<compile_context>
chip_gen: v5e
topology: v5e:2x2
jax: 0.10.0
libtpu: 0.0.40
codegen_flags: <defaults>
</compile_context>

<pallas_src>
import numpy as np
import jax
import jax.numpy as jnp
from jax.experimental import pallas as pl
from jax.experimental.pallas import tpu as pltpu

TAU = 1.5
V_TH = 1.0
BN_EPS = 1e-5


def _round_up(x, m):
    return ((x + m - 1) // m) * m


def _cdiv(a, b):
    return (a + b - 1) // b


# ---------------------------------------------------------------------------
# Pallas kernels
# ---------------------------------------------------------------------------

def _make_conv_kernel(K):
    """K-tap matmul + fused BN affine.  refs = (a_0..a_{K-1}, w, scale, bias, out)."""
    def kernel(*refs):
        a_refs = refs[:K]
        w_ref, s_ref, b_ref, o_ref = refs[K], refs[K + 1], refs[K + 2], refs[K + 3]
        acc = jnp.dot(a_refs[0][...], w_ref[0], preferred_element_type=jnp.float32)
        for k in range(1, K):
            acc = acc + jnp.dot(a_refs[k][...], w_ref[k],
                                preferred_element_type=jnp.float32)
        o_ref[...] = acc * s_ref[...] + b_ref[...]
    return kernel


def conv_taps_matmul(taps, wk, scale_g, bias_g):
    """out[r, :] = sum_k taps[k][r, :] @ wk[k]   (grouped, lane-dense layout) + fused affine."""
    K = len(taps)
    Mg, Kg = taps[0].shape
    Ng = wk.shape[-1]
    tm = Mg if Mg <= 512 else 512
    grid = (_cdiv(Mg, tm),)
    in_specs = [pl.BlockSpec((tm, Kg), lambda i: (i, 0)) for _ in range(K)]
    in_specs += [
        pl.BlockSpec((K, Kg, Ng), lambda i: (0, 0, 0)),
        pl.BlockSpec((1, Ng), lambda i: (0, 0)),
        pl.BlockSpec((1, Ng), lambda i: (0, 0)),
    ]
    return pl.pallas_call(
        _make_conv_kernel(K),
        out_shape=jax.ShapeDtypeStruct((Mg, Ng), jnp.float32),
        grid_spec=pltpu.PrefetchScalarGridSpec(
            num_scalar_prefetch=0,
            grid=grid,
            in_specs=in_specs,
            out_specs=pl.BlockSpec((tm, Ng), lambda i: (i, 0)),
        ),
        compiler_params=pltpu.CompilerParams(dimension_semantics=("parallel",)),
    )(*taps, wk, scale_g, bias_g)


def _make_lif_kernel(T_in, T_steps, reduce_mean):
    inv_tau = 1.0 / TAU

    def kernel(x_ref, o_ref):
        shape = x_ref.shape[1:]                     # (S, 128) dense vreg tiles
        v = jnp.zeros(shape, jnp.float32)
        acc = jnp.zeros(shape, jnp.float32) if reduce_mean else None
        for t in range(T_steps):                    # T is small & static
            xt = x_ref[t] if T_in == T_steps else x_ref[0]
            h = v + (xt - v) * inv_tau
            s = (h >= V_TH).astype(jnp.float32)
            v = h * (1.0 - s)                       # hard reset to 0
            if reduce_mean:
                acc = acc + s
            else:
                o_ref[t] = s
        if reduce_mean:
            o_ref[0] = acc * (1.0 / T_steps)

    return kernel


def lif_op(x, T_steps=None, reduce_mean=False):
    """Multi-step LIF.  x: (T_in, ...) with T_in in {1, T_steps}.
    T_in == 1 with T_steps > 1 means 'constant input over time' (never expanded in HBM).
    reduce_mean=True returns the mean of the spikes over time -> (1, ...)."""
    T_in = x.shape[0]
    if T_steps is None:
        T_steps = T_in
    feat = x.shape[1:]
    M = int(np.prod(feat))
    Mp = _round_up(M, 128)
    xf = x.reshape(T_in, M).astype(jnp.float32)
    if Mp != M:                                     # not hit for typical shapes
        xf = jnp.pad(xf, ((0, 0), (0, Mp - M)))
    R = Mp // 128
    x3 = xf.reshape(T_in, R, 128)
    S = R if R <= 1024 else 512
    grid = (_cdiv(R, S),)
    T_out = 1 if reduce_mean else T_steps
    out = pl.pallas_call(
        _make_lif_kernel(T_in, T_steps, reduce_mean),
        out_shape=jax.ShapeDtypeStruct((T_out, R, 128), jnp.float32),
        grid_spec=pltpu.PrefetchScalarGridSpec(
            num_scalar_prefetch=0,
            grid=grid,
            in_specs=[pl.BlockSpec((T_in, S, 128), lambda i: (0, i, 0))],
            out_specs=pl.BlockSpec((T_out, S, 128), lambda i: (0, i, 0)),
        ),
        compiler_params=pltpu.CompilerParams(dimension_semantics=("parallel",)),
    )(x3)
    out = out.reshape(T_out, Mp)
    if Mp != M:
        out = out[:, :M]
    return out.reshape((T_out,) + feat)


def _make_max_kernel(K):
    def kernel(*refs):
        o_ref = refs[K]
        m = refs[0][...]
        for k in range(1, K):
            m = jnp.maximum(m, refs[k][...])
        o_ref[...] = m
    return kernel


def window_max(views):
    """Elementwise max over K dense (R, 128) views (max-pool window reduce)."""
    K = len(views)
    R = views[0].shape[0]
    S = R if R <= 1024 else 512
    grid = (_cdiv(R, S),)
    in_specs = [pl.BlockSpec((S, 128), lambda i: (i, 0)) for _ in range(K)]
    return pl.pallas_call(
        _make_max_kernel(K),
        out_shape=jax.ShapeDtypeStruct((R, 128), jnp.float32),
        grid_spec=pltpu.PrefetchScalarGridSpec(
            num_scalar_prefetch=0, grid=grid, in_specs=in_specs,
            out_specs=pl.BlockSpec((S, 128), lambda i: (i, 0)),
        ),
        compiler_params=pltpu.CompilerParams(dimension_semantics=("parallel",)),
    )(*views)


def _fc_kernel(x_ref, w_ref, b_ref, o_ref):
    o_ref[...] = (jnp.dot(x_ref[...], w_ref[...], preferred_element_type=jnp.float32)
                  + b_ref[...])


def fc_matmul(x, w, b):
    """Tiny fully-connected head: (N, K) @ (K, C) + b."""
    N, K = x.shape
    C = w.shape[1]
    return pl.pallas_call(
        _fc_kernel,
        out_shape=jax.ShapeDtypeStruct((N, C), jnp.float32),
        grid=(1,),
        in_specs=[pl.BlockSpec((N, K), lambda i: (0, 0)),
                  pl.BlockSpec((K, C), lambda i: (0, 0)),
                  pl.BlockSpec((1, C), lambda i: (0, 0))],
        out_specs=pl.BlockSpec((N, C), lambda i: (0, 0)),
    )(x, w, b.reshape(1, C))


# ---------------------------------------------------------------------------
# Conv / pooling wrappers (tap extraction is thin plain-JAX glue, fused by XLA)
# ---------------------------------------------------------------------------

def conv_bn(x, p):
    """Conv2d (no bias) + folded eval-mode BatchNorm.  x: (B, H, W, Cin) -> (B, OH, OW, Cout)."""
    B, H, W, Cin = x.shape
    KH, KW, stride, pad = p["kh"], p["kw"], p["stride"], p["pad"]
    G, Cout = p["G"], p["cout"]
    OH = (H + 2 * pad - KH) // stride + 1
    OW = (W + 2 * pad - KW) // stride + 1
    xp = jnp.pad(x, ((0, 0), (pad, pad), (pad, pad), (0, 0))) if pad else x
    M = B * OH * OW
    Mr = _round_up(M, G)                 # G-grouping row padding (no-op for typical shapes)
    taps = []
    for i in range(KH):
        for j in range(KW):
            v = jax.lax.slice(
                xp, (0, i, j, 0),
                (B, i + (OH - 1) * stride + 1, j + (OW - 1) * stride + 1, Cin),
                (1, stride, stride, 1),
            ).reshape(M, Cin)
            if Mr != M:
                v = jnp.pad(v, ((0, Mr - M), (0, 0)))
            taps.append(v.astype(jnp.bfloat16).reshape(Mr // G, G * Cin))
    out = conv_taps_matmul(taps, p["wk"], p["scale_g"], p["bias_g"])   # (Mr//G, G*Cout)
    out = out.reshape(Mr, Cout)
    if Mr != M:
        out = out[:M]
    return out.reshape(B, OH, OW, Cout)


def seq_conv_bn(x, p):
    """SeqToANNContainer(conv, BN): per (T*N) frame.  x: (T, N, H, W, C)."""
    Tt, Nn, H, W, C = x.shape
    out = conv_bn(x.reshape(Tt * Nn, H, W, C), p)
    _, OH, OW, Cout = out.shape
    return out.reshape(Tt, Nn, OH, OW, Cout)


def maxpool3x3s2(x):
    """MaxPool2d(kernel=3, stride=2, padding=1) per frame.  x: (T, N, H, W, C)."""
    Tt, Nn, H, W, C = x.shape
    B = Tt * Nn
    xb = x.reshape(B, H, W, C)
    xp = jnp.pad(xb, ((0, 0), (1, 1), (1, 1), (0, 0)), constant_values=-jnp.inf)
    OH = (H + 2 - 3) // 2 + 1
    OW = (W + 2 - 3) // 2 + 1
    M = B * OH * OW * C
    Mp = _round_up(M, 128)
    views = []
    for i in range(3):
        for j in range(3):
            v = jax.lax.slice(
                xp, (0, i, j, 0),
                (B, i + (OH - 1) * 2 + 1, j + (OW - 1) * 2 + 1, C),
                (1, 2, 2, 1),
            ).reshape(M)
            if Mp != M:
                v = jnp.pad(v, (0, Mp - M), constant_values=-jnp.inf)
            views.append(v.reshape(Mp // 128, 128))
    out = window_max(views).reshape(Mp)
    if Mp != M:
        out = out[:M]
    return out.reshape(Tt, Nn, OH, OW, C)


# ---------------------------------------------------------------------------
# Residual blocks
# ---------------------------------------------------------------------------

def basic_block(x, p, T_model):
    """BasicBlock: out = convBN(LIF(x)); out = convBN(LIF(out)); out + identity."""
    T_ = T_model if x.shape[0] == 1 else x.shape[0]
    identity = x
    s1 = lif_op(x, T_steps=T_)                    # hoisted: reused by conv1 and downsample
    out = seq_conv_bn(s1, p["conv1"])
    out = seq_conv_bn(lif_op(out), p["conv2"])
    if p["ds"] is not None:
        # downsample_module: ConvBN( LIF(x).mean(0, keepdim=True) )  (same LIF output as s1)
        identity = seq_conv_bn(jnp.mean(s1, axis=0, keepdims=True), p["ds"])
    return out + identity                          # broadcasts over T when identity has leading 1


def basic_block_qs(x, p, T_model):
    """BasicBlock_qs: time-quantized variant (means over T between stages)."""
    T_real = T_model if x.shape[0] == 1 else x.shape[0]
    T_ = T_real if not p["T_c"] else p["T_c"]
    sm = lif_op(x, T_steps=T_real, reduce_mean=True)        # hoisted mean-of-spikes, (1, ...)
    out = seq_conv_bn(sm, p["conv1"])
    # sn2 over T_ identical frames, mean over T_: constant-input fused LIF (no HBM expand)
    out = seq_conv_bn(lif_op(out, T_steps=T_, reduce_mean=True), p["conv2"])
    if p["ds"] is not None:
        identity = seq_conv_bn(sm, p["ds"])
        res = (jnp.broadcast_to(out, (T_,) + out.shape[1:]) +
               jnp.broadcast_to(identity, (T_,) + identity.shape[1:]))
    else:
        idm = jnp.mean(x, axis=0, keepdims=True)
        res = (jnp.broadcast_to(out, (T_,) + out.shape[1:]) +
               jnp.broadcast_to(idm, (T_,) + idm.shape[1:]))
    return res


# ---------------------------------------------------------------------------
# Parameter construction (deterministic, mirrors MSResNet_qs.__init__)
# ---------------------------------------------------------------------------

def _init_conv_bn(key, kh, kw, cin, cout, stride, pad):
    fan_out = kh * kw * cout                      # kaiming_normal_(mode='fan_out', relu)
    w = jax.random.normal(key, (kh, kw, cin, cout), jnp.float32) * np.sqrt(2.0 / fan_out)
    gamma = jnp.ones((cout,), jnp.float32)
    beta = jnp.zeros((cout,), jnp.float32)
    rmean = jnp.zeros((cout,), jnp.float32)
    rvar = jnp.ones((cout,), jnp.float32)
    scale = gamma / jnp.sqrt(rvar + BN_EPS)
    bias = beta - rmean * scale
    # Row-grouping factor so that the kernel's output minor dim is a full 128 lanes.
    G = 128 // cout if (cout <= 128 and 128 % cout == 0) else 1
    eye = jnp.eye(G, dtype=jnp.float32)
    wk = jnp.stack([jnp.kron(eye, w[i, j]) for i in range(kh) for j in range(kw)], axis=0)
    return {
        "wk": wk.astype(jnp.bfloat16),                       # (KH*KW, G*cin, G*cout) block-diag
        "scale_g": jnp.tile(scale, G).reshape(1, G * cout),
        "bias_g": jnp.tile(bias, G).reshape(1, G * cout),
        "kh": kh, "kw": kw, "stride": stride, "pad": pad,
        "cin": cin, "cout": cout, "G": G,
    }


def build_params(key, layers=(1, 1, 1), num_classes=10, T=4,
                 T_c_config=(None, None, None, None)):
    keys = list(jax.random.split(key, 64))
    kit = iter(keys)
    params = {}
    inplanes = 16
    params["conv1"] = _init_conv_bn(next(kit), 3, 3, 2, inplanes, stride=2, pad=1)

    def make_layer(planes, blocks, stride, T_c):
        nonlocal inplanes
        use_qs = not (T_c is None or T_c == 0)
        out_blocks = []
        for b in range(blocks):
            s = stride if b == 0 else 1
            blk = {
                "qs": use_qs,
                "T_c": T_c,
                "conv1": _init_conv_bn(next(kit), 3, 3, inplanes, planes, stride=s, pad=1),
                "conv2": _init_conv_bn(next(kit), 3, 3, planes, planes, stride=1, pad=1),
                "ds": None,
            }
            if b == 0 and (stride != 1 or inplanes != planes):
                blk["ds"] = _init_conv_bn(next(kit), 1, 1, inplanes, planes, stride=s, pad=0)
            out_blocks.append(blk)
            inplanes = planes
        return out_blocks

    params["layer1"] = make_layer(16, layers[0], 1, T_c_config[0])
    params["layer2"] = make_layer(32, layers[1], 2, T_c_config[1])
    params["layer3"] = make_layer(64, layers[2], 2, T_c_config[2])

    bound = 1.0 / np.sqrt(64.0)
    kw_, kb_ = jax.random.split(next(kit))
    params["fc_w"] = jax.random.uniform(kw_, (64, num_classes), jnp.float32, -bound, bound)
    params["fc_b"] = jax.random.uniform(kb_, (num_classes,), jnp.float32, -bound, bound)
    return params


# ---------------------------------------------------------------------------
# Full forward (MSResNet_qs._forward_impl)
# ---------------------------------------------------------------------------

def ms_resnet_qs_forward(params, x):
    # x: (N, T, 2, H, W), PyTorch NCHW per frame.
    T = x.shape[1]
    x = jnp.transpose(x, (1, 0, 3, 4, 2))            # (T, N, H, W, C), channels-last
    xm = jnp.mean(x, axis=0, keepdims=True)          # x.mean(0, keepdim=True)

    # The reference broadcasts the mean over T, so all T stem frames are identical ->
    # compute conv1 + bn1 + maxpool on the single mean frame (exact, T x less work).
    h = seq_conv_bn(xm, params["conv1"])
    h = maxpool3x3s2(h)                               # (1, N, H/4, W/4, 16), logically T frames

    for blk in params["layer1"] + params["layer2"] + params["layer3"]:
        h = basic_block_qs(h, blk, T) if blk["qs"] else basic_block(h, blk, T)

    # Head: sn1 -> avgpool -> flatten -> fc -> mean over T.
    # mean over T commutes with the affine fc and the avg-pool, so fold it into the LIF kernel.
    spk_mean = lif_op(h, T_steps=h.shape[0], reduce_mean=True)[0]    # (N, H', W', 64)
    Nn, Hh, Ww, Cc = spk_mean.shape
    pooled = jnp.mean(spk_mean.reshape(Nn, Hh * Ww, Cc), axis=1)     # AdaptiveAvgPool2d((1,1))
    logits = fc_matmul(pooled, params["fc_w"], params["fc_b"])       # (N, num_classes)
    return logits


if __name__ == "__main__":
    key = jax.random.PRNGKey(0)
    kx, kp = jax.random.split(key)

    N, T, C, H, W = 2, 4, 2, 32, 32
    x = jax.random.normal(kx, (N, T, C, H, W), jnp.float32)

    # layers=[1,1,1]; layer2 uses BasicBlock_qs (T_c=T), layer1/layer3 use BasicBlock.
    params = build_params(kp, layers=(1, 1, 1), num_classes=10, T=T,
                          T_c_config=(None, T, None, None))

    fwd = jax.jit(lambda inp: ms_resnet_qs_forward(params, inp))
    out = jax.block_until_ready(fwd(x))
    assert out.shape == (N, 10) and out.dtype == jnp.float32
    print("KERNEL_OK")
</pallas_src>

<mosaic_0001>
module attributes {stable_mosaic.version = 11 : i64} {
  func.func @kernel(%arg0: i32, %arg1: memref<64x16xbf16, #tpu.memory_space<vmem>>, %arg2: memref<64x16xbf16, #tpu.memory_space<vmem>>, %arg3: memref<64x16xbf16, #tpu.memory_space<vmem>>, %arg4: memref<64x16xbf16, #tpu.memory_space<vmem>>, %arg5: memref<64x16xbf16, #tpu.memory_space<vmem>>, %arg6: memref<64x16xbf16, #tpu.memory_space<vmem>>, %arg7: memref<64x16xbf16, #tpu.memory_space<vmem>>, %arg8: memref<64x16xbf16, #tpu.memory_space<vmem>>, %arg9: memref<64x16xbf16, #tpu.memory_space<vmem>>, %arg10: memref<9x16x128xbf16, #tpu.memory_space<vmem>>, %arg11: memref<1x128xf32, #tpu.memory_space<vmem>>, %arg12: memref<1x128xf32, #tpu.memory_space<vmem>>, %arg13: memref<64x128xf32, #tpu.memory_space<vmem>>) attributes {dimension_semantics = [#tpu.dimension_semantics<parallel>], iteration_bounds = array<i64: 1>, scalar_prefetch = 0 : i64, scratch_operands = 0 : i64, tpu.core_type = #tpu.core_type<tc>, window_params = [{transform_indices = @transform_0, window_bounds = array<i64: 64, 16>}, {transform_indices = @transform_1, window_bounds = array<i64: 64, 16>}, {transform_indices = @transform_2, window_bounds = array<i64: 64, 16>}, {transform_indices = @transform_3, window_bounds = array<i64: 64, 16>}, {transform_indices = @transform_4, window_bounds = array<i64: 64, 16>}, {transform_indices = @transform_5, window_bounds = array<i64: 64, 16>}, {transform_indices = @transform_6, window_bounds = array<i64: 64, 16>}, {transform_indices = @transform_7, window_bounds = array<i64: 64, 16>}, {transform_indices = @transform_8, window_bounds = array<i64: 64, 16>}, {pipeline_mode = #tpu.pipeline_mode<synchronous>, transform_indices = @transform_9, window_bounds = array<i64: 9, 16, 128>}, {pipeline_mode = #tpu.pipeline_mode<synchronous>, transform_indices = @transform_10, window_bounds = array<i64: 1, 128>}, {pipeline_mode = #tpu.pipeline_mode<synchronous>, transform_indices = @transform_11, window_bounds = array<i64: 1, 128>}, {transform_indices = @transform_12, window_bounds = array<i64: 64, 128>}]} {
    %c0 = arith.constant 0 : index
    %c0_0 = arith.constant 0 : index
    %0 = vector.load %arg1[%c0, %c0_0] : memref<64x16xbf16, #tpu.memory_space<vmem>>, vector<64x16xbf16>
    %c0_1 = arith.constant 0 : index
    %c0_2 = arith.constant 0 : index
    %c0_3 = arith.constant 0 : index
    %1 = vector.load %arg10[%c0_1, %c0_2, %c0_3] : memref<9x16x128xbf16, #tpu.memory_space<vmem>>, vector<1x16x128xbf16>
    %2 = vector.shape_cast %1 : vector<1x16x128xbf16> to vector<16x128xbf16>
    %cst = arith.constant dense<0.000000e+00> : vector<64x128xf32>
    %3 = tpu.matmul %0, %2, %cst {dimension_numbers = #tpu.dot_dimension_numbers<[1], [0], [0], [1], [0, 0, 1, 1], [], []>} : vector<64x16xbf16>, vector<16x128xbf16>, vector<64x128xf32> -> vector<64x128xf32>
    %c0_4 = arith.constant 0 : index
    %c0_5 = arith.constant 0 : index
    %4 = vector.load %arg2[%c0_4, %c0_5] : memref<64x16xbf16, #tpu.memory_space<vmem>>, vector<64x16xbf16>
    %c1 = arith.constant 1 : index
    %c0_6 = arith.constant 0 : index
    %c0_7 = arith.constant 0 : index
    %5 = vector.load %arg10[%c1, %c0_6, %c0_7] : memref<9x16x128xbf16, #tpu.memory_space<vmem>>, vector<1x16x128xbf16>
    %6 = vector.shape_cast %5 : vector<1x16x128xbf16> to vector<16x128xbf16>
    %cst_8 = arith.constant dense<0.000000e+00> : vector<64x128xf32>
    %7 = tpu.matmul %4, %6, %cst_8 {dimension_numbers = #tpu.dot_dimension_numbers<[1], [0], [0], [1], [0, 0, 1, 1], [], []>} : vector<64x16xbf16>, vector<16x128xbf16>, vector<64x128xf32> -> vector<64x128xf32>
    %8 = arith.addf %3, %7 : vector<64x128xf32>
    %c0_9 = arith.constant 0 : index
    %c0_10 = arith.constant 0 : index
    %9 = vector.load %arg3[%c0_9, %c0_10] : memref<64x16xbf16, #tpu.memory_space<vmem>>, vector<64x16xbf16>
    %c2 = arith.constant 2 : index
    %c0_11 = arith.constant 0 : index
    %c0_12 = arith.constant 0 : index
    %10 = vector.load %arg10[%c2, %c0_11, %c0_12] : memref<9x16x128xbf16, #tpu.memory_space<vmem>>, vector<1x16x128xbf16>
    %11 = vector.shape_cast %10 : vector<1x16x128xbf16> to vector<16x128xbf16>
    %cst_13 = arith.constant dense<0.000000e+00> : vector<64x128xf32>
    %12 = tpu.matmul %9, %11, %cst_13 {dimension_numbers = #tpu.dot_dimension_numbers<[1], [0], [0], [1], [0, 0, 1, 1], [], []>} : vector<64x16xbf16>, vector<16x128xbf16>, vector<64x128xf32> -> vector<64x128xf32>
    %13 = arith.addf %8, %12 : vector<64x128xf32>
    %c0_14 = arith.constant 0 : index
    %c0_15 = arith.constant 0 : index
    %14 = vector.load %arg4[%c0_14, %c0_15] : memref<64x16xbf16, #tpu.memory_space<vmem>>, vector<64x16xbf16>
    %c3 = arith.constant 3 : index
    %c0_16 = arith.constant 0 : index
    %c0_17 = arith.constant 0 : index
    %15 = vector.load %arg10[%c3, %c0_16, %c0_17] : memref<9x16x128xbf16, #tpu.memory_space<vmem>>, vector<1x16x128xbf16>
    %16 = vector.shape_cast %15 : vector<1x16x128xbf16> to vector<16x128xbf16>
    %cst_18 = arith.constant dense<0.000000e+00> : vector<64x128xf32>
    %17 = tpu.matmul %14, %16, %cst_18 {dimension_numbers = #tpu.dot_dimension_numbers<[1], [0], [0], [1], [0, 0, 1, 1], [], []>} : vector<64x16xbf16>, vector<16x128xbf16>, vector<64x128xf32> -> vector<64x128xf32>
    %18 = arith.addf %13, %17 : vector<64x128xf32>
    %c0_19 = arith.constant 0 : index
    %c0_20 = arith.constant 0 : index
    %19 = vector.load %arg5[%c0_19, %c0_20] : memref<64x16xbf16, #tpu.memory_space<vmem>>, vector<64x16xbf16>
    %c4 = arith.constant 4 : index
    %c0_21 = arith.constant 0 : index
    %c0_22 = arith.constant 0 : index
    %20 = vector.load %arg10[%c4, %c0_21, %c0_22] : memref<9x16x128xbf16, #tpu.memory_space<vmem>>, vector<1x16x128xbf16>
    %21 = vector.shape_cast %20 : vector<1x16x128xbf16> to vector<16x128xbf16>
    %cst_23 = arith.constant dense<0.000000e+00> : vector<64x128xf32>
    %22 = tpu.matmul %19, %21, %cst_23 {dimension_numbers = #tpu.dot_dimension_numbers<[1], [0], [0], [1], [0, 0, 1, 1], [], []>} : vector<64x16xbf16>, vector<16x128xbf16>, vector<64x128xf32> -> vector<64x128xf32>
    %23 = arith.addf %18, %22 : vector<64x128xf32>
    %c0_24 = arith.constant 0 : index
    %c0_25 = arith.constant 0 : index
    %24 = vector.load %arg6[%c0_24, %c0_25] : memref<64x16xbf16, #tpu.memory_space<vmem>>, vector<64x16xbf16>
    %c5 = arith.constant 5 : index
    %c0_26 = arith.constant 0 : index
    %c0_27 = arith.constant 0 : index
    %25 = vector.load %arg10[%c5, %c0_26, %c0_27] : memref<9x16x128xbf16, #tpu.memory_space<vmem>>, vector<1x16x128xbf16>
    %26 = vector.shape_cast %25 : vector<1x16x128xbf16> to vector<16x128xbf16>
    %cst_28 = arith.constant dense<0.000000e+00> : vector<64x128xf32>
    %27 = tpu.matmul %24, %26, %cst_28 {dimension_numbers = #tpu.dot_dimension_numbers<[1], [0], [0], [1], [0, 0, 1, 1], [], []>} : vector<64x16xbf16>, vector<16x128xbf16>, vector<64x128xf32> -> vector<64x128xf32>
    %28 = arith.addf %23, %27 : vector<64x128xf32>
    %c0_29 = arith.constant 0 : index
    %c0_30 = arith.constant 0 : index
    %29 = vector.load %arg7[%c0_29, %c0_30] : memref<64x16xbf16, #tpu.memory_space<vmem>>, vector<64x16xbf16>
    %c6 = arith.constant 6 : index
    %c0_31 = arith.constant 0 : index
    %c0_32 = arith.constant 0 : index
    %30 = vector.load %arg10[%c6, %c0_31, %c0_32] : memref<9x16x128xbf16, #tpu.memory_space<vmem>>, vector<1x16x128xbf16>
    %31 = vector.shape_cast %30 : vector<1x16x128xbf16> to vector<16x128xbf16>
    %cst_33 = arith.constant dense<0.000000e+00> : vector<64x128xf32>
    %32 = tpu.matmul %29, %31, %cst_33 {dimension_numbers = #tpu.dot_dimension_numbers<[1], [0], [0], [1], [0, 0, 1, 1], [], []>} : vector<64x16xbf16>, vector<16x128xbf16>, vector<64x128xf32> -> vector<64x128xf32>
    %33 = arith.addf %28, %32 : vector<64x128xf32>
    %c0_34 = arith.constant 0 : index
    %c0_35 = arith.constant 0 : index
    %34 = vector.load %arg8[%c0_34, %c0_35] : memref<64x16xbf16, #tpu.memory_space<vmem>>, vector<64x16xbf16>
    %c7 = arith.constant 7 : index
    %c0_36 = arith.constant 0 : index
    %c0_37 = arith.constant 0 : index
    %35 = vector.load %arg10[%c7, %c0_36, %c0_37] : memref<9x16x128xbf16, #tpu.memory_space<vmem>>, vector<1x16x128xbf16>
    %36 = vector.shape_cast %35 : vector<1x16x128xbf16> to vector<16x128xbf16>
    %cst_38 = arith.constant dense<0.000000e+00> : vector<64x128xf32>
    %37 = tpu.matmul %34, %36, %cst_38 {dimension_numbers = #tpu.dot_dimension_numbers<[1], [0], [0], [1], [0, 0, 1, 1], [], []>} : vector<64x16xbf16>, vector<16x128xbf16>, vector<64x128xf32> -> vector<64x128xf32>
    %38 = arith.addf %33, %37 : vector<64x128xf32>
    %c0_39 = arith.constant 0 : index
    %c0_40 = arith.constant 0 : index
    %39 = vector.load %arg9[%c0_39, %c0_40] : memref<64x16xbf16, #tpu.memory_space<vmem>>, vector<64x16xbf16>
    %c8 = arith.constant 8 : index
    %c0_41 = arith.constant 0 : index
    %c0_42 = arith.constant 0 : index
    %40 = vector.load %arg10[%c8, %c0_41, %c0_42] : memref<9x16x128xbf16, #tpu.memory_space<vmem>>, vector<1x16x128xbf16>
    %41 = vector.shape_cast %40 : vector<1x16x128xbf16> to vector<16x128xbf16>
    %cst_43 = arith.constant dense<0.000000e+00> : vector<64x128xf32>
    %42 = tpu.matmul %39, %41, %cst_43 {dimension_numbers = #tpu.dot_dimension_numbers<[1], [0], [0], [1], [0, 0, 1, 1], [], []>} : vector<64x16xbf16>, vector<16x128xbf16>, vector<64x128xf32> -> vector<64x128xf32>
    %43 = arith.addf %38, %42 : vector<64x128xf32>
    %c0_44 = arith.constant 0 : index
    %c0_45 = arith.constant 0 : index
    %44 = vector.load %arg11[%c0_44, %c0_45] : memref<1x128xf32, #tpu.memory_space<vmem>>, vector<1x128xf32>
    %45 = vector.broadcast %44 : vector<1x128xf32> to vector<64x128xf32>
    %46 = arith.mulf %43, %45 : vector<64x128xf32>
    %c0_46 = arith.constant 0 : index
    %c0_47 = arith.constant 0 : index
    %47 = vector.load %arg12[%c0_46, %c0_47] : memref<1x128xf32, #tpu.memory_space<vmem>>, vector<1x128xf32>
    %48 = vector.broadcast %47 : vector<1x128xf32> to vector<64x128xf32>
    %49 = arith.addf %46, %48 : vector<64x128xf32>
    %c0_48 = arith.constant 0 : index
    %c0_49 = arith.constant 0 : index
    %50 = vector.load %arg13[%c0_48, %c0_49] : memref<64x128xf32, #tpu.memory_space<vmem>>, vector<64x128xf32>
    tpu.vector_store %arg13[%c0_48, %c0_49], %49 {strides = array<i32>} : memref<64x128xf32, #tpu.memory_space<vmem>>, vector<64x128xf32>,
    return
  }
  func.func @transform_0(%arg0: i32) -> (i32, i32) {
    %c0_i32 = arith.constant 0 : i32
    %c0_i32_0 = arith.constant 0 : i32
    return %arg0, %c0_i32 : i32, i32
  }
  func.func @transform_1(%arg0: i32) -> (i32, i32) {
    %c0_i32 = arith.constant 0 : i32
    %c0_i32_0 = arith.constant 0 : i32
    return %arg0, %c0_i32 : i32, i32
  }
  func.func @transform_2(%arg0: i32) -> (i32, i32) {
    %c0_i32 = arith.constant 0 : i32
    %c0_i32_0 = arith.constant 0 : i32
    return %arg0, %c0_i32 : i32, i32
  }
  func.func @transform_3(%arg0: i32) -> (i32, i32) {
    %c0_i32 = arith.constant 0 : i32
    %c0_i32_0 = arith.constant 0 : i32
    return %arg0, %c0_i32 : i32, i32
  }
  func.func @transform_4(%arg0: i32) -> (i32, i32) {
    %c0_i32 = arith.constant 0 : i32
    %c0_i32_0 = arith.constant 0 : i32
    return %arg0, %c0_i32 : i32, i32
  }
  func.func @transform_5(%arg0: i32) -> (i32, i32) {
    %c0_i32 = arith.constant 0 : i32
    %c0_i32_0 = arith.constant 0 : i32
    return %arg0, %c0_i32 : i32, i32
  }
  func.func @transform_6(%arg0: i32) -> (i32, i32) {
    %c0_i32 = arith.constant 0 : i32
    %c0_i32_0 = arith.constant 0 : i32
    return %arg0, %c0_i32 : i32, i32
  }
  func.func @transform_7(%arg0: i32) -> (i32, i32) {
    %c0_i32 = arith.constant 0 : i32
    %c0_i32_0 = arith.constant 0 : i32
    return %arg0, %c0_i32 : i32, i32
  }
  func.func @transform_8(%arg0: i32) -> (i32, i32) {
    %c0_i32 = arith.constant 0 : i32
    %c0_i32_0 = arith.constant 0 : i32
    return %arg0, %c0_i32 : i32, i32
  }
  func.func @transform_9(%arg0: i32) -> (i32, i32, i32) {
    %c0_i32 = arith.constant 0 : i32
    %c0_i32_0 = arith.constant 0 : i32
    %c0_i32_1 = arith.constant 0 : i32
    %c0_i32_2 = arith.constant 0 : i32
    return %c0_i32, %c0_i32_0, %c0_i32_1 : i32, i32, i32
  }
  func.func @transform_10(%arg0: i32) -> (i32, i32) {
    %c0_i32 = arith.constant 0 : i32
    %c0_i32_0 = arith.constant 0 : i32
    %c0_i32_1 = arith.constant 0 : i32
    return %c0_i32, %c0_i32_0 : i32, i32
  }
  func.func @transform_11(%arg0: i32) -> (i32, i32) {
    %c0_i32 = arith.constant 0 : i32
    %c0_i32_0 = arith.constant 0 : i32
    %c0_i32_1 = arith.constant 0 : i32
    return %c0_i32, %c0_i32_0 : i32, i32
  }
  func.func @transform_12(%arg0: i32) -> (i32, i32) {
    %c0_i32 = arith.constant 0 : i32
    %c0_i32_0 = arith.constant 0 : i32
    return %arg0, %c0_i32 : i32, i32
  }
}

module attributes {stable_mosaic.version = 11 : i64} {
  func.func @kernel(%arg0: i32, %arg1: memref<1x16x128xf32, #tpu.memory_space<vmem>>, %arg2: memref<4x16x128xf32, #tpu.memory_space<vmem>>) attributes {dimension_semantics = [#tpu.dimension_semantics<parallel>], iteration_bounds = array<i64: 1>, scalar_prefetch = 0 : i64, scratch_operands = 0 : i64, tpu.core_type = #tpu.core_type<tc>, window_params = [{transform_indices = @transform_0, window_bounds = array<i64: 1, 16, 128>}, {transform_indices = @transform_1, window_bounds = array<i64: 4, 16, 128>}]} {
    %cst = arith.constant 0.000000e+00 : f32
    %0 = vector.broadcast %cst : f32 to vector<16x128xf32>
    %c0 = arith.constant 0 : index
    %c0_0 = arith.constant 0 : index
    %c0_1 = arith.constant 0 : index
    %1 = vector.load %arg1[%c0, %c0_0, %c0_1] : memref<1x16x128xf32, #tpu.memory_space<vmem>>, vector<1x16x128xf32>
    %2 = vector.shape_cast %1 : vector<1x16x128xf32> to vector<16x128xf32>
    %3 = arith.subf %2, %0 : vector<16x128xf32>
    %cst_2 = arith.constant 0.666666686 : f32
    %4 = vector.broadcast %cst_2 : f32 to vector<16x128xf32>
    %5 = arith.mulf %3, %4 : vector<16x128xf32>
    %6 = arith.addf %0, %5 : vector<16x128xf32>
    %cst_3 = arith.constant 1.000000e+00 : f32
    %7 = vector.broadcast %cst_3 : f32 to vector<16x128xf32>
    %8 = arith.cmpf oge, %6, %7 : vector<16x128xf32>
    %9 = arith.extui %8 : vector<16x128xi1> to vector<16x128xi32>
    %10 = arith.sitofp %9 : vector<16x128xi32> to vector<16x128xf32>
    %cst_4 = arith.constant 1.000000e+00 : f32
    %11 = vector.broadcast %cst_4 : f32 to vector<16x128xf32>
    %12 = arith.subf %11, %10 : vector<16x128xf32>
    %13 = arith.mulf %6, %12 : vector<16x128xf32>
    %c0_5 = arith.constant 0 : index
    %c0_6 = arith.constant 0 : index
    %c0_7 = arith.constant 0 : index
    %14 = vector.load %arg2[%c0_5, %c0_6, %c0_7] : memref<4x16x128xf32, #tpu.memory_space<vmem>>, vector<1x16x128xf32>
    %15 = vector.shape_cast %14 : vector<1x16x128xf32> to vector<16x128xf32>
    %16 = vector.shape_cast %10 : vector<16x128xf32> to vector<1x16x128xf32>
    tpu.vector_store %arg2[%c0_5, %c0_6, %c0_7], %16 {strides = array<i32>} : memref<4x16x128xf32, #tpu.memory_space<vmem>>, vector<1x16x128xf32>,
    %c0_8 = arith.constant 0 : index
    %c0_9 = arith.constant 0 : index
    %c0_10 = arith.constant 0 : index
    %17 = vector.load %arg1[%c0_8, %c0_9, %c0_10] : memref<1x16x128xf32, #tpu.memory_space<vmem>>, vector<1x16x128xf32>
    %18 = vector.shape_cast %17 : vector<1x16x128xf32> to vector<16x128xf32>
    %19 = arith.subf %18, %13 : vector<16x128xf32>
    %cst_11 = arith.constant 0.666666686 : f32
    %20 = vector.broadcast %cst_11 : f32 to vector<16x128xf32>
    %21 = arith.mulf %19, %20 : vector<16x128xf32>
    %22 = arith.addf %13, %21 : vector<16x128xf32>
    %cst_12 = arith.constant 1.000000e+00 : f32
    %23 = vector.broadcast %cst_12 : f32 to vector<16x128xf32>
    %24 = arith.cmpf oge, %22, %23 : vector<16x128xf32>
    %25 = arith.extui %24 : vector<16x128xi1> to vector<16x128xi32>
    %26 = arith.sitofp %25 : vector<16x128xi32> to vector<16x128xf32>
    %cst_13 = arith.constant 1.000000e+00 : f32
    %27 = vector.broadcast %cst_13 : f32 to vector<16x128xf32>
    %28 = arith.subf %27, %26 : vector<16x128xf32>
    %29 = arith.mulf %22, %28 : vector<16x128xf32>
    %c1 = arith.constant 1 : index
    %c0_14 = arith.constant 0 : index
    %c0_15 = arith.constant 0 : index
    %30 = vector.load %arg2[%c1, %c0_14, %c0_15] : memref<4x16x128xf32, #tpu.memory_space<vmem>>, vector<1x16x128xf32>
    %31 = vector.shape_cast %30 : vector<1x16x128xf32> to vector<16x128xf32>
    %32 = vector.shape_cast %26 : vector<16x128xf32> to vector<1x16x128xf32>
    tpu.vector_store %arg2[%c1, %c0_14, %c0_15], %32 {strides = array<i32>} : memref<4x16x128xf32, #tpu.memory_space<vmem>>, vector<1x16x128xf32>,
    %c0_16 = arith.constant 0 : index
    %c0_17 = arith.constant 0 : index
    %c0_18 = arith.constant 0 : index
    %33 = vector.load %arg1[%c0_16, %c0_17, %c0_18] : memref<1x16x128xf32, #tpu.memory_space<vmem>>, vector<1x16x128xf32>
    %34 = vector.shape_cast %33 : vector<1x16x128xf32> to vector<16x128xf32>
    %35 = arith.subf %34, %29 : vector<16x128xf32>
    %cst_19 = arith.constant 0.666666686 : f32
    %36 = vector.broadcast %cst_19 : f32 to vector<16x128xf32>
    %37 = arith.mulf %35, %36 : vector<16x128xf32>
    %38 = arith.addf %29, %37 : vector<16x128xf32>
    %cst_20 = arith.constant 1.000000e+00 : f32
    %39 = vector.broadcast %cst_20 : f32 to vector<16x128xf32>
    %40 = arith.cmpf oge, %38, %39 : vector<16x128xf32>
    %41 = arith.extui %40 : vector<16x128xi1> to vector<16x128xi32>
    %42 = arith.sitofp %41 : vector<16x128xi32> to vector<16x128xf32>
    %cst_21 = arith.constant 1.000000e+00 : f32
    %43 = vector.broadcast %cst_21 : f32 to vector<16x128xf32>
    %44 = arith.subf %43, %42 : vector<16x128xf32>
    %45 = arith.mulf %38, %44 : vector<16x128xf32>
    %c2 = arith.constant 2 : index
    %c0_22 = arith.constant 0 : index
    %c0_23 = arith.constant 0 : index
    %46 = vector.load %arg2[%c2, %c0_22, %c0_23] : memref<4x16x128xf32, #tpu.memory_space<vmem>>, vector<1x16x128xf32>
    %47 = vector.shape_cast %46 : vector<1x16x128xf32> to vector<16x128xf32>
    %48 = vector.shape_cast %42 : vector<16x128xf32> to vector<1x16x128xf32>
    tpu.vector_store %arg2[%c2, %c0_22, %c0_23], %48 {strides = array<i32>} : memref<4x16x128xf32, #tpu.memory_space<vmem>>, vector<1x16x128xf32>,
    %c0_24 = arith.constant 0 : index
    %c0_25 = arith.constant 0 : index
    %c0_26 = arith.constant 0 : index
    %49 = vector.load %arg1[%c0_24, %c0_25, %c0_26] : memref<1x16x128xf32, #tpu.memory_space<vmem>>, vector<1x16x128xf32>
    %50 = vector.shape_cast %49 : vector<1x16x128xf32> to vector<16x128xf32>
    %51 = arith.subf %50, %45 : vector<16x128xf32>
    %cst_27 = arith.constant 0.666666686 : f32
    %52 = vector.broadcast %cst_27 : f32 to vector<16x128xf32>
    %53 = arith.mulf %51, %52 : vector<16x128xf32>
    %54 = arith.addf %45, %53 : vector<16x128xf32>
    %cst_28 = arith.constant 1.000000e+00 : f32
    %55 = vector.broadcast %cst_28 : f32 to vector<16x128xf32>
    %56 = arith.cmpf oge, %54, %55 : vector<16x128xf32>
    %57 = arith.extui %56 : vector<16x128xi1> to vector<16x128xi32>
    %58 = arith.sitofp %57 : vector<16x128xi32> to vector<16x128xf32>
    %c3 = arith.constant 3 : index
    %c0_29 = arith.constant 0 : index
    %c0_30 = arith.constant 0 : index
    %59 = vector.load %arg2[%c3, %c0_29, %c0_30] : memref<4x16x128xf32, #tpu.memory_space<vmem>>, vector<1x16x128xf32>
    %60 = vector.shape_cast %59 : vector<1x16x128xf32> to vector<16x128xf32>
    %61 = vector.shape_cast %58 : vector<16x128xf32> to vector<1x16x128xf32>
    tpu.vector_store %arg2[%c3, %c0_29, %c0_30], %61 {strides = array<i32>} : memref<4x16x128xf32, #tpu.memory_space<vmem>>, vector<1x16x128xf32>,
    return
  }
  func.func @transform_0(%arg0: i32) -> (i32, i32, i32) {
    %c0_i32 = arith.constant 0 : i32
    %c0_i32_0 = arith.constant 0 : i32
    %c0_i32_1 = arith.constant 0 : i32
    return %c0_i32, %arg0, %c0_i32_0 : i32, i32, i32
  }
  func.func @transform_1(%arg0: i32) -> (i32, i32, i32) {
    %c0_i32 = arith.constant 0 : i32
    %c0_i32_0 = arith.constant 0 : i32
    %c0_i32_1 = arith.constant 0 : i32
    return %c0_i32, %arg0, %c0_i32_0 : i32, i32, i32
  }
}

module attributes {stable_mosaic.version = 11 : i64} {
  func.func @kernel(%arg0: i32, %arg1: memref<16x128xf32, #tpu.memory_space<vmem>>, %arg2: memref<16x128xf32, #tpu.memory_space<vmem>>, %arg3: memref<16x128xf32, #tpu.memory_space<vmem>>, %arg4: memref<16x128xf32, #tpu.memory_space<vmem>>, %arg5: memref<16x128xf32, #tpu.memory_space<vmem>>, %arg6: memref<16x128xf32, #tpu.memory_space<vmem>>, %arg7: memref<16x128xf32, #tpu.memory_space<vmem>>, %arg8: memref<16x128xf32, #tpu.memory_space<vmem>>, %arg9: memref<16x128xf32, #tpu.memory_space<vmem>>, %arg10: memref<16x128xf32, #tpu.memory_space<vmem>>) attributes {dimension_semantics = [#tpu.dimension_semantics<parallel>], iteration_bounds = array<i64: 1>, scalar_prefetch = 0 : i64, scratch_operands = 0 : i64, tpu.core_type = #tpu.core_type<tc>, window_params = [{transform_indices = @transform_0, window_bounds = array<i64: 16, 128>}, {transform_indices = @transform_1, window_bounds = array<i64: 16, 128>}, {transform_indices = @transform_2, window_bounds = array<i64: 16, 128>}, {transform_indices = @transform_3, window_bounds = array<i64: 16, 128>}, {transform_indices = @transform_4, window_bounds = array<i64: 16, 128>}, {transform_indices = @transform_5, window_bounds = array<i64: 16, 128>}, {transform_indices = @transform_6, window_bounds = array<i64: 16, 128>}, {transform_indices = @transform_7, window_bounds = array<i64: 16, 128>}, {transform_indices = @transform_8, window_bounds = array<i64: 16, 128>}, {transform_indices = @transform_9, window_bounds = array<i64: 16, 128>}]} {
    %c0 = arith.constant 0 : index
    %c0_0 = arith.constant 0 : index
    %0 = vector.load %arg1[%c0, %c0_0] : memref<16x128xf32, #tpu.memory_space<vmem>>, vector<16x128xf32>
    %c0_1 = arith.constant 0 : index
    %c0_2 = arith.constant 0 : index
    %1 = vector.load %arg2[%c0_1, %c0_2] : memref<16x128xf32, #tpu.memory_space<vmem>>, vector<16x128xf32>
    %2 = arith.maximumf %0, %1 : vector<16x128xf32>
    %c0_3 = arith.constant 0 : index
    %c0_4 = arith.constant 0 : index
    %3 = vector.load %arg3[%c0_3, %c0_4] : memref<16x128xf32, #tpu.memory_space<vmem>>, vector<16x128xf32>
    %4 = arith.maximumf %2, %3 : vector<16x128xf32>
    %c0_5 = arith.constant 0 : index
    %c0_6 = arith.constant 0 : index
    %5 = vector.load %arg4[%c0_5, %c0_6] : memref<16x128xf32, #tpu.memory_space<vmem>>, vector<16x128xf32>
    %6 = arith.maximumf %4, %5 : vector<16x128xf32>
    %c0_7 = arith.constant 0 : index
    %c0_8 = arith.constant 0 : index
    %7 = vector.load %arg5[%c0_7, %c0_8] : memref<16x128xf32, #tpu.memory_space<vmem>>, vector<16x128xf32>
    %8 = arith.maximumf %6, %7 : vector<16x128xf32>
    %c0_9 = arith.constant 0 : index
    %c0_10 = arith.constant 0 : index
    %9 = vector.load %arg6[%c0_9, %c0_10] : memref<16x128xf32, #tpu.memory_space<vmem>>, vector<16x128xf32>
    %10 = arith.maximumf %8, %9 : vector<16x128xf32>
    %c0_11 = arith.constant 0 : index
    %c0_12 = arith.constant 0 : index
    %11 = vector.load %arg7[%c0_11, %c0_12] : memref<16x128xf32, #tpu.memory_space<vmem>>, vector<16x128xf32>
    %12 = arith.maximumf %10, %11 : vector<16x128xf32>
    %c0_13 = arith.constant 0 : index
    %c0_14 = arith.constant 0 : index
    %13 = vector.load %arg8[%c0_13, %c0_14] : memref<16x128xf32, #tpu.memory_space<vmem>>, vector<16x128xf32>
    %14 = arith.maximumf %12, %13 : vector<16x128xf32>
    %c0_15 = arith.constant 0 : index
    %c0_16 = arith.constant 0 : index
    %15 = vector.load %arg9[%c0_15, %c0_16] : memref<16x128xf32, #tpu.memory_space<vmem>>, vector<16x128xf32>
    %16 = arith.maximumf %14, %15 : vector<16x128xf32>
    %c0_17 = arith.constant 0 : index
    %c0_18 = arith.constant 0 : index
    %17 = vector.load %arg10[%c0_17, %c0_18] : memref<16x128xf32, #tpu.memory_space<vmem>>, vector<16x128xf32>
    tpu.vector_store %arg10[%c0_17, %c0_18], %16 {strides = array<i32>} : memref<16x128xf32, #tpu.memory_space<vmem>>, vector<16x128xf32>,
    return
  }
  func.func @transform_0(%arg0: i32) -> (i32, i32) {
    %c0_i32 = arith.constant 0 : i32
    %c0_i32_0 = arith.constant 0 : i32
    return %arg0, %c0_i32 : i32, i32
  }
  func.func @transform_1(%arg0: i32) -> (i32, i32) {
    %c0_i32 = arith.constant 0 : i32
    %c0_i32_0 = arith.constant 0 : i32
    return %arg0, %c0_i32 : i32, i32
  }
  func.func @transform_2(%arg0: i32) -> (i32, i32) {
    %c0_i32 = arith.constant 0 : i32
    %c0_i32_0 = arith.constant 0 : i32
    return %arg0, %c0_i32 : i32, i32
  }
  func.func @transform_3(%arg0: i32) -> (i32, i32) {
    %c0_i32 = arith.constant 0 : i32
    %c0_i32_0 = arith.constant 0 : i32
    return %arg0, %c0_i32 : i32, i32
  }
  func.func @transform_4(%arg0: i32) -> (i32, i32) {
    %c0_i32 = arith.constant 0 : i32
    %c0_i32_0 = arith.constant 0 : i32
    return %arg0, %c0_i32 : i32, i32
  }
  func.func @transform_5(%arg0: i32) -> (i32, i32) {
    %c0_i32 = arith.constant 0 : i32
    %c0_i32_0 = arith.constant 0 : i32
    return %arg0, %c0_i32 : i32, i32
  }
  func.func @transform_6(%arg0: i32) -> (i32, i32) {
    %c0_i32 = arith.constant 0 : i32
    %c0_i32_0 = arith.constant 0 : i32
    return %arg0, %c0_i32 : i32, i32
  }
  func.func @transform_7(%arg0: i32) -> (i32, i32) {
    %c0_i32 = arith.constant 0 : i32
    %c0_i32_0 = arith.constant 0 : i32
    return %arg0, %c0_i32 : i32, i32
  }
  func.func @transform_8(%arg0: i32) -> (i32, i32) {
    %c0_i32 = arith.constant 0 : i32
    %c0_i32_0 = arith.constant 0 : i32
    return %arg0, %c0_i32 : i32, i32
  }
  func.func @transform_9(%arg0: i32) -> (i32, i32) {
    %c0_i32 = arith.constant 0 : i32
    %c0_i32_0 = arith.constant 0 : i32
    return %arg0, %c0_i32 : i32, i32
  }
}

module attributes {stable_mosaic.version = 11 : i64} {
  func.func @kernel(%arg0: i32, %arg1: memref<4x16x128xf32, #tpu.memory_space<vmem>>, %arg2: memref<4x16x128xf32, #tpu.memory_space<vmem>>) attributes {dimension_semantics = [#tpu.dimension_semantics<parallel>], iteration_bounds = array<i64: 1>, scalar_prefetch = 0 : i64, scratch_operands = 0 : i64, tpu.core_type = #tpu.core_type<tc>, window_params = [{transform_indices = @transform_0, window_bounds = array<i64: 4, 16, 128>}, {transform_indices = @transform_1, window_bounds = array<i64: 4, 16, 128>}]} {
    %cst = arith.constant 0.000000e+00 : f32
    %0 = vector.broadcast %cst : f32 to vector<16x128xf32>
    %c0 = arith.constant 0 : index
    %c0_0 = arith.constant 0 : index
    %c0_1 = arith.constant 0 : index
    %1 = vector.load %arg1[%c0, %c0_0, %c0_1] : memref<4x16x128xf32, #tpu.memory_space<vmem>>, vector<1x16x128xf32>
    %2 = vector.shape_cast %1 : vector<1x16x128xf32> to vector<16x128xf32>
    %3 = arith.subf %2, %0 : vector<16x128xf32>
    %cst_2 = arith.constant 0.666666686 : f32
    %4 = vector.broadcast %cst_2 : f32 to vector<16x128xf32>
    %5 = arith.mulf %3, %4 : vector<16x128xf32>
    %6 = arith.addf %0, %5 : vector<16x128xf32>
    %cst_3 = arith.constant 1.000000e+00 : f32
    %7 = vector.broadcast %cst_3 : f32 to vector<16x128xf32>
    %8 = arith.cmpf oge, %6, %7 : vector<16x128xf32>
    %9 = arith.extui %8 : vector<16x128xi1> to vector<16x128xi32>
    %10 = arith.sitofp %9 : vector<16x128xi32> to vector<16x128xf32>
    %cst_4 = arith.constant 1.000000e+00 : f32
    %11 = vector.broadcast %cst_4 : f32 to vector<16x128xf32>
    %12 = arith.subf %11, %10 : vector<16x128xf32>
    %13 = arith.mulf %6, %12 : vector<16x128xf32>
    %c0_5 = arith.constant 0 : index
    %c0_6 = arith.constant 0 : index
    %c0_7 = arith.constant 0 : index
    %14 = vector.load %arg2[%c0_5, %c0_6, %c0_7] : memref<4x16x128xf32, #tpu.memory_space<vmem>>, vector<1x16x128xf32>
    %15 = vector.shape_cast %14 : vector<1x16x128xf32> to vector<16x128xf32>
    %16 = vector.shape_cast %10 : vector<16x128xf32> to vector<1x16x128xf32>
    tpu.vector_store %arg2[%c0_5, %c0_6, %c0_7], %16 {strides = array<i32>} : memref<4x16x128xf32, #tpu.memory_space<vmem>>, vector<1x16x128xf32>,
    %c1 = arith.constant 1 : index
    %c0_8 = arith.constant 0 : index
    %c0_9 = arith.constant 0 : index
    %17 = vector.load %arg1[%c1, %c0_8, %c0_9] : memref<4x16x128xf32, #tpu.memory_space<vmem>>, vector<1x16x128xf32>
    %18 = vector.shape_cast %17 : vector<1x16x128xf32> to vector<16x128xf32>
    %19 = arith.subf %18, %13 : vector<16x128xf32>
    %cst_10 = arith.constant 0.666666686 : f32
    %20 = vector.broadcast %cst_10 : f32 to vector<16x128xf32>
    %21 = arith.mulf %19, %20 : vector<16x128xf32>
    %22 = arith.addf %13, %21 : vector<16x128xf32>
    %cst_11 = arith.constant 1.000000e+00 : f32
    %23 = vector.broadcast %cst_11 : f32 to vector<16x128xf32>
    %24 = arith.cmpf oge, %22, %23 : vector<16x128xf32>
    %25 = arith.extui %24 : vector<16x128xi1> to vector<16x128xi32>
    %26 = arith.sitofp %25 : vector<16x128xi32> to vector<16x128xf32>
    %cst_12 = arith.constant 1.000000e+00 : f32
    %27 = vector.broadcast %cst_12 : f32 to vector<16x128xf32>
    %28 = arith.subf %27, %26 : vector<16x128xf32>
    %29 = arith.mulf %22, %28 : vector<16x128xf32>
    %c1_13 = arith.constant 1 : index
    %c0_14 = arith.constant 0 : index
    %c0_15 = arith.constant 0 : index
    %30 = vector.load %arg2[%c1_13, %c0_14, %c0_15] : memref<4x16x128xf32, #tpu.memory_space<vmem>>, vector<1x16x128xf32>
    %31 = vector.shape_cast %30 : vector<1x16x128xf32> to vector<16x128xf32>
    %32 = vector.shape_cast %26 : vector<16x128xf32> to vector<1x16x128xf32>
    tpu.vector_store %arg2[%c1_13, %c0_14, %c0_15], %32 {strides = array<i32>} : memref<4x16x128xf32, #tpu.memory_space<vmem>>, vector<1x16x128xf32>,
    %c2 = arith.constant 2 : index
    %c0_16 = arith.constant 0 : index
    %c0_17 = arith.constant 0 : index
    %33 = vector.load %arg1[%c2, %c0_16, %c0_17] : memref<4x16x128xf32, #tpu.memory_space<vmem>>, vector<1x16x128xf32>
    %34 = vector.shape_cast %33 : vector<1x16x128xf32> to vector<16x128xf32>
    %35 = arith.subf %34, %29 : vector<16x128xf32>
    %cst_18 = arith.constant 0.666666686 : f32
    %36 = vector.broadcast %cst_18 : f32 to vector<16x128xf32>
    %37 = arith.mulf %35, %36 : vector<16x128xf32>
    %38 = arith.addf %29, %37 : vector<16x128xf32>
    %cst_19 = arith.constant 1.000000e+00 : f32
    %39 = vector.broadcast %cst_19 : f32 to vector<16x128xf32>
    %40 = arith.cmpf oge, %38, %39 : vector<16x128xf32>
    %41 = arith.extui %40 : vector<16x128xi1> to vector<16x128xi32>
    %42 = arith.sitofp %41 : vector<16x128xi32> to vector<16x128xf32>
    %cst_20 = arith.constant 1.000000e+00 : f32
    %43 = vector.broadcast %cst_20 : f32 to vector<16x128xf32>
    %44 = arith.subf %43, %42 : vector<16x128xf32>
    %45 = arith.mulf %38, %44 : vector<16x128xf32>
    %c2_21 = arith.constant 2 : index
    %c0_22 = arith.constant 0 : index
    %c0_23 = arith.constant 0 : index
    %46 = vector.load %arg2[%c2_21, %c0_22, %c0_23] : memref<4x16x128xf32, #tpu.memory_space<vmem>>, vector<1x16x128xf32>
    %47 = vector.shape_cast %46 : vector<1x16x128xf32> to vector<16x128xf32>
    %48 = vector.shape_cast %42 : vector<16x128xf32> to vector<1x16x128xf32>
    tpu.vector_store %arg2[%c2_21, %c0_22, %c0_23], %48 {strides = array<i32>} : memref<4x16x128xf32, #tpu.memory_space<vmem>>, vector<1x16x128xf32>,
    %c3 = arith.constant 3 : index
    %c0_24 = arith.constant 0 : index
    %c0_25 = arith.constant 0 : index
    %49 = vector.load %arg1[%c3, %c0_24, %c0_25] : memref<4x16x128xf32, #tpu.memory_space<vmem>>, vector<1x16x128xf32>
    %50 = vector.shape_cast %49 : vector<1x16x128xf32> to vector<16x128xf32>
    %51 = arith.subf %50, %45 : vector<16x128xf32>
    %cst_26 = arith.constant 0.666666686 : f32
    %52 = vector.broadcast %cst_26 : f32 to vector<16x128xf32>
    %53 = arith.mulf %51, %52 : vector<16x128xf32>
    %54 = arith.addf %45, %53 : vector<16x128xf32>
    %cst_27 = arith.constant 1.000000e+00 : f32
    %55 = vector.broadcast %cst_27 : f32 to vector<16x128xf32>
    %56 = arith.cmpf oge, %54, %55 : vector<16x128xf32>
    %57 = arith.extui %56 : vector<16x128xi1> to vector<16x128xi32>
    %58 = arith.sitofp %57 : vector<16x128xi32> to vector<16x128xf32>
    %c3_28 = arith.constant 3 : index
    %c0_29 = arith.constant 0 : index
    %c0_30 = arith.constant 0 : index
    %59 = vector.load %arg2[%c3_28, %c0_29, %c0_30] : memref<4x16x128xf32, #tpu.memory_space<vmem>>, vector<1x16x128xf32>
    %60 = vector.shape_cast %59 : vector<1x16x128xf32> to vector<16x128xf32>
    %61 = vector.shape_cast %58 : vector<16x128xf32> to vector<1x16x128xf32>
    tpu.vector_store %arg2[%c3_28, %c0_29, %c0_30], %61 {strides = array<i32>} : memref<4x16x128xf32, #tpu.memory_space<vmem>>, vector<1x16x128xf32>,
    return
  }
  func.func @transform_0(%arg0: i32) -> (i32, i32, i32) {
    %c0_i32 = arith.constant 0 : i32
    %c0_i32_0 = arith.constant 0 : i32
    %c0_i32_1 = arith.constant 0 : i32
    return %c0_i32, %arg0, %c0_i32_0 : i32, i32, i32
  }
  func.func @transform_1(%arg0: i32) -> (i32, i32, i32) {
    %c0_i32 = arith.constant 0 : i32
    %c0_i32_0 = arith.constant 0 : i32
    %c0_i32_1 = arith.constant 0 : i32
    return %c0_i32, %arg0, %c0_i32_0 : i32, i32, i32
  }
}

module attributes {stable_mosaic.version = 11 : i64} {
  func.func @kernel(%arg0: i32, %arg1: memref<64x128xbf16, #tpu.memory_space<vmem>>, %arg2: memref<64x128xbf16, #tpu.memory_space<vmem>>, %arg3: memref<64x128xbf16, #tpu.memory_space<vmem>>, %arg4: memref<64x128xbf16, #tpu.memory_space<vmem>>, %arg5: memref<64x128xbf16, #tpu.memory_space<vmem>>, %arg6: memref<64x128xbf16, #tpu.memory_space<vmem>>, %arg7: memref<64x128xbf16, #tpu.memory_space<vmem>>, %arg8: memref<64x128xbf16, #tpu.memory_space<vmem>>, %arg9: memref<64x128xbf16, #tpu.memory_space<vmem>>, %arg10: memref<9x128x128xbf16, #tpu.memory_space<vmem>>, %arg11: memref<1x128xf32, #tpu.memory_space<vmem>>, %arg12: memref<1x128xf32, #tpu.memory_space<vmem>>, %arg13: memref<64x128xf32, #tpu.memory_space<vmem>>) attributes {dimension_semantics = [#tpu.dimension_semantics<parallel>], iteration_bounds = array<i64: 1>, scalar_prefetch = 0 : i64, scratch_operands = 0 : i64, tpu.core_type = #tpu.core_type<tc>, window_params = [{transform_indices = @transform_0, window_bounds = array<i64: 64, 128>}, {transform_indices = @transform_1, window_bounds = array<i64: 64, 128>}, {transform_indices = @transform_2, window_bounds = array<i64: 64, 128>}, {transform_indices = @transform_3, window_bounds = array<i64: 64, 128>}, {transform_indices = @transform_4, window_bounds = array<i64: 64, 128>}, {transform_indices = @transform_5, window_bounds = array<i64: 64, 128>}, {transform_indices = @transform_6, window_bounds = array<i64: 64, 128>}, {transform_indices = @transform_7, window_bounds = array<i64: 64, 128>}, {transform_indices = @transform_8, window_bounds = array<i64: 64, 128>}, {pipeline_mode = #tpu.pipeline_mode<synchronous>, transform_indices = @transform_9, window_bounds = array<i64: 9, 128, 128>}, {pipeline_mode = #tpu.pipeline_mode<synchronous>, transform_indices = @transform_10, window_bounds = array<i64: 1, 128>}, {pipeline_mode = #tpu.pipeline_mode<synchronous>, transform_indices = @transform_11, window_bounds = array<i64: 1, 128>}, {transform_indices = @transform_12, window_bounds = array<i64: 64, 128>}]} {
    %c0 = arith.constant 0 : index
    %c0_0 = arith.constant 0 : index
    %0 = vector.load %arg1[%c0, %c0_0] : memref<64x128xbf16, #tpu.memory_space<vmem>>, vector<64x128xbf16>
    %c0_1 = arith.constant 0 : index
    %c0_2 = arith.constant 0 : index
    %c0_3 = arith.constant 0 : index
    %1 = vector.load %arg10[%c0_1, %c0_2, %c0_3] : memref<9x128x128xbf16, #tpu.memory_space<vmem>>, vector<1x128x128xbf16>
    %2 = vector.shape_cast %1 : vector<1x128x128xbf16> to vector<128x128xbf16>
    %cst = arith.constant dense<0.000000e+00> : vector<64x128xf32>
    %3 = tpu.matmul %0, %2, %cst {dimension_numbers = #tpu.dot_dimension_numbers<[1], [0], [0], [1], [0, 0, 1, 1], [], []>} : vector<64x128xbf16>, vector<128x128xbf16>, vector<64x128xf32> -> vector<64x128xf32>
    %c0_4 = arith.constant 0 : index
    %c0_5 = arith.constant 0 : index
    %4 = vector.load %arg2[%c0_4, %c0_5] : memref<64x128xbf16, #tpu.memory_space<vmem>>, vector<64x128xbf16>
    %c1 = arith.constant 1 : index
    %c0_6 = arith.constant 0 : index
    %c0_7 = arith.constant 0 : index
    %5 = vector.load %arg10[%c1, %c0_6, %c0_7] : memref<9x128x128xbf16, #tpu.memory_space<vmem>>, vector<1x128x128xbf16>
    %6 = vector.shape_cast %5 : vector<1x128x128xbf16> to vector<128x128xbf16>
    %cst_8 = arith.constant dense<0.000000e+00> : vector<64x128xf32>
    %7 = tpu.matmul %4, %6, %cst_8 {dimension_numbers = #tpu.dot_dimension_numbers<[1], [0], [0], [1], [0, 0, 1, 1], [], []>} : vector<64x128xbf16>, vector<128x128xbf16>, vector<64x128xf32> -> vector<64x128xf32>
    %8 = arith.addf %3, %7 : vector<64x128xf32>
    %c0_9 = arith.constant 0 : index
    %c0_10 = arith.constant 0 : index
    %9 = vector.load %arg3[%c0_9, %c0_10] : memref<64x128xbf16, #tpu.memory_space<vmem>>, vector<64x128xbf16>
    %c2 = arith.constant 2 : index
    %c0_11 = arith.constant 0 : index
    %c0_12 = arith.constant 0 : index
    %10 = vector.load %arg10[%c2, %c0_11, %c0_12] : memref<9x128x128xbf16, #tpu.memory_space<vmem>>, vector<1x128x128xbf16>
    %11 = vector.shape_cast %10 : vector<1x128x128xbf16> to vector<128x128xbf16>
    %cst_13 = arith.constant dense<0.000000e+00> : vector<64x128xf32>
    %12 = tpu.matmul %9, %11, %cst_13 {dimension_numbers = #tpu.dot_dimension_numbers<[1], [0], [0], [1], [0, 0, 1, 1], [], []>} : vector<64x128xbf16>, vector<128x128xbf16>, vector<64x128xf32> -> vector<64x128xf32>
    %13 = arith.addf %8, %12 : vector<64x128xf32>
    %c0_14 = arith.constant 0 : index
    %c0_15 = arith.constant 0 : index
    %14 = vector.load %arg4[%c0_14, %c0_15] : memref<64x128xbf16, #tpu.memory_space<vmem>>, vector<64x128xbf16>
    %c3 = arith.constant 3 : index
    %c0_16 = arith.constant 0 : index
    %c0_17 = arith.constant 0 : index
    %15 = vector.load %arg10[%c3, %c0_16, %c0_17] : memref<9x128x128xbf16, #tpu.memory_space<vmem>>, vector<1x128x128xbf16>
    %16 = vector.shape_cast %15 : vector<1x128x128xbf16> to vector<128x128xbf16>
    %cst_18 = arith.constant dense<0.000000e+00> : vector<64x128xf32>
    %17 = tpu.matmul %14, %16, %cst_18 {dimension_numbers = #tpu.dot_dimension_numbers<[1], [0], [0], [1], [0, 0, 1, 1], [], []>} : vector<64x128xbf16>, vector<128x128xbf16>, vector<64x128xf32> -> vector<64x128xf32>
    %18 = arith.addf %13, %17 : vector<64x128xf32>
    %c0_19 = arith.constant 0 : index
    %c0_20 = arith.constant 0 : index
    %19 = vector.load %arg5[%c0_19, %c0_20] : memref<64x128xbf16, #tpu.memory_space<vmem>>, vector<64x128xbf16>
    %c4 = arith.constant 4 : index
    %c0_21 = arith.constant 0 : index
    %c0_22 = arith.constant 0 : index
    %20 = vector.load %arg10[%c4, %c0_21, %c0_22] : memref<9x128x128xbf16, #tpu.memory_space<vmem>>, vector<1x128x128xbf16>
    %21 = vector.shape_cast %20 : vector<1x128x128xbf16> to vector<128x128xbf16>
    %cst_23 = arith.constant dense<0.000000e+00> : vector<64x128xf32>
    %22 = tpu.matmul %19, %21, %cst_23 {dimension_numbers = #tpu.dot_dimension_numbers<[1], [0], [0], [1], [0, 0, 1, 1], [], []>} : vector<64x128xbf16>, vector<128x128xbf16>, vector<64x128xf32> -> vector<64x128xf32>
    %23 = arith.addf %18, %22 : vector<64x128xf32>
    %c0_24 = arith.constant 0 : index
    %c0_25 = arith.constant 0 : index
    %24 = vector.load %arg6[%c0_24, %c0_25] : memref<64x128xbf16, #tpu.memory_space<vmem>>, vector<64x128xbf16>
    %c5 = arith.constant 5 : index
    %c0_26 = arith.constant 0 : index
    %c0_27 = arith.constant 0 : index
    %25 = vector.load %arg10[%c5, %c0_26, %c0_27] : memref<9x128x128xbf16, #tpu.memory_space<vmem>>, vector<1x128x128xbf16>
    %26 = vector.shape_cast %25 : vector<1x128x128xbf16> to vector<128x128xbf16>
    %cst_28 = arith.constant dense<0.000000e+00> : vector<64x128xf32>
    %27 = tpu.matmul %24, %26, %cst_28 {dimension_numbers = #tpu.dot_dimension_numbers<[1], [0], [0], [1], [0, 0, 1, 1], [], []>} : vector<64x128xbf16>, vector<128x128xbf16>, vector<64x128xf32> -> vector<64x128xf32>
    %28 = arith.addf %23, %27 : vector<64x128xf32>
    %c0_29 = arith.constant 0 : index
    %c0_30 = arith.constant 0 : index
    %29 = vector.load %arg7[%c0_29, %c0_30] : memref<64x128xbf16, #tpu.memory_space<vmem>>, vector<64x128xbf16>
    %c6 = arith.constant 6 : index
    %c0_31 = arith.constant 0 : index
    %c0_32 = arith.constant 0 : index
    %30 = vector.load %arg10[%c6, %c0_31, %c0_32] : memref<9x128x128xbf16, #tpu.memory_space<vmem>>, vector<1x128x128xbf16>
    %31 = vector.shape_cast %30 : vector<1x128x128xbf16> to vector<128x128xbf16>
    %cst_33 = arith.constant dense<0.000000e+00> : vector<64x128xf32>
    %32 = tpu.matmul %29, %31, %cst_33 {dimension_numbers = #tpu.dot_dimension_numbers<[1], [0], [0], [1], [0, 0, 1, 1], [], []>} : vector<64x128xbf16>, vector<128x128xbf16>, vector<64x128xf32> -> vector<64x128xf32>
    %33 = arith.addf %28, %32 : vector<64x128xf32>
    %c0_34 = arith.constant 0 : index
    %c0_35 = arith.constant 0 : index
    %34 = vector.load %arg8[%c0_34, %c0_35] : memref<64x128xbf16, #tpu.memory_space<vmem>>, vector<64x128xbf16>
    %c7 = arith.constant 7 : index
    %c0_36 = arith.constant 0 : index
    %c0_37 = arith.constant 0 : index
    %35 = vector.load %arg10[%c7, %c0_36, %c0_37] : memref<9x128x128xbf16, #tpu.memory_space<vmem>>, vector<1x128x128xbf16>
    %36 = vector.shape_cast %35 : vector<1x128x128xbf16> to vector<128x128xbf16>
    %cst_38 = arith.constant dense<0.000000e+00> : vector<64x128xf32>
    %37 = tpu.matmul %34, %36, %cst_38 {dimension_numbers = #tpu.dot_dimension_numbers<[1], [0], [0], [1], [0, 0, 1, 1], [], []>} : vector<64x128xbf16>, vector<128x128xbf16>, vector<64x128xf32> -> vector<64x128xf32>
    %38 = arith.addf %33, %37 : vector<64x128xf32>
    %c0_39 = arith.constant 0 : index
    %c0_40 = arith.constant 0 : index
    %39 = vector.load %arg9[%c0_39, %c0_40] : memref<64x128xbf16, #tpu.memory_space<vmem>>, vector<64x128xbf16>
    %c8 = arith.constant 8 : index
    %c0_41 = arith.constant 0 : index
    %c0_42 = arith.constant 0 : index
    %40 = vector.load %arg10[%c8, %c0_41, %c0_42] : memref<9x128x128xbf16, #tpu.memory_space<vmem>>, vector<1x128x128xbf16>
    %41 = vector.shape_cast %40 : vector<1x128x128xbf16> to vector<128x128xbf16>
    %cst_43 = arith.constant dense<0.000000e+00> : vector<64x128xf32>
    %42 = tpu.matmul %39, %41, %cst_43 {dimension_numbers = #tpu.dot_dimension_numbers<[1], [0], [0], [1], [0, 0, 1, 1], [], []>} : vector<64x128xbf16>, vector<128x128xbf16>, vector<64x128xf32> -> vector<64x128xf32>
    %43 = arith.addf %38, %42 : vector<64x128xf32>
    %c0_44 = arith.constant 0 : index
    %c0_45 = arith.constant 0 : index
    %44 = vector.load %arg11[%c0_44, %c0_45] : memref<1x128xf32, #tpu.memory_space<vmem>>, vector<1x128xf32>
    %45 = vector.broadcast %44 : vector<1x128xf32> to vector<64x128xf32>
    %46 = arith.mulf %43, %45 : vector<64x128xf32>
    %c0_46 = arith.constant 0 : index
    %c0_47 = arith.constant 0 : index
    %47 = vector.load %arg12[%c0_46, %c0_47] : memref<1x128xf32, #tpu.memory_space<vmem>>, vector<1x128xf32>
    %48 = vector.broadcast %47 : vector<1x128xf32> to vector<64x128xf32>
    %49 = arith.addf %46, %48 : vector<64x128xf32>
    %c0_48 = arith.constant 0 : index
    %c0_49 = arith.constant 0 : index
    %50 = vector.load %arg13[%c0_48, %c0_49] : memref<64x128xf32, #tpu.memory_space<vmem>>, vector<64x128xf32>
    tpu.vector_store %arg13[%c0_48, %c0_49], %49 {strides = array<i32>} : memref<64x128xf32, #tpu.memory_space<vmem>>, vector<64x128xf32>,
    return
  }
  func.func @transform_0(%arg0: i32) -> (i32, i32) {
    %c0_i32 = arith.constant 0 : i32
    %c0_i32_0 = arith.constant 0 : i32
    return %arg0, %c0_i32 : i32, i32
  }
  func.func @transform_1(%arg0: i32) -> (i32, i32) {
    %c0_i32 = arith.constant 0 : i32
    %c0_i32_0 = arith.constant 0 : i32
    return %arg0, %c0_i32 : i32, i32
  }
  func.func @transform_2(%arg0: i32) -> (i32, i32) {
    %c0_i32 = arith.constant 0 : i32
    %c0_i32_0 = arith.constant 0 : i32
    return %arg0, %c0_i32 : i32, i32
  }
  func.func @transform_3(%arg0: i32) -> (i32, i32) {
    %c0_i32 = arith.constant 0 : i32
    %c0_i32_0 = arith.constant 0 : i32
    return %arg0, %c0_i32 : i32, i32
  }
  func.func @transform_4(%arg0: i32) -> (i32, i32) {
    %c0_i32 = arith.constant 0 : i32
    %c0_i32_0 = arith.constant 0 : i32
    return %arg0, %c0_i32 : i32, i32
  }
  func.func @transform_5(%arg0: i32) -> (i32, i32) {
    %c0_i32 = arith.constant 0 : i32
    %c0_i32_0 = arith.constant 0 : i32
    return %arg0, %c0_i32 : i32, i32
  }
  func.func @transform_6(%arg0: i32) -> (i32, i32) {
    %c0_i32 = arith.constant 0 : i32
    %c0_i32_0 = arith.constant 0 : i32
    return %arg0, %c0_i32 : i32, i32
  }
  func.func @transform_7(%arg0: i32) -> (i32, i32) {
    %c0_i32 = arith.constant 0 : i32
    %c0_i32_0 = arith.constant 0 : i32
    return %arg0, %c0_i32 : i32, i32
  }
  func.func @transform_8(%arg0: i32) -> (i32, i32) {
    %c0_i32 = arith.constant 0 : i32
    %c0_i32_0 = arith.constant 0 : i32
    return %arg0, %c0_i32 : i32, i32
  }
  func.func @transform_9(%arg0: i32) -> (i32, i32, i32) {
    %c0_i32 = arith.constant 0 : i32
    %c0_i32_0 = arith.constant 0 : i32
    %c0_i32_1 = arith.constant 0 : i32
    %c0_i32_2 = arith.constant 0 : i32
    return %c0_i32, %c0_i32_0, %c0_i32_1 : i32, i32, i32
  }
  func.func @transform_10(%arg0: i32) -> (i32, i32) {
    %c0_i32 = arith.constant 0 : i32
    %c0_i32_0 = arith.constant 0 : i32
    %c0_i32_1 = arith.constant 0 : i32
    return %c0_i32, %c0_i32_0 : i32, i32
  }
  func.func @transform_11(%arg0: i32) -> (i32, i32) {
    %c0_i32 = arith.constant 0 : i32
    %c0_i32_0 = arith.constant 0 : i32
    %c0_i32_1 = arith.constant 0 : i32
    return %c0_i32, %c0_i32_0 : i32, i32
  }
  func.func @transform_12(%arg0: i32) -> (i32, i32) {
    %c0_i32 = arith.constant 0 : i32
    %c0_i32_0 = arith.constant 0 : i32
    return %arg0, %c0_i32 : i32, i32
  }
}

module attributes {stable_mosaic.version = 11 : i64} {
  func.func @kernel(%arg0: i32, %arg1: memref<4x16x128xf32, #tpu.memory_space<vmem>>, %arg2: memref<1x16x128xf32, #tpu.memory_space<vmem>>) attributes {dimension_semantics = [#tpu.dimension_semantics<parallel>], iteration_bounds = array<i64: 1>, scalar_prefetch = 0 : i64, scratch_operands = 0 : i64, tpu.core_type = #tpu.core_type<tc>, window_params = [{transform_indices = @transform_0, window_bounds = array<i64: 4, 16, 128>}, {transform_indices = @transform_1, window_bounds = array<i64: 1, 16, 128>}]} {
    %cst = arith.constant 0.000000e+00 : f32
    %0 = vector.broadcast %cst : f32 to vector<16x128xf32>
    %cst_0 = arith.constant 0.000000e+00 : f32
    %1 = vector.broadcast %cst_0 : f32 to vector<16x128xf32>
    %c0 = arith.constant 0 : index
    %c0_1 = arith.constant 0 : index
    %c0_2 = arith.constant 0 : index
    %2 = vector.load %arg1[%c0, %c0_1, %c0_2] : memref<4x16x128xf32, #tpu.memory_space<vmem>>, vector<1x16x128xf32>
    %3 = vector.shape_cast %2 : vector<1x16x128xf32> to vector<16x128xf32>
    %4 = arith.subf %3, %0 : vector<16x128xf32>
    %cst_3 = arith.constant 0.666666686 : f32
    %5 = vector.broadcast %cst_3 : f32 to vector<16x128xf32>
    %6 = arith.mulf %4, %5 : vector<16x128xf32>
    %7 = arith.addf %0, %6 : vector<16x128xf32>
    %cst_4 = arith.constant 1.000000e+00 : f32
    %8 = vector.broadcast %cst_4 : f32 to vector<16x128xf32>
    %9 = arith.cmpf oge, %7, %8 : vector<16x128xf32>
    %10 = arith.extui %9 : vector<16x128xi1> to vector<16x128xi32>
    %11 = arith.sitofp %10 : vector<16x128xi32> to vector<16x128xf32>
    %cst_5 = arith.constant 1.000000e+00 : f32
    %12 = vector.broadcast %cst_5 : f32 to vector<16x128xf32>
    %13 = arith.subf %12, %11 : vector<16x128xf32>
    %14 = arith.mulf %7, %13 : vector<16x128xf32>
    %15 = arith.addf %1, %11 : vector<16x128xf32>
    %c1 = arith.constant 1 : index
    %c0_6 = arith.constant 0 : index
    %c0_7 = arith.constant 0 : index
    %16 = vector.load %arg1[%c1, %c0_6, %c0_7] : memref<4x16x128xf32, #tpu.memory_space<vmem>>, vector<1x16x128xf32>
    %17 = vector.shape_cast %16 : vector<1x16x128xf32> to vector<16x128xf32>
    %18 = arith.subf %17, %14 : vector<16x128xf32>
    %cst_8 = arith.constant 0.666666686 : f32
    %19 = vector.broadcast %cst_8 : f32 to vector<16x128xf32>
    %20 = arith.mulf %18, %19 : vector<16x128xf32>
    %21 = arith.addf %14, %20 : vector<16x128xf32>
    %cst_9 = arith.constant 1.000000e+00 : f32
    %22 = vector.broadcast %cst_9 : f32 to vector<16x128xf32>
    %23 = arith.cmpf oge, %21, %22 : vector<16x128xf32>
    %24 = arith.extui %23 : vector<16x128xi1> to vector<16x128xi32>
    %25 = arith.sitofp %24 : vector<16x128xi32> to vector<16x128xf32>
    %cst_10 = arith.constant 1.000000e+00 : f32
    %26 = vector.broadcast %cst_10 : f32 to vector<16x128xf32>
    %27 = arith.subf %26, %25 : vector<16x128xf32>
    %28 = arith.mulf %21, %27 : vector<16x128xf32>
    %29 = arith.addf %15, %25 : vector<16x128xf32>
    %c2 = arith.constant 2 : index
    %c0_11 = arith.constant 0 : index
    %c0_12 = arith.constant 0 : index
    %30 = vector.load %arg1[%c2, %c0_11, %c0_12] : memref<4x16x128xf32, #tpu.memory_space<vmem>>, vector<1x16x128xf32>
    %31 = vector.shape_cast %30 : vector<1x16x128xf32> to vector<16x128xf32>
    %32 = arith.subf %31, %28 : vector<16x128xf32>
    %cst_13 = arith.constant 0.666666686 : f32
    %33 = vector.broadcast %cst_13 : f32 to vector<16x128xf32>
    %34 = arith.mulf %32, %33 : vector<16x128xf32>
    %35 = arith.addf %28, %34 : vector<16x128xf32>
    %cst_14 = arith.constant 1.000000e+00 : f32
    %36 = vector.broadcast %cst_14 : f32 to vector<16x128xf32>
    %37 = arith.cmpf oge, %35, %36 : vector<16x128xf32>
    %38 = arith.extui %37 : vector<16x128xi1> to vector<16x128xi32>
    %39 = arith.sitofp %38 : vector<16x128xi32> to vector<16x128xf32>
    %cst_15 = arith.constant 1.000000e+00 : f32
    %40 = vector.broadcast %cst_15 : f32 to vector<16x128xf32>
    %41 = arith.subf %40, %39 : vector<16x128xf32>
    %42 = arith.mulf %35, %41 : vector<16x128xf32>
    %43 = arith.addf %29, %39 : vector<16x128xf32>
    %c3 = arith.constant 3 : index
    %c0_16 = arith.constant 0 : index
    %c0_17 = arith.constant 0 : index
    %44 = vector.load %arg1[%c3, %c0_16, %c0_17] : memref<4x16x128xf32, #tpu.memory_space<vmem>>, vector<1x16x128xf32>
    %45 = vector.shape_cast %44 : vector<1x16x128xf32> to vector<16x128xf32>
    %46 = arith.subf %45, %42 : vector<16x128xf32>
    %cst_18 = arith.constant 0.666666686 : f32
    %47 = vector.broadcast %cst_18 : f32 to vector<16x128xf32>
    %48 = arith.mulf %46, %47 : vector<16x128xf32>
    %49 = arith.addf %42, %48 : vector<16x128xf32>
    %cst_19 = arith.constant 1.000000e+00 : f32
    %50 = vector.broadcast %cst_19 : f32 to vector<16x128xf32>
    %51 = arith.cmpf oge, %49, %50 : vector<16x128xf32>
    %52 = arith.extui %51 : vector<16x128xi1> to vector<16x128xi32>
    %53 = arith.sitofp %52 : vector<16x128xi32> to vector<16x128xf32>
    %54 = arith.addf %43, %53 : vector<16x128xf32>
    %cst_20 = arith.constant 2.500000e-01 : f32
    %55 = vector.broadcast %cst_20 : f32 to vector<16x128xf32>
    %56 = arith.mulf %54, %55 : vector<16x128xf32>
    %c0_21 = arith.constant 0 : index
    %c0_22 = arith.constant 0 : index
    %c0_23 = arith.constant 0 : index
    %57 = vector.load %arg2[%c0_21, %c0_22, %c0_23] : memref<1x16x128xf32, #tpu.memory_space<vmem>>, vector<1x16x128xf32>
    %58 = vector.shape_cast %57 : vector<1x16x128xf32> to vector<16x128xf32>
    %59 = vector.shape_cast %56 : vector<16x128xf32> to vector<1x16x128xf32>
    tpu.vector_store %arg2[%c0_21, %c0_22, %c0_23], %59 {strides = array<i32>} : memref<1x16x128xf32, #tpu.memory_space<vmem>>, vector<1x16x128xf32>,
    return
  }
  func.func @transform_0(%arg0: i32) -> (i32, i32, i32) {
    %c0_i32 = arith.constant 0 : i32
    %c0_i32_0 = arith.constant 0 : i32
    %c0_i32_1 = arith.constant 0 : i32
    return %c0_i32, %arg0, %c0_i32_0 : i32, i32, i32
  }
  func.func @transform_1(%arg0: i32) -> (i32, i32, i32) {
    %c0_i32 = arith.constant 0 : i32
    %c0_i32_0 = arith.constant 0 : i32
    %c0_i32_1 = arith.constant 0 : i32
    return %c0_i32, %arg0, %c0_i32_0 : i32, i32, i32
  }
}

module attributes {stable_mosaic.version = 11 : i64} {
  func.func @kernel(%arg0: i32, %arg1: memref<8x64xbf16, #tpu.memory_space<vmem>>, %arg2: memref<1x64x128xbf16, #tpu.memory_space<vmem>>, %arg3: memref<1x128xf32, #tpu.memory_space<vmem>>, %arg4: memref<1x128xf32, #tpu.memory_space<vmem>>, %arg5: memref<8x128xf32, #tpu.memory_space<vmem>>) attributes {dimension_semantics = [#tpu.dimension_semantics<parallel>], iteration_bounds = array<i64: 1>, scalar_prefetch = 0 : i64, scratch_operands = 0 : i64, tpu.core_type = #tpu.core_type<tc>, window_params = [{transform_indices = @transform_0, window_bounds = array<i64: 8, 64>}, {pipeline_mode = #tpu.pipeline_mode<synchronous>, transform_indices = @transform_1, window_bounds = array<i64: 1, 64, 128>}, {pipeline_mode = #tpu.pipeline_mode<synchronous>, transform_indices = @transform_2, window_bounds = array<i64: 1, 128>}, {pipeline_mode = #tpu.pipeline_mode<synchronous>, transform_indices = @transform_3, window_bounds = array<i64: 1, 128>}, {transform_indices = @transform_4, window_bounds = array<i64: 8, 128>}]} {
    %c0 = arith.constant 0 : index
    %c0_0 = arith.constant 0 : index
    %0 = vector.load %arg1[%c0, %c0_0] : memref<8x64xbf16, #tpu.memory_space<vmem>>, vector<8x64xbf16>
    %c0_1 = arith.constant 0 : index
    %c0_2 = arith.constant 0 : index
    %c0_3 = arith.constant 0 : index
    %1 = vector.load %arg2[%c0_1, %c0_2, %c0_3] : memref<1x64x128xbf16, #tpu.memory_space<vmem>>, vector<1x64x128xbf16>
    %2 = vector.shape_cast %1 : vector<1x64x128xbf16> to vector<64x128xbf16>
    %cst = arith.constant dense<0.000000e+00> : vector<8x128xf32>
    %3 = tpu.matmul %0, %2, %cst {dimension_numbers = #tpu.dot_dimension_numbers<[1], [0], [0], [1], [0, 0, 1, 1], [], []>} : vector<8x64xbf16>, vector<64x128xbf16>, vector<8x128xf32> -> vector<8x128xf32>
    %c0_4 = arith.constant 0 : index
    %c0_5 = arith.constant 0 : index
    %4 = vector.load %arg3[%c0_4, %c0_5] : memref<1x128xf32, #tpu.memory_space<vmem>>, vector<1x128xf32>
    %5 = vector.broadcast %4 : vector<1x128xf32> to vector<8x128xf32>
    %6 = arith.mulf %3, %5 : vector<8x128xf32>
    %c0_6 = arith.constant 0 : index
    %c0_7 = arith.constant 0 : index
    %7 = vector.load %arg4[%c0_6, %c0_7] : memref<1x128xf32, #tpu.memory_space<vmem>>, vector<1x128xf32>
    %8 = vector.broadcast %7 : vector<1x128xf32> to vector<8x128xf32>
    %9 = arith.addf %6, %8 : vector<8x128xf32>
    %c0_8 = arith.constant 0 : index
    %c0_9 = arith.constant 0 : index
    %10 = vector.load %arg5[%c0_8, %c0_9] : memref<8x128xf32, #tpu.memory_space<vmem>>, vector<8x128xf32>
    tpu.vector_store %arg5[%c0_8, %c0_9], %9 {strides = array<i32>} : memref<8x128xf32, #tpu.memory_space<vmem>>, vector<8x128xf32>,
    return
  }
  func.func @transform_0(%arg0: i32) -> (i32, i32) {
    %c0_i32 = arith.constant 0 : i32
    %c0_i32_0 = arith.constant 0 : i32
    return %arg0, %c0_i32 : i32, i32
  }
  func.func @transform_1(%arg0: i32) -> (i32, i32, i32) {
    %c0_i32 = arith.constant 0 : i32
    %c0_i32_0 = arith.constant 0 : i32
    %c0_i32_1 = arith.constant 0 : i32
    %c0_i32_2 = arith.constant 0 : i32
    return %c0_i32, %c0_i32_0, %c0_i32_1 : i32, i32, i32
  }
  func.func @transform_2(%arg0: i32) -> (i32, i32) {
    %c0_i32 = arith.constant 0 : i32
    %c0_i32_0 = arith.constant 0 : i32
    %c0_i32_1 = arith.constant 0 : i32
    return %c0_i32, %c0_i32_0 : i32, i32
  }
  func.func @transform_3(%arg0: i32) -> (i32, i32) {
    %c0_i32 = arith.constant 0 : i32
    %c0_i32_0 = arith.constant 0 : i32
    %c0_i32_1 = arith.constant 0 : i32
    return %c0_i32, %c0_i32_0 : i32, i32
  }
  func.func @transform_4(%arg0: i32) -> (i32, i32) {
    %c0_i32 = arith.constant 0 : i32
    %c0_i32_0 = arith.constant 0 : i32
    return %arg0, %c0_i32 : i32, i32
  }
}

module attributes {stable_mosaic.version = 11 : i64} {
  func.func @kernel(%arg0: i32, %arg1: memref<1x8x128xf32, #tpu.memory_space<vmem>>, %arg2: memref<1x8x128xf32, #tpu.memory_space<vmem>>) attributes {dimension_semantics = [#tpu.dimension_semantics<parallel>], iteration_bounds = array<i64: 1>, scalar_prefetch = 0 : i64, scratch_operands = 0 : i64, tpu.core_type = #tpu.core_type<tc>, window_params = [{transform_indices = @transform_0, window_bounds = array<i64: 1, 8, 128>}, {transform_indices = @transform_1, window_bounds = array<i64: 1, 8, 128>}]} {
    %cst = arith.constant 0.000000e+00 : f32
    %0 = vector.broadcast %cst : f32 to vector<8x128xf32>
    %cst_0 = arith.constant 0.000000e+00 : f32
    %1 = vector.broadcast %cst_0 : f32 to vector<8x128xf32>
    %c0 = arith.constant 0 : index
    %c0_1 = arith.constant 0 : index
    %c0_2 = arith.constant 0 : index
    %2 = vector.load %arg1[%c0, %c0_1, %c0_2] : memref<1x8x128xf32, #tpu.memory_space<vmem>>, vector<1x8x128xf32>
    %3 = vector.shape_cast %2 : vector<1x8x128xf32> to vector<8x128xf32>
    %4 = arith.subf %3, %0 : vector<8x128xf32>
    %cst_3 = arith.constant 0.666666686 : f32
    %5 = vector.broadcast %cst_3 : f32 to vector<8x128xf32>
    %6 = arith.mulf %4, %5 : vector<8x128xf32>
    %7 = arith.addf %0, %6 : vector<8x128xf32>
    %cst_4 = arith.constant 1.000000e+00 : f32
    %8 = vector.broadcast %cst_4 : f32 to vector<8x128xf32>
    %9 = arith.cmpf oge, %7, %8 : vector<8x128xf32>
    %10 = arith.extui %9 : vector<8x128xi1> to vector<8x128xi32>
    %11 = arith.sitofp %10 : vector<8x128xi32> to vector<8x128xf32>
    %cst_5 = arith.constant 1.000000e+00 : f32
    %12 = vector.broadcast %cst_5 : f32 to vector<8x128xf32>
    %13 = arith.subf %12, %11 : vector<8x128xf32>
    %14 = arith.mulf %7, %13 : vector<8x128xf32>
    %15 = arith.addf %1, %11 : vector<8x128xf32>
    %c0_6 = arith.constant 0 : index
    %c0_7 = arith.constant 0 : index
    %c0_8 = arith.constant 0 : index
    %16 = vector.load %arg1[%c0_6, %c0_7, %c0_8] : memref<1x8x128xf32, #tpu.memory_space<vmem>>, vector<1x8x128xf32>
    %17 = vector.shape_cast %16 : vector<1x8x128xf32> to vector<8x128xf32>
    %18 = arith.subf %17, %14 : vector<8x128xf32>
    %cst_9 = arith.constant 0.666666686 : f32
    %19 = vector.broadcast %cst_9 : f32 to vector<8x128xf32>
    %20 = arith.mulf %18, %19 : vector<8x128xf32>
    %21 = arith.addf %14, %20 : vector<8x128xf32>
    %cst_10 = arith.constant 1.000000e+00 : f32
    %22 = vector.broadcast %cst_10 : f32 to vector<8x128xf32>
    %23 = arith.cmpf oge, %21, %22 : vector<8x128xf32>
    %24 = arith.extui %23 : vector<8x128xi1> to vector<8x128xi32>
    %25 = arith.sitofp %24 : vector<8x128xi32> to vector<8x128xf32>
    %cst_11 = arith.constant 1.000000e+00 : f32
    %26 = vector.broadcast %cst_11 : f32 to vector<8x128xf32>
    %27 = arith.subf %26, %25 : vector<8x128xf32>
    %28 = arith.mulf %21, %27 : vector<8x128xf32>
    %29 = arith.addf %15, %25 : vector<8x128xf32>
    %c0_12 = arith.constant 0 : index
    %c0_13 = arith.constant 0 : index
    %c0_14 = arith.constant 0 : index
    %30 = vector.load %arg1[%c0_12, %c0_13, %c0_14] : memref<1x8x128xf32, #tpu.memory_space<vmem>>, vector<1x8x128xf32>
    %31 = vector.shape_cast %30 : vector<1x8x128xf32> to vector<8x128xf32>
    %32 = arith.subf %31, %28 : vector<8x128xf32>
    %cst_15 = arith.constant 0.666666686 : f32
    %33 = vector.broadcast %cst_15 : f32 to vector<8x128xf32>
    %34 = arith.mulf %32, %33 : vector<8x128xf32>
    %35 = arith.addf %28, %34 : vector<8x128xf32>
    %cst_16 = arith.constant 1.000000e+00 : f32
    %36 = vector.broadcast %cst_16 : f32 to vector<8x128xf32>
    %37 = arith.cmpf oge, %35, %36 : vector<8x128xf32>
    %38 = arith.extui %37 : vector<8x128xi1> to vector<8x128xi32>
    %39 = arith.sitofp %38 : vector<8x128xi32> to vector<8x128xf32>
    %cst_17 = arith.constant 1.000000e+00 : f32
    %40 = vector.broadcast %cst_17 : f32 to vector<8x128xf32>
    %41 = arith.subf %40, %39 : vector<8x128xf32>
    %42 = arith.mulf %35, %41 : vector<8x128xf32>
    %43 = arith.addf %29, %39 : vector<8x128xf32>
    %c0_18 = arith.constant 0 : index
    %c0_19 = arith.constant 0 : index
    %c0_20 = arith.constant 0 : index
    %44 = vector.load %arg1[%c0_18, %c0_19, %c0_20] : memref<1x8x128xf32, #tpu.memory_space<vmem>>, vector<1x8x128xf32>
    %45 = vector.shape_cast %44 : vector<1x8x128xf32> to vector<8x128xf32>
    %46 = arith.subf %45, %42 : vector<8x128xf32>
    %cst_21 = arith.constant 0.666666686 : f32
    %47 = vector.broadcast %cst_21 : f32 to vector<8x128xf32>
    %48 = arith.mulf %46, %47 : vector<8x128xf32>
    %49 = arith.addf %42, %48 : vector<8x128xf32>
    %cst_22 = arith.constant 1.000000e+00 : f32
    %50 = vector.broadcast %cst_22 : f32 to vector<8x128xf32>
    %51 = arith.cmpf oge, %49, %50 : vector<8x128xf32>
    %52 = arith.extui %51 : vector<8x128xi1> to vector<8x128xi32>
    %53 = arith.sitofp %52 : vector<8x128xi32> to vector<8x128xf32>
    %54 = arith.addf %43, %53 : vector<8x128xf32>
    %cst_23 = arith.constant 2.500000e-01 : f32
    %55 = vector.broadcast %cst_23 : f32 to vector<8x128xf32>
    %56 = arith.mulf %54, %55 : vector<8x128xf32>
    %c0_24 = arith.constant 0 : index
    %c0_25 = arith.constant 0 : index
    %c0_26 = arith.constant 0 : index
    %57 = vector.load %arg2[%c0_24, %c0_25, %c0_26] : memref<1x8x128xf32, #tpu.memory_space<vmem>>, vector<1x8x128xf32>
    %58 = vector.shape_cast %57 : vector<1x8x128xf32> to vector<8x128xf32>
    %59 = vector.shape_cast %56 : vector<8x128xf32> to vector<1x8x128xf32>
    tpu.vector_store %arg2[%c0_24, %c0_25, %c0_26], %59 {strides = array<i32>} : memref<1x8x128xf32, #tpu.memory_space<vmem>>, vector<1x8x128xf32>,
    return
  }
  func.func @transform_0(%arg0: i32) -> (i32, i32, i32) {
    %c0_i32 = arith.constant 0 : i32
    %c0_i32_0 = arith.constant 0 : i32
    %c0_i32_1 = arith.constant 0 : i32
    return %c0_i32, %arg0, %c0_i32_0 : i32, i32, i32
  }
  func.func @transform_1(%arg0: i32) -> (i32, i32, i32) {
    %c0_i32 = arith.constant 0 : i32
    %c0_i32_0 = arith.constant 0 : i32
    %c0_i32_1 = arith.constant 0 : i32
    return %c0_i32, %arg0, %c0_i32_0 : i32, i32, i32
  }
}

module attributes {stable_mosaic.version = 11 : i64} {
  func.func @kernel(%arg0: i32, %arg1: memref<8x64xbf16, #tpu.memory_space<vmem>>, %arg2: memref<8x64xbf16, #tpu.memory_space<vmem>>, %arg3: memref<8x64xbf16, #tpu.memory_space<vmem>>, %arg4: memref<8x64xbf16, #tpu.memory_space<vmem>>, %arg5: memref<8x64xbf16, #tpu.memory_space<vmem>>, %arg6: memref<8x64xbf16, #tpu.memory_space<vmem>>, %arg7: memref<8x64xbf16, #tpu.memory_space<vmem>>, %arg8: memref<8x64xbf16, #tpu.memory_space<vmem>>, %arg9: memref<8x64xbf16, #tpu.memory_space<vmem>>, %arg10: memref<9x64x128xbf16, #tpu.memory_space<vmem>>, %arg11: memref<1x128xf32, #tpu.memory_space<vmem>>, %arg12: memref<1x128xf32, #tpu.memory_space<vmem>>, %arg13: memref<8x128xf32, #tpu.memory_space<vmem>>) attributes {dimension_semantics = [#tpu.dimension_semantics<parallel>], iteration_bounds = array<i64: 1>, scalar_prefetch = 0 : i64, scratch_operands = 0 : i64, tpu.core_type = #tpu.core_type<tc>, window_params = [{transform_indices = @transform_0, window_bounds = array<i64: 8, 64>}, {transform_indices = @transform_1, window_bounds = array<i64: 8, 64>}, {transform_indices = @transform_2, window_bounds = array<i64: 8, 64>}, {transform_indices = @transform_3, window_bounds = array<i64: 8, 64>}, {transform_indices = @transform_4, window_bounds = array<i64: 8, 64>}, {transform_indices = @transform_5, window_bounds = array<i64: 8, 64>}, {transform_indices = @transform_6, window_bounds = array<i64: 8, 64>}, {transform_indices = @transform_7, window_bounds = array<i64: 8, 64>}, {transform_indices = @transform_8, window_bounds = array<i64: 8, 64>}, {pipeline_mode = #tpu.pipeline_mode<synchronous>, transform_indices = @transform_9, window_bounds = array<i64: 9, 64, 128>}, {pipeline_mode = #tpu.pipeline_mode<synchronous>, transform_indices = @transform_10, window_bounds = array<i64: 1, 128>}, {pipeline_mode = #tpu.pipeline_mode<synchronous>, transform_indices = @transform_11, window_bounds = array<i64: 1, 128>}, {transform_indices = @transform_12, window_bounds = array<i64: 8, 128>}]} {
    %c0 = arith.constant 0 : index
    %c0_0 = arith.constant 0 : index
    %0 = vector.load %arg1[%c0, %c0_0] : memref<8x64xbf16, #tpu.memory_space<vmem>>, vector<8x64xbf16>
    %c0_1 = arith.constant 0 : index
    %c0_2 = arith.constant 0 : index
    %c0_3 = arith.constant 0 : index
    %1 = vector.load %arg10[%c0_1, %c0_2, %c0_3] : memref<9x64x128xbf16, #tpu.memory_space<vmem>>, vector<1x64x128xbf16>
    %2 = vector.shape_cast %1 : vector<1x64x128xbf16> to vector<64x128xbf16>
    %cst = arith.constant dense<0.000000e+00> : vector<8x128xf32>
    %3 = tpu.matmul %0, %2, %cst {dimension_numbers = #tpu.dot_dimension_numbers<[1], [0], [0], [1], [0, 0, 1, 1], [], []>} : vector<8x64xbf16>, vector<64x128xbf16>, vector<8x128xf32> -> vector<8x128xf32>
    %c0_4 = arith.constant 0 : index
    %c0_5 = arith.constant 0 : index
    %4 = vector.load %arg2[%c0_4, %c0_5] : memref<8x64xbf16, #tpu.memory_space<vmem>>, vector<8x64xbf16>
    %c1 = arith.constant 1 : index
    %c0_6 = arith.constant 0 : index
    %c0_7 = arith.constant 0 : index
    %5 = vector.load %arg10[%c1, %c0_6, %c0_7] : memref<9x64x128xbf16, #tpu.memory_space<vmem>>, vector<1x64x128xbf16>
    %6 = vector.shape_cast %5 : vector<1x64x128xbf16> to vector<64x128xbf16>
    %cst_8 = arith.constant dense<0.000000e+00> : vector<8x128xf32>
    %7 = tpu.matmul %4, %6, %cst_8 {dimension_numbers = #tpu.dot_dimension_numbers<[1], [0], [0], [1], [0, 0, 1, 1], [], []>} : vector<8x64xbf16>, vector<64x128xbf16>, vector<8x128xf32> -> vector<8x128xf32>
    %8 = arith.addf %3, %7 : vector<8x128xf32>
    %c0_9 = arith.constant 0 : index
    %c0_10 = arith.constant 0 : index
    %9 = vector.load %arg3[%c0_9, %c0_10] : memref<8x64xbf16, #tpu.memory_space<vmem>>, vector<8x64xbf16>
    %c2 = arith.constant 2 : index
    %c0_11 = arith.constant 0 : index
    %c0_12 = arith.constant 0 : index
    %10 = vector.load %arg10[%c2, %c0_11, %c0_12] : memref<9x64x128xbf16, #tpu.memory_space<vmem>>, vector<1x64x128xbf16>
    %11 = vector.shape_cast %10 : vector<1x64x128xbf16> to vector<64x128xbf16>
    %cst_13 = arith.constant dense<0.000000e+00> : vector<8x128xf32>
    %12 = tpu.matmul %9, %11, %cst_13 {dimension_numbers = #tpu.dot_dimension_numbers<[1], [0], [0], [1], [0, 0, 1, 1], [], []>} : vector<8x64xbf16>, vector<64x128xbf16>, vector<8x128xf32> -> vector<8x128xf32>
    %13 = arith.addf %8, %12 : vector<8x128xf32>
    %c0_14 = arith.constant 0 : index
    %c0_15 = arith.constant 0 : index
    %14 = vector.load %arg4[%c0_14, %c0_15] : memref<8x64xbf16, #tpu.memory_space<vmem>>, vector<8x64xbf16>
    %c3 = arith.constant 3 : index
    %c0_16 = arith.constant 0 : index
    %c0_17 = arith.constant 0 : index
    %15 = vector.load %arg10[%c3, %c0_16, %c0_17] : memref<9x64x128xbf16, #tpu.memory_space<vmem>>, vector<1x64x128xbf16>
    %16 = vector.shape_cast %15 : vector<1x64x128xbf16> to vector<64x128xbf16>
    %cst_18 = arith.constant dense<0.000000e+00> : vector<8x128xf32>
    %17 = tpu.matmul %14, %16, %cst_18 {dimension_numbers = #tpu.dot_dimension_numbers<[1], [0], [0], [1], [0, 0, 1, 1], [], []>} : vector<8x64xbf16>, vector<64x128xbf16>, vector<8x128xf32> -> vector<8x128xf32>
    %18 = arith.addf %13, %17 : vector<8x128xf32>
    %c0_19 = arith.constant 0 : index
    %c0_20 = arith.constant 0 : index
    %19 = vector.load %arg5[%c0_19, %c0_20] : memref<8x64xbf16, #tpu.memory_space<vmem>>, vector<8x64xbf16>
    %c4 = arith.constant 4 : index
    %c0_21 = arith.constant 0 : index
    %c0_22 = arith.constant 0 : index
    %20 = vector.load %arg10[%c4, %c0_21, %c0_22] : memref<9x64x128xbf16, #tpu.memory_space<vmem>>, vector<1x64x128xbf16>
    %21 = vector.shape_cast %20 : vector<1x64x128xbf16> to vector<64x128xbf16>
    %cst_23 = arith.constant dense<0.000000e+00> : vector<8x128xf32>
    %22 = tpu.matmul %19, %21, %cst_23 {dimension_numbers = #tpu.dot_dimension_numbers<[1], [0], [0], [1], [0, 0, 1, 1], [], []>} : vector<8x64xbf16>, vector<64x128xbf16>, vector<8x128xf32> -> vector<8x128xf32>
    %23 = arith.addf %18, %22 : vector<8x128xf32>
    %c0_24 = arith.constant 0 : index
    %c0_25 = arith.constant 0 : index
    %24 = vector.load %arg6[%c0_24, %c0_25] : memref<8x64xbf16, #tpu.memory_space<vmem>>, vector<8x64xbf16>
    %c5 = arith.constant 5 : index
    %c0_26 = arith.constant 0 : index
    %c0_27 = arith.constant 0 : index
    %25 = vector.load %arg10[%c5, %c0_26, %c0_27] : memref<9x64x128xbf16, #tpu.memory_space<vmem>>, vector<1x64x128xbf16>
    %26 = vector.shape_cast %25 : vector<1x64x128xbf16> to vector<64x128xbf16>
    %cst_28 = arith.constant dense<0.000000e+00> : vector<8x128xf32>
    %27 = tpu.matmul %24, %26, %cst_28 {dimension_numbers = #tpu.dot_dimension_numbers<[1], [0], [0], [1], [0, 0, 1, 1], [], []>} : vector<8x64xbf16>, vector<64x128xbf16>, vector<8x128xf32> -> vector<8x128xf32>
    %28 = arith.addf %23, %27 : vector<8x128xf32>
    %c0_29 = arith.constant 0 : index
    %c0_30 = arith.constant 0 : index
    %29 = vector.load %arg7[%c0_29, %c0_30] : memref<8x64xbf16, #tpu.memory_space<vmem>>, vector<8x64xbf16>
    %c6 = arith.constant 6 : index
    %c0_31 = arith.constant 0 : index
    %c0_32 = arith.constant 0 : index
    %30 = vector.load %arg10[%c6, %c0_31, %c0_32] : memref<9x64x128xbf16, #tpu.memory_space<vmem>>, vector<1x64x128xbf16>
    %31 = vector.shape_cast %30 : vector<1x64x128xbf16> to vector<64x128xbf16>
    %cst_33 = arith.constant dense<0.000000e+00> : vector<8x128xf32>
    %32 = tpu.matmul %29, %31, %cst_33 {dimension_numbers = #tpu.dot_dimension_numbers<[1], [0], [0], [1], [0, 0, 1, 1], [], []>} : vector<8x64xbf16>, vector<64x128xbf16>, vector<8x128xf32> -> vector<8x128xf32>
    %33 = arith.addf %28, %32 : vector<8x128xf32>
    %c0_34 = arith.constant 0 : index
    %c0_35 = arith.constant 0 : index
    %34 = vector.load %arg8[%c0_34, %c0_35] : memref<8x64xbf16, #tpu.memory_space<vmem>>, vector<8x64xbf16>
    %c7 = arith.constant 7 : index
    %c0_36 = arith.constant 0 : index
    %c0_37 = arith.constant 0 : index
    %35 = vector.load %arg10[%c7, %c0_36, %c0_37] : memref<9x64x128xbf16, #tpu.memory_space<vmem>>, vector<1x64x128xbf16>
    %36 = vector.shape_cast %35 : vector<1x64x128xbf16> to vector<64x128xbf16>
    %cst_38 = arith.constant dense<0.000000e+00> : vector<8x128xf32>
    %37 = tpu.matmul %34, %36, %cst_38 {dimension_numbers = #tpu.dot_dimension_numbers<[1], [0], [0], [1], [0, 0, 1, 1], [], []>} : vector<8x64xbf16>, vector<64x128xbf16>, vector<8x128xf32> -> vector<8x128xf32>
    %38 = arith.addf %33, %37 : vector<8x128xf32>
    %c0_39 = arith.constant 0 : index
    %c0_40 = arith.constant 0 : index
    %39 = vector.load %arg9[%c0_39, %c0_40] : memref<8x64xbf16, #tpu.memory_space<vmem>>, vector<8x64xbf16>
    %c8 = arith.constant 8 : index
    %c0_41 = arith.constant 0 : index
    %c0_42 = arith.constant 0 : index
    %40 = vector.load %arg10[%c8, %c0_41, %c0_42] : memref<9x64x128xbf16, #tpu.memory_space<vmem>>, vector<1x64x128xbf16>
    %41 = vector.shape_cast %40 : vector<1x64x128xbf16> to vector<64x128xbf16>
    %cst_43 = arith.constant dense<0.000000e+00> : vector<8x128xf32>
    %42 = tpu.matmul %39, %41, %cst_43 {dimension_numbers = #tpu.dot_dimension_numbers<[1], [0], [0], [1], [0, 0, 1, 1], [], []>} : vector<8x64xbf16>, vector<64x128xbf16>, vector<8x128xf32> -> vector<8x128xf32>
    %43 = arith.addf %38, %42 : vector<8x128xf32>
    %c0_44 = arith.constant 0 : index
    %c0_45 = arith.constant 0 : index
    %44 = vector.load %arg11[%c0_44, %c0_45] : memref<1x128xf32, #tpu.memory_space<vmem>>, vector<1x128xf32>
    %45 = vector.broadcast %44 : vector<1x128xf32> to vector<8x128xf32>
    %46 = arith.mulf %43, %45 : vector<8x128xf32>
    %c0_46 = arith.constant 0 : index
    %c0_47 = arith.constant 0 : index
    %47 = vector.load %arg12[%c0_46, %c0_47] : memref<1x128xf32, #tpu.memory_space<vmem>>, vector<1x128xf32>
    %48 = vector.broadcast %47 : vector<1x128xf32> to vector<8x128xf32>
    %49 = arith.addf %46, %48 : vector<8x128xf32>
    %c0_48 = arith.constant 0 : index
    %c0_49 = arith.constant 0 : index
    %50 = vector.load %arg13[%c0_48, %c0_49] : memref<8x128xf32, #tpu.memory_space<vmem>>, vector<8x128xf32>
    tpu.vector_store %arg13[%c0_48, %c0_49], %49 {strides = array<i32>} : memref<8x128xf32, #tpu.memory_space<vmem>>, vector<8x128xf32>,
    return
  }
  func.func @transform_0(%arg0: i32) -> (i32, i32) {
    %c0_i32 = arith.constant 0 : i32
    %c0_i32_0 = arith.constant 0 : i32
    return %arg0, %c0_i32 : i32, i32
  }
  func.func @transform_1(%arg0: i32) -> (i32, i32) {
    %c0_i32 = arith.constant 0 : i32
    %c0_i32_0 = arith.constant 0 : i32
    return %arg0, %c0_i32 : i32, i32
  }
  func.func @transform_2(%arg0: i32) -> (i32, i32) {
    %c0_i32 = arith.constant 0 : i32
    %c0_i32_0 = arith.constant 0 : i32
    return %arg0, %c0_i32 : i32, i32
  }
  func.func @transform_3(%arg0: i32) -> (i32, i32) {
    %c0_i32 = arith.constant 0 : i32
    %c0_i32_0 = arith.constant 0 : i32
    return %arg0, %c0_i32 : i32, i32
  }
  func.func @transform_4(%arg0: i32) -> (i32, i32) {
    %c0_i32 = arith.constant 0 : i32
    %c0_i32_0 = arith.constant 0 : i32
    return %arg0, %c0_i32 : i32, i32
  }
  func.func @transform_5(%arg0: i32) -> (i32, i32) {
    %c0_i32 = arith.constant 0 : i32
    %c0_i32_0 = arith.constant 0 : i32
    return %arg0, %c0_i32 : i32, i32
  }
  func.func @transform_6(%arg0: i32) -> (i32, i32) {
    %c0_i32 = arith.constant 0 : i32
    %c0_i32_0 = arith.constant 0 : i32
    return %arg0, %c0_i32 : i32, i32
  }
  func.func @transform_7(%arg0: i32) -> (i32, i32) {
    %c0_i32 = arith.constant 0 : i32
    %c0_i32_0 = arith.constant 0 : i32
    return %arg0, %c0_i32 : i32, i32
  }
  func.func @transform_8(%arg0: i32) -> (i32, i32) {
    %c0_i32 = arith.constant 0 : i32
    %c0_i32_0 = arith.constant 0 : i32
    return %arg0, %c0_i32 : i32, i32
  }
  func.func @transform_9(%arg0: i32) -> (i32, i32, i32) {
    %c0_i32 = arith.constant 0 : i32
    %c0_i32_0 = arith.constant 0 : i32
    %c0_i32_1 = arith.constant 0 : i32
    %c0_i32_2 = arith.constant 0 : i32
    return %c0_i32, %c0_i32_0, %c0_i32_1 : i32, i32, i32
  }
  func.func @transform_10(%arg0: i32) -> (i32, i32) {
    %c0_i32 = arith.constant 0 : i32
    %c0_i32_0 = arith.constant 0 : i32
    %c0_i32_1 = arith.constant 0 : i32
    return %c0_i32, %c0_i32_0 : i32, i32
  }
  func.func @transform_11(%arg0: i32) -> (i32, i32) {
    %c0_i32 = arith.constant 0 : i32
    %c0_i32_0 = arith.constant 0 : i32
    %c0_i32_1 = arith.constant 0 : i32
    return %c0_i32, %c0_i32_0 : i32, i32
  }
  func.func @transform_12(%arg0: i32) -> (i32, i32) {
    %c0_i32 = arith.constant 0 : i32
    %c0_i32_0 = arith.constant 0 : i32
    return %arg0, %c0_i32 : i32, i32
  }
}

module attributes {stable_mosaic.version = 11 : i64} {
  func.func @kernel(%arg0: i32, %arg1: memref<8x128xbf16, #tpu.memory_space<vmem>>, %arg2: memref<8x128xbf16, #tpu.memory_space<vmem>>, %arg3: memref<8x128xbf16, #tpu.memory_space<vmem>>, %arg4: memref<8x128xbf16, #tpu.memory_space<vmem>>, %arg5: memref<8x128xbf16, #tpu.memory_space<vmem>>, %arg6: memref<8x128xbf16, #tpu.memory_space<vmem>>, %arg7: memref<8x128xbf16, #tpu.memory_space<vmem>>, %arg8: memref<8x128xbf16, #tpu.memory_space<vmem>>, %arg9: memref<8x128xbf16, #tpu.memory_space<vmem>>, %arg10: memref<9x128x128xbf16, #tpu.memory_space<vmem>>, %arg11: memref<1x128xf32, #tpu.memory_space<vmem>>, %arg12: memref<1x128xf32, #tpu.memory_space<vmem>>, %arg13: memref<8x128xf32, #tpu.memory_space<vmem>>) attributes {dimension_semantics = [#tpu.dimension_semantics<parallel>], iteration_bounds = array<i64: 1>, scalar_prefetch = 0 : i64, scratch_operands = 0 : i64, tpu.core_type = #tpu.core_type<tc>, window_params = [{transform_indices = @transform_0, window_bounds = array<i64: 8, 128>}, {transform_indices = @transform_1, window_bounds = array<i64: 8, 128>}, {transform_indices = @transform_2, window_bounds = array<i64: 8, 128>}, {transform_indices = @transform_3, window_bounds = array<i64: 8, 128>}, {transform_indices = @transform_4, window_bounds = array<i64: 8, 128>}, {transform_indices = @transform_5, window_bounds = array<i64: 8, 128>}, {transform_indices = @transform_6, window_bounds = array<i64: 8, 128>}, {transform_indices = @transform_7, window_bounds = array<i64: 8, 128>}, {transform_indices = @transform_8, window_bounds = array<i64: 8, 128>}, {pipeline_mode = #tpu.pipeline_mode<synchronous>, transform_indices = @transform_9, window_bounds = array<i64: 9, 128, 128>}, {pipeline_mode = #tpu.pipeline_mode<synchronous>, transform_indices = @transform_10, window_bounds = array<i64: 1, 128>}, {pipeline_mode = #tpu.pipeline_mode<synchronous>, transform_indices = @transform_11, window_bounds = array<i64: 1, 128>}, {transform_indices = @transform_12, window_bounds = array<i64: 8, 128>}]} {
    %c0 = arith.constant 0 : index
    %c0_0 = arith.constant 0 : index
    %0 = vector.load %arg1[%c0, %c0_0] : memref<8x128xbf16, #tpu.memory_space<vmem>>, vector<8x128xbf16>
    %c0_1 = arith.constant 0 : index
    %c0_2 = arith.constant 0 : index
    %c0_3 = arith.constant 0 : index
    %1 = vector.load %arg10[%c0_1, %c0_2, %c0_3] : memref<9x128x128xbf16, #tpu.memory_space<vmem>>, vector<1x128x128xbf16>
    %2 = vector.shape_cast %1 : vector<1x128x128xbf16> to vector<128x128xbf16>
    %cst = arith.constant dense<0.000000e+00> : vector<8x128xf32>
    %3 = tpu.matmul %0, %2, %cst {dimension_numbers = #tpu.dot_dimension_numbers<[1], [0], [0], [1], [0, 0, 1, 1], [], []>} : vector<8x128xbf16>, vector<128x128xbf16>, vector<8x128xf32> -> vector<8x128xf32>
    %c0_4 = arith.constant 0 : index
    %c0_5 = arith.constant 0 : index
    %4 = vector.load %arg2[%c0_4, %c0_5] : memref<8x128xbf16, #tpu.memory_space<vmem>>, vector<8x128xbf16>
    %c1 = arith.constant 1 : index
    %c0_6 = arith.constant 0 : index
    %c0_7 = arith.constant 0 : index
    %5 = vector.load %arg10[%c1, %c0_6, %c0_7] : memref<9x128x128xbf16, #tpu.memory_space<vmem>>, vector<1x128x128xbf16>
    %6 = vector.shape_cast %5 : vector<1x128x128xbf16> to vector<128x128xbf16>
    %cst_8 = arith.constant dense<0.000000e+00> : vector<8x128xf32>
    %7 = tpu.matmul %4, %6, %cst_8 {dimension_numbers = #tpu.dot_dimension_numbers<[1], [0], [0], [1], [0, 0, 1, 1], [], []>} : vector<8x128xbf16>, vector<128x128xbf16>, vector<8x128xf32> -> vector<8x128xf32>
    %8 = arith.addf %3, %7 : vector<8x128xf32>
    %c0_9 = arith.constant 0 : index
    %c0_10 = arith.constant 0 : index
    %9 = vector.load %arg3[%c0_9, %c0_10] : memref<8x128xbf16, #tpu.memory_space<vmem>>, vector<8x128xbf16>
    %c2 = arith.constant 2 : index
    %c0_11 = arith.constant 0 : index
    %c0_12 = arith.constant 0 : index
    %10 = vector.load %arg10[%c2, %c0_11, %c0_12] : memref<9x128x128xbf16, #tpu.memory_space<vmem>>, vector<1x128x128xbf16>
    %11 = vector.shape_cast %10 : vector<1x128x128xbf16> to vector<128x128xbf16>
    %cst_13 = arith.constant dense<0.000000e+00> : vector<8x128xf32>
    %12 = tpu.matmul %9, %11, %cst_13 {dimension_numbers = #tpu.dot_dimension_numbers<[1], [0], [0], [1], [0, 0, 1, 1], [], []>} : vector<8x128xbf16>, vector<128x128xbf16>, vector<8x128xf32> -> vector<8x128xf32>
    %13 = arith.addf %8, %12 : vector<8x128xf32>
    %c0_14 = arith.constant 0 : index
    %c0_15 = arith.constant 0 : index
    %14 = vector.load %arg4[%c0_14, %c0_15] : memref<8x128xbf16, #tpu.memory_space<vmem>>, vector<8x128xbf16>
    %c3 = arith.constant 3 : index
    %c0_16 = arith.constant 0 : index
    %c0_17 = arith.constant 0 : index
    %15 = vector.load %arg10[%c3, %c0_16, %c0_17] : memref<9x128x128xbf16, #tpu.memory_space<vmem>>, vector<1x128x128xbf16>
    %16 = vector.shape_cast %15 : vector<1x128x128xbf16> to vector<128x128xbf16>
    %cst_18 = arith.constant dense<0.000000e+00> : vector<8x128xf32>
    %17 = tpu.matmul %14, %16, %cst_18 {dimension_numbers = #tpu.dot_dimension_numbers<[1], [0], [0], [1], [0, 0, 1, 1], [], []>} : vector<8x128xbf16>, vector<128x128xbf16>, vector<8x128xf32> -> vector<8x128xf32>
    %18 = arith.addf %13, %17 : vector<8x128xf32>
    %c0_19 = arith.constant 0 : index
    %c0_20 = arith.constant 0 : index
    %19 = vector.load %arg5[%c0_19, %c0_20] : memref<8x128xbf16, #tpu.memory_space<vmem>>, vector<8x128xbf16>
    %c4 = arith.constant 4 : index
    %c0_21 = arith.constant 0 : index
    %c0_22 = arith.constant 0 : index
    %20 = vector.load %arg10[%c4, %c0_21, %c0_22] : memref<9x128x128xbf16, #tpu.memory_space<vmem>>, vector<1x128x128xbf16>
    %21 = vector.shape_cast %20 : vector<1x128x128xbf16> to vector<128x128xbf16>
    %cst_23 = arith.constant dense<0.000000e+00> : vector<8x128xf32>
    %22 = tpu.matmul %19, %21, %cst_23 {dimension_numbers = #tpu.dot_dimension_numbers<[1], [0], [0], [1], [0, 0, 1, 1], [], []>} : vector<8x128xbf16>, vector<128x128xbf16>, vector<8x128xf32> -> vector<8x128xf32>
    %23 = arith.addf %18, %22 : vector<8x128xf32>
    %c0_24 = arith.constant 0 : index
    %c0_25 = arith.constant 0 : index
    %24 = vector.load %arg6[%c0_24, %c0_25] : memref<8x128xbf16, #tpu.memory_space<vmem>>, vector<8x128xbf16>
    %c5 = arith.constant 5 : index
    %c0_26 = arith.constant 0 : index
    %c0_27 = arith.constant 0 : index
    %25 = vector.load %arg10[%c5, %c0_26, %c0_27] : memref<9x128x128xbf16, #tpu.memory_space<vmem>>, vector<1x128x128xbf16>
    %26 = vector.shape_cast %25 : vector<1x128x128xbf16> to vector<128x128xbf16>
    %cst_28 = arith.constant dense<0.000000e+00> : vector<8x128xf32>
    %27 = tpu.matmul %24, %26, %cst_28 {dimension_numbers = #tpu.dot_dimension_numbers<[1], [0], [0], [1], [0, 0, 1, 1], [], []>} : vector<8x128xbf16>, vector<128x128xbf16>, vector<8x128xf32> -> vector<8x128xf32>
    %28 = arith.addf %23, %27 : vector<8x128xf32>
    %c0_29 = arith.constant 0 : index
    %c0_30 = arith.constant 0 : index
    %29 = vector.load %arg7[%c0_29, %c0_30] : memref<8x128xbf16, #tpu.memory_space<vmem>>, vector<8x128xbf16>
    %c6 = arith.constant 6 : index
    %c0_31 = arith.constant 0 : index
    %c0_32 = arith.constant 0 : index
    %30 = vector.load %arg10[%c6, %c0_31, %c0_32] : memref<9x128x128xbf16, #tpu.memory_space<vmem>>, vector<1x128x128xbf16>
    %31 = vector.shape_cast %30 : vector<1x128x128xbf16> to vector<128x128xbf16>
    %cst_33 = arith.constant dense<0.000000e+00> : vector<8x128xf32>
    %32 = tpu.matmul %29, %31, %cst_33 {dimension_numbers = #tpu.dot_dimension_numbers<[1], [0], [0], [1], [0, 0, 1, 1], [], []>} : vector<8x128xbf16>, vector<128x128xbf16>, vector<8x128xf32> -> vector<8x128xf32>
    %33 = arith.addf %28, %32 : vector<8x128xf32>
    %c0_34 = arith.constant 0 : index
    %c0_35 = arith.constant 0 : index
    %34 = vector.load %arg8[%c0_34, %c0_35] : memref<8x128xbf16, #tpu.memory_space<vmem>>, vector<8x128xbf16>
    %c7 = arith.constant 7 : index
    %c0_36 = arith.constant 0 : index
    %c0_37 = arith.constant 0 : index
    %35 = vector.load %arg10[%c7, %c0_36, %c0_37] : memref<9x128x128xbf16, #tpu.memory_space<vmem>>, vector<1x128x128xbf16>
    %36 = vector.shape_cast %35 : vector<1x128x128xbf16> to vector<128x128xbf16>
    %cst_38 = arith.constant dense<0.000000e+00> : vector<8x128xf32>
    %37 = tpu.matmul %34, %36, %cst_38 {dimension_numbers = #tpu.dot_dimension_numbers<[1], [0], [0], [1], [0, 0, 1, 1], [], []>} : vector<8x128xbf16>, vector<128x128xbf16>, vector<8x128xf32> -> vector<8x128xf32>
    %38 = arith.addf %33, %37 : vector<8x128xf32>
    %c0_39 = arith.constant 0 : index
    %c0_40 = arith.constant 0 : index
    %39 = vector.load %arg9[%c0_39, %c0_40] : memref<8x128xbf16, #tpu.memory_space<vmem>>, vector<8x128xbf16>
    %c8 = arith.constant 8 : index
    %c0_41 = arith.constant 0 : index
    %c0_42 = arith.constant 0 : index
    %40 = vector.load %arg10[%c8, %c0_41, %c0_42] : memref<9x128x128xbf16, #tpu.memory_space<vmem>>, vector<1x128x128xbf16>
    %41 = vector.shape_cast %40 : vector<1x128x128xbf16> to vector<128x128xbf16>
    %cst_43 = arith.constant dense<0.000000e+00> : vector<8x128xf32>
    %42 = tpu.matmul %39, %41, %cst_43 {dimension_numbers = #tpu.dot_dimension_numbers<[1], [0], [0], [1], [0, 0, 1, 1], [], []>} : vector<8x128xbf16>, vector<128x128xbf16>, vector<8x128xf32> -> vector<8x128xf32>
    %43 = arith.addf %38, %42 : vector<8x128xf32>
    %c0_44 = arith.constant 0 : index
    %c0_45 = arith.constant 0 : index
    %44 = vector.load %arg11[%c0_44, %c0_45] : memref<1x128xf32, #tpu.memory_space<vmem>>, vector<1x128xf32>
    %45 = vector.broadcast %44 : vector<1x128xf32> to vector<8x128xf32>
    %46 = arith.mulf %43, %45 : vector<8x128xf32>
    %c0_46 = arith.constant 0 : index
    %c0_47 = arith.constant 0 : index
    %47 = vector.load %arg12[%c0_46, %c0_47] : memref<1x128xf32, #tpu.memory_space<vmem>>, vector<1x128xf32>
    %48 = vector.broadcast %47 : vector<1x128xf32> to vector<8x128xf32>
    %49 = arith.addf %46, %48 : vector<8x128xf32>
    %c0_48 = arith.constant 0 : index
    %c0_49 = arith.constant 0 : index
    %50 = vector.load %arg13[%c0_48, %c0_49] : memref<8x128xf32, #tpu.memory_space<vmem>>, vector<8x128xf32>
    tpu.vector_store %arg13[%c0_48, %c0_49], %49 {strides = array<i32>} : memref<8x128xf32, #tpu.memory_space<vmem>>, vector<8x128xf32>,
    return
  }
  func.func @transform_0(%arg0: i32) -> (i32, i32) {
    %c0_i32 = arith.constant 0 : i32
    %c0_i32_0 = arith.constant 0 : i32
    return %arg0, %c0_i32 : i32, i32
  }
  func.func @transform_1(%arg0: i32) -> (i32, i32) {
    %c0_i32 = arith.constant 0 : i32
    %c0_i32_0 = arith.constant 0 : i32
    return %arg0, %c0_i32 : i32, i32
  }
  func.func @transform_2(%arg0: i32) -> (i32, i32) {
    %c0_i32 = arith.constant 0 : i32
    %c0_i32_0 = arith.constant 0 : i32
    return %arg0, %c0_i32 : i32, i32
  }
  func.func @transform_3(%arg0: i32) -> (i32, i32) {
    %c0_i32 = arith.constant 0 : i32
    %c0_i32_0 = arith.constant 0 : i32
    return %arg0, %c0_i32 : i32, i32
  }
  func.func @transform_4(%arg0: i32) -> (i32, i32) {
    %c0_i32 = arith.constant 0 : i32
    %c0_i32_0 = arith.constant 0 : i32
    return %arg0, %c0_i32 : i32, i32
  }
  func.func @transform_5(%arg0: i32) -> (i32, i32) {
    %c0_i32 = arith.constant 0 : i32
    %c0_i32_0 = arith.constant 0 : i32
    return %arg0, %c0_i32 : i32, i32
  }
  func.func @transform_6(%arg0: i32) -> (i32, i32) {
    %c0_i32 = arith.constant 0 : i32
    %c0_i32_0 = arith.constant 0 : i32
    return %arg0, %c0_i32 : i32, i32
  }
  func.func @transform_7(%arg0: i32) -> (i32, i32) {
    %c0_i32 = arith.constant 0 : i32
    %c0_i32_0 = arith.constant 0 : i32
    return %arg0, %c0_i32 : i32, i32
  }
  func.func @transform_8(%arg0: i32) -> (i32, i32) {
    %c0_i32 = arith.constant 0 : i32
    %c0_i32_0 = arith.constant 0 : i32
    return %arg0, %c0_i32 : i32, i32
  }
  func.func @transform_9(%arg0: i32) -> (i32, i32, i32) {
    %c0_i32 = arith.constant 0 : i32
    %c0_i32_0 = arith.constant 0 : i32
    %c0_i32_1 = arith.constant 0 : i32
    %c0_i32_2 = arith.constant 0 : i32
    return %c0_i32, %c0_i32_0, %c0_i32_1 : i32, i32, i32
  }
  func.func @transform_10(%arg0: i32) -> (i32, i32) {
    %c0_i32 = arith.constant 0 : i32
    %c0_i32_0 = arith.constant 0 : i32
    %c0_i32_1 = arith.constant 0 : i32
    return %c0_i32, %c0_i32_0 : i32, i32
  }
  func.func @transform_11(%arg0: i32) -> (i32, i32) {
    %c0_i32 = arith.constant 0 : i32
    %c0_i32_0 = arith.constant 0 : i32
    %c0_i32_1 = arith.constant 0 : i32
    return %c0_i32, %c0_i32_0 : i32, i32
  }
  func.func @transform_12(%arg0: i32) -> (i32, i32) {
    %c0_i32 = arith.constant 0 : i32
    %c0_i32_0 = arith.constant 0 : i32
    return %arg0, %c0_i32 : i32, i32
  }
}

module attributes {stable_mosaic.version = 11 : i64} {
  func.func @kernel(%arg0: i32, %arg1: memref<4x64xbf16, #tpu.memory_space<vmem>>, %arg2: memref<1x64x128xbf16, #tpu.memory_space<vmem>>, %arg3: memref<1x128xf32, #tpu.memory_space<vmem>>, %arg4: memref<1x128xf32, #tpu.memory_space<vmem>>, %arg5: memref<4x128xf32, #tpu.memory_space<vmem>>) attributes {dimension_semantics = [#tpu.dimension_semantics<parallel>], iteration_bounds = array<i64: 1>, scalar_prefetch = 0 : i64, scratch_operands = 0 : i64, tpu.core_type = #tpu.core_type<tc>, window_params = [{transform_indices = @transform_0, window_bounds = array<i64: 4, 64>}, {pipeline_mode = #tpu.pipeline_mode<synchronous>, transform_indices = @transform_1, window_bounds = array<i64: 1, 64, 128>}, {pipeline_mode = #tpu.pipeline_mode<synchronous>, transform_indices = @transform_2, window_bounds = array<i64: 1, 128>}, {pipeline_mode = #tpu.pipeline_mode<synchronous>, transform_indices = @transform_3, window_bounds = array<i64: 1, 128>}, {transform_indices = @transform_4, window_bounds = array<i64: 4, 128>}]} {
    %c0 = arith.constant 0 : index
    %c0_0 = arith.constant 0 : index
    %0 = vector.load %arg1[%c0, %c0_0] : memref<4x64xbf16, #tpu.memory_space<vmem>>, vector<4x64xbf16>
    %c0_1 = arith.constant 0 : index
    %c0_2 = arith.constant 0 : index
    %c0_3 = arith.constant 0 : index
    %1 = vector.load %arg2[%c0_1, %c0_2, %c0_3] : memref<1x64x128xbf16, #tpu.memory_space<vmem>>, vector<1x64x128xbf16>
    %2 = vector.shape_cast %1 : vector<1x64x128xbf16> to vector<64x128xbf16>
    %cst = arith.constant dense<0.000000e+00> : vector<4x128xf32>
    %3 = tpu.matmul %0, %2, %cst {dimension_numbers = #tpu.dot_dimension_numbers<[1], [0], [0], [1], [0, 0, 1, 1], [], []>} : vector<4x64xbf16>, vector<64x128xbf16>, vector<4x128xf32> -> vector<4x128xf32>
    %c0_4 = arith.constant 0 : index
    %c0_5 = arith.constant 0 : index
    %4 = vector.load %arg3[%c0_4, %c0_5] : memref<1x128xf32, #tpu.memory_space<vmem>>, vector<1x128xf32>
    %5 = vector.broadcast %4 : vector<1x128xf32> to vector<4x128xf32>
    %6 = arith.mulf %3, %5 : vector<4x128xf32>
    %c0_6 = arith.constant 0 : index
    %c0_7 = arith.constant 0 : index
    %7 = vector.load %arg4[%c0_6, %c0_7] : memref<1x128xf32, #tpu.memory_space<vmem>>, vector<1x128xf32>
    %8 = vector.broadcast %7 : vector<1x128xf32> to vector<4x128xf32>
    %9 = arith.addf %6, %8 : vector<4x128xf32>
    %c0_8 = arith.constant 0 : index
    %c0_9 = arith.constant 0 : index
    %10 = vector.load %arg5[%c0_8, %c0_9] : memref<4x128xf32, #tpu.memory_space<vmem>>, vector<4x128xf32>
    tpu.vector_store %arg5[%c0_8, %c0_9], %9 {strides = array<i32>} : memref<4x128xf32, #tpu.memory_space<vmem>>, vector<4x128xf32>,
    return
  }
  func.func @transform_0(%arg0: i32) -> (i32, i32) {
    %c0_i32 = arith.constant 0 : i32
    %c0_i32_0 = arith.constant 0 : i32
    return %arg0, %c0_i32 : i32, i32
  }
  func.func @transform_1(%arg0: i32) -> (i32, i32, i32) {
    %c0_i32 = arith.constant 0 : i32
    %c0_i32_0 = arith.constant 0 : i32
    %c0_i32_1 = arith.constant 0 : i32
    %c0_i32_2 = arith.constant 0 : i32
    return %c0_i32, %c0_i32_0, %c0_i32_1 : i32, i32, i32
  }
  func.func @transform_2(%arg0: i32) -> (i32, i32) {
    %c0_i32 = arith.constant 0 : i32
    %c0_i32_0 = arith.constant 0 : i32
    %c0_i32_1 = arith.constant 0 : i32
    return %c0_i32, %c0_i32_0 : i32, i32
  }
  func.func @transform_3(%arg0: i32) -> (i32, i32) {
    %c0_i32 = arith.constant 0 : i32
    %c0_i32_0 = arith.constant 0 : i32
    %c0_i32_1 = arith.constant 0 : i32
    return %c0_i32, %c0_i32_0 : i32, i32
  }
  func.func @transform_4(%arg0: i32) -> (i32, i32) {
    %c0_i32 = arith.constant 0 : i32
    %c0_i32_0 = arith.constant 0 : i32
    return %arg0, %c0_i32 : i32, i32
  }
}

module attributes {stable_mosaic.version = 11 : i64} {
  func.func @kernel(%arg0: i32, %arg1: memref<4x8x128xf32, #tpu.memory_space<vmem>>, %arg2: memref<4x8x128xf32, #tpu.memory_space<vmem>>) attributes {dimension_semantics = [#tpu.dimension_semantics<parallel>], iteration_bounds = array<i64: 1>, scalar_prefetch = 0 : i64, scratch_operands = 0 : i64, tpu.core_type = #tpu.core_type<tc>, window_params = [{transform_indices = @transform_0, window_bounds = array<i64: 4, 8, 128>}, {transform_indices = @transform_1, window_bounds = array<i64: 4, 8, 128>}]} {
    %cst = arith.constant 0.000000e+00 : f32
    %0 = vector.broadcast %cst : f32 to vector<8x128xf32>
    %c0 = arith.constant 0 : index
    %c0_0 = arith.constant 0 : index
    %c0_1 = arith.constant 0 : index
    %1 = vector.load %arg1[%c0, %c0_0, %c0_1] : memref<4x8x128xf32, #tpu.memory_space<vmem>>, vector<1x8x128xf32>
    %2 = vector.shape_cast %1 : vector<1x8x128xf32> to vector<8x128xf32>
    %3 = arith.subf %2, %0 : vector<8x128xf32>
    %cst_2 = arith.constant 0.666666686 : f32
    %4 = vector.broadcast %cst_2 : f32 to vector<8x128xf32>
    %5 = arith.mulf %3, %4 : vector<8x128xf32>
    %6 = arith.addf %0, %5 : vector<8x128xf32>
    %cst_3 = arith.constant 1.000000e+00 : f32
    %7 = vector.broadcast %cst_3 : f32 to vector<8x128xf32>
    %8 = arith.cmpf oge, %6, %7 : vector<8x128xf32>
    %9 = arith.extui %8 : vector<8x128xi1> to vector<8x128xi32>
    %10 = arith.sitofp %9 : vector<8x128xi32> to vector<8x128xf32>
    %cst_4 = arith.constant 1.000000e+00 : f32
    %11 = vector.broadcast %cst_4 : f32 to vector<8x128xf32>
    %12 = arith.subf %11, %10 : vector<8x128xf32>
    %13 = arith.mulf %6, %12 : vector<8x128xf32>
    %c0_5 = arith.constant 0 : index
    %c0_6 = arith.constant 0 : index
    %c0_7 = arith.constant 0 : index
    %14 = vector.load %arg2[%c0_5, %c0_6, %c0_7] : memref<4x8x128xf32, #tpu.memory_space<vmem>>, vector<1x8x128xf32>
    %15 = vector.shape_cast %14 : vector<1x8x128xf32> to vector<8x128xf32>
    %16 = vector.shape_cast %10 : vector<8x128xf32> to vector<1x8x128xf32>
    tpu.vector_store %arg2[%c0_5, %c0_6, %c0_7], %16 {strides = array<i32>} : memref<4x8x128xf32, #tpu.memory_space<vmem>>, vector<1x8x128xf32>,
    %c1 = arith.constant 1 : index
    %c0_8 = arith.constant 0 : index
    %c0_9 = arith.constant 0 : index
    %17 = vector.load %arg1[%c1, %c0_8, %c0_9] : memref<4x8x128xf32, #tpu.memory_space<vmem>>, vector<1x8x128xf32>
    %18 = vector.shape_cast %17 : vector<1x8x128xf32> to vector<8x128xf32>
    %19 = arith.subf %18, %13 : vector<8x128xf32>
    %cst_10 = arith.constant 0.666666686 : f32
    %20 = vector.broadcast %cst_10 : f32 to vector<8x128xf32>
    %21 = arith.mulf %19, %20 : vector<8x128xf32>
    %22 = arith.addf %13, %21 : vector<8x128xf32>
    %cst_11 = arith.constant 1.000000e+00 : f32
    %23 = vector.broadcast %cst_11 : f32 to vector<8x128xf32>
    %24 = arith.cmpf oge, %22, %23 : vector<8x128xf32>
    %25 = arith.extui %24 : vector<8x128xi1> to vector<8x128xi32>
    %26 = arith.sitofp %25 : vector<8x128xi32> to vector<8x128xf32>
    %cst_12 = arith.constant 1.000000e+00 : f32
    %27 = vector.broadcast %cst_12 : f32 to vector<8x128xf32>
    %28 = arith.subf %27, %26 : vector<8x128xf32>
    %29 = arith.mulf %22, %28 : vector<8x128xf32>
    %c1_13 = arith.constant 1 : index
    %c0_14 = arith.constant 0 : index
    %c0_15 = arith.constant 0 : index
    %30 = vector.load %arg2[%c1_13, %c0_14, %c0_15] : memref<4x8x128xf32, #tpu.memory_space<vmem>>, vector<1x8x128xf32>
    %31 = vector.shape_cast %30 : vector<1x8x128xf32> to vector<8x128xf32>
    %32 = vector.shape_cast %26 : vector<8x128xf32> to vector<1x8x128xf32>
    tpu.vector_store %arg2[%c1_13, %c0_14, %c0_15], %32 {strides = array<i32>} : memref<4x8x128xf32, #tpu.memory_space<vmem>>, vector<1x8x128xf32>,
    %c2 = arith.constant 2 : index
    %c0_16 = arith.constant 0 : index
    %c0_17 = arith.constant 0 : index
    %33 = vector.load %arg1[%c2, %c0_16, %c0_17] : memref<4x8x128xf32, #tpu.memory_space<vmem>>, vector<1x8x128xf32>
    %34 = vector.shape_cast %33 : vector<1x8x128xf32> to vector<8x128xf32>
    %35 = arith.subf %34, %29 : vector<8x128xf32>
    %cst_18 = arith.constant 0.666666686 : f32
    %36 = vector.broadcast %cst_18 : f32 to vector<8x128xf32>
    %37 = arith.mulf %35, %36 : vector<8x128xf32>
    %38 = arith.addf %29, %37 : vector<8x128xf32>
    %cst_19 = arith.constant 1.000000e+00 : f32
    %39 = vector.broadcast %cst_19 : f32 to vector<8x128xf32>
    %40 = arith.cmpf oge, %38, %39 : vector<8x128xf32>
    %41 = arith.extui %40 : vector<8x128xi1> to vector<8x128xi32>
    %42 = arith.sitofp %41 : vector<8x128xi32> to vector<8x128xf32>
    %cst_20 = arith.constant 1.000000e+00 : f32
    %43 = vector.broadcast %cst_20 : f32 to vector<8x128xf32>
    %44 = arith.subf %43, %42 : vector<8x128xf32>
    %45 = arith.mulf %38, %44 : vector<8x128xf32>
    %c2_21 = arith.constant 2 : index
    %c0_22 = arith.constant 0 : index
    %c0_23 = arith.constant 0 : index
    %46 = vector.load %arg2[%c2_21, %c0_22, %c0_23] : memref<4x8x128xf32, #tpu.memory_space<vmem>>, vector<1x8x128xf32>
    %47 = vector.shape_cast %46 : vector<1x8x128xf32> to vector<8x128xf32>
    %48 = vector.shape_cast %42 : vector<8x128xf32> to vector<1x8x128xf32>
    tpu.vector_store %arg2[%c2_21, %c0_22, %c0_23], %48 {strides = array<i32>} : memref<4x8x128xf32, #tpu.memory_space<vmem>>, vector<1x8x128xf32>,
    %c3 = arith.constant 3 : index
    %c0_24 = arith.constant 0 : index
    %c0_25 = arith.constant 0 : index
    %49 = vector.load %arg1[%c3, %c0_24, %c0_25] : memref<4x8x128xf32, #tpu.memory_space<vmem>>, vector<1x8x128xf32>
    %50 = vector.shape_cast %49 : vector<1x8x128xf32> to vector<8x128xf32>
    %51 = arith.subf %50, %45 : vector<8x128xf32>
    %cst_26 = arith.constant 0.666666686 : f32
    %52 = vector.broadcast %cst_26 : f32 to vector<8x128xf32>
    %53 = arith.mulf %51, %52 : vector<8x128xf32>
    %54 = arith.addf %45, %53 : vector<8x128xf32>
    %cst_27 = arith.constant 1.000000e+00 : f32
    %55 = vector.broadcast %cst_27 : f32 to vector<8x128xf32>
    %56 = arith.cmpf oge, %54, %55 : vector<8x128xf32>
    %57 = arith.extui %56 : vector<8x128xi1> to vector<8x128xi32>
    %58 = arith.sitofp %57 : vector<8x128xi32> to vector<8x128xf32>
    %c3_28 = arith.constant 3 : index
    %c0_29 = arith.constant 0 : index
    %c0_30 = arith.constant 0 : index
    %59 = vector.load %arg2[%c3_28, %c0_29, %c0_30] : memref<4x8x128xf32, #tpu.memory_space<vmem>>, vector<1x8x128xf32>
    %60 = vector.shape_cast %59 : vector<1x8x128xf32> to vector<8x128xf32>
    %61 = vector.shape_cast %58 : vector<8x128xf32> to vector<1x8x128xf32>
    tpu.vector_store %arg2[%c3_28, %c0_29, %c0_30], %61 {strides = array<i32>} : memref<4x8x128xf32, #tpu.memory_space<vmem>>, vector<1x8x128xf32>,
    return
  }
  func.func @transform_0(%arg0: i32) -> (i32, i32, i32) {
    %c0_i32 = arith.constant 0 : i32
    %c0_i32_0 = arith.constant 0 : i32
    %c0_i32_1 = arith.constant 0 : i32
    return %c0_i32, %arg0, %c0_i32_0 : i32, i32, i32
  }
  func.func @transform_1(%arg0: i32) -> (i32, i32, i32) {
    %c0_i32 = arith.constant 0 : i32
    %c0_i32_0 = arith.constant 0 : i32
    %c0_i32_1 = arith.constant 0 : i32
    return %c0_i32, %arg0, %c0_i32_0 : i32, i32, i32
  }
}

module attributes {stable_mosaic.version = 11 : i64} {
  func.func @kernel(%arg0: i32, %arg1: memref<4x4x128xf32, #tpu.memory_space<vmem>>, %arg2: memref<4x4x128xf32, #tpu.memory_space<vmem>>) attributes {dimension_semantics = [#tpu.dimension_semantics<parallel>], iteration_bounds = array<i64: 1>, scalar_prefetch = 0 : i64, scratch_operands = 0 : i64, tpu.core_type = #tpu.core_type<tc>, window_params = [{transform_indices = @transform_0, window_bounds = array<i64: 4, 4, 128>}, {transform_indices = @transform_1, window_bounds = array<i64: 4, 4, 128>}]} {
    %cst = arith.constant 0.000000e+00 : f32
    %0 = vector.broadcast %cst : f32 to vector<4x128xf32>
    %c0 = arith.constant 0 : index
    %c0_0 = arith.constant 0 : index
    %c0_1 = arith.constant 0 : index
    %1 = vector.load %arg1[%c0, %c0_0, %c0_1] : memref<4x4x128xf32, #tpu.memory_space<vmem>>, vector<1x4x128xf32>
    %2 = vector.shape_cast %1 : vector<1x4x128xf32> to vector<4x128xf32>
    %3 = arith.subf %2, %0 : vector<4x128xf32>
    %cst_2 = arith.constant 0.666666686 : f32
    %4 = vector.broadcast %cst_2 : f32 to vector<4x128xf32>
    %5 = arith.mulf %3, %4 : vector<4x128xf32>
    %6 = arith.addf %0, %5 : vector<4x128xf32>
    %cst_3 = arith.constant 1.000000e+00 : f32
    %7 = vector.broadcast %cst_3 : f32 to vector<4x128xf32>
    %8 = arith.cmpf oge, %6, %7 : vector<4x128xf32>
    %9 = arith.extui %8 : vector<4x128xi1> to vector<4x128xi32>
    %10 = arith.sitofp %9 : vector<4x128xi32> to vector<4x128xf32>
    %cst_4 = arith.constant 1.000000e+00 : f32
    %11 = vector.broadcast %cst_4 : f32 to vector<4x128xf32>
    %12 = arith.subf %11, %10 : vector<4x128xf32>
    %13 = arith.mulf %6, %12 : vector<4x128xf32>
    %c0_5 = arith.constant 0 : index
    %c0_6 = arith.constant 0 : index
    %c0_7 = arith.constant 0 : index
    %14 = vector.load %arg2[%c0_5, %c0_6, %c0_7] : memref<4x4x128xf32, #tpu.memory_space<vmem>>, vector<1x4x128xf32>
    %15 = vector.shape_cast %14 : vector<1x4x128xf32> to vector<4x128xf32>
    %16 = vector.shape_cast %10 : vector<4x128xf32> to vector<1x4x128xf32>
    tpu.vector_store %arg2[%c0_5, %c0_6, %c0_7], %16 {strides = array<i32>} : memref<4x4x128xf32, #tpu.memory_space<vmem>>, vector<1x4x128xf32>,
    %c1 = arith.constant 1 : index
    %c0_8 = arith.constant 0 : index
    %c0_9 = arith.constant 0 : index
    %17 = vector.load %arg1[%c1, %c0_8, %c0_9] : memref<4x4x128xf32, #tpu.memory_space<vmem>>, vector<1x4x128xf32>
    %18 = vector.shape_cast %17 : vector<1x4x128xf32> to vector<4x128xf32>
    %19 = arith.subf %18, %13 : vector<4x128xf32>
    %cst_10 = arith.constant 0.666666686 : f32
    %20 = vector.broadcast %cst_10 : f32 to vector<4x128xf32>
    %21 = arith.mulf %19, %20 : vector<4x128xf32>
    %22 = arith.addf %13, %21 : vector<4x128xf32>
    %cst_11 = arith.constant 1.000000e+00 : f32
    %23 = vector.broadcast %cst_11 : f32 to vector<4x128xf32>
    %24 = arith.cmpf oge, %22, %23 : vector<4x128xf32>
    %25 = arith.extui %24 : vector<4x128xi1> to vector<4x128xi32>
    %26 = arith.sitofp %25 : vector<4x128xi32> to vector<4x128xf32>
    %cst_12 = arith.constant 1.000000e+00 : f32
    %27 = vector.broadcast %cst_12 : f32 to vector<4x128xf32>
    %28 = arith.subf %27, %26 : vector<4x128xf32>
    %29 = arith.mulf %22, %28 : vector<4x128xf32>
    %c1_13 = arith.constant 1 : index
    %c0_14 = arith.constant 0 : index
    %c0_15 = arith.constant 0 : index
    %30 = vector.load %arg2[%c1_13, %c0_14, %c0_15] : memref<4x4x128xf32, #tpu.memory_space<vmem>>, vector<1x4x128xf32>
    %31 = vector.shape_cast %30 : vector<1x4x128xf32> to vector<4x128xf32>
    %32 = vector.shape_cast %26 : vector<4x128xf32> to vector<1x4x128xf32>
    tpu.vector_store %arg2[%c1_13, %c0_14, %c0_15], %32 {strides = array<i32>} : memref<4x4x128xf32, #tpu.memory_space<vmem>>, vector<1x4x128xf32>,
    %c2 = arith.constant 2 : index
    %c0_16 = arith.constant 0 : index
    %c0_17 = arith.constant 0 : index
    %33 = vector.load %arg1[%c2, %c0_16, %c0_17] : memref<4x4x128xf32, #tpu.memory_space<vmem>>, vector<1x4x128xf32>
    %34 = vector.shape_cast %33 : vector<1x4x128xf32> to vector<4x128xf32>
    %35 = arith.subf %34, %29 : vector<4x128xf32>
    %cst_18 = arith.constant 0.666666686 : f32
    %36 = vector.broadcast %cst_18 : f32 to vector<4x128xf32>
    %37 = arith.mulf %35, %36 : vector<4x128xf32>
    %38 = arith.addf %29, %37 : vector<4x128xf32>
    %cst_19 = arith.constant 1.000000e+00 : f32
    %39 = vector.broadcast %cst_19 : f32 to vector<4x128xf32>
    %40 = arith.cmpf oge, %38, %39 : vector<4x128xf32>
    %41 = arith.extui %40 : vector<4x128xi1> to vector<4x128xi32>
    %42 = arith.sitofp %41 : vector<4x128xi32> to vector<4x128xf32>
    %cst_20 = arith.constant 1.000000e+00 : f32
    %43 = vector.broadcast %cst_20 : f32 to vector<4x128xf32>
    %44 = arith.subf %43, %42 : vector<4x128xf32>
    %45 = arith.mulf %38, %44 : vector<4x128xf32>
    %c2_21 = arith.constant 2 : index
    %c0_22 = arith.constant 0 : index
    %c0_23 = arith.constant 0 : index
    %46 = vector.load %arg2[%c2_21, %c0_22, %c0_23] : memref<4x4x128xf32, #tpu.memory_space<vmem>>, vector<1x4x128xf32>
    %47 = vector.shape_cast %46 : vector<1x4x128xf32> to vector<4x128xf32>
    %48 = vector.shape_cast %42 : vector<4x128xf32> to vector<1x4x128xf32>
    tpu.vector_store %arg2[%c2_21, %c0_22, %c0_23], %48 {strides = array<i32>} : memref<4x4x128xf32, #tpu.memory_space<vmem>>, vector<1x4x128xf32>,
    %c3 = arith.constant 3 : index
    %c0_24 = arith.constant 0 : index
    %c0_25 = arith.constant 0 : index
    %49 = vector.load %arg1[%c3, %c0_24, %c0_25] : memref<4x4x128xf32, #tpu.memory_space<vmem>>, vector<1x4x128xf32>
    %50 = vector.shape_cast %49 : vector<1x4x128xf32> to vector<4x128xf32>
    %51 = arith.subf %50, %45 : vector<4x128xf32>
    %cst_26 = arith.constant 0.666666686 : f32
    %52 = vector.broadcast %cst_26 : f32 to vector<4x128xf32>
    %53 = arith.mulf %51, %52 : vector<4x128xf32>
    %54 = arith.addf %45, %53 : vector<4x128xf32>
    %cst_27 = arith.constant 1.000000e+00 : f32
    %55 = vector.broadcast %cst_27 : f32 to vector<4x128xf32>
    %56 = arith.cmpf oge, %54, %55 : vector<4x128xf32>
    %57 = arith.extui %56 : vector<4x128xi1> to vector<4x128xi32>
    %58 = arith.sitofp %57 : vector<4x128xi32> to vector<4x128xf32>
    %c3_28 = arith.constant 3 : index
    %c0_29 = arith.constant 0 : index
    %c0_30 = arith.constant 0 : index
    %59 = vector.load %arg2[%c3_28, %c0_29, %c0_30] : memref<4x4x128xf32, #tpu.memory_space<vmem>>, vector<1x4x128xf32>
    %60 = vector.shape_cast %59 : vector<1x4x128xf32> to vector<4x128xf32>
    %61 = vector.shape_cast %58 : vector<4x128xf32> to vector<1x4x128xf32>
    tpu.vector_store %arg2[%c3_28, %c0_29, %c0_30], %61 {strides = array<i32>} : memref<4x4x128xf32, #tpu.memory_space<vmem>>, vector<1x4x128xf32>,
    return
  }
  func.func @transform_0(%arg0: i32) -> (i32, i32, i32) {
    %c0_i32 = arith.constant 0 : i32
    %c0_i32_0 = arith.constant 0 : i32
    %c0_i32_1 = arith.constant 0 : i32
    return %c0_i32, %arg0, %c0_i32_0 : i32, i32, i32
  }
  func.func @transform_1(%arg0: i32) -> (i32, i32, i32) {
    %c0_i32 = arith.constant 0 : i32
    %c0_i32_0 = arith.constant 0 : i32
    %c0_i32_1 = arith.constant 0 : i32
    return %c0_i32, %arg0, %c0_i32_0 : i32, i32, i32
  }
}

module attributes {stable_mosaic.version = 11 : i64} {
  func.func @kernel(%arg0: i32, %arg1: memref<16x64xbf16, #tpu.memory_space<vmem>>, %arg2: memref<16x64xbf16, #tpu.memory_space<vmem>>, %arg3: memref<16x64xbf16, #tpu.memory_space<vmem>>, %arg4: memref<16x64xbf16, #tpu.memory_space<vmem>>, %arg5: memref<16x64xbf16, #tpu.memory_space<vmem>>, %arg6: memref<16x64xbf16, #tpu.memory_space<vmem>>, %arg7: memref<16x64xbf16, #tpu.memory_space<vmem>>, %arg8: memref<16x64xbf16, #tpu.memory_space<vmem>>, %arg9: memref<16x64xbf16, #tpu.memory_space<vmem>>, %arg10: memref<9x64x128xbf16, #tpu.memory_space<vmem>>, %arg11: memref<1x128xf32, #tpu.memory_space<vmem>>, %arg12: memref<1x128xf32, #tpu.memory_space<vmem>>, %arg13: memref<16x128xf32, #tpu.memory_space<vmem>>) attributes {dimension_semantics = [#tpu.dimension_semantics<parallel>], iteration_bounds = array<i64: 1>, scalar_prefetch = 0 : i64, scratch_operands = 0 : i64, tpu.core_type = #tpu.core_type<tc>, window_params = [{transform_indices = @transform_0, window_bounds = array<i64: 16, 64>}, {transform_indices = @transform_1, window_bounds = array<i64: 16, 64>}, {transform_indices = @transform_2, window_bounds = array<i64: 16, 64>}, {transform_indices = @transform_3, window_bounds = array<i64: 16, 64>}, {transform_indices = @transform_4, window_bounds = array<i64: 16, 64>}, {transform_indices = @transform_5, window_bounds = array<i64: 16, 64>}, {transform_indices = @transform_6, window_bounds = array<i64: 16, 64>}, {transform_indices = @transform_7, window_bounds = array<i64: 16, 64>}, {transform_indices = @transform_8, window_bounds = array<i64: 16, 64>}, {pipeline_mode = #tpu.pipeline_mode<synchronous>, transform_indices = @transform_9, window_bounds = array<i64: 9, 64, 128>}, {pipeline_mode = #tpu.pipeline_mode<synchronous>, transform_indices = @transform_10, window_bounds = array<i64: 1, 128>}, {pipeline_mode = #tpu.pipeline_mode<synchronous>, transform_indices = @transform_11, window_bounds = array<i64: 1, 128>}, {transform_indices = @transform_12, window_bounds = array<i64: 16, 128>}]} {
    %c0 = arith.constant 0 : index
    %c0_0 = arith.constant 0 : index
    %0 = vector.load %arg1[%c0, %c0_0] : memref<16x64xbf16, #tpu.memory_space<vmem>>, vector<16x64xbf16>
    %c0_1 = arith.constant 0 : index
    %c0_2 = arith.constant 0 : index
    %c0_3 = arith.constant 0 : index
    %1 = vector.load %arg10[%c0_1, %c0_2, %c0_3] : memref<9x64x128xbf16, #tpu.memory_space<vmem>>, vector<1x64x128xbf16>
    %2 = vector.shape_cast %1 : vector<1x64x128xbf16> to vector<64x128xbf16>
    %cst = arith.constant dense<0.000000e+00> : vector<16x128xf32>
    %3 = tpu.matmul %0, %2, %cst {dimension_numbers = #tpu.dot_dimension_numbers<[1], [0], [0], [1], [0, 0, 1, 1], [], []>} : vector<16x64xbf16>, vector<64x128xbf16>, vector<16x128xf32> -> vector<16x128xf32>
    %c0_4 = arith.constant 0 : index
    %c0_5 = arith.constant 0 : index
    %4 = vector.load %arg2[%c0_4, %c0_5] : memref<16x64xbf16, #tpu.memory_space<vmem>>, vector<16x64xbf16>
    %c1 = arith.constant 1 : index
    %c0_6 = arith.constant 0 : index
    %c0_7 = arith.constant 0 : index
    %5 = vector.load %arg10[%c1, %c0_6, %c0_7] : memref<9x64x128xbf16, #tpu.memory_space<vmem>>, vector<1x64x128xbf16>
    %6 = vector.shape_cast %5 : vector<1x64x128xbf16> to vector<64x128xbf16>
    %cst_8 = arith.constant dense<0.000000e+00> : vector<16x128xf32>
    %7 = tpu.matmul %4, %6, %cst_8 {dimension_numbers = #tpu.dot_dimension_numbers<[1], [0], [0], [1], [0, 0, 1, 1], [], []>} : vector<16x64xbf16>, vector<64x128xbf16>, vector<16x128xf32> -> vector<16x128xf32>
    %8 = arith.addf %3, %7 : vector<16x128xf32>
    %c0_9 = arith.constant 0 : index
    %c0_10 = arith.constant 0 : index
    %9 = vector.load %arg3[%c0_9, %c0_10] : memref<16x64xbf16, #tpu.memory_space<vmem>>, vector<16x64xbf16>
    %c2 = arith.constant 2 : index
    %c0_11 = arith.constant 0 : index
    %c0_12 = arith.constant 0 : index
    %10 = vector.load %arg10[%c2, %c0_11, %c0_12] : memref<9x64x128xbf16, #tpu.memory_space<vmem>>, vector<1x64x128xbf16>
    %11 = vector.shape_cast %10 : vector<1x64x128xbf16> to vector<64x128xbf16>
    %cst_13 = arith.constant dense<0.000000e+00> : vector<16x128xf32>
    %12 = tpu.matmul %9, %11, %cst_13 {dimension_numbers = #tpu.dot_dimension_numbers<[1], [0], [0], [1], [0, 0, 1, 1], [], []>} : vector<16x64xbf16>, vector<64x128xbf16>, vector<16x128xf32> -> vector<16x128xf32>
    %13 = arith.addf %8, %12 : vector<16x128xf32>
    %c0_14 = arith.constant 0 : index
    %c0_15 = arith.constant 0 : index
    %14 = vector.load %arg4[%c0_14, %c0_15] : memref<16x64xbf16, #tpu.memory_space<vmem>>, vector<16x64xbf16>
    %c3 = arith.constant 3 : index
    %c0_16 = arith.constant 0 : index
    %c0_17 = arith.constant 0 : index
    %15 = vector.load %arg10[%c3, %c0_16, %c0_17] : memref<9x64x128xbf16, #tpu.memory_space<vmem>>, vector<1x64x128xbf16>
    %16 = vector.shape_cast %15 : vector<1x64x128xbf16> to vector<64x128xbf16>
    %cst_18 = arith.constant dense<0.000000e+00> : vector<16x128xf32>
    %17 = tpu.matmul %14, %16, %cst_18 {dimension_numbers = #tpu.dot_dimension_numbers<[1], [0], [0], [1], [0, 0, 1, 1], [], []>} : vector<16x64xbf16>, vector<64x128xbf16>, vector<16x128xf32> -> vector<16x128xf32>
    %18 = arith.addf %13, %17 : vector<16x128xf32>
    %c0_19 = arith.constant 0 : index
    %c0_20 = arith.constant 0 : index
    %19 = vector.load %arg5[%c0_19, %c0_20] : memref<16x64xbf16, #tpu.memory_space<vmem>>, vector<16x64xbf16>
    %c4 = arith.constant 4 : index
    %c0_21 = arith.constant 0 : index
    %c0_22 = arith.constant 0 : index
    %20 = vector.load %arg10[%c4, %c0_21, %c0_22] : memref<9x64x128xbf16, #tpu.memory_space<vmem>>, vector<1x64x128xbf16>
    %21 = vector.shape_cast %20 : vector<1x64x128xbf16> to vector<64x128xbf16>
    %cst_23 = arith.constant dense<0.000000e+00> : vector<16x128xf32>
    %22 = tpu.matmul %19, %21, %cst_23 {dimension_numbers = #tpu.dot_dimension_numbers<[1], [0], [0], [1], [0, 0, 1, 1], [], []>} : vector<16x64xbf16>, vector<64x128xbf16>, vector<16x128xf32> -> vector<16x128xf32>
    %23 = arith.addf %18, %22 : vector<16x128xf32>
    %c0_24 = arith.constant 0 : index
    %c0_25 = arith.constant 0 : index
    %24 = vector.load %arg6[%c0_24, %c0_25] : memref<16x64xbf16, #tpu.memory_space<vmem>>, vector<16x64xbf16>
    %c5 = arith.constant 5 : index
    %c0_26 = arith.constant 0 : index
    %c0_27 = arith.constant 0 : index
    %25 = vector.load %arg10[%c5, %c0_26, %c0_27] : memref<9x64x128xbf16, #tpu.memory_space<vmem>>, vector<1x64x128xbf16>
    %26 = vector.shape_cast %25 : vector<1x64x128xbf16> to vector<64x128xbf16>
    %cst_28 = arith.constant dense<0.000000e+00> : vector<16x128xf32>
    %27 = tpu.matmul %24, %26, %cst_28 {dimension_numbers = #tpu.dot_dimension_numbers<[1], [0], [0], [1], [0, 0, 1, 1], [], []>} : vector<16x64xbf16>, vector<64x128xbf16>, vector<16x128xf32> -> vector<16x128xf32>
    %28 = arith.addf %23, %27 : vector<16x128xf32>
    %c0_29 = arith.constant 0 : index
    %c0_30 = arith.constant 0 : index
    %29 = vector.load %arg7[%c0_29, %c0_30] : memref<16x64xbf16, #tpu.memory_space<vmem>>, vector<16x64xbf16>
    %c6 = arith.constant 6 : index
    %c0_31 = arith.constant 0 : index
    %c0_32 = arith.constant 0 : index
    %30 = vector.load %arg10[%c6, %c0_31, %c0_32] : memref<9x64x128xbf16, #tpu.memory_space<vmem>>, vector<1x64x128xbf16>
    %31 = vector.shape_cast %30 : vector<1x64x128xbf16> to vector<64x128xbf16>
    %cst_33 = arith.constant dense<0.000000e+00> : vector<16x128xf32>
    %32 = tpu.matmul %29, %31, %cst_33 {dimension_numbers = #tpu.dot_dimension_numbers<[1], [0], [0], [1], [0, 0, 1, 1], [], []>} : vector<16x64xbf16>, vector<64x128xbf16>, vector<16x128xf32> -> vector<16x128xf32>
    %33 = arith.addf %28, %32 : vector<16x128xf32>
    %c0_34 = arith.constant 0 : index
    %c0_35 = arith.constant 0 : index
    %34 = vector.load %arg8[%c0_34, %c0_35] : memref<16x64xbf16, #tpu.memory_space<vmem>>, vector<16x64xbf16>
    %c7 = arith.constant 7 : index
    %c0_36 = arith.constant 0 : index
    %c0_37 = arith.constant 0 : index
    %35 = vector.load %arg10[%c7, %c0_36, %c0_37] : memref<9x64x128xbf16, #tpu.memory_space<vmem>>, vector<1x64x128xbf16>
    %36 = vector.shape_cast %35 : vector<1x64x128xbf16> to vector<64x128xbf16>
    %cst_38 = arith.constant dense<0.000000e+00> : vector<16x128xf32>
    %37 = tpu.matmul %34, %36, %cst_38 {dimension_numbers = #tpu.dot_dimension_numbers<[1], [0], [0], [1], [0, 0, 1, 1], [], []>} : vector<16x64xbf16>, vector<64x128xbf16>, vector<16x128xf32> -> vector<16x128xf32>
    %38 = arith.addf %33, %37 : vector<16x128xf32>
    %c0_39 = arith.constant 0 : index
    %c0_40 = arith.constant 0 : index
    %39 = vector.load %arg9[%c0_39, %c0_40] : memref<16x64xbf16, #tpu.memory_space<vmem>>, vector<16x64xbf16>
    %c8 = arith.constant 8 : index
    %c0_41 = arith.constant 0 : index
    %c0_42 = arith.constant 0 : index
    %40 = vector.load %arg10[%c8, %c0_41, %c0_42] : memref<9x64x128xbf16, #tpu.memory_space<vmem>>, vector<1x64x128xbf16>
    %41 = vector.shape_cast %40 : vector<1x64x128xbf16> to vector<64x128xbf16>
    %cst_43 = arith.constant dense<0.000000e+00> : vector<16x128xf32>
    %42 = tpu.matmul %39, %41, %cst_43 {dimension_numbers = #tpu.dot_dimension_numbers<[1], [0], [0], [1], [0, 0, 1, 1], [], []>} : vector<16x64xbf16>, vector<64x128xbf16>, vector<16x128xf32> -> vector<16x128xf32>
    %43 = arith.addf %38, %42 : vector<16x128xf32>
    %c0_44 = arith.constant 0 : index
    %c0_45 = arith.constant 0 : index
    %44 = vector.load %arg11[%c0_44, %c0_45] : memref<1x128xf32, #tpu.memory_space<vmem>>, vector<1x128xf32>
    %45 = vector.broadcast %44 : vector<1x128xf32> to vector<16x128xf32>
    %46 = arith.mulf %43, %45 : vector<16x128xf32>
    %c0_46 = arith.constant 0 : index
    %c0_47 = arith.constant 0 : index
    %47 = vector.load %arg12[%c0_46, %c0_47] : memref<1x128xf32, #tpu.memory_space<vmem>>, vector<1x128xf32>
    %48 = vector.broadcast %47 : vector<1x128xf32> to vector<16x128xf32>
    %49 = arith.addf %46, %48 : vector<16x128xf32>
    %c0_48 = arith.constant 0 : index
    %c0_49 = arith.constant 0 : index
    %50 = vector.load %arg13[%c0_48, %c0_49] : memref<16x128xf32, #tpu.memory_space<vmem>>, vector<16x128xf32>
    tpu.vector_store %arg13[%c0_48, %c0_49], %49 {strides = array<i32>} : memref<16x128xf32, #tpu.memory_space<vmem>>, vector<16x128xf32>,
    return
  }
  func.func @transform_0(%arg0: i32) -> (i32, i32) {
    %c0_i32 = arith.constant 0 : i32
    %c0_i32_0 = arith.constant 0 : i32
    return %arg0, %c0_i32 : i32, i32
  }
  func.func @transform_1(%arg0: i32) -> (i32, i32) {
    %c0_i32 = arith.constant 0 : i32
    %c0_i32_0 = arith.constant 0 : i32
    return %arg0, %c0_i32 : i32, i32
  }
  func.func @transform_2(%arg0: i32) -> (i32, i32) {
    %c0_i32 = arith.constant 0 : i32
    %c0_i32_0 = arith.constant 0 : i32
    return %arg0, %c0_i32 : i32, i32
  }
  func.func @transform_3(%arg0: i32) -> (i32, i32) {
    %c0_i32 = arith.constant 0 : i32
    %c0_i32_0 = arith.constant 0 : i32
    return %arg0, %c0_i32 : i32, i32
  }
  func.func @transform_4(%arg0: i32) -> (i32, i32) {
    %c0_i32 = arith.constant 0 : i32
    %c0_i32_0 = arith.constant 0 : i32
    return %arg0, %c0_i32 : i32, i32
  }
  func.func @transform_5(%arg0: i32) -> (i32, i32) {
    %c0_i32 = arith.constant 0 : i32
    %c0_i32_0 = arith.constant 0 : i32
    return %arg0, %c0_i32 : i32, i32
  }
  func.func @transform_6(%arg0: i32) -> (i32, i32) {
    %c0_i32 = arith.constant 0 : i32
    %c0_i32_0 = arith.constant 0 : i32
    return %arg0, %c0_i32 : i32, i32
  }
  func.func @transform_7(%arg0: i32) -> (i32, i32) {
    %c0_i32 = arith.constant 0 : i32
    %c0_i32_0 = arith.constant 0 : i32
    return %arg0, %c0_i32 : i32, i32
  }
  func.func @transform_8(%arg0: i32) -> (i32, i32) {
    %c0_i32 = arith.constant 0 : i32
    %c0_i32_0 = arith.constant 0 : i32
    return %arg0, %c0_i32 : i32, i32
  }
  func.func @transform_9(%arg0: i32) -> (i32, i32, i32) {
    %c0_i32 = arith.constant 0 : i32
    %c0_i32_0 = arith.constant 0 : i32
    %c0_i32_1 = arith.constant 0 : i32
    %c0_i32_2 = arith.constant 0 : i32
    return %c0_i32, %c0_i32_0, %c0_i32_1 : i32, i32, i32
  }
  func.func @transform_10(%arg0: i32) -> (i32, i32) {
    %c0_i32 = arith.constant 0 : i32
    %c0_i32_0 = arith.constant 0 : i32
    %c0_i32_1 = arith.constant 0 : i32
    return %c0_i32, %c0_i32_0 : i32, i32
  }
  func.func @transform_11(%arg0: i32) -> (i32, i32) {
    %c0_i32 = arith.constant 0 : i32
    %c0_i32_0 = arith.constant 0 : i32
    %c0_i32_1 = arith.constant 0 : i32
    return %c0_i32, %c0_i32_0 : i32, i32
  }
  func.func @transform_12(%arg0: i32) -> (i32, i32) {
    %c0_i32 = arith.constant 0 : i32
    %c0_i32_0 = arith.constant 0 : i32
    return %arg0, %c0_i32 : i32, i32
  }
}

module attributes {stable_mosaic.version = 11 : i64} {
  func.func @kernel(%arg0: i32, %arg1: memref<16x128xbf16, #tpu.memory_space<vmem>>, %arg2: memref<16x128xbf16, #tpu.memory_space<vmem>>, %arg3: memref<16x128xbf16, #tpu.memory_space<vmem>>, %arg4: memref<16x128xbf16, #tpu.memory_space<vmem>>, %arg5: memref<16x128xbf16, #tpu.memory_space<vmem>>, %arg6: memref<16x128xbf16, #tpu.memory_space<vmem>>, %arg7: memref<16x128xbf16, #tpu.memory_space<vmem>>, %arg8: memref<16x128xbf16, #tpu.memory_space<vmem>>, %arg9: memref<16x128xbf16, #tpu.memory_space<vmem>>, %arg10: memref<9x128x128xbf16, #tpu.memory_space<vmem>>, %arg11: memref<1x128xf32, #tpu.memory_space<vmem>>, %arg12: memref<1x128xf32, #tpu.memory_space<vmem>>, %arg13: memref<16x128xf32, #tpu.memory_space<vmem>>) attributes {dimension_semantics = [#tpu.dimension_semantics<parallel>], iteration_bounds = array<i64: 1>, scalar_prefetch = 0 : i64, scratch_operands = 0 : i64, tpu.core_type = #tpu.core_type<tc>, window_params = [{transform_indices = @transform_0, window_bounds = array<i64: 16, 128>}, {transform_indices = @transform_1, window_bounds = array<i64: 16, 128>}, {transform_indices = @transform_2, window_bounds = array<i64: 16, 128>}, {transform_indices = @transform_3, window_bounds = array<i64: 16, 128>}, {transform_indices = @transform_4, window_bounds = array<i64: 16, 128>}, {transform_indices = @transform_5, window_bounds = array<i64: 16, 128>}, {transform_indices = @transform_6, window_bounds = array<i64: 16, 128>}, {transform_indices = @transform_7, window_bounds = array<i64: 16, 128>}, {transform_indices = @transform_8, window_bounds = array<i64: 16, 128>}, {pipeline_mode = #tpu.pipeline_mode<synchronous>, transform_indices = @transform_9, window_bounds = array<i64: 9, 128, 128>}, {pipeline_mode = #tpu.pipeline_mode<synchronous>, transform_indices = @transform_10, window_bounds = array<i64: 1, 128>}, {pipeline_mode = #tpu.pipeline_mode<synchronous>, transform_indices = @transform_11, window_bounds = array<i64: 1, 128>}, {transform_indices = @transform_12, window_bounds = array<i64: 16, 128>}]} {
    %c0 = arith.constant 0 : index
    %c0_0 = arith.constant 0 : index
    %0 = vector.load %arg1[%c0, %c0_0] : memref<16x128xbf16, #tpu.memory_space<vmem>>, vector<16x128xbf16>
    %c0_1 = arith.constant 0 : index
    %c0_2 = arith.constant 0 : index
    %c0_3 = arith.constant 0 : index
    %1 = vector.load %arg10[%c0_1, %c0_2, %c0_3] : memref<9x128x128xbf16, #tpu.memory_space<vmem>>, vector<1x128x128xbf16>
    %2 = vector.shape_cast %1 : vector<1x128x128xbf16> to vector<128x128xbf16>
    %cst = arith.constant dense<0.000000e+00> : vector<16x128xf32>
    %3 = tpu.matmul %0, %2, %cst {dimension_numbers = #tpu.dot_dimension_numbers<[1], [0], [0], [1], [0, 0, 1, 1], [], []>} : vector<16x128xbf16>, vector<128x128xbf16>, vector<16x128xf32> -> vector<16x128xf32>
    %c0_4 = arith.constant 0 : index
    %c0_5 = arith.constant 0 : index
    %4 = vector.load %arg2[%c0_4, %c0_5] : memref<16x128xbf16, #tpu.memory_space<vmem>>, vector<16x128xbf16>
    %c1 = arith.constant 1 : index
    %c0_6 = arith.constant 0 : index
    %c0_7 = arith.constant 0 : index
    %5 = vector.load %arg10[%c1, %c0_6, %c0_7] : memref<9x128x128xbf16, #tpu.memory_space<vmem>>, vector<1x128x128xbf16>
    %6 = vector.shape_cast %5 : vector<1x128x128xbf16> to vector<128x128xbf16>
    %cst_8 = arith.constant dense<0.000000e+00> : vector<16x128xf32>
    %7 = tpu.matmul %4, %6, %cst_8 {dimension_numbers = #tpu.dot_dimension_numbers<[1], [0], [0], [1], [0, 0, 1, 1], [], []>} : vector<16x128xbf16>, vector<128x128xbf16>, vector<16x128xf32> -> vector<16x128xf32>
    %8 = arith.addf %3, %7 : vector<16x128xf32>
    %c0_9 = arith.constant 0 : index
    %c0_10 = arith.constant 0 : index
    %9 = vector.load %arg3[%c0_9, %c0_10] : memref<16x128xbf16, #tpu.memory_space<vmem>>, vector<16x128xbf16>
    %c2 = arith.constant 2 : index
    %c0_11 = arith.constant 0 : index
    %c0_12 = arith.constant 0 : index
    %10 = vector.load %arg10[%c2, %c0_11, %c0_12] : memref<9x128x128xbf16, #tpu.memory_space<vmem>>, vector<1x128x128xbf16>
    %11 = vector.shape_cast %10 : vector<1x128x128xbf16> to vector<128x128xbf16>
    %cst_13 = arith.constant dense<0.000000e+00> : vector<16x128xf32>
    %12 = tpu.matmul %9, %11, %cst_13 {dimension_numbers = #tpu.dot_dimension_numbers<[1], [0], [0], [1], [0, 0, 1, 1], [], []>} : vector<16x128xbf16>, vector<128x128xbf16>, vector<16x128xf32> -> vector<16x128xf32>
    %13 = arith.addf %8, %12 : vector<16x128xf32>
    %c0_14 = arith.constant 0 : index
    %c0_15 = arith.constant 0 : index
    %14 = vector.load %arg4[%c0_14, %c0_15] : memref<16x128xbf16, #tpu.memory_space<vmem>>, vector<16x128xbf16>
    %c3 = arith.constant 3 : index
    %c0_16 = arith.constant 0 : index
    %c0_17 = arith.constant 0 : index
    %15 = vector.load %arg10[%c3, %c0_16, %c0_17] : memref<9x128x128xbf16, #tpu.memory_space<vmem>>, vector<1x128x128xbf16>
    %16 = vector.shape_cast %15 : vector<1x128x128xbf16> to vector<128x128xbf16>
    %cst_18 = arith.constant dense<0.000000e+00> : vector<16x128xf32>
    %17 = tpu.matmul %14, %16, %cst_18 {dimension_numbers = #tpu.dot_dimension_numbers<[1], [0], [0], [1], [0, 0, 1, 1], [], []>} : vector<16x128xbf16>, vector<128x128xbf16>, vector<16x128xf32> -> vector<16x128xf32>
    %18 = arith.addf %13, %17 : vector<16x128xf32>
    %c0_19 = arith.constant 0 : index
    %c0_20 = arith.constant 0 : index
    %19 = vector.load %arg5[%c0_19, %c0_20] : memref<16x128xbf16, #tpu.memory_space<vmem>>, vector<16x128xbf16>
    %c4 = arith.constant 4 : index
    %c0_21 = arith.constant 0 : index
    %c0_22 = arith.constant 0 : index
    %20 = vector.load %arg10[%c4, %c0_21, %c0_22] : memref<9x128x128xbf16, #tpu.memory_space<vmem>>, vector<1x128x128xbf16>
    %21 = vector.shape_cast %20 : vector<1x128x128xbf16> to vector<128x128xbf16>
    %cst_23 = arith.constant dense<0.000000e+00> : vector<16x128xf32>
    %22 = tpu.matmul %19, %21, %cst_23 {dimension_numbers = #tpu.dot_dimension_numbers<[1], [0], [0], [1], [0, 0, 1, 1], [], []>} : vector<16x128xbf16>, vector<128x128xbf16>, vector<16x128xf32> -> vector<16x128xf32>
    %23 = arith.addf %18, %22 : vector<16x128xf32>
    %c0_24 = arith.constant 0 : index
    %c0_25 = arith.constant 0 : index
    %24 = vector.load %arg6[%c0_24, %c0_25] : memref<16x128xbf16, #tpu.memory_space<vmem>>, vector<16x128xbf16>
    %c5 = arith.constant 5 : index
    %c0_26 = arith.constant 0 : index
    %c0_27 = arith.constant 0 : index
    %25 = vector.load %arg10[%c5, %c0_26, %c0_27] : memref<9x128x128xbf16, #tpu.memory_space<vmem>>, vector<1x128x128xbf16>
    %26 = vector.shape_cast %25 : vector<1x128x128xbf16> to vector<128x128xbf16>
    %cst_28 = arith.constant dense<0.000000e+00> : vector<16x128xf32>
    %27 = tpu.matmul %24, %26, %cst_28 {dimension_numbers = #tpu.dot_dimension_numbers<[1], [0], [0], [1], [0, 0, 1, 1], [], []>} : vector<16x128xbf16>, vector<128x128xbf16>, vector<16x128xf32> -> vector<16x128xf32>
    %28 = arith.addf %23, %27 : vector<16x128xf32>
    %c0_29 = arith.constant 0 : index
    %c0_30 = arith.constant 0 : index
    %29 = vector.load %arg7[%c0_29, %c0_30] : memref<16x128xbf16, #tpu.memory_space<vmem>>, vector<16x128xbf16>
    %c6 = arith.constant 6 : index
    %c0_31 = arith.constant 0 : index
    %c0_32 = arith.constant 0 : index
    %30 = vector.load %arg10[%c6, %c0_31, %c0_32] : memref<9x128x128xbf16, #tpu.memory_space<vmem>>, vector<1x128x128xbf16>
    %31 = vector.shape_cast %30 : vector<1x128x128xbf16> to vector<128x128xbf16>
    %cst_33 = arith.constant dense<0.000000e+00> : vector<16x128xf32>
    %32 = tpu.matmul %29, %31, %cst_33 {dimension_numbers = #tpu.dot_dimension_numbers<[1], [0], [0], [1], [0, 0, 1, 1], [], []>} : vector<16x128xbf16>, vector<128x128xbf16>, vector<16x128xf32> -> vector<16x128xf32>
    %33 = arith.addf %28, %32 : vector<16x128xf32>
    %c0_34 = arith.constant 0 : index
    %c0_35 = arith.constant 0 : index
    %34 = vector.load %arg8[%c0_34, %c0_35] : memref<16x128xbf16, #tpu.memory_space<vmem>>, vector<16x128xbf16>
    %c7 = arith.constant 7 : index
    %c0_36 = arith.constant 0 : index
    %c0_37 = arith.constant 0 : index
    %35 = vector.load %arg10[%c7, %c0_36, %c0_37] : memref<9x128x128xbf16, #tpu.memory_space<vmem>>, vector<1x128x128xbf16>
    %36 = vector.shape_cast %35 : vector<1x128x128xbf16> to vector<128x128xbf16>
    %cst_38 = arith.constant dense<0.000000e+00> : vector<16x128xf32>
    %37 = tpu.matmul %34, %36, %cst_38 {dimension_numbers = #tpu.dot_dimension_numbers<[1], [0], [0], [1], [0, 0, 1, 1], [], []>} : vector<16x128xbf16>, vector<128x128xbf16>, vector<16x128xf32> -> vector<16x128xf32>
    %38 = arith.addf %33, %37 : vector<16x128xf32>
    %c0_39 = arith.constant 0 : index
    %c0_40 = arith.constant 0 : index
    %39 = vector.load %arg9[%c0_39, %c0_40] : memref<16x128xbf16, #tpu.memory_space<vmem>>, vector<16x128xbf16>
    %c8 = arith.constant 8 : index
    %c0_41 = arith.constant 0 : index
    %c0_42 = arith.constant 0 : index
    %40 = vector.load %arg10[%c8, %c0_41, %c0_42] : memref<9x128x128xbf16, #tpu.memory_space<vmem>>, vector<1x128x128xbf16>
    %41 = vector.shape_cast %40 : vector<1x128x128xbf16> to vector<128x128xbf16>
    %cst_43 = arith.constant dense<0.000000e+00> : vector<16x128xf32>
    %42 = tpu.matmul %39, %41, %cst_43 {dimension_numbers = #tpu.dot_dimension_numbers<[1], [0], [0], [1], [0, 0, 1, 1], [], []>} : vector<16x128xbf16>, vector<128x128xbf16>, vector<16x128xf32> -> vector<16x128xf32>
    %43 = arith.addf %38, %42 : vector<16x128xf32>
    %c0_44 = arith.constant 0 : index
    %c0_45 = arith.constant 0 : index
    %44 = vector.load %arg11[%c0_44, %c0_45] : memref<1x128xf32, #tpu.memory_space<vmem>>, vector<1x128xf32>
    %45 = vector.broadcast %44 : vector<1x128xf32> to vector<16x128xf32>
    %46 = arith.mulf %43, %45 : vector<16x128xf32>
    %c0_46 = arith.constant 0 : index
    %c0_47 = arith.constant 0 : index
    %47 = vector.load %arg12[%c0_46, %c0_47] : memref<1x128xf32, #tpu.memory_space<vmem>>, vector<1x128xf32>
    %48 = vector.broadcast %47 : vector<1x128xf32> to vector<16x128xf32>
    %49 = arith.addf %46, %48 : vector<16x128xf32>
    %c0_48 = arith.constant 0 : index
    %c0_49 = arith.constant 0 : index
    %50 = vector.load %arg13[%c0_48, %c0_49] : memref<16x128xf32, #tpu.memory_space<vmem>>, vector<16x128xf32>
    tpu.vector_store %arg13[%c0_48, %c0_49], %49 {strides = array<i32>} : memref<16x128xf32, #tpu.memory_space<vmem>>, vector<16x128xf32>,
    return
  }
  func.func @transform_0(%arg0: i32) -> (i32, i32) {
    %c0_i32 = arith.constant 0 : i32
    %c0_i32_0 = arith.constant 0 : i32
    return %arg0, %c0_i32 : i32, i32
  }
  func.func @transform_1(%arg0: i32) -> (i32, i32) {
    %c0_i32 = arith.constant 0 : i32
    %c0_i32_0 = arith.constant 0 : i32
    return %arg0, %c0_i32 : i32, i32
  }
  func.func @transform_2(%arg0: i32) -> (i32, i32) {
    %c0_i32 = arith.constant 0 : i32
    %c0_i32_0 = arith.constant 0 : i32
    return %arg0, %c0_i32 : i32, i32
  }
  func.func @transform_3(%arg0: i32) -> (i32, i32) {
    %c0_i32 = arith.constant 0 : i32
    %c0_i32_0 = arith.constant 0 : i32
    return %arg0, %c0_i32 : i32, i32
  }
  func.func @transform_4(%arg0: i32) -> (i32, i32) {
    %c0_i32 = arith.constant 0 : i32
    %c0_i32_0 = arith.constant 0 : i32
    return %arg0, %c0_i32 : i32, i32
  }
  func.func @transform_5(%arg0: i32) -> (i32, i32) {
    %c0_i32 = arith.constant 0 : i32
    %c0_i32_0 = arith.constant 0 : i32
    return %arg0, %c0_i32 : i32, i32
  }
  func.func @transform_6(%arg0: i32) -> (i32, i32) {
    %c0_i32 = arith.constant 0 : i32
    %c0_i32_0 = arith.constant 0 : i32
    return %arg0, %c0_i32 : i32, i32
  }
  func.func @transform_7(%arg0: i32) -> (i32, i32) {
    %c0_i32 = arith.constant 0 : i32
    %c0_i32_0 = arith.constant 0 : i32
    return %arg0, %c0_i32 : i32, i32
  }
  func.func @transform_8(%arg0: i32) -> (i32, i32) {
    %c0_i32 = arith.constant 0 : i32
    %c0_i32_0 = arith.constant 0 : i32
    return %arg0, %c0_i32 : i32, i32
  }
  func.func @transform_9(%arg0: i32) -> (i32, i32, i32) {
    %c0_i32 = arith.constant 0 : i32
    %c0_i32_0 = arith.constant 0 : i32
    %c0_i32_1 = arith.constant 0 : i32
    %c0_i32_2 = arith.constant 0 : i32
    return %c0_i32, %c0_i32_0, %c0_i32_1 : i32, i32, i32
  }
  func.func @transform_10(%arg0: i32) -> (i32, i32) {
    %c0_i32 = arith.constant 0 : i32
    %c0_i32_0 = arith.constant 0 : i32
    %c0_i32_1 = arith.constant 0 : i32
    return %c0_i32, %c0_i32_0 : i32, i32
  }
  func.func @transform_11(%arg0: i32) -> (i32, i32) {
    %c0_i32 = arith.constant 0 : i32
    %c0_i32_0 = arith.constant 0 : i32
    %c0_i32_1 = arith.constant 0 : i32
    return %c0_i32, %c0_i32_0 : i32, i32
  }
  func.func @transform_12(%arg0: i32) -> (i32, i32) {
    %c0_i32 = arith.constant 0 : i32
    %c0_i32_0 = arith.constant 0 : i32
    return %arg0, %c0_i32 : i32, i32
  }
}

module attributes {stable_mosaic.version = 11 : i64} {
  func.func @kernel(%arg0: i32, %arg1: memref<4x4x128xf32, #tpu.memory_space<vmem>>, %arg2: memref<1x4x128xf32, #tpu.memory_space<vmem>>) attributes {dimension_semantics = [#tpu.dimension_semantics<parallel>], iteration_bounds = array<i64: 1>, scalar_prefetch = 0 : i64, scratch_operands = 0 : i64, tpu.core_type = #tpu.core_type<tc>, window_params = [{transform_indices = @transform_0, window_bounds = array<i64: 4, 4, 128>}, {transform_indices = @transform_1, window_bounds = array<i64: 1, 4, 128>}]} {
    %cst = arith.constant 0.000000e+00 : f32
    %0 = vector.broadcast %cst : f32 to vector<4x128xf32>
    %cst_0 = arith.constant 0.000000e+00 : f32
    %1 = vector.broadcast %cst_0 : f32 to vector<4x128xf32>
    %c0 = arith.constant 0 : index
    %c0_1 = arith.constant 0 : index
    %c0_2 = arith.constant 0 : index
    %2 = vector.load %arg1[%c0, %c0_1, %c0_2] : memref<4x4x128xf32, #tpu.memory_space<vmem>>, vector<1x4x128xf32>
    %3 = vector.shape_cast %2 : vector<1x4x128xf32> to vector<4x128xf32>
    %4 = arith.subf %3, %0 : vector<4x128xf32>
    %cst_3 = arith.constant 0.666666686 : f32
    %5 = vector.broadcast %cst_3 : f32 to vector<4x128xf32>
    %6 = arith.mulf %4, %5 : vector<4x128xf32>
    %7 = arith.addf %0, %6 : vector<4x128xf32>
    %cst_4 = arith.constant 1.000000e+00 : f32
    %8 = vector.broadcast %cst_4 : f32 to vector<4x128xf32>
    %9 = arith.cmpf oge, %7, %8 : vector<4x128xf32>
    %10 = arith.extui %9 : vector<4x128xi1> to vector<4x128xi32>
    %11 = arith.sitofp %10 : vector<4x128xi32> to vector<4x128xf32>
    %cst_5 = arith.constant 1.000000e+00 : f32
    %12 = vector.broadcast %cst_5 : f32 to vector<4x128xf32>
    %13 = arith.subf %12, %11 : vector<4x128xf32>
    %14 = arith.mulf %7, %13 : vector<4x128xf32>
    %15 = arith.addf %1, %11 : vector<4x128xf32>
    %c1 = arith.constant 1 : index
    %c0_6 = arith.constant 0 : index
    %c0_7 = arith.constant 0 : index
    %16 = vector.load %arg1[%c1, %c0_6, %c0_7] : memref<4x4x128xf32, #tpu.memory_space<vmem>>, vector<1x4x128xf32>
    %17 = vector.shape_cast %16 : vector<1x4x128xf32> to vector<4x128xf32>
    %18 = arith.subf %17, %14 : vector<4x128xf32>
    %cst_8 = arith.constant 0.666666686 : f32
    %19 = vector.broadcast %cst_8 : f32 to vector<4x128xf32>
    %20 = arith.mulf %18, %19 : vector<4x128xf32>
    %21 = arith.addf %14, %20 : vector<4x128xf32>
    %cst_9 = arith.constant 1.000000e+00 : f32
    %22 = vector.broadcast %cst_9 : f32 to vector<4x128xf32>
    %23 = arith.cmpf oge, %21, %22 : vector<4x128xf32>
    %24 = arith.extui %23 : vector<4x128xi1> to vector<4x128xi32>
    %25 = arith.sitofp %24 : vector<4x128xi32> to vector<4x128xf32>
    %cst_10 = arith.constant 1.000000e+00 : f32
    %26 = vector.broadcast %cst_10 : f32 to vector<4x128xf32>
    %27 = arith.subf %26, %25 : vector<4x128xf32>
    %28 = arith.mulf %21, %27 : vector<4x128xf32>
    %29 = arith.addf %15, %25 : vector<4x128xf32>
    %c2 = arith.constant 2 : index
    %c0_11 = arith.constant 0 : index
    %c0_12 = arith.constant 0 : index
    %30 = vector.load %arg1[%c2, %c0_11, %c0_12] : memref<4x4x128xf32, #tpu.memory_space<vmem>>, vector<1x4x128xf32>
    %31 = vector.shape_cast %30 : vector<1x4x128xf32> to vector<4x128xf32>
    %32 = arith.subf %31, %28 : vector<4x128xf32>
    %cst_13 = arith.constant 0.666666686 : f32
    %33 = vector.broadcast %cst_13 : f32 to vector<4x128xf32>
    %34 = arith.mulf %32, %33 : vector<4x128xf32>
    %35 = arith.addf %28, %34 : vector<4x128xf32>
    %cst_14 = arith.constant 1.000000e+00 : f32
    %36 = vector.broadcast %cst_14 : f32 to vector<4x128xf32>
    %37 = arith.cmpf oge, %35, %36 : vector<4x128xf32>
    %38 = arith.extui %37 : vector<4x128xi1> to vector<4x128xi32>
    %39 = arith.sitofp %38 : vector<4x128xi32> to vector<4x128xf32>
    %cst_15 = arith.constant 1.000000e+00 : f32
    %40 = vector.broadcast %cst_15 : f32 to vector<4x128xf32>
    %41 = arith.subf %40, %39 : vector<4x128xf32>
    %42 = arith.mulf %35, %41 : vector<4x128xf32>
    %43 = arith.addf %29, %39 : vector<4x128xf32>
    %c3 = arith.constant 3 : index
    %c0_16 = arith.constant 0 : index
    %c0_17 = arith.constant 0 : index
    %44 = vector.load %arg1[%c3, %c0_16, %c0_17] : memref<4x4x128xf32, #tpu.memory_space<vmem>>, vector<1x4x128xf32>
    %45 = vector.shape_cast %44 : vector<1x4x128xf32> to vector<4x128xf32>
    %46 = arith.subf %45, %42 : vector<4x128xf32>
    %cst_18 = arith.constant 0.666666686 : f32
    %47 = vector.broadcast %cst_18 : f32 to vector<4x128xf32>
    %48 = arith.mulf %46, %47 : vector<4x128xf32>
    %49 = arith.addf %42, %48 : vector<4x128xf32>
    %cst_19 = arith.constant 1.000000e+00 : f32
    %50 = vector.broadcast %cst_19 : f32 to vector<4x128xf32>
    %51 = arith.cmpf oge, %49, %50 : vector<4x128xf32>
    %52 = arith.extui %51 : vector<4x128xi1> to vector<4x128xi32>
    %53 = arith.sitofp %52 : vector<4x128xi32> to vector<4x128xf32>
    %54 = arith.addf %43, %53 : vector<4x128xf32>
    %cst_20 = arith.constant 2.500000e-01 : f32
    %55 = vector.broadcast %cst_20 : f32 to vector<4x128xf32>
    %56 = arith.mulf %54, %55 : vector<4x128xf32>
    %c0_21 = arith.constant 0 : index
    %c0_22 = arith.constant 0 : index
    %c0_23 = arith.constant 0 : index
    %57 = vector.load %arg2[%c0_21, %c0_22, %c0_23] : memref<1x4x128xf32, #tpu.memory_space<vmem>>, vector<1x4x128xf32>
    %58 = vector.shape_cast %57 : vector<1x4x128xf32> to vector<4x128xf32>
    %59 = vector.shape_cast %56 : vector<4x128xf32> to vector<1x4x128xf32>
    tpu.vector_store %arg2[%c0_21, %c0_22, %c0_23], %59 {strides = array<i32>} : memref<1x4x128xf32, #tpu.memory_space<vmem>>, vector<1x4x128xf32>,
    return
  }
  func.func @transform_0(%arg0: i32) -> (i32, i32, i32) {
    %c0_i32 = arith.constant 0 : i32
    %c0_i32_0 = arith.constant 0 : i32
    %c0_i32_1 = arith.constant 0 : i32
    return %c0_i32, %arg0, %c0_i32_0 : i32, i32, i32
  }
  func.func @transform_1(%arg0: i32) -> (i32, i32, i32) {
    %c0_i32 = arith.constant 0 : i32
    %c0_i32_0 = arith.constant 0 : i32
    %c0_i32_1 = arith.constant 0 : i32
    return %c0_i32, %arg0, %c0_i32_0 : i32, i32, i32
  }
}

module attributes {stable_mosaic.version = 11 : i64} {
  func.func @_fc_kernel(%arg0: i32, %arg1: memref<2x64xf32, #tpu.memory_space<vmem>>, %arg2: memref<64x10xf32, #tpu.memory_space<vmem>>, %arg3: memref<1x10xf32, #tpu.memory_space<vmem>>, %arg4: memref<2x10xf32, #tpu.memory_space<vmem>>) attributes {dimension_semantics = [#tpu.dimension_semantics<arbitrary>], iteration_bounds = array<i64: 1>, scalar_prefetch = 0 : i64, scratch_operands = 0 : i64, tpu.core_type = #tpu.core_type<tc>, window_params = [{pipeline_mode = #tpu.pipeline_mode<synchronous>, transform_indices = @transform_0, window_bounds = array<i64: 2, 64>}, {pipeline_mode = #tpu.pipeline_mode<synchronous>, transform_indices = @transform_1, window_bounds = array<i64: 64, 10>}, {pipeline_mode = #tpu.pipeline_mode<synchronous>, transform_indices = @transform_2, window_bounds = array<i64: 1, 10>}, {pipeline_mode = #tpu.pipeline_mode<synchronous>, transform_indices = @transform_3, window_bounds = array<i64: 2, 10>}]} {
    %c0 = arith.constant 0 : index
    %c0_0 = arith.constant 0 : index
    %0 = vector.load %arg1[%c0, %c0_0] : memref<2x64xf32, #tpu.memory_space<vmem>>, vector<2x64xf32>
    %c0_1 = arith.constant 0 : index
    %c0_2 = arith.constant 0 : index
    %1 = vector.load %arg2[%c0_1, %c0_2] : memref<64x10xf32, #tpu.memory_space<vmem>>, vector<64x10xf32>
    %cst = arith.constant dense<0.000000e+00> : vector<2x10xf32>
    %2 = tpu.matmul %0, %1, %cst {dimension_numbers = #tpu.dot_dimension_numbers<[1], [0], [0], [1], [0, 0, 1, 1], [], []>} : vector<2x64xf32>, vector<64x10xf32>, vector<2x10xf32> -> vector<2x10xf32>
    %c0_3 = arith.constant 0 : index
    %c0_4 = arith.constant 0 : index
    %3 = vector.load %arg3[%c0_3, %c0_4] : memref<1x10xf32, #tpu.memory_space<vmem>>, vector<1x10xf32>
    %4 = vector.broadcast %3 : vector<1x10xf32> to vector<2x10xf32>
    %5 = arith.addf %2, %4 : vector<2x10xf32>
    %c0_5 = arith.constant 0 : index
    %c0_6 = arith.constant 0 : index
    %6 = vector.load %arg4[%c0_5, %c0_6] : memref<2x10xf32, #tpu.memory_space<vmem>>, vector<2x10xf32>
    tpu.vector_store %arg4[%c0_5, %c0_6], %5 {strides = array<i32>} : memref<2x10xf32, #tpu.memory_space<vmem>>, vector<2x10xf32>,
    return
  }
  func.func @transform_0(%arg0: i32) -> (i32, i32) {
    %c0_i32 = arith.constant 0 : i32
    %c0_i32_0 = arith.constant 0 : i32
    %c0_i32_1 = arith.constant 0 : i32
    return %c0_i32, %c0_i32_0 : i32, i32
  }
  func.func @transform_1(%arg0: i32) -> (i32, i32) {
    %c0_i32 = arith.constant 0 : i32
    %c0_i32_0 = arith.constant 0 : i32
    %c0_i32_1 = arith.constant 0 : i32
    return %c0_i32, %c0_i32_0 : i32, i32
  }
  func.func @transform_2(%arg0: i32) -> (i32, i32) {
    %c0_i32 = arith.constant 0 : i32
    %c0_i32_0 = arith.constant 0 : i32
    %c0_i32_1 = arith.constant 0 : i32
    return %c0_i32, %c0_i32_0 : i32, i32
  }
  func.func @transform_3(%arg0: i32) -> (i32, i32) {
    %c0_i32 = arith.constant 0 : i32
    %c0_i32_0 = arith.constant 0 : i32
    %c0_i32_1 = arith.constant 0 : i32
    return %c0_i32, %c0_i32_0 : i32, i32
  }
}

</mosaic_0001>

<llo_original>
// kernel: _lambda_.20
$region0: #{_lambda_.20}
  #allocation0 [shape = 'u32[]', space=smem, size = 0x4, offset = 0x4, fixed_abs, tag = 'smem constant byte address 0x4 - core index']
  #allocation1 [shape = 'u32[72,128]{1,0:T(1,128)}', space=vmem, size = 0x9000, scoped, tag = 'internal scratch']
  %s0 = inlined_call_operand.vmem [shape: f32[1,16,128], index: 0, kind: input, shape index: {}]
  %s1 = inlined_call_operand.vmem [shape: f32[4,16,128], index: 1, kind: output, shape index: {}]
  %s2 = sld [smem:[#allocation0]]
  $region14: #{_lambda_.20} parent=0
    _
  %s4 = ssub.s32 1, %s2
  %s5 = scalar_select 0, %s4, %s2
  // Predicated region
  $region2: #{_lambda_.20} parent=0 // pred_check
    _
  $region3: #{_lambda_.20} parent=0 // pred_check_branch
    %7 = sbr.rel (0) target = $region5
  $region4: #{_lambda_.20} parent=0 // pred_region
    _
  $region5: #{_lambda_.20} parent=0 // pred_fallthru
    _
  %v8 = vld [vmem:[%s0] sm:$0xff]
  %v9 = vld [vmem:[%s0 + $0x8] sm:$0xff]
  %v10 = vmul.f32 %v8, 0.6666667
  %v11 = vmul.f32 %v9, 0.6666667
  %v12 = vadd.f32 %v10, 0.0
  %v13 = vadd.f32 %v11, 0.0
  %vm14 = vcmp.ge.f32.partialorder %v12, 1.0
  %vm15 = vcmp.ge.f32.partialorder %v13, 1.0
  %v16 = vsel %vm14, 1, 0
  %v17 = vsel %vm15, 1, 0
  %v18 = vcvt.s32.f32 %v16
  %v19 = vcvt.s32.f32 %v17
  %v20 = vsub.f32 1.0, %v18
  %v21 = vsub.f32 1.0, %v19
  %v22 = vmul.f32 %v12, %v20
  %v23 = vmul.f32 %v13, %v21
  %24 = vst [vmem:[%s1] sm:$0xff] %v18
  %25 = vst [vmem:[%s1 + $0x8] sm:$0xff] %v19
  %v26 = vld [vmem:[%s0] sm:$0xff]
  %v27 = vld [vmem:[%s0 + $0x8] sm:$0xff]
  %v28 = vsub.f32 %v26, %v22
  %v29 = vsub.f32 %v27, %v23
  %v30 = vmul.f32 %v28, 0.6666667
  %v31 = vmul.f32 %v29, 0.6666667
  %v32 = vadd.f32 %v22, %v30
  %v33 = vadd.f32 %v23, %v31
  %vm34 = vcmp.ge.f32.partialorder %v32, 1.0
  %vm35 = vcmp.ge.f32.partialorder %v33, 1.0
  %v36 = vsel %vm34, 1, 0
  %v37 = vsel %vm35, 1, 0
  %v38 = vcvt.s32.f32 %v36
  %v39 = vcvt.s32.f32 %v37
  %v40 = vsub.f32 1.0, %v38
  %v41 = vsub.f32 1.0, %v39
  %v42 = vmul.f32 %v32, %v40
  %v43 = vmul.f32 %v33, %v41
  %s44 = scalar_lea.vmem %s1, 16
  %45 = vst [vmem:[%s44] sm:$0xff] %v38
  %46 = vst [vmem:[%s44 + $0x8] sm:$0xff] %v39
  %v47 = vld [vmem:[%s0] sm:$0xff]
  %v48 = vld [vmem:[%s0 + $0x8] sm:$0xff]
  %v49 = vsub.f32 %v47, %v42
  %v50 = vsub.f32 %v48, %v43
  %v51 = vmul.f32 %v49, 0.6666667
  %v52 = vmul.f32 %v50, 0.6666667
  %v53 = vadd.f32 %v42, %v51
  %v54 = vadd.f32 %v43, %v52
  %vm55 = vcmp.ge.f32.partialorder %v53, 1.0
  %vm56 = vcmp.ge.f32.partialorder %v54, 1.0
  %v57 = vsel %vm55, 1, 0
  %v58 = vsel %vm56, 1, 0
  %v59 = vcvt.s32.f32 %v57
  %v60 = vcvt.s32.f32 %v58
  %v61 = vsub.f32 1.0, %v59
  %v62 = vsub.f32 1.0, %v60
  %v63 = vmul.f32 %v53, %v61
  %v64 = vmul.f32 %v54, %v62
  %s65 = scalar_lea.vmem %s1, 32
  %66 = vst [vmem:[%s65] sm:$0xff] %v59
  %67 = vst [vmem:[%s65 + $0x8] sm:$0xff] %v60
  %v68 = vld [vmem:[%s0] sm:$0xff]
  %v69 = vld [vmem:[%s0 + $0x8] sm:$0xff]
  %v70 = vsub.f32 %v68, %v63
  %v71 = vsub.f32 %v69, %v64
  %v72 = vmul.f32 %v70, 0.6666667
  %v73 = vmul.f32 %v71, 0.6666667
  %v74 = vadd.f32 %v63, %v72
  %v75 = vadd.f32 %v64, %v73
  %vm76 = vcmp.ge.f32.partialorder %v74, 1.0
  %vm77 = vcmp.ge.f32.partialorder %v75, 1.0
  %v78 = vsel %vm76, 1, 0
  %v79 = vsel %vm77, 1, 0
  %v80 = vcvt.s32.f32 %v78
  %v81 = vcvt.s32.f32 %v79
  %s82 = scalar_lea.vmem %s1, 48
  %83 = vst [vmem:[%s82] sm:$0xff] %v80
  %84 = vst [vmem:[%s82 + $0x8] sm:$0xff] %v81
  // Predicated region
  $region6: #{_lambda_.20} parent=0 // pred_check
    _
  $region7: #{_lambda_.20} parent=0 // pred_check_branch
    %86 = sbr.rel (0) target = $region9
  $region8: #{_lambda_.20} parent=0 // pred_region
    _
  $region9: #{_lambda_.20} parent=0 // pred_fallthru
    _
  // Predicated region
  $region10: #{_lambda_.20} parent=0 // pred_check
    _
  $region11: #{_lambda_.20} parent=0 // pred_check_branch
    %88 = sbr.rel (0) target = $region13
  $region12: #{_lambda_.20} parent=0 // pred_region
    _
  $region13: #{_lambda_.20} parent=0 // pred_fallthru
    _

// kernel: _lambda_.18
$region0: #{_lambda_.18}
  #allocation0 [shape = 'u32[]', space=smem, size = 0x4, offset = 0x4, fixed_abs, tag = 'smem constant byte address 0x4 - core index']
  #allocation1 [shape = 'u32[72,128]{1,0:T(1,128)}', space=vmem, size = 0x9000, scoped, tag = 'internal scratch']
  %s0 = inlined_call_operand.vmem [shape: bf16[64,16], index: 0, kind: input, shape index: {}]
  %s1 = inlined_call_operand.vmem [shape: bf16[64,16], index: 1, kind: input, shape index: {}]
  %s2 = inlined_call_operand.vmem [shape: bf16[64,16], index: 2, kind: input, shape index: {}]
  %s3 = inlined_call_operand.vmem [shape: bf16[64,16], index: 3, kind: input, shape index: {}]
  %s4 = inlined_call_operand.vmem [shape: bf16[64,16], index: 4, kind: input, shape index: {}]
  %s5 = inlined_call_operand.vmem [shape: bf16[64,16], index: 5, kind: input, shape index: {}]
  %s6 = inlined_call_operand.vmem [shape: bf16[64,16], index: 6, kind: input, shape index: {}]
  %s7 = inlined_call_operand.vmem [shape: bf16[64,16], index: 7, kind: input, shape index: {}]
  %s8 = inlined_call_operand.vmem [shape: bf16[64,16], index: 8, kind: input, shape index: {}]
  %s9 = inlined_call_operand.vmem [shape: bf16[9,16,128], index: 9, kind: input, shape index: {}]
  %s10 = inlined_call_operand.vmem [shape: f32[1,128], index: 10, kind: input, shape index: {}]
  %s11 = inlined_call_operand.vmem [shape: f32[1,128], index: 11, kind: input, shape index: {}]
  %s12 = inlined_call_operand.vmem [shape: f32[64,128], index: 12, kind: output, shape index: {}]
  %s13 = sld [smem:[#allocation0]]
  $region58: #{_lambda_.18} parent=0
    _
  %s15 = ssub.s32 1, %s13
  %s16 = scalar_select 0, %s15, %s13
  // Predicated region
  $region2: #{_lambda_.18} parent=0 // pred_check
    _
  $region3: #{_lambda_.18} parent=0 // pred_check_branch
    %18 = sbr.rel (0) target = $region5
  $region4: #{_lambda_.18} parent=0 // pred_region
    _
  $region5: #{_lambda_.18} parent=0 // pred_fallthru
    _
  // Predicated region
  $region6: #{_lambda_.18} parent=0 // pred_check
    _
  $region7: #{_lambda_.18} parent=0 // pred_check_branch
    %20 = sbr.rel (0) target = $region9
  $region8: #{_lambda_.18} parent=0 // pred_region
    _
  $region9: #{_lambda_.18} parent=0 // pred_fallthru
    _
  // Predicated region
  $region10: #{_lambda_.18} parent=0 // pred_check
    _
  $region11: #{_lambda_.18} parent=0 // pred_check_branch
    %22 = sbr.rel (0) target = $region13
  $region12: #{_lambda_.18} parent=0 // pred_region
    _
  $region13: #{_lambda_.18} parent=0 // pred_fallthru
    _
  // Predicated region
  $region14: #{_lambda_.18} parent=0 // pred_check
    _
  $region15: #{_lambda_.18} parent=0 // pred_check_branch
    %24 = sbr.rel (0) target = $region17
  $region16: #{_lambda_.18} parent=0 // pred_region
    _
  $region17: #{_lambda_.18} parent=0 // pred_fallthru
    _
  // Predicated region
  $region18: #{_lambda_.18} parent=0 // pred_check
    _
  $region19: #{_lambda_.18} parent=0 // pred_check_branch
    %26 = sbr.rel (0) target = $region21
  $region20: #{_lambda_.18} parent=0 // pred_region
    _
  $region21: #{_lambda_.18} parent=0 // pred_fallthru
    _
  // Predicated region
  $region22: #{_lambda_.18} parent=0 // pred_check
    _
  $region23: #{_lambda_.18} parent=0 // pred_check_branch
    %28 = sbr.rel (0) target = $region25
  $region24: #{_lambda_.18} parent=0 // pred_region
    _
  $region25: #{_lambda_.18} parent=0 // pred_fallthru
    _
  // Predicated region
  $region26: #{_lambda_.18} parent=0 // pred_check
    _
  $region27: #{_lambda_.18} parent=0 // pred_check_branch
    %30 = sbr.rel (0) target = $region29
  $region28: #{_lambda_.18} parent=0 // pred_region
    _
  $region29: #{_lambda_.18} parent=0 // pred_fallthru
    _
  // Predicated region
  $region30: #{_lambda_.18} parent=0 // pred_check
    _
  $region31: #{_lambda_.18} parent=0 // pred_check_branch
    %32 = sbr.rel (0) target = $region33
  $region32: #{_lambda_.18} parent=0 // pred_region
    _
  $region33: #{_lambda_.18} parent=0 // pred_fallthru
    _
  // Predicated region
  $region34: #{_lambda_.18} parent=0 // pred_check
    _
  $region35: #{_lambda_.18} parent=0 // pred_check_branch
    %34 = sbr.rel (0) target = $region37
  $region36: #{_lambda_.18} parent=0 // pred_region
    _
  $region37: #{_lambda_.18} parent=0 // pred_fallthru
    _
  // Predicated region
  $region38: #{_lambda_.18} parent=0 // pred_check
    _
  $region39: #{_lambda_.18} parent=0 // pred_check_branch
    %36 = sbr.rel (0) target = $region41
  $region40: #{_lambda_.18} parent=0 // pred_region
    _
  $region41: #{_lambda_.18} parent=0 // pred_fallthru
    _
  // Predicated region
  $region42: #{_lambda_.18} parent=0 // pred_check
    _
  $region43: #{_lambda_.18} parent=0 // pred_check_branch
    %38 = sbr.rel (0) target = $region45
  $region44: #{_lambda_.18} parent=0 // pred_region
    _
  $region45: #{_lambda_.18} parent=0 // pred_fallthru
    _
  // Predicated region
  $region46: #{_lambda_.18} parent=0 // pred_check
    _
  $region47: #{_lambda_.18} parent=0 // pred_check_branch
    %40 = sbr.rel (0) target = $region49
  $region48: #{_lambda_.18} parent=0 // pred_region
    _
  $region49: #{_lambda_.18} parent=0 // pred_fallthru
    _
  %v42 = vld [vmem:[%s0] sm:$0xf]
  %v43 = vld [vmem:[%s0 + $0x4] sm:$0xf]
  %v44 = vld [vmem:[%s0 + $0x8] sm:$0xf]
  %v45 = vld [vmem:[%s0 + $0xc] sm:$0xf]
  %v46 = vld [vmem:[%s0 + $0x10] sm:$0xf]
  %v47 = vld [vmem:[%s0 + $0x14] sm:$0xf]
  %v48 = vld [vmem:[%s0 + $0x18] sm:$0xf]
  %v49 = vld [vmem:[%s0 + $0x1c] sm:$0xf]
  %v50 = vld [vmem:[%s9] sm:$0xf]
  %v51 = vld [vmem:[%s9 + $0x4] sm:$0xf]
  %v52 = vld [vmem:[%s1] sm:$0xf]
  %v53 = vld [vmem:[%s1 + $0x4] sm:$0xf]
  %v54 = vld [vmem:[%s1 + $0x8] sm:$0xf]
  %v55 = vld [vmem:[%s1 + $0xc] sm:$0xf]
  %v56 = vld [vmem:[%s1 + $0x10] sm:$0xf]
  %v57 = vld [vmem:[%s1 + $0x14] sm:$0xf]
  %v58 = vld [vmem:[%s1 + $0x18] sm:$0xf]
  %v59 = vld [vmem:[%s1 + $0x1c] sm:$0xf]
  %s60 = scalar_lea.vmem %s9, 8
  %v61 = vld [vmem:[%s60] sm:$0xf]
  %v62 = vld [vmem:[%s60 + $0x4] sm:$0xf]
  %v71 = vunpack.c.l.b16 %v52
  %v72 = vunpack.c.l.b16 %v53
  %v73 = vunpack.c.l.b16 %v54
  %v74 = vunpack.c.l.b16 %v55
  %v75 = vunpack.c.l.b16 %v56
  %v76 = vunpack.c.l.b16 %v57
  %v77 = vunpack.c.l.b16 %v58
  %v78 = vunpack.c.l.b16 %v59
  %v79 = vpack.c.b16 %v72, %v71
  %v80 = vpack.c.b16 %v74, %v73
  %v81 = vpack.c.b16 %v76, %v75
  %v82 = vpack.c.b16 %v78, %v77
  %v85 = vunpack.c.l.b16 %v61
  %v86 = vunpack.c.l.b16 %v62
  %v87 = vpack.c.b16 %v86, %v85
  %vm89 = vcmask 130048
  %v91 = vsel %vm89, %v79, 0
  %v94 = vsel %vm89, %v80, 0
  %v97 = vsel %vm89, %v81, 0
  %v100 = vsel %vm89, %v82, 0
  %102 = vmatpush.bf16.msra.mxu0 0
  %103 = vmatpush.bf16.msra.mxu0 0
  %104 = vmatpush.bf16.msra.mxu0 0
  %105 = vmatpush.bf16.msra.mxu0 0
  %106 = vmatpush.bf16.msra.mxu0 0
  %107 = vmatpush.bf16.msra.mxu0 0
  %108 = vmatpush.bf16.msra.mxu0 0
  %109 = vmatpush.bf16.msra.mxu0 %v87
  %110 = vmatmul.bf16.gmra.mxu0 %v91
  %v111 = vpop.f32.mrf.mxu0
  %v112 = vadd.f32 0.0, %v111
  %v113 = vpop.f32.mrf.mxu0
  %v114 = vadd.f32 0.0, %v113
  %115 = vmatmul.bf16.gmra.mxu0 %v94
  %v116 = vpop.f32.mrf.mxu0
  %v117 = vadd.f32 0.0, %v116
  %v118 = vpop.f32.mrf.mxu0
  %v119 = vadd.f32 0.0, %v118
  %120 = vmatmul.bf16.gmra.mxu0 %v97
  %v121 = vpop.f32.mrf.mxu0
  %v122 = vadd.f32 0.0, %v121
  %v123 = vpop.f32.mrf.mxu0
  %v124 = vadd.f32 0.0, %v123
  %125 = vmatmul.bf16.gmra.mxu0 %v100
  %v126 = vpop.f32.mrf.mxu0
  %v127 = vadd.f32 0.0, %v126
  %v128 = vpop.f32.mrf.mxu0
  %v129 = vadd.f32 0.0, %v128
  %130 = vdwg.mxu0
  %v139 = vunpack.c.l.b16 %v42
  %v140 = vunpack.c.l.b16 %v43
  %v141 = vunpack.c.l.b16 %v44
  %v142 = vunpack.c.l.b16 %v45
  %v143 = vunpack.c.l.b16 %v46
  %v144 = vunpack.c.l.b16 %v47
  %v145 = vunpack.c.l.b16 %v48
  %v146 = vunpack.c.l.b16 %v49
  %v147 = vpack.c.b16 %v140, %v139
  %v148 = vpack.c.b16 %v142, %v141
  %v149 = vpack.c.b16 %v144, %v143
  %v150 = vpack.c.b16 %v146, %v145
  %v153 = vunpack.c.l.b16 %v50
  %v154 = vunpack.c.l.b16 %v51
  %v155 = vpack.c.b16 %v154, %v153
  %v158 = vsel %vm89, %v147, 0
  %v161 = vsel %vm89, %v148, 0
  %v164 = vsel %vm89, %v149, 0
  %v167 = vsel %vm89, %v150, 0
  %169 = vmatpush.bf16.msra.mxu0 0
  %170 = vmatpush.bf16.msra.mxu0 0
  %171 = vmatpush.bf16.msra.mxu0 0
  %172 = vmatpush.bf16.msra.mxu0 0
  %173 = vmatpush.bf16.msra.mxu0 0
  %174 = vmatpush.bf16.msra.mxu0 0
  %175 = vmatpush.bf16.msra.mxu0 0
  %176 = vmatpush.bf16.msra.mxu0 %v155
  %177 = vmatmul.bf16.gmra.mxu0 %v158
  %v178 = vpop.f32.mrf.mxu0
  %v179 = vadd.f32 %v112, %v178
  %v180 = vpop.f32.mrf.mxu0
  %v181 = vadd.f32 %v114, %v180
  %182 = vmatmul.bf16.gmra.mxu0 %v161
  %v183 = vpop.f32.mrf.mxu0
  %v184 = vadd.f32 %v117, %v183
  %v185 = vpop.f32.mrf.mxu0
  %v186 = vadd.f32 %v119, %v185
  %187 = vmatmul.bf16.gmra.mxu0 %v164
  %v188 = vpop.f32.mrf.mxu0
  %v189 = vadd.f32 %v122, %v188
  %v190 = vpop.f32.mrf.mxu0
  %v191 = vadd.f32 %v124, %v190
  %192 = vmatmul.bf16.gmra.mxu0 %v167
  %v193 = vpop.f32.mrf.mxu0
  %v194 = vadd.f32 %v127, %v193
  %v195 = vpop.f32.mrf.mxu0
  %v196 = vadd.f32 %v129, %v195
  %197 = vdwg.mxu0
  %v198 = vld [vmem:[%s2] sm:$0xf]
  %v199 = vld [vmem:[%s2 + $0x4] sm:$0xf]
  %v200 = vld [vmem:[%s2 + $0x8] sm:$0xf]
  %v201 = vld [vmem:[%s2 + $0xc] sm:$0xf]
  %v202 = vld [vmem:[%s2 + $0x10] sm:$0xf]
  %v203 = vld [vmem:[%s2 + $0x14] sm:$0xf]
  %v204 = vld [vmem:[%s2 + $0x18] sm:$0xf]
  %v205 = vld [vmem:[%s2 + $0x1c] sm:$0xf]
  %s206 = scalar_lea.vmem %s9, 16
  %v207 = vld [vmem:[%s206] sm:$0xf]
  %v208 = vld [vmem:[%s206 + $0x4] sm:$0xf]
  %v217 = vunpack.c.l.b16 %v198
  %v218 = vunpack.c.l.b16 %v199
  %v219 = vunpack.c.l.b16 %v200
  %v220 = vunpack.c.l.b16 %v201
  %v221 = vunpack.c.l.b16 %v202
  %v222 = vunpack.c.l.b16 %v203
  %v223 = vunpack.c.l.b16 %v204
  %v224 = vunpack.c.l.b16 %v205
  %v225 = vpack.c.b16 %v218, %v217
  %v226 = vpack.c.b16 %v220, %v219
  %v227 = vpack.c.b16 %v222, %v221
  %v228 = vpack.c.b16 %v224, %v223
  %v231 = vunpack.c.l.b16 %v207
  %v232 = vunpack.c.l.b16 %v208
  %v233 = vpack.c.b16 %v232, %v231
  %v236 = vsel %vm89, %v225, 0
  %v239 = vsel %vm89, %v226, 0
  %v242 = vsel %vm89, %v227, 0
  %v245 = vsel %vm89, %v228, 0
  %247 = vmatpush.bf16.msra.mxu0 0
  %248 = vmatpush.bf16.msra.mxu0 0
  %249 = vmatpush.bf16.msra.mxu0 0
  %250 = vmatpush.bf16.msra.mxu0 0
  %251 = vmatpush.bf16.msra.mxu0 0
  %252 = vmatpush.bf16.msra.mxu0 0
  %253 = vmatpush.bf16.msra.mxu0 0
  %254 = vmatpush.bf16.msra.mxu0 %v233
  %255 = vmatmul.bf16.gmra.mxu0 %v236
  %v256 = vpop.f32.mrf.mxu0
  %v257 = vadd.f32 0.0, %v256
  %v258 = vpop.f32.mrf.mxu0
  %v259 = vadd.f32 0.0, %v258
  %260 = vmatmul.bf16.gmra.mxu0 %v239
  %v261 = vpop.f32.mrf.mxu0
  %v262 = vadd.f32 0.0, %v261
  %v263 = vpop.f32.mrf.mxu0
  %v264 = vadd.f32 0.0, %v263
  %265 = vmatmul.bf16.gmra.mxu0 %v242
  %v266 = vpop.f32.mrf.mxu0
  %v267 = vadd.f32 0.0, %v266
  %v268 = vpop.f32.mrf.mxu0
  %v269 = vadd.f32 0.0, %v268
  %270 = vmatmul.bf16.gmra.mxu0 %v245
  %v271 = vpop.f32.mrf.mxu0
  %v272 = vadd.f32 0.0, %v271
  %v273 = vpop.f32.mrf.mxu0
  %v274 = vadd.f32 0.0, %v273
  %275 = vdwg.mxu0
  %v276 = vadd.f32 %v179, %v257
  %v277 = vadd.f32 %v181, %v259
  %v278 = vadd.f32 %v184, %v262
  %v279 = vadd.f32 %v186, %v264
  %v280 = vadd.f32 %v189, %v267
  %v281 = vadd.f32 %v191, %v269
  %v282 = vadd.f32 %v194, %v272
  %v283 = vadd.f32 %v196, %v274
  %v284 = vld [vmem:[%s3] sm:$0xf]
  %v285 = vld [vmem:[%s3 + $0x4] sm:$0xf]
  %v286 = vld [vmem:[%s3 + $0x8] sm:$0xf]
  %v287 = vld [vmem:[%s3 + $0xc] sm:$0xf]
  %v288 = vld [vmem:[%s3 + $0x10] sm:$0xf]
  %v289 = vld [vmem:[%s3 + $0x14] sm:$0xf]
  %v290 = vld [vmem:[%s3 + $0x18] sm:$0xf]
  %v291 = vld [vmem:[%s3 + $0x1c] sm:$0xf]
  %s292 = scalar_lea.vmem %s9, 24
  %v293 = vld [vmem:[%s292] sm:$0xf]
  %v294 = vld [vmem:[%s292 + $0x4] sm:$0xf]
  %v303 = vunpack.c.l.b16 %v284
  %v304 = vunpack.c.l.b16 %v285
  %v305 = vunpack.c.l.b16 %v286
  %v306 = vunpack.c.l.b16 %v287
  %v307 = vunpack.c.l.b16 %v288
  %v308 = vunpack.c.l.b16 %v289
  %v309 = vunpack.c.l.b16 %v290
  %v310 = vunpack.c.l.b16 %v291
  %v311 = vpack.c.b16 %v304, %v303
  %v312 = vpack.c.b16 %v306, %v305
  %v313 = vpack.c.b16 %v308, %v307
  %v314 = vpack.c.b16 %v310, %v309
  %v317 = vunpack.c.l.b16 %v293
  %v318 = vunpack.c.l.b16 %v294
  %v319 = vpack.c.b16 %v318, %v317
  %v322 = vsel %vm89, %v311, 0
  %v325 = vsel %vm89, %v312, 0
  %v328 = vsel %vm89, %v313, 0
  %v331 = vsel %vm89, %v314, 0
  %333 = vmatpush.bf16.msra.mxu0 0
  %334 = vmatpush.bf16.msra.mxu0 0
  %335 = vmatpush.bf16.msra.mxu0 0
  %336 = vmatpush.bf16.msra.mxu0 0
  %337 = vmatpush.bf16.msra.mxu0 0
  %338 = vmatpush.bf16.msra.mxu0 0
  %339 = vmatpush.bf16.msra.mxu0 0
  %340 = vmatpush.bf16.msra.mxu0 %v319
  %341 = vmatmul.bf16.gmra.mxu0 %v322
  %v342 = vpop.f32.mrf.mxu0
  %v343 = vadd.f32 0.0, %v342
  %v344 = vpop.f32.mrf.mxu0
  %v345 = vadd.f32 0.0, %v344
  %346 = vmatmul.bf16.gmra.mxu0 %v325
  %v347 = vpop.f32.mrf.mxu0
  %v348 = vadd.f32 0.0, %v347
  %v349 = vpop.f32.mrf.mxu0
  %v350 = vadd.f32 0.0, %v349
  %351 = vmatmul.bf16.gmra.mxu0 %v328
  %v352 = vpop.f32.mrf.mxu0
  %v353 = vadd.f32 0.0, %v352
  %v354 = vpop.f32.mrf.mxu0
  %v355 = vadd.f32 0.0, %v354
  %356 = vmatmul.bf16.gmra.mxu0 %v331
  %v357 = vpop.f32.mrf.mxu0
  %v358 = vadd.f32 0.0, %v357
  %v359 = vpop.f32.mrf.mxu0
  %v360 = vadd.f32 0.0, %v359
  %361 = vdwg.mxu0
  %v362 = vadd.f32 %v276, %v343
  %v363 = vadd.f32 %v277, %v345
  %v364 = vadd.f32 %v278, %v348
  %v365 = vadd.f32 %v279, %v350
  %v366 = vadd.f32 %v280, %v353
  %v367 = vadd.f32 %v281, %v355
  %v368 = vadd.f32 %v282, %v358
  %v369 = vadd.f32 %v283, %v360
  %v370 = vld [vmem:[%s4] sm:$0xf]
  %v371 = vld [vmem:[%s4 + $0x4] sm:$0xf]
  %v372 = vld [vmem:[%s4 + $0x8] sm:$0xf]
  %v373 = vld [vmem:[%s4 + $0xc] sm:$0xf]
  %v374 = vld [vmem:[%s4 + $0x10] sm:$0xf]
  %v375 = vld [vmem:[%s4 + $0x14] sm:$0xf]
  %v376 = vld [vmem:[%s4 + $0x18] sm:$0xf]
  %v377 = vld [vmem:[%s4 + $0x1c] sm:$0xf]
  %s378 = scalar_lea.vmem %s9, 32
  %v379 = vld [vmem:[%s378] sm:$0xf]
  %v380 = vld [vmem:[%s378 + $0x4] sm:$0xf]
  %v389 = vunpack.c.l.b16 %v370
  %v390 = vunpack.c.l.b16 %v371
  %v391 = vunpack.c.l.b16 %v372
  %v392 = vunpack.c.l.b16 %v373
  %v393 = vunpack.c.l.b16 %v374
  %v394 = vunpack.c.l.b16 %v375
  %v395 = vunpack.c.l.b16 %v376
  %v396 = vunpack.c.l.b16 %v377
  %v397 = vpack.c.b16 %v390, %v389
  %v398 = vpack.c.b16 %v392, %v391
  %v399 = vpack.c.b16 %v394, %v393
  %v400 = vpack.c.b16 %v396, %v395
  %v403 = vunpack.c.l.b16 %v379
  %v404 = vunpack.c.l.b16 %v380
  %v405 = vpack.c.b16 %v404, %v403
  %v408 = vsel %vm89, %v397, 0
  %v411 = vsel %vm89, %v398, 0
  %v414 = vsel %vm89, %v399, 0
  %v417 = vsel %vm89, %v400, 0
  %419 = vmatpush.bf16.msra.mxu0 0
  %420 = vmatpush.bf16.msra.mxu0 0
  %421 = vmatpush.bf16.msra.mxu0 0
  %422 = vmatpush.bf16.msra.mxu0 0
  %423 = vmatpush.bf16.msra.mxu0 0
  %424 = vmatpush.bf16.msra.mxu0 0
  %425 = vmatpush.bf16.msra.mxu0 0
  %426 = vmatpush.bf16.msra.mxu0 %v405
  %427 = vmatmul.bf16.gmra.mxu0 %v408
  %v428 = vpop.f32.mrf.mxu0
  %v429 = vadd.f32 0.0, %v428
  %v430 = vpop.f32.mrf.mxu0
  %v431 = vadd.f32 0.0, %v430
  %432 = vmatmul.bf16.gmra.mxu0 %v411
  %v433 = vpop.f32.mrf.mxu0
  %v434 = vadd.f32 0.0, %v433
  %v435 = vpop.f32.mrf.mxu0
  %v436 = vadd.f32 0.0, %v435
  %437 = vmatmul.bf16.gmra.mxu0 %v414
  %v438 = vpop.f32.mrf.mxu0
  %v439 = vadd.f32 0.0, %v438
  %v440 = vpop.f32.mrf.mxu0
  %v441 = vadd.f32 0.0, %v440
  %442 = vmatmul.bf16.gmra.mxu0 %v417
  %v443 = vpop.f32.mrf.mxu0
  %v444 = vadd.f32 0.0, %v443
  %v445 = vpop.f32.mrf.mxu0
  %v446 = vadd.f32 0.0, %v445
  %447 = vdwg.mxu0
  %v448 = vadd.f32 %v362, %v429
  %v449 = vadd.f32 %v363, %v431
  %v450 = vadd.f32 %v364, %v434
  %v451 = vadd.f32 %v365, %v436
  %v452 = vadd.f32 %v366, %v439
  %v453 = vadd.f32 %v367, %v441
  %v454 = vadd.f32 %v368, %v444
  %v455 = vadd.f32 %v369, %v446
  %v456 = vld [vmem:[%s5] sm:$0xf]
  %v457 = vld [vmem:[%s5 + $0x4] sm:$0xf]
  %v458 = vld [vmem:[%s5 + $0x8] sm:$0xf]
  %v459 = vld [vmem:[%s5 + $0xc] sm:$0xf]
  %v460 = vld [vmem:[%s5 + $0x10] sm:$0xf]
  %v461 = vld [vmem:[%s5 + $0x14] sm:$0xf]
  %v462 = vld [vmem:[%s5 + $0x18] sm:$0xf]
  %v463 = vld [vmem:[%s5 + $0x1c] sm:$0xf]
  %s464 = scalar_lea.vmem %s9, 40
  %v465 = vld [vmem:[%s464] sm:$0xf]
  %v466 = vld [vmem:[%s464 + $0x4] sm:$0xf]
  %v475 = vunpack.c.l.b16 %v456
  %v476 = vunpack.c.l.b16 %v457
  %v477 = vunpack.c.l.b16 %v458
  %v478 = vunpack.c.l.b16 %v459
  %v479 = vunpack.c.l.b16 %v460
  %v480 = vunpack.c.l.b16 %v461
  %v481 = vunpack.c.l.b16 %v462
  %v482 = vunpack.c.l.b16 %v463
  %v483 = vpack.c.b16 %v476, %v475
  %v484 = vpack.c.b16 %v478, %v477
  %v485 = vpack.c.b16 %v480, %v479
  %v486 = vpack.c.b16 %v482, %v481
  %v489 = vunpack.c.l.b16 %v465
  %v490 = vunpack.c.l.b16 %v466
  %v491 = vpack.c.b16 %v490, %v489
  %v494 = vsel %vm89, %v483, 0
  %v497 = vsel %vm89, %v484, 0
  %v500 = vsel %vm89, %v485, 0
  %v503 = vsel %vm89, %v486, 0
  %505 = vmatpush.bf16.msra.mxu0 0
  %506 = vmatpush.bf16.msra.mxu0 0
  %507 = vmatpush.bf16.msra.mxu0 0
  %508 = vmatpush.bf16.msra.mxu0 0
  %509 = vmatpush.bf16.msra.mxu0 0
  %510 = vmatpush.bf16.msra.mxu0 0
  %511 = vmatpush.bf16.msra.mxu0 0
  %512 = vmatpush.bf16.msra.mxu0 %v491
  %513 = vmatmul.bf16.gmra.mxu0 %v494
  %v514 = vpop.f32.mrf.mxu0
  %v515 = vadd.f32 0.0, %v514
  %v516 = vpop.f32.mrf.mxu0
  %v517 = vadd.f32 0.0, %v516
  %518 = vmatmul.bf16.gmra.mxu0 %v497
  %v519 = vpop.f32.mrf.mxu0
  %v520 = vadd.f32 0.0, %v519
  %v521 = vpop.f32.mrf.mxu0
  %v522 = vadd.f32 0.0, %v521
  %523 = vmatmul.bf16.gmra.mxu0 %v500
  %v524 = vpop.f32.mrf.mxu0
  %v525 = vadd.f32 0.0, %v524
  %v526 = vpop.f32.mrf.mxu0
  %v527 = vadd.f32 0.0, %v526
  %528 = vmatmul.bf16.gmra.mxu0 %v503
  %v529 = vpop.f32.mrf.mxu0
  %v530 = vadd.f32 0.0, %v529
  %v531 = vpop.f32.mrf.mxu0
  %v532 = vadd.f32 0.0, %v531
  %533 = vdwg.mxu0
  %v534 = vadd.f32 %v448, %v515
  %v535 = vadd.f32 %v449, %v517
  %v536 = vadd.f32 %v450, %v520
  %v537 = vadd.f32 %v451, %v522
  %v538 = vadd.f32 %v452, %v525
  %v539 = vadd.f32 %v453, %v527
  %v540 = vadd.f32 %v454, %v530
  %v541 = vadd.f32 %v455, %v532
  %v542 = vld [vmem:[%s6] sm:$0xf]
  %v543 = vld [vmem:[%s6 + $0x4] sm:$0xf]
  %v544 = vld [vmem:[%s6 + $0x8] sm:$0xf]
  %v545 = vld [vmem:[%s6 + $0xc] sm:$0xf]
  %v546 = vld [vmem:[%s6 + $0x10] sm:$0xf]
  %v547 = vld [vmem:[%s6 + $0x14] sm:$0xf]
  %v548 = vld [vmem:[%s6 + $0x18] sm:$0xf]
  %v549 = vld [vmem:[%s6 + $0x1c] sm:$0xf]
  %s550 = scalar_lea.vmem %s9, 48
  %v551 = vld [vmem:[%s550] sm:$0xf]
  %v552 = vld [vmem:[%s550 + $0x4] sm:$0xf]
  %v561 = vunpack.c.l.b16 %v542
  %v562 = vunpack.c.l.b16 %v543
  %v563 = vunpack.c.l.b16 %v544
  %v564 = vunpack.c.l.b16 %v545
  %v565 = vunpack.c.l.b16 %v546
  %v566 = vunpack.c.l.b16 %v547
  %v567 = vunpack.c.l.b16 %v548
  %v568 = vunpack.c.l.b16 %v549
  %v569 = vpack.c.b16 %v562, %v561
  %v570 = vpack.c.b16 %v564, %v563
  %v571 = vpack.c.b16 %v566, %v565
  %v572 = vpack.c.b16 %v568, %v567
  %v575 = vunpack.c.l.b16 %v551
  %v576 = vunpack.c.l.b16 %v552
  %v577 = vpack.c.b16 %v576, %v575
  %v580 = vsel %vm89, %v569, 0
  %v583 = vsel %vm89, %v570, 0
  %v586 = vsel %vm89, %v571, 0
  %v589 = vsel %vm89, %v572, 0
  %591 = vmatpush.bf16.msra.mxu0 0
  %592 = vmatpush.bf16.msra.mxu0 0
  %593 = vmatpush.bf16.msra.mxu0 0
  %594 = vmatpush.bf16.msra.mxu0 0
  %595 = vmatpush.bf16.msra.mxu0 0
  %596 = vmatpush.bf16.msra.mxu0 0
  %597 = vmatpush.bf16.msra.mxu0 0
  %598 = vmatpush.bf16.msra.mxu0 %v577
  %599 = vmatmul.bf16.gmra.mxu0 %v580
  %v600 = vpop.f32.mrf.mxu0
  %v601 = vadd.f32 0.0, %v600
  %v602 = vpop.f32.mrf.mxu0
  %v603 = vadd.f32 0.0, %v602
  %604 = vmatmul.bf16.gmra.mxu0 %v583
  %v605 = vpop.f32.mrf.mxu0
  %v606 = vadd.f32 0.0, %v605
  %v607 = vpop.f32.mrf.mxu0
  %v608 = vadd.f32 0.0, %v607
  %609 = vmatmul.bf16.gmra.mxu0 %v586
  %v610 = vpop.f32.mrf.mxu0
  %v611 = vadd.f32 0.0, %v610
  %v612 = vpop.f32.mrf.mxu0
  %v613 = vadd.f32 0.0, %v612
  %614 = vmatmul.bf16.gmra.mxu0 %v589
  %v615 = vpop.f32.mrf.mxu0
  %v616 = vadd.f32 0.0, %v615
  %v617 = vpop.f32.mrf.mxu0
  %v618 = vadd.f32 0.0, %v617
  %619 = vdwg.mxu0
  %v620 = vadd.f32 %v534, %v601
  %v621 = vadd.f32 %v535, %v603
  %v622 = vadd.f32 %v536, %v606
  %v623 = vadd.f32 %v537, %v608
  %v624 = vadd.f32 %v538, %v611
  %v625 = vadd.f32 %v539, %v613
  %v626 = vadd.f32 %v540, %v616
  %v627 = vadd.f32 %v541, %v618
  %v628 = vld [vmem:[%s7] sm:$0xf]
  %v629 = vld [vmem:[%s7 + $0x4] sm:$0xf]
  %v630 = vld [vmem:[%s7 + $0x8] sm:$0xf]
  %v631 = vld [vmem:[%s7 + $0xc] sm:$0xf]
  %v632 = vld [vmem:[%s7 + $0x10] sm:$0xf]
  %v633 = vld [vmem:[%s7 + $0x14] sm:$0xf]
  %v634 = vld [vmem:[%s7 + $0x18] sm:$0xf]
  %v635 = vld [vmem:[%s7 + $0x1c] sm:$0xf]
  %s636 = scalar_lea.vmem %s9, 56
  %v637 = vld [vmem:[%s636] sm:$0xf]
  %v638 = vld [vmem:[%s636 + $0x4] sm:$0xf]
  %v647 = vunpack.c.l.b16 %v628
  %v648 = vunpack.c.l.b16 %v629
  %v649 = vunpack.c.l.b16 %v630
  %v650 = vunpack.c.l.b16 %v631
  %v651 = vunpack.c.l.b16 %v632
  %v652 = vunpack.c.l.b16 %v633
  %v653 = vunpack.c.l.b16 %v634
  %v654 = vunpack.c.l.b16 %v635
  %v655 = vpack.c.b16 %v648, %v647
  %v656 = vpack.c.b16 %v650, %v649
  %v657 = vpack.c.b16 %v652, %v651
  %v658 = vpack.c.b16 %v654, %v653
  %v661 = vunpack.c.l.b16 %v637
  %v662 = vunpack.c.l.b16 %v638
  %v663 = vpack.c.b16 %v662, %v661
  %v666 = vsel %vm89, %v655, 0
  %v669 = vsel %vm89, %v656, 0
  %v672 = vsel %vm89, %v657, 0
  %v675 = vsel %vm89, %v658, 0
  %677 = vmatpush.bf16.msra.mxu0 0
  %678 = vmatpush.bf16.msra.mxu0 0
  %679 = vmatpush.bf16.msra.mxu0 0
  %680 = vmatpush.bf16.msra.mxu0 0
  %681 = vmatpush.bf16.msra.mxu0 0
  %682 = vmatpush.bf16.msra.mxu0 0
  %683 = vmatpush.bf16.msra.mxu0 0
  %684 = vmatpush.bf16.msra.mxu0 %v663
  %685 = vmatmul.bf16.gmra.mxu0 %v666
  %v686 = vpop.f32.mrf.mxu0
  %v687 = vadd.f32 0.0, %v686
  %v688 = vpop.f32.mrf.mxu0
  %v689 = vadd.f32 0.0, %v688
  %690 = vmatmul.bf16.gmra.mxu0 %v669
  %v691 = vpop.f32.mrf.mxu0
  %v692 = vadd.f32 0.0, %v691
  %v693 = vpop.f32.mrf.mxu0
  %v694 = vadd.f32 0.0, %v693
  %695 = vmatmul.bf16.gmra.mxu0 %v672
  %v696 = vpop.f32.mrf.mxu0
  %v697 = vadd.f32 0.0, %v696
  %v698 = vpop.f32.mrf.mxu0
  %v699 = vadd.f32 0.0, %v698
  %700 = vmatmul.bf16.gmra.mxu0 %v675
  %v701 = vpop.f32.mrf.mxu0
  %v702 = vadd.f32 0.0, %v701
  %v703 = vpop.f32.mrf.mxu0
  %v704 = vadd.f32 0.0, %v703
  %705 = vdwg.mxu0
  %v706 = vadd.f32 %v620, %v687
  %v707 = vadd.f32 %v621, %v689
  %v708 = vadd.f32 %v622, %v692
  %v709 = vadd.f32 %v623, %v694
  %v710 = vadd.f32 %v624, %v697
  %v711 = vadd.f32 %v625, %v699
  %v712 = vadd.f32 %v626, %v702
  %v713 = vadd.f32 %v627, %v704
  %v714 = vld [vmem:[%s8] sm:$0xf]
  %v715 = vld [vmem:[%s8 + $0x4] sm:$0xf]
  %v716 = vld [vmem:[%s8 + $0x8] sm:$0xf]
  %v717 = vld [vmem:[%s8 + $0xc] sm:$0xf]
  %v718 = vld [vmem:[%s8 + $0x10] sm:$0xf]
  %v719 = vld [vmem:[%s8 + $0x14] sm:$0xf]
  %v720 = vld [vmem:[%s8 + $0x18] sm:$0xf]
  %v721 = vld [vmem:[%s8 + $0x1c] sm:$0xf]
  %s722 = scalar_lea.vmem %s9, 64
  %v723 = vld [vmem:[%s722] sm:$0xf]
  %v724 = vld [vmem:[%s722 + $0x4] sm:$0xf]
  %v733 = vunpack.c.l.b16 %v714
  %v734 = vunpack.c.l.b16 %v715
  %v735 = vunpack.c.l.b16 %v716
  %v736 = vunpack.c.l.b16 %v717
  %v737 = vunpack.c.l.b16 %v718
  %v738 = vunpack.c.l.b16 %v719
  %v739 = vunpack.c.l.b16 %v720
  %v740 = vunpack.c.l.b16 %v721
  %v741 = vpack.c.b16 %v734, %v733
  %v742 = vpack.c.b16 %v736, %v735
  %v743 = vpack.c.b16 %v738, %v737
  %v744 = vpack.c.b16 %v740, %v739
  %v747 = vunpack.c.l.b16 %v723
  %v748 = vunpack.c.l.b16 %v724
  %v749 = vpack.c.b16 %v748, %v747
  %v752 = vsel %vm89, %v741, 0
  %v755 = vsel %vm89, %v742, 0
  %v758 = vsel %vm89, %v743, 0
  %v761 = vsel %vm89, %v744, 0
  %763 = vmatpush.bf16.msra.mxu0 0
  %764 = vmatpush.bf16.msra.mxu0 0
  %765 = vmatpush.bf16.msra.mxu0 0
  %766 = vmatpush.bf16.msra.mxu0 0
  %767 = vmatpush.bf16.msra.mxu0 0
  %768 = vmatpush.bf16.msra.mxu0 0
  %769 = vmatpush.bf16.msra.mxu0 0
  %770 = vmatpush.bf16.msra.mxu0 %v749
  %771 = vmatmul.bf16.gmra.mxu0 %v752
  %v772 = vpop.f32.mrf.mxu0
  %v773 = vadd.f32 0.0, %v772
  %v774 = vpop.f32.mrf.mxu0
  %v775 = vadd.f32 0.0, %v774
  %776 = vmatmul.bf16.gmra.mxu0 %v755
  %v777 = vpop.f32.mrf.mxu0
  %v778 = vadd.f32 0.0, %v777
  %v779 = vpop.f32.mrf.mxu0
  %v780 = vadd.f32 0.0, %v779
  %781 = vmatmul.bf16.gmra.mxu0 %v758
  %v782 = vpop.f32.mrf.mxu0
  %v783 = vadd.f32 0.0, %v782
  %v784 = vpop.f32.mrf.mxu0
  %v785 = vadd.f32 0.0, %v784
  %786 = vmatmul.bf16.gmra.mxu0 %v761
  %v787 = vpop.f32.mrf.mxu0
  %v788 = vadd.f32 0.0, %v787
  %v789 = vpop.f32.mrf.mxu0
  %v790 = vadd.f32 0.0, %v789
  %791 = vdwg.mxu0
  %v792 = vadd.f32 %v706, %v773
  %v793 = vadd.f32 %v707, %v775
  %v794 = vadd.f32 %v708, %v778
  %v795 = vadd.f32 %v709, %v780
  %v796 = vadd.f32 %v710, %v783
  %v797 = vadd.f32 %v711, %v785
  %v798 = vadd.f32 %v712, %v788
  %v799 = vadd.f32 %v713, %v790
  %v800 = vld [vmem:[%s10] sm:$0x1]
  %v802 = vperm.slane %v800, 0
  %v804 = vmul.f32 %v792, %v802
  %v805 = vmul.f32 %v793, %v802
  %v806 = vmul.f32 %v794, %v802
  %v807 = vmul.f32 %v795, %v802
  %v808 = vmul.f32 %v796, %v802
  %v809 = vmul.f32 %v797, %v802
  %v810 = vmul.f32 %v798, %v802
  %v811 = vmul.f32 %v799, %v802
  %v812 = vld [vmem:[%s11] sm:$0x1]
  %v814 = vperm.slane %v812, 0
  %v816 = vadd.f32 %v804, %v814
  %v817 = vadd.f32 %v805, %v814
  %v818 = vadd.f32 %v806, %v814
  %v819 = vadd.f32 %v807, %v814
  %v820 = vadd.f32 %v808, %v814
  %v821 = vadd.f32 %v809, %v814
  %v822 = vadd.f32 %v810, %v814
  %v823 = vadd.f32 %v811, %v814
  %824 = vst [vmem:[%s12] sm:$0xff] %v816
  %825 = vst [vmem:[%s12 + $0x8] sm:$0xff] %v817
  %826 = vst [vmem:[%s12 + $0x10] sm:$0xff] %v818
  %827 = vst [vmem:[%s12 + $0x18] sm:$0xff] %v819
  %828 = vst [vmem:[%s12 + $0x20] sm:$0xff] %v820
  %829 = vst [vmem:[%s12 + $0x28] sm:$0xff] %v821
  %830 = vst [vmem:[%s12 + $0x30] sm:$0xff] %v822
  %831 = vst [vmem:[%s12 + $0x38] sm:$0xff] %v823
  // Predicated region
  $region50: #{_lambda_.18} parent=0 // pred_check
    _
  $region51: #{_lambda_.18} parent=0 // pred_check_branch
    %833 = sbr.rel (0) target = $region53
  $region52: #{_lambda_.18} parent=0 // pred_region
    _
  $region53: #{_lambda_.18} parent=0 // pred_fallthru
    _
  // Predicated region
  $region54: #{_lambda_.18} parent=0 // pred_check
    _
  $region55: #{_lambda_.18} parent=0 // pred_check_branch
    %835 = sbr.rel (0) target = $region57
  $region56: #{_lambda_.18} parent=0 // pred_region
    _
  $region57: #{_lambda_.18} parent=0 // pred_fallthru
    _

// kernel: _lambda_.19
$region0: #{_lambda_.19}
  #allocation0 [shape = 'u32[]', space=smem, size = 0x4, offset = 0x4, fixed_abs, tag = 'smem constant byte address 0x4 - core index']
  #allocation1 [shape = 'u32[72,128]{1,0:T(1,128)}', space=vmem, size = 0x9000, scoped, tag = 'internal scratch']
  %s0 = inlined_call_operand.vmem [shape: f32[16,128], index: 0, kind: input, shape index: {}]
  %s1 = inlined_call_operand.vmem [shape: f32[16,128], index: 1, kind: input, shape index: {}]
  %s2 = inlined_call_operand.vmem [shape: f32[16,128], index: 2, kind: input, shape index: {}]
  %s3 = inlined_call_operand.vmem [shape: f32[16,128], index: 3, kind: input, shape index: {}]
  %s4 = inlined_call_operand.vmem [shape: f32[16,128], index: 4, kind: input, shape index: {}]
  %s5 = inlined_call_operand.vmem [shape: f32[16,128], index: 5, kind: input, shape index: {}]
  %s6 = inlined_call_operand.vmem [shape: f32[16,128], index: 6, kind: input, shape index: {}]
  %s7 = inlined_call_operand.vmem [shape: f32[16,128], index: 7, kind: input, shape index: {}]
  %s8 = inlined_call_operand.vmem [shape: f32[16,128], index: 8, kind: input, shape index: {}]
  %s9 = inlined_call_operand.vmem [shape: f32[16,128], index: 9, kind: output, shape index: {}]
  %s10 = sld [smem:[#allocation0]]
  $region46: #{_lambda_.19} parent=0
    _
  %s12 = ssub.s32 1, %s10
  %s13 = scalar_select 0, %s12, %s10
  // Predicated region
  $region2: #{_lambda_.19} parent=0 // pred_check
    _
  $region3: #{_lambda_.19} parent=0 // pred_check_branch
    %15 = sbr.rel (0) target = $region5
  $region4: #{_lambda_.19} parent=0 // pred_region
    _
  $region5: #{_lambda_.19} parent=0 // pred_fallthru
    _
  // Predicated region
  $region6: #{_lambda_.19} parent=0 // pred_check
    _
  $region7: #{_lambda_.19} parent=0 // pred_check_branch
    %17 = sbr.rel (0) target = $region9
  $region8: #{_lambda_.19} parent=0 // pred_region
    _
  $region9: #{_lambda_.19} parent=0 // pred_fallthru
    _
  // Predicated region
  $region10: #{_lambda_.19} parent=0 // pred_check
    _
  $region11: #{_lambda_.19} parent=0 // pred_check_branch
    %19 = sbr.rel (0) target = $region13
  $region12: #{_lambda_.19} parent=0 // pred_region
    _
  $region13: #{_lambda_.19} parent=0 // pred_fallthru
    _
  // Predicated region
  $region14: #{_lambda_.19} parent=0 // pred_check
    _
  $region15: #{_lambda_.19} parent=0 // pred_check_branch
    %21 = sbr.rel (0) target = $region17
  $region16: #{_lambda_.19} parent=0 // pred_region
    _
  $region17: #{_lambda_.19} parent=0 // pred_fallthru
    _
  // Predicated region
  $region18: #{_lambda_.19} parent=0 // pred_check
    _
  $region19: #{_lambda_.19} parent=0 // pred_check_branch
    %23 = sbr.rel (0) target = $region21
  $region20: #{_lambda_.19} parent=0 // pred_region
    _
  $region21: #{_lambda_.19} parent=0 // pred_fallthru
    _
  // Predicated region
  $region22: #{_lambda_.19} parent=0 // pred_check
    _
  $region23: #{_lambda_.19} parent=0 // pred_check_branch
    %25 = sbr.rel (0) target = $region25
  $region24: #{_lambda_.19} parent=0 // pred_region
    _
  $region25: #{_lambda_.19} parent=0 // pred_fallthru
    _
  // Predicated region
  $region26: #{_lambda_.19} parent=0 // pred_check
    _
  $region27: #{_lambda_.19} parent=0 // pred_check_branch
    %27 = sbr.rel (0) target = $region29
  $region28: #{_lambda_.19} parent=0 // pred_region
    _
  $region29: #{_lambda_.19} parent=0 // pred_fallthru
    _
  // Predicated region
  $region30: #{_lambda_.19} parent=0 // pred_check
    _
  $region31: #{_lambda_.19} parent=0 // pred_check_branch
    %29 = sbr.rel (0) target = $region33
  $region32: #{_lambda_.19} parent=0 // pred_region
    _
  $region33: #{_lambda_.19} parent=0 // pred_fallthru
    _
  // Predicated region
  $region34: #{_lambda_.19} parent=0 // pred_check
    _
  $region35: #{_lambda_.19} parent=0 // pred_check_branch
    %31 = sbr.rel (0) target = $region37
  $region36: #{_lambda_.19} parent=0 // pred_region
    _
  $region37: #{_lambda_.19} parent=0 // pred_fallthru
    _
  %v32 = vld [vmem:[%s0] sm:$0xff]
  %v33 = vld [vmem:[%s0 + $0x8] sm:$0xff]
  %v34 = vld [vmem:[%s1] sm:$0xff]
  %v35 = vld [vmem:[%s1 + $0x8] sm:$0xff]
  %v36 = vmax.f32 %v32, %v34
  %v37 = vmax.f32 %v33, %v35
  %v38 = vld [vmem:[%s2] sm:$0xff]
  %v39 = vld [vmem:[%s2 + $0x8] sm:$0xff]
  %v40 = vmax.f32 %v36, %v38
  %v41 = vmax.f32 %v37, %v39
  %v42 = vld [vmem:[%s3] sm:$0xff]
  %v43 = vld [vmem:[%s3 + $0x8] sm:$0xff]
  %v44 = vmax.f32 %v40, %v42
  %v45 = vmax.f32 %v41, %v43
  %v46 = vld [vmem:[%s4] sm:$0xff]
  %v47 = vld [vmem:[%s4 + $0x8] sm:$0xff]
  %v48 = vmax.f32 %v44, %v46
  %v49 = vmax.f32 %v45, %v47
  %v50 = vld [vmem:[%s5] sm:$0xff]
  %v51 = vld [vmem:[%s5 + $0x8] sm:$0xff]
  %v52 = vmax.f32 %v48, %v50
  %v53 = vmax.f32 %v49, %v51
  %v54 = vld [vmem:[%s6] sm:$0xff]
  %v55 = vld [vmem:[%s6 + $0x8] sm:$0xff]
  %v56 = vmax.f32 %v52, %v54
  %v57 = vmax.f32 %v53, %v55
  %v58 = vld [vmem:[%s7] sm:$0xff]
  %v59 = vld [vmem:[%s7 + $0x8] sm:$0xff]
  %v60 = vmax.f32 %v56, %v58
  %v61 = vmax.f32 %v57, %v59
  %v62 = vld [vmem:[%s8] sm:$0xff]
  %v63 = vld [vmem:[%s8 + $0x8] sm:$0xff]
  %v64 = vmax.f32 %v60, %v62
  %v65 = vmax.f32 %v61, %v63
  %66 = vst [vmem:[%s9] sm:$0xff] %v64
  %67 = vst [vmem:[%s9 + $0x8] sm:$0xff] %v65
  // Predicated region
  $region38: #{_lambda_.19} parent=0 // pred_check
    _
  $region39: #{_lambda_.19} parent=0 // pred_check_branch
    %69 = sbr.rel (0) target = $region41
  $region40: #{_lambda_.19} parent=0 // pred_region
    _
  $region41: #{_lambda_.19} parent=0 // pred_fallthru
    _
  // Predicated region
  $region42: #{_lambda_.19} parent=0 // pred_check
    _
  $region43: #{_lambda_.19} parent=0 // pred_check_branch
    %71 = sbr.rel (0) target = $region45
  $region44: #{_lambda_.19} parent=0 // pred_region
    _
  $region45: #{_lambda_.19} parent=0 // pred_fallthru
    _

// kernel: _lambda_.22
$region0: #{_lambda_.22}
  #allocation0 [shape = 'u32[]', space=smem, size = 0x4, offset = 0x4, fixed_abs, tag = 'smem constant byte address 0x4 - core index']
  #allocation1 [shape = 'u32[72,128]{1,0:T(1,128)}', space=vmem, size = 0x9000, scoped, tag = 'internal scratch']
  %s0 = inlined_call_operand.vmem [shape: f32[4,16,128], index: 0, kind: input, shape index: {}]
  %s1 = inlined_call_operand.vmem [shape: f32[4,16,128], index: 1, kind: output, shape index: {}]
  %s2 = sld [smem:[#allocation0]]
  $region14: #{_lambda_.22} parent=0
    _
  %s4 = ssub.s32 1, %s2
  %s5 = scalar_select 0, %s4, %s2
  // Predicated region
  $region2: #{_lambda_.22} parent=0 // pred_check
    _
  $region3: #{_lambda_.22} parent=0 // pred_check_branch
    %7 = sbr.rel (0) target = $region5
  $region4: #{_lambda_.22} parent=0 // pred_region
    _
  $region5: #{_lambda_.22} parent=0 // pred_fallthru
    _
  %v8 = vld [vmem:[%s0] sm:$0xff]
  %v9 = vld [vmem:[%s0 + $0x8] sm:$0xff]
  %v10 = vmul.f32 %v8, 0.6666667
  %v11 = vmul.f32 %v9, 0.6666667
  %v12 = vadd.f32 %v10, 0.0
  %v13 = vadd.f32 %v11, 0.0
  %vm14 = vcmp.ge.f32.partialorder %v12, 1.0
  %vm15 = vcmp.ge.f32.partialorder %v13, 1.0
  %v16 = vsel %vm14, 1, 0
  %v17 = vsel %vm15, 1, 0
  %v18 = vcvt.s32.f32 %v16
  %v19 = vcvt.s32.f32 %v17
  %v20 = vsub.f32 1.0, %v18
  %v21 = vsub.f32 1.0, %v19
  %v22 = vmul.f32 %v12, %v20
  %v23 = vmul.f32 %v13, %v21
  %24 = vst [vmem:[%s1] sm:$0xff] %v18
  %25 = vst [vmem:[%s1 + $0x8] sm:$0xff] %v19
  %s26 = scalar_lea.vmem %s0, 16
  %v27 = vld [vmem:[%s26] sm:$0xff]
  %v28 = vld [vmem:[%s26 + $0x8] sm:$0xff]
  %v29 = vsub.f32 %v27, %v22
  %v30 = vsub.f32 %v28, %v23
  %v31 = vmul.f32 %v29, 0.6666667
  %v32 = vmul.f32 %v30, 0.6666667
  %v33 = vadd.f32 %v22, %v31
  %v34 = vadd.f32 %v23, %v32
  %vm35 = vcmp.ge.f32.partialorder %v33, 1.0
  %vm36 = vcmp.ge.f32.partialorder %v34, 1.0
  %v37 = vsel %vm35, 1, 0
  %v38 = vsel %vm36, 1, 0
  %v39 = vcvt.s32.f32 %v37
  %v40 = vcvt.s32.f32 %v38
  %v41 = vsub.f32 1.0, %v39
  %v42 = vsub.f32 1.0, %v40
  %v43 = vmul.f32 %v33, %v41
  %v44 = vmul.f32 %v34, %v42
  %s45 = scalar_lea.vmem %s1, 16
  %46 = vst [vmem:[%s45] sm:$0xff] %v39
  %47 = vst [vmem:[%s45 + $0x8] sm:$0xff] %v40
  %s48 = scalar_lea.vmem %s0, 32
  %v49 = vld [vmem:[%s48] sm:$0xff]
  %v50 = vld [vmem:[%s48 + $0x8] sm:$0xff]
  %v51 = vsub.f32 %v49, %v43
  %v52 = vsub.f32 %v50, %v44
  %v53 = vmul.f32 %v51, 0.6666667
  %v54 = vmul.f32 %v52, 0.6666667
  %v55 = vadd.f32 %v43, %v53
  %v56 = vadd.f32 %v44, %v54
  %vm57 = vcmp.ge.f32.partialorder %v55, 1.0
  %vm58 = vcmp.ge.f32.partialorder %v56, 1.0
  %v59 = vsel %vm57, 1, 0
  %v60 = vsel %vm58, 1, 0
  %v61 = vcvt.s32.f32 %v59
  %v62 = vcvt.s32.f32 %v60
  %v63 = vsub.f32 1.0, %v61
  %v64 = vsub.f32 1.0, %v62
  %v65 = vmul.f32 %v55, %v63
  %v66 = vmul.f32 %v56, %v64
  %s67 = scalar_lea.vmem %s1, 32
  %68 = vst [vmem:[%s67] sm:$0xff] %v61
  %69 = vst [vmem:[%s67 + $0x8] sm:$0xff] %v62
  %s70 = scalar_lea.vmem %s0, 48
  %v71 = vld [vmem:[%s70] sm:$0xff]
  %v72 = vld [vmem:[%s70 + $0x8] sm:$0xff]
  %v73 = vsub.f32 %v71, %v65
  %v74 = vsub.f32 %v72, %v66
  %v75 = vmul.f32 %v73, 0.6666667
  %v76 = vmul.f32 %v74, 0.6666667
  %v77 = vadd.f32 %v65, %v75
  %v78 = vadd.f32 %v66, %v76
  %vm79 = vcmp.ge.f32.partialorder %v77, 1.0
  %vm80 = vcmp.ge.f32.partialorder %v78, 1.0
  %v81 = vsel %vm79, 1, 0
  %v82 = vsel %vm80, 1, 0
  %v83 = vcvt.s32.f32 %v81
  %v84 = vcvt.s32.f32 %v82
  %s85 = scalar_lea.vmem %s1, 48
  %86 = vst [vmem:[%s85] sm:$0xff] %v83
  %87 = vst [vmem:[%s85 + $0x8] sm:$0xff] %v84
  // Predicated region
  $region6: #{_lambda_.22} parent=0 // pred_check
    _
  $region7: #{_lambda_.22} parent=0 // pred_check_branch
    %89 = sbr.rel (0) target = $region9
  $region8: #{_lambda_.22} parent=0 // pred_region
    _
  $region9: #{_lambda_.22} parent=0 // pred_fallthru
    _
  // Predicated region
  $region10: #{_lambda_.22} parent=0 // pred_check
    _
  $region11: #{_lambda_.22} parent=0 // pred_check_branch
    %91 = sbr.rel (0) target = $region13
  $region12: #{_lambda_.22} parent=0 // pred_region
    _
  $region13: #{_lambda_.22} parent=0 // pred_fallthru
    _

// kernel: _lambda_.24
$region0: #{_lambda_.24}
  #allocation0 [shape = 'u32[]', space=smem, size = 0x4, offset = 0x4, fixed_abs, tag = 'smem constant byte address 0x4 - core index']
  #allocation1 [shape = 'u32[72,128]{1,0:T(1,128)}', space=vmem, size = 0x9000, scoped, tag = 'internal scratch']
  %s0 = inlined_call_operand.vmem [shape: f32[4,16,128], index: 0, kind: input, shape index: {}]
  %s1 = inlined_call_operand.vmem [shape: f32[1,16,128], index: 1, kind: output, shape index: {}]
  %s2 = sld [smem:[#allocation0]]
  $region14: #{_lambda_.24} parent=0
    _
  %s4 = ssub.s32 1, %s2
  %s5 = scalar_select 0, %s4, %s2
  // Predicated region
  $region2: #{_lambda_.24} parent=0 // pred_check
    _
  $region3: #{_lambda_.24} parent=0 // pred_check_branch
    %7 = sbr.rel (0) target = $region5
  $region4: #{_lambda_.24} parent=0 // pred_region
    _
  $region5: #{_lambda_.24} parent=0 // pred_fallthru
    _
  %v8 = vld [vmem:[%s0] sm:$0xff]
  %v9 = vld [vmem:[%s0 + $0x8] sm:$0xff]
  %v10 = vmul.f32 %v8, 0.6666667
  %v11 = vmul.f32 %v9, 0.6666667
  %v12 = vadd.f32 %v10, 0.0
  %v13 = vadd.f32 %v11, 0.0
  %vm14 = vcmp.ge.f32.partialorder %v12, 1.0
  %vm15 = vcmp.ge.f32.partialorder %v13, 1.0
  %v16 = vsel %vm14, 1, 0
  %v17 = vsel %vm15, 1, 0
  %v18 = vcvt.s32.f32 %v16
  %v19 = vcvt.s32.f32 %v17
  %v20 = vsub.f32 1.0, %v18
  %v21 = vsub.f32 1.0, %v19
  %v22 = vmul.f32 %v12, %v20
  %v23 = vmul.f32 %v13, %v21
  %v24 = vadd.f32 %v18, 0.0
  %v25 = vadd.f32 %v19, 0.0
  %s26 = scalar_lea.vmem %s0, 16
  %v27 = vld [vmem:[%s26] sm:$0xff]
  %v28 = vld [vmem:[%s26 + $0x8] sm:$0xff]
  %v29 = vsub.f32 %v27, %v22
  %v30 = vsub.f32 %v28, %v23
  %v31 = vmul.f32 %v29, 0.6666667
  %v32 = vmul.f32 %v30, 0.6666667
  %v33 = vadd.f32 %v22, %v31
  %v34 = vadd.f32 %v23, %v32
  %vm35 = vcmp.ge.f32.partialorder %v33, 1.0
  %vm36 = vcmp.ge.f32.partialorder %v34, 1.0
  %v37 = vsel %vm35, 1, 0
  %v38 = vsel %vm36, 1, 0
  %v39 = vcvt.s32.f32 %v37
  %v40 = vcvt.s32.f32 %v38
  %v41 = vsub.f32 1.0, %v39
  %v42 = vsub.f32 1.0, %v40
  %v43 = vmul.f32 %v33, %v41
  %v44 = vmul.f32 %v34, %v42
  %v45 = vadd.f32 %v24, %v39
  %v46 = vadd.f32 %v25, %v40
  %s47 = scalar_lea.vmem %s0, 32
  %v48 = vld [vmem:[%s47] sm:$0xff]
  %v49 = vld [vmem:[%s47 + $0x8] sm:$0xff]
  %v50 = vsub.f32 %v48, %v43
  %v51 = vsub.f32 %v49, %v44
  %v52 = vmul.f32 %v50, 0.6666667
  %v53 = vmul.f32 %v51, 0.6666667
  %v54 = vadd.f32 %v43, %v52
  %v55 = vadd.f32 %v44, %v53
  %vm56 = vcmp.ge.f32.partialorder %v54, 1.0
  %vm57 = vcmp.ge.f32.partialorder %v55, 1.0
  %v58 = vsel %vm56, 1, 0
  %v59 = vsel %vm57, 1, 0
  %v60 = vcvt.s32.f32 %v58
  %v61 = vcvt.s32.f32 %v59
  %v62 = vsub.f32 1.0, %v60
  %v63 = vsub.f32 1.0, %v61
  %v64 = vmul.f32 %v54, %v62
  %v65 = vmul.f32 %v55, %v63
  %v66 = vadd.f32 %v45, %v60
  %v67 = vadd.f32 %v46, %v61
  %s68 = scalar_lea.vmem %s0, 48
  %v69 = vld [vmem:[%s68] sm:$0xff]
  %v70 = vld [vmem:[%s68 + $0x8] sm:$0xff]
  %v71 = vsub.f32 %v69, %v64
  %v72 = vsub.f32 %v70, %v65
  %v73 = vmul.f32 %v71, 0.6666667
  %v74 = vmul.f32 %v72, 0.6666667
  %v75 = vadd.f32 %v64, %v73
  %v76 = vadd.f32 %v65, %v74
  %vm77 = vcmp.ge.f32.partialorder %v75, 1.0
  %vm78 = vcmp.ge.f32.partialorder %v76, 1.0
  %v79 = vsel %vm77, 1, 0
  %v80 = vsel %vm78, 1, 0
  %v81 = vcvt.s32.f32 %v79
  %v82 = vcvt.s32.f32 %v80
  %v83 = vadd.f32 %v66, %v81
  %v84 = vadd.f32 %v67, %v82
  %v85 = vmul.f32 %v83, 0.25
  %v86 = vmul.f32 %v84, 0.25
  %87 = vst [vmem:[%s1] sm:$0xff] %v85
  %88 = vst [vmem:[%s1 + $0x8] sm:$0xff] %v86
  // Predicated region
  $region6: #{_lambda_.24} parent=0 // pred_check
    _
  $region7: #{_lambda_.24} parent=0 // pred_check_branch
    %90 = sbr.rel (0) target = $region9
  $region8: #{_lambda_.24} parent=0 // pred_region
    _
  $region9: #{_lambda_.24} parent=0 // pred_fallthru
    _
  // Predicated region
  $region10: #{_lambda_.24} parent=0 // pred_check
    _
  $region11: #{_lambda_.24} parent=0 // pred_check_branch
    %92 = sbr.rel (0) target = $region13
  $region12: #{_lambda_.24} parent=0 // pred_region
    _
  $region13: #{_lambda_.24} parent=0 // pred_fallthru
    _

// kernel: _lambda_.21
$region0: #{_lambda_.21}
  #allocation0 [shape = 'u32[]', space=smem, size = 0x4, offset = 0x4, fixed_abs, tag = 'smem constant byte address 0x4 - core index']
  #allocation1 [shape = 'u32[72,128]{1,0:T(1,128)}', space=vmem, size = 0x9000, scoped, tag = 'internal scratch']
  %s0 = inlined_call_operand.vmem [shape: bf16[64,128], index: 0, kind: input, shape index: {}]
  %s1 = inlined_call_operand.vmem [shape: bf16[64,128], index: 1, kind: input, shape index: {}]
  %s2 = inlined_call_operand.vmem [shape: bf16[64,128], index: 2, kind: input, shape index: {}]
  %s3 = inlined_call_operand.vmem [shape: bf16[64,128], index: 3, kind: input, shape index: {}]
  %s4 = inlined_call_operand.vmem [shape: bf16[64,128], index: 4, kind: input, shape index: {}]
  %s5 = inlined_call_operand.vmem [shape: bf16[64,128], index: 5, kind: input, shape index: {}]
  %s6 = inlined_call_operand.vmem [shape: bf16[64,128], index: 6, kind: input, shape index: {}]
  %s7 = inlined_call_operand.vmem [shape: bf16[64,128], index: 7, kind: input, shape index: {}]
  %s8 = inlined_call_operand.vmem [shape: bf16[64,128], index: 8, kind: input, shape index: {}]
  %s9 = inlined_call_operand.vmem [shape: bf16[9,128,128], index: 9, kind: input, shape index: {}]
  %s10 = inlined_call_operand.vmem [shape: f32[1,128], index: 10, kind: input, shape index: {}]
  %s11 = inlined_call_operand.vmem [shape: f32[1,128], index: 11, kind: input, shape index: {}]
  %s12 = inlined_call_operand.vmem [shape: f32[64,128], index: 12, kind: output, shape index: {}]
  %s13 = sld [smem:[#allocation0]]
  $region58: #{_lambda_.21} parent=0
    _
  %s15 = ssub.s32 1, %s13
  %s16 = scalar_select 0, %s15, %s13
  // Predicated region
  $region2: #{_lambda_.21} parent=0 // pred_check
    _
  $region3: #{_lambda_.21} parent=0 // pred_check_branch
    %18 = sbr.rel (0) target = $region5
  $region4: #{_lambda_.21} parent=0 // pred_region
    _
  $region5: #{_lambda_.21} parent=0 // pred_fallthru
    _
  // Predicated region
  $region6: #{_lambda_.21} parent=0 // pred_check
    _
  $region7: #{_lambda_.21} parent=0 // pred_check_branch
    %20 = sbr.rel (0) target = $region9
  $region8: #{_lambda_.21} parent=0 // pred_region
    _
  $region9: #{_lambda_.21} parent=0 // pred_fallthru
    _
  // Predicated region
  $region10: #{_lambda_.21} parent=0 // pred_check
    _
  $region11: #{_lambda_.21} parent=0 // pred_check_branch
    %22 = sbr.rel (0) target = $region13
  $region12: #{_lambda_.21} parent=0 // pred_region
    _
  $region13: #{_lambda_.21} parent=0 // pred_fallthru
    _
  // Predicated region
  $region14: #{_lambda_.21} parent=0 // pred_check
    _
  $region15: #{_lambda_.21} parent=0 // pred_check_branch
    %24 = sbr.rel (0) target = $region17
  $region16: #{_lambda_.21} parent=0 // pred_region
    _
  $region17: #{_lambda_.21} parent=0 // pred_fallthru
    _
  // Predicated region
  $region18: #{_lambda_.21} parent=0 // pred_check
    _
  $region19: #{_lambda_.21} parent=0 // pred_check_branch
    %26 = sbr.rel (0) target = $region21
  $region20: #{_lambda_.21} parent=0 // pred_region
    _
  $region21: #{_lambda_.21} parent=0 // pred_fallthru
    _
  // Predicated region
  $region22: #{_lambda_.21} parent=0 // pred_check
    _
  $region23: #{_lambda_.21} parent=0 // pred_check_branch
    %28 = sbr.rel (0) target = $region25
  $region24: #{_lambda_.21} parent=0 // pred_region
    _
  $region25: #{_lambda_.21} parent=0 // pred_fallthru
    _
  // Predicated region
  $region26: #{_lambda_.21} parent=0 // pred_check
    _
  $region27: #{_lambda_.21} parent=0 // pred_check_branch
    %30 = sbr.rel (0) target = $region29
  $region28: #{_lambda_.21} parent=0 // pred_region
    _
  $region29: #{_lambda_.21} parent=0 // pred_fallthru
    _
  // Predicated region
  $region30: #{_lambda_.21} parent=0 // pred_check
    _
  $region31: #{_lambda_.21} parent=0 // pred_check_branch
    %32 = sbr.rel (0) target = $region33
  $region32: #{_lambda_.21} parent=0 // pred_region
    _
  $region33: #{_lambda_.21} parent=0 // pred_fallthru
    _
  // Predicated region
  $region34: #{_lambda_.21} parent=0 // pred_check
    _
  $region35: #{_lambda_.21} parent=0 // pred_check_branch
    %34 = sbr.rel (0) target = $region37
  $region36: #{_lambda_.21} parent=0 // pred_region
    _
  $region37: #{_lambda_.21} parent=0 // pred_fallthru
    _
  // Predicated region
  $region38: #{_lambda_.21} parent=0 // pred_check
    _
  $region39: #{_lambda_.21} parent=0 // pred_check_branch
    %36 = sbr.rel (0) target = $region41
  $region40: #{_lambda_.21} parent=0 // pred_region
    _
  $region41: #{_lambda_.21} parent=0 // pred_fallthru
    _
  // Predicated region
  $region42: #{_lambda_.21} parent=0 // pred_check
    _
  $region43: #{_lambda_.21} parent=0 // pred_check_branch
    %38 = sbr.rel (0) target = $region45
  $region44: #{_lambda_.21} parent=0 // pred_region
    _
  $region45: #{_lambda_.21} parent=0 // pred_fallthru
    _
  // Predicated region
  $region46: #{_lambda_.21} parent=0 // pred_check
    _
  $region47: #{_lambda_.21} parent=0 // pred_check_branch
    %40 = sbr.rel (0) target = $region49
  $region48: #{_lambda_.21} parent=0 // pred_region
    _
  $region49: #{_lambda_.21} parent=0 // pred_fallthru
    _
  %v41 = vld [vmem:[%s0] sm:$0xf]
  %v42 = vld [vmem:[%s0 + $0x4] sm:$0xf]
  %v43 = vld [vmem:[%s0 + $0x8] sm:$0xf]
  %v44 = vld [vmem:[%s0 + $0xc] sm:$0xf]
  %v45 = vld [vmem:[%s0 + $0x10] sm:$0xf]
  %v46 = vld [vmem:[%s0 + $0x14] sm:$0xf]
  %v47 = vld [vmem:[%s0 + $0x18] sm:$0xf]
  %v48 = vld [vmem:[%s0 + $0x1c] sm:$0xf]
  %v49 = vld [vmem:[%s9] sm:$0xf]
  %v50 = vld [vmem:[%s9 + $0x4] sm:$0xf]
  %v51 = vld [vmem:[%s9 + $0x8] sm:$0xf]
  %v52 = vld [vmem:[%s9 + $0xc] sm:$0xf]
  %v53 = vld [vmem:[%s9 + $0x10] sm:$0xf]
  %v54 = vld [vmem:[%s9 + $0x14] sm:$0xf]
  %v55 = vld [vmem:[%s9 + $0x18] sm:$0xf]
  %v56 = vld [vmem:[%s9 + $0x1c] sm:$0xf]
  %v57 = vld [vmem:[%s9 + $0x20] sm:$0xf]
  %v58 = vld [vmem:[%s9 + $0x24] sm:$0xf]
  %v59 = vld [vmem:[%s9 + $0x28] sm:$0xf]
  %v60 = vld [vmem:[%s9 + $0x2c] sm:$0xf]
  %v61 = vld [vmem:[%s9 + $0x30] sm:$0xf]
  %v62 = vld [vmem:[%s9 + $0x34] sm:$0xf]
  %v63 = vld [vmem:[%s9 + $0x38] sm:$0xf]
  %v64 = vld [vmem:[%s9 + $0x3c] sm:$0xf]
  %v65 = vld [vmem:[%s1] sm:$0xf]
  %v66 = vld [vmem:[%s1 + $0x4] sm:$0xf]
  %v67 = vld [vmem:[%s1 + $0x8] sm:$0xf]
  %v68 = vld [vmem:[%s1 + $0xc] sm:$0xf]
  %v69 = vld [vmem:[%s1 + $0x10] sm:$0xf]
  %v70 = vld [vmem:[%s1 + $0x14] sm:$0xf]
  %v71 = vld [vmem:[%s1 + $0x18] sm:$0xf]
  %v72 = vld [vmem:[%s1 + $0x1c] sm:$0xf]
  %s73 = scalar_lea.vmem %s9, 64
  %v74 = vld [vmem:[%s73] sm:$0xf]
  %v75 = vld [vmem:[%s73 + $0x4] sm:$0xf]
  %v76 = vld [vmem:[%s73 + $0x8] sm:$0xf]
  %v77 = vld [vmem:[%s73 + $0xc] sm:$0xf]
  %v78 = vld [vmem:[%s73 + $0x10] sm:$0xf]
  %v79 = vld [vmem:[%s73 + $0x14] sm:$0xf]
  %v80 = vld [vmem:[%s73 + $0x18] sm:$0xf]
  %v81 = vld [vmem:[%s73 + $0x1c] sm:$0xf]
  %v82 = vld [vmem:[%s73 + $0x20] sm:$0xf]
  %v83 = vld [vmem:[%s73 + $0x24] sm:$0xf]
  %v84 = vld [vmem:[%s73 + $0x28] sm:$0xf]
  %v85 = vld [vmem:[%s73 + $0x2c] sm:$0xf]
  %v86 = vld [vmem:[%s73 + $0x30] sm:$0xf]
  %v87 = vld [vmem:[%s73 + $0x34] sm:$0xf]
  %v88 = vld [vmem:[%s73 + $0x38] sm:$0xf]
  %v89 = vld [vmem:[%s73 + $0x3c] sm:$0xf]
  %v98 = vunpack.c.l.b16 %v65
  %v99 = vunpack.c.l.b16 %v66
  %v100 = vunpack.c.l.b16 %v67
  %v101 = vunpack.c.l.b16 %v68
  %v102 = vunpack.c.l.b16 %v69
  %v103 = vunpack.c.l.b16 %v70
  %v104 = vunpack.c.l.b16 %v71
  %v105 = vunpack.c.l.b16 %v72
  %v106 = vpack.c.b16 %v99, %v98
  %v107 = vpack.c.b16 %v101, %v100
  %v108 = vpack.c.b16 %v103, %v102
  %v109 = vpack.c.b16 %v105, %v104
  %v130 = vunpack.c.l.b16 %v74
  %v131 = vunpack.c.l.b16 %v75
  %v132 = vunpack.c.l.b16 %v76
  %v133 = vunpack.c.l.b16 %v77
  %v134 = vunpack.c.l.b16 %v78
  %v135 = vunpack.c.l.b16 %v79
  %v136 = vunpack.c.l.b16 %v80
  %v137 = vunpack.c.l.b16 %v81
  %v138 = vunpack.c.l.b16 %v82
  %v139 = vunpack.c.l.b16 %v83
  %v140 = vunpack.c.l.b16 %v84
  %v141 = vunpack.c.l.b16 %v85
  %v142 = vunpack.c.l.b16 %v86
  %v143 = vunpack.c.l.b16 %v87
  %v144 = vunpack.c.l.b16 %v88
  %v145 = vunpack.c.l.b16 %v89
  %v146 = vpack.c.b16 %v131, %v130
  %v147 = vpack.c.b16 %v133, %v132
  %v148 = vpack.c.b16 %v135, %v134
  %v149 = vpack.c.b16 %v137, %v136
  %v150 = vpack.c.b16 %v139, %v138
  %v151 = vpack.c.b16 %v141, %v140
  %v152 = vpack.c.b16 %v143, %v142
  %v153 = vpack.c.b16 %v145, %v144
  %162 = vmatpush.bf16.msra.mxu0 %v153
  %163 = vmatpush.bf16.msra.mxu0 %v152
  %164 = vmatpush.bf16.msra.mxu0 %v151
  %165 = vmatpush.bf16.msra.mxu0 %v150
  %166 = vmatpush.bf16.msra.mxu0 %v149
  %167 = vmatpush.bf16.msra.mxu0 %v148
  %168 = vmatpush.bf16.msra.mxu0 %v147
  %169 = vmatpush.bf16.msra.mxu0 %v146
  %170 = vmatmul.bf16.gmra.mxu0 %v106
  %v171 = vpop.f32.mrf.mxu0
  %v172 = vadd.f32 0.0, %v171
  %v173 = vpop.f32.mrf.mxu0
  %v174 = vadd.f32 0.0, %v173
  %175 = vmatmul.bf16.gmra.mxu0 %v107
  %v176 = vpop.f32.mrf.mxu0
  %v177 = vadd.f32 0.0, %v176
  %v178 = vpop.f32.mrf.mxu0
  %v179 = vadd.f32 0.0, %v178
  %180 = vmatmul.bf16.gmra.mxu0 %v108
  %v181 = vpop.f32.mrf.mxu0
  %v182 = vadd.f32 0.0, %v181
  %v183 = vpop.f32.mrf.mxu0
  %v184 = vadd.f32 0.0, %v183
  %185 = vmatmul.bf16.gmra.mxu0 %v109
  %v186 = vpop.f32.mrf.mxu0
  %v187 = vadd.f32 0.0, %v186
  %v188 = vpop.f32.mrf.mxu0
  %v189 = vadd.f32 0.0, %v188
  %190 = vdwg.mxu0
  %v199 = vunpack.c.l.b16 %v41
  %v200 = vunpack.c.l.b16 %v42
  %v201 = vunpack.c.l.b16 %v43
  %v202 = vunpack.c.l.b16 %v44
  %v203 = vunpack.c.l.b16 %v45
  %v204 = vunpack.c.l.b16 %v46
  %v205 = vunpack.c.l.b16 %v47
  %v206 = vunpack.c.l.b16 %v48
  %v207 = vpack.c.b16 %v200, %v199
  %v208 = vpack.c.b16 %v202, %v201
  %v209 = vpack.c.b16 %v204, %v203
  %v210 = vpack.c.b16 %v206, %v205
  %v231 = vunpack.c.l.b16 %v49
  %v232 = vunpack.c.l.b16 %v50
  %v233 = vunpack.c.l.b16 %v51
  %v234 = vunpack.c.l.b16 %v52
  %v235 = vunpack.c.l.b16 %v53
  %v236 = vunpack.c.l.b16 %v54
  %v237 = vunpack.c.l.b16 %v55
  %v238 = vunpack.c.l.b16 %v56
  %v239 = vunpack.c.l.b16 %v57
  %v240 = vunpack.c.l.b16 %v58
  %v241 = vunpack.c.l.b16 %v59
  %v242 = vunpack.c.l.b16 %v60
  %v243 = vunpack.c.l.b16 %v61
  %v244 = vunpack.c.l.b16 %v62
  %v245 = vunpack.c.l.b16 %v63
  %v246 = vunpack.c.l.b16 %v64
  %v247 = vpack.c.b16 %v232, %v231
  %v248 = vpack.c.b16 %v234, %v233
  %v249 = vpack.c.b16 %v236, %v235
  %v250 = vpack.c.b16 %v238, %v237
  %v251 = vpack.c.b16 %v240, %v239
  %v252 = vpack.c.b16 %v242, %v241
  %v253 = vpack.c.b16 %v244, %v243
  %v254 = vpack.c.b16 %v246, %v245
  %263 = vmatpush.bf16.msra.mxu0 %v254
  %264 = vmatpush.bf16.msra.mxu0 %v253
  %265 = vmatpush.bf16.msra.mxu0 %v252
  %266 = vmatpush.bf16.msra.mxu0 %v251
  %267 = vmatpush.bf16.msra.mxu0 %v250
  %268 = vmatpush.bf16.msra.mxu0 %v249
  %269 = vmatpush.bf16.msra.mxu0 %v248
  %270 = vmatpush.bf16.msra.mxu0 %v247
  %271 = vmatmul.bf16.gmra.mxu0 %v207
  %v272 = vpop.f32.mrf.mxu0
  %v273 = vadd.f32 %v172, %v272
  %v274 = vpop.f32.mrf.mxu0
  %v275 = vadd.f32 %v174, %v274
  %276 = vmatmul.bf16.gmra.mxu0 %v208
  %v277 = vpop.f32.mrf.mxu0
  %v278 = vadd.f32 %v177, %v277
  %v279 = vpop.f32.mrf.mxu0
  %v280 = vadd.f32 %v179, %v279
  %281 = vmatmul.bf16.gmra.mxu0 %v209
  %v282 = vpop.f32.mrf.mxu0
  %v283 = vadd.f32 %v182, %v282
  %v284 = vpop.f32.mrf.mxu0
  %v285 = vadd.f32 %v184, %v284
  %286 = vmatmul.bf16.gmra.mxu0 %v210
  %v287 = vpop.f32.mrf.mxu0
  %v288 = vadd.f32 %v187, %v287
  %v289 = vpop.f32.mrf.mxu0
  %v290 = vadd.f32 %v189, %v289
  %291 = vdwg.mxu0
  %v292 = vld [vmem:[%s2] sm:$0xf]
  %v293 = vld [vmem:[%s2 + $0x4] sm:$0xf]
  %v294 = vld [vmem:[%s2 + $0x8] sm:$0xf]
  %v295 = vld [vmem:[%s2 + $0xc] sm:$0xf]
  %v296 = vld [vmem:[%s2 + $0x10] sm:$0xf]
  %v297 = vld [vmem:[%s2 + $0x14] sm:$0xf]
  %v298 = vld [vmem:[%s2 + $0x18] sm:$0xf]
  %v299 = vld [vmem:[%s2 + $0x1c] sm:$0xf]
  %s300 = scalar_lea.vmem %s9, 128
  %v301 = vld [vmem:[%s300] sm:$0xf]
  %v302 = vld [vmem:[%s300 + $0x4] sm:$0xf]
  %v303 = vld [vmem:[%s300 + $0x8] sm:$0xf]
  %v304 = vld [vmem:[%s300 + $0xc] sm:$0xf]
  %v305 = vld [vmem:[%s300 + $0x10] sm:$0xf]
  %v306 = vld [vmem:[%s300 + $0x14] sm:$0xf]
  %v307 = vld [vmem:[%s300 + $0x18] sm:$0xf]
  %v308 = vld [vmem:[%s300 + $0x1c] sm:$0xf]
  %v309 = vld [vmem:[%s300 + $0x20] sm:$0xf]
  %v310 = vld [vmem:[%s300 + $0x24] sm:$0xf]
  %v311 = vld [vmem:[%s300 + $0x28] sm:$0xf]
  %v312 = vld [vmem:[%s300 + $0x2c] sm:$0xf]
  %v313 = vld [vmem:[%s300 + $0x30] sm:$0xf]
  %v314 = vld [vmem:[%s300 + $0x34] sm:$0xf]
  %v315 = vld [vmem:[%s300 + $0x38] sm:$0xf]
  %v316 = vld [vmem:[%s300 + $0x3c] sm:$0xf]
  %v325 = vunpack.c.l.b16 %v292
  %v326 = vunpack.c.l.b16 %v293
  %v327 = vunpack.c.l.b16 %v294
  %v328 = vunpack.c.l.b16 %v295
  %v329 = vunpack.c.l.b16 %v296
  %v330 = vunpack.c.l.b16 %v297
  %v331 = vunpack.c.l.b16 %v298
  %v332 = vunpack.c.l.b16 %v299
  %v333 = vpack.c.b16 %v326, %v325
  %v334 = vpack.c.b16 %v328, %v327
  %v335 = vpack.c.b16 %v330, %v329
  %v336 = vpack.c.b16 %v332, %v331
  %v357 = vunpack.c.l.b16 %v301
  %v358 = vunpack.c.l.b16 %v302
  %v359 = vunpack.c.l.b16 %v303
  %v360 = vunpack.c.l.b16 %v304
  %v361 = vunpack.c.l.b16 %v305
  %v362 = vunpack.c.l.b16 %v306
  %v363 = vunpack.c.l.b16 %v307
  %v364 = vunpack.c.l.b16 %v308
  %v365 = vunpack.c.l.b16 %v309
  %v366 = vunpack.c.l.b16 %v310
  %v367 = vunpack.c.l.b16 %v311
  %v368 = vunpack.c.l.b16 %v312
  %v369 = vunpack.c.l.b16 %v313
  %v370 = vunpack.c.l.b16 %v314
  %v371 = vunpack.c.l.b16 %v315
  %v372 = vunpack.c.l.b16 %v316
  %v373 = vpack.c.b16 %v358, %v357
  %v374 = vpack.c.b16 %v360, %v359
  %v375 = vpack.c.b16 %v362, %v361
  %v376 = vpack.c.b16 %v364, %v363
  %v377 = vpack.c.b16 %v366, %v365
  %v378 = vpack.c.b16 %v368, %v367
  %v379 = vpack.c.b16 %v370, %v369
  %v380 = vpack.c.b16 %v372, %v371
  %389 = vmatpush.bf16.msra.mxu0 %v380
  %390 = vmatpush.bf16.msra.mxu0 %v379
  %391 = vmatpush.bf16.msra.mxu0 %v378
  %392 = vmatpush.bf16.msra.mxu0 %v377
  %393 = vmatpush.bf16.msra.mxu0 %v376
  %394 = vmatpush.bf16.msra.mxu0 %v375
  %395 = vmatpush.bf16.msra.mxu0 %v374
  %396 = vmatpush.bf16.msra.mxu0 %v373
  %397 = vmatmul.bf16.gmra.mxu0 %v333
  %v398 = vpop.f32.mrf.mxu0
  %v399 = vadd.f32 0.0, %v398
  %v400 = vpop.f32.mrf.mxu0
  %v401 = vadd.f32 0.0, %v400
  %402 = vmatmul.bf16.gmra.mxu0 %v334
  %v403 = vpop.f32.mrf.mxu0
  %v404 = vadd.f32 0.0, %v403
  %v405 = vpop.f32.mrf.mxu0
  %v406 = vadd.f32 0.0, %v405
  %407 = vmatmul.bf16.gmra.mxu0 %v335
  %v408 = vpop.f32.mrf.mxu0
  %v409 = vadd.f32 0.0, %v408
  %v410 = vpop.f32.mrf.mxu0
  %v411 = vadd.f32 0.0, %v410
  %412 = vmatmul.bf16.gmra.mxu0 %v336
  %v413 = vpop.f32.mrf.mxu0
  %v414 = vadd.f32 0.0, %v413
  %v415 = vpop.f32.mrf.mxu0
  %v416 = vadd.f32 0.0, %v415
  %417 = vdwg.mxu0
  %v418 = vadd.f32 %v273, %v399
  %v419 = vadd.f32 %v275, %v401
  %v420 = vadd.f32 %v278, %v404
  %v421 = vadd.f32 %v280, %v406
  %v422 = vadd.f32 %v283, %v409
  %v423 = vadd.f32 %v285, %v411
  %v424 = vadd.f32 %v288, %v414
  %v425 = vadd.f32 %v290, %v416
  %v426 = vld [vmem:[%s3] sm:$0xf]
  %v427 = vld [vmem:[%s3 + $0x4] sm:$0xf]
  %v428 = vld [vmem:[%s3 + $0x8] sm:$0xf]
  %v429 = vld [vmem:[%s3 + $0xc] sm:$0xf]
  %v430 = vld [vmem:[%s3 + $0x10] sm:$0xf]
  %v431 = vld [vmem:[%s3 + $0x14] sm:$0xf]
  %v432 = vld [vmem:[%s3 + $0x18] sm:$0xf]
  %v433 = vld [vmem:[%s3 + $0x1c] sm:$0xf]
  %s434 = scalar_lea.vmem %s9, 192
  %v435 = vld [vmem:[%s434] sm:$0xf]
  %v436 = vld [vmem:[%s434 + $0x4] sm:$0xf]
  %v437 = vld [vmem:[%s434 + $0x8] sm:$0xf]
  %v438 = vld [vmem:[%s434 + $0xc] sm:$0xf]
  %v439 = vld [vmem:[%s434 + $0x10] sm:$0xf]
  %v440 = vld [vmem:[%s434 + $0x14] sm:$0xf]
  %v441 = vld [vmem:[%s434 + $0x18] sm:$0xf]
  %v442 = vld [vmem:[%s434 + $0x1c] sm:$0xf]
  %v443 = vld [vmem:[%s434 + $0x20] sm:$0xf]
  %v444 = vld [vmem:[%s434 + $0x24] sm:$0xf]
  %v445 = vld [vmem:[%s434 + $0x28] sm:$0xf]
  %v446 = vld [vmem:[%s434 + $0x2c] sm:$0xf]
  %v447 = vld [vmem:[%s434 + $0x30] sm:$0xf]
  %v448 = vld [vmem:[%s434 + $0x34] sm:$0xf]
  %v449 = vld [vmem:[%s434 + $0x38] sm:$0xf]
  %v450 = vld [vmem:[%s434 + $0x3c] sm:$0xf]
  %v459 = vunpack.c.l.b16 %v426
  %v460 = vunpack.c.l.b16 %v427
  %v461 = vunpack.c.l.b16 %v428
  %v462 = vunpack.c.l.b16 %v429
  %v463 = vunpack.c.l.b16 %v430
  %v464 = vunpack.c.l.b16 %v431
  %v465 = vunpack.c.l.b16 %v432
  %v466 = vunpack.c.l.b16 %v433
  %v467 = vpack.c.b16 %v460, %v459
  %v468 = vpack.c.b16 %v462, %v461
  %v469 = vpack.c.b16 %v464, %v463
  %v470 = vpack.c.b16 %v466, %v465
  %v491 = vunpack.c.l.b16 %v435
  %v492 = vunpack.c.l.b16 %v436
  %v493 = vunpack.c.l.b16 %v437
  %v494 = vunpack.c.l.b16 %v438
  %v495 = vunpack.c.l.b16 %v439
  %v496 = vunpack.c.l.b16 %v440
  %v497 = vunpack.c.l.b16 %v441
  %v498 = vunpack.c.l.b16 %v442
  %v499 = vunpack.c.l.b16 %v443
  %v500 = vunpack.c.l.b16 %v444
  %v501 = vunpack.c.l.b16 %v445
  %v502 = vunpack.c.l.b16 %v446
  %v503 = vunpack.c.l.b16 %v447
  %v504 = vunpack.c.l.b16 %v448
  %v505 = vunpack.c.l.b16 %v449
  %v506 = vunpack.c.l.b16 %v450
  %v507 = vpack.c.b16 %v492, %v491
  %v508 = vpack.c.b16 %v494, %v493
  %v509 = vpack.c.b16 %v496, %v495
  %v510 = vpack.c.b16 %v498, %v497
  %v511 = vpack.c.b16 %v500, %v499
  %v512 = vpack.c.b16 %v502, %v501
  %v513 = vpack.c.b16 %v504, %v503
  %v514 = vpack.c.b16 %v506, %v505
  %523 = vmatpush.bf16.msra.mxu0 %v514
  %524 = vmatpush.bf16.msra.mxu0 %v513
  %525 = vmatpush.bf16.msra.mxu0 %v512
  %526 = vmatpush.bf16.msra.mxu0 %v511
  %527 = vmatpush.bf16.msra.mxu0 %v510
  %528 = vmatpush.bf16.msra.mxu0 %v509
  %529 = vmatpush.bf16.msra.mxu0 %v508
  %530 = vmatpush.bf16.msra.mxu0 %v507
  %531 = vmatmul.bf16.gmra.mxu0 %v467
  %v532 = vpop.f32.mrf.mxu0
  %v533 = vadd.f32 0.0, %v532
  %v534 = vpop.f32.mrf.mxu0
  %v535 = vadd.f32 0.0, %v534
  %536 = vmatmul.bf16.gmra.mxu0 %v468
  %v537 = vpop.f32.mrf.mxu0
  %v538 = vadd.f32 0.0, %v537
  %v539 = vpop.f32.mrf.mxu0
  %v540 = vadd.f32 0.0, %v539
  %541 = vmatmul.bf16.gmra.mxu0 %v469
  %v542 = vpop.f32.mrf.mxu0
  %v543 = vadd.f32 0.0, %v542
  %v544 = vpop.f32.mrf.mxu0
  %v545 = vadd.f32 0.0, %v544
  %546 = vmatmul.bf16.gmra.mxu0 %v470
  %v547 = vpop.f32.mrf.mxu0
  %v548 = vadd.f32 0.0, %v547
  %v549 = vpop.f32.mrf.mxu0
  %v550 = vadd.f32 0.0, %v549
  %551 = vdwg.mxu0
  %v552 = vadd.f32 %v418, %v533
  %v553 = vadd.f32 %v419, %v535
  %v554 = vadd.f32 %v420, %v538
  %v555 = vadd.f32 %v421, %v540
  %v556 = vadd.f32 %v422, %v543
  %v557 = vadd.f32 %v423, %v545
  %v558 = vadd.f32 %v424, %v548
  %v559 = vadd.f32 %v425, %v550
  %v560 = vld [vmem:[%s4] sm:$0xf]
  %v561 = vld [vmem:[%s4 + $0x4] sm:$0xf]
  %v562 = vld [vmem:[%s4 + $0x8] sm:$0xf]
  %v563 = vld [vmem:[%s4 + $0xc] sm:$0xf]
  %v564 = vld [vmem:[%s4 + $0x10] sm:$0xf]
  %v565 = vld [vmem:[%s4 + $0x14] sm:$0xf]
  %v566 = vld [vmem:[%s4 + $0x18] sm:$0xf]
  %v567 = vld [vmem:[%s4 + $0x1c] sm:$0xf]
  %s568 = scalar_lea.vmem %s9, 256
  %v569 = vld [vmem:[%s568] sm:$0xf]
  %v570 = vld [vmem:[%s568 + $0x4] sm:$0xf]
  %v571 = vld [vmem:[%s568 + $0x8] sm:$0xf]
  %v572 = vld [vmem:[%s568 + $0xc] sm:$0xf]
  %v573 = vld [vmem:[%s568 + $0x10] sm:$0xf]
  %v574 = vld [vmem:[%s568 + $0x14] sm:$0xf]
  %v575 = vld [vmem:[%s568 + $0x18] sm:$0xf]
  %v576 = vld [vmem:[%s568 + $0x1c] sm:$0xf]
  %v577 = vld [vmem:[%s568 + $0x20] sm:$0xf]
  %v578 = vld [vmem:[%s568 + $0x24] sm:$0xf]
  %v579 = vld [vmem:[%s568 + $0x28] sm:$0xf]
  %v580 = vld [vmem:[%s568 + $0x2c] sm:$0xf]
  %v581 = vld [vmem:[%s568 + $0x30] sm:$0xf]
  %v582 = vld [vmem:[%s568 + $0x34] sm:$0xf]
  %v583 = vld [vmem:[%s568 + $0x38] sm:$0xf]
  %v584 = vld [vmem:[%s568 + $0x3c] sm:$0xf]
  %v593 = vunpack.c.l.b16 %v560
  %v594 = vunpack.c.l.b16 %v561
  %v595 = vunpack.c.l.b16 %v562
  %v596 = vunpack.c.l.b16 %v563
  %v597 = vunpack.c.l.b16 %v564
  %v598 = vunpack.c.l.b16 %v565
  %v599 = vunpack.c.l.b16 %v566
  %v600 = vunpack.c.l.b16 %v567
  %v601 = vpack.c.b16 %v594, %v593
  %v602 = vpack.c.b16 %v596, %v595
  %v603 = vpack.c.b16 %v598, %v597
  %v604 = vpack.c.b16 %v600, %v599
  %v625 = vunpack.c.l.b16 %v569
  %v626 = vunpack.c.l.b16 %v570
  %v627 = vunpack.c.l.b16 %v571
  %v628 = vunpack.c.l.b16 %v572
  %v629 = vunpack.c.l.b16 %v573
  %v630 = vunpack.c.l.b16 %v574
  %v631 = vunpack.c.l.b16 %v575
  %v632 = vunpack.c.l.b16 %v576
  %v633 = vunpack.c.l.b16 %v577
  %v634 = vunpack.c.l.b16 %v578
  %v635 = vunpack.c.l.b16 %v579
  %v636 = vunpack.c.l.b16 %v580
  %v637 = vunpack.c.l.b16 %v581
  %v638 = vunpack.c.l.b16 %v582
  %v639 = vunpack.c.l.b16 %v583
  %v640 = vunpack.c.l.b16 %v584
  %v641 = vpack.c.b16 %v626, %v625
  %v642 = vpack.c.b16 %v628, %v627
  %v643 = vpack.c.b16 %v630, %v629
  %v644 = vpack.c.b16 %v632, %v631
  %v645 = vpack.c.b16 %v634, %v633
  %v646 = vpack.c.b16 %v636, %v635
  %v647 = vpack.c.b16 %v638, %v637
  %v648 = vpack.c.b16 %v640, %v639
  %657 = vmatpush.bf16.msra.mxu0 %v648
  %658 = vmatpush.bf16.msra.mxu0 %v647
  %659 = vmatpush.bf16.msra.mxu0 %v646
  %660 = vmatpush.bf16.msra.mxu0 %v645
  %661 = vmatpush.bf16.msra.mxu0 %v644
  %662 = vmatpush.bf16.msra.mxu0 %v643
  %663 = vmatpush.bf16.msra.mxu0 %v642
  %664 = vmatpush.bf16.msra.mxu0 %v641
  %665 = vmatmul.bf16.gmra.mxu0 %v601
  %v666 = vpop.f32.mrf.mxu0
  %v667 = vadd.f32 0.0, %v666
  %v668 = vpop.f32.mrf.mxu0
  %v669 = vadd.f32 0.0, %v668
  %670 = vmatmul.bf16.gmra.mxu0 %v602
  %v671 = vpop.f32.mrf.mxu0
  %v672 = vadd.f32 0.0, %v671
  %v673 = vpop.f32.mrf.mxu0
  %v674 = vadd.f32 0.0, %v673
  %675 = vmatmul.bf16.gmra.mxu0 %v603
  %v676 = vpop.f32.mrf.mxu0
  %v677 = vadd.f32 0.0, %v676
  %v678 = vpop.f32.mrf.mxu0
  %v679 = vadd.f32 0.0, %v678
  %680 = vmatmul.bf16.gmra.mxu0 %v604
  %v681 = vpop.f32.mrf.mxu0
  %v682 = vadd.f32 0.0, %v681
  %v683 = vpop.f32.mrf.mxu0
  %v684 = vadd.f32 0.0, %v683
  %685 = vdwg.mxu0
  %v686 = vadd.f32 %v552, %v667
  %v687 = vadd.f32 %v553, %v669
  %v688 = vadd.f32 %v554, %v672
  %v689 = vadd.f32 %v555, %v674
  %v690 = vadd.f32 %v556, %v677
  %v691 = vadd.f32 %v557, %v679
  %v692 = vadd.f32 %v558, %v682
  %v693 = vadd.f32 %v559, %v684
  %v694 = vld [vmem:[%s5] sm:$0xf]
  %v695 = vld [vmem:[%s5 + $0x4] sm:$0xf]
  %v696 = vld [vmem:[%s5 + $0x8] sm:$0xf]
  %v697 = vld [vmem:[%s5 + $0xc] sm:$0xf]
  %v698 = vld [vmem:[%s5 + $0x10] sm:$0xf]
  %v699 = vld [vmem:[%s5 + $0x14] sm:$0xf]
  %v700 = vld [vmem:[%s5 + $0x18] sm:$0xf]
  %v701 = vld [vmem:[%s5 + $0x1c] sm:$0xf]
  %s702 = scalar_lea.vmem %s9, 320
  %v703 = vld [vmem:[%s702] sm:$0xf]
  %v704 = vld [vmem:[%s702 + $0x4] sm:$0xf]
  %v705 = vld [vmem:[%s702 + $0x8] sm:$0xf]
  %v706 = vld [vmem:[%s702 + $0xc] sm:$0xf]
  %v707 = vld [vmem:[%s702 + $0x10] sm:$0xf]
  %v708 = vld [vmem:[%s702 + $0x14] sm:$0xf]
  %v709 = vld [vmem:[%s702 + $0x18] sm:$0xf]
  %v710 = vld [vmem:[%s702 + $0x1c] sm:$0xf]
  %v711 = vld [vmem:[%s702 + $0x20] sm:$0xf]
  %v712 = vld [vmem:[%s702 + $0x24] sm:$0xf]
  %v713 = vld [vmem:[%s702 + $0x28] sm:$0xf]
  %v714 = vld [vmem:[%s702 + $0x2c] sm:$0xf]
  %v715 = vld [vmem:[%s702 + $0x30] sm:$0xf]
  %v716 = vld [vmem:[%s702 + $0x34] sm:$0xf]
  %v717 = vld [vmem:[%s702 + $0x38] sm:$0xf]
  %v718 = vld [vmem:[%s702 + $0x3c] sm:$0xf]
  %v727 = vunpack.c.l.b16 %v694
  %v728 = vunpack.c.l.b16 %v695
  %v729 = vunpack.c.l.b16 %v696
  %v730 = vunpack.c.l.b16 %v697
  %v731 = vunpack.c.l.b16 %v698
  %v732 = vunpack.c.l.b16 %v699
  %v733 = vunpack.c.l.b16 %v700
  %v734 = vunpack.c.l.b16 %v701
  %v735 = vpack.c.b16 %v728, %v727
  %v736 = vpack.c.b16 %v730, %v729
  %v737 = vpack.c.b16 %v732, %v731
  %v738 = vpack.c.b16 %v734, %v733
  %v759 = vunpack.c.l.b16 %v703
  %v760 = vunpack.c.l.b16 %v704
  %v761 = vunpack.c.l.b16 %v705
  %v762 = vunpack.c.l.b16 %v706
  %v763 = vunpack.c.l.b16 %v707
  %v764 = vunpack.c.l.b16 %v708
  %v765 = vunpack.c.l.b16 %v709
  %v766 = vunpack.c.l.b16 %v710
  %v767 = vunpack.c.l.b16 %v711
  %v768 = vunpack.c.l.b16 %v712
  %v769 = vunpack.c.l.b16 %v713
  %v770 = vunpack.c.l.b16 %v714
  %v771 = vunpack.c.l.b16 %v715
  %v772 = vunpack.c.l.b16 %v716
  %v773 = vunpack.c.l.b16 %v717
  %v774 = vunpack.c.l.b16 %v718
  %v775 = vpack.c.b16 %v760, %v759
  %v776 = vpack.c.b16 %v762, %v761
  %v777 = vpack.c.b16 %v764, %v763
  %v778 = vpack.c.b16 %v766, %v765
  %v779 = vpack.c.b16 %v768, %v767
  %v780 = vpack.c.b16 %v770, %v769
  %v781 = vpack.c.b16 %v772, %v771
  %v782 = vpack.c.b16 %v774, %v773
  %791 = vmatpush.bf16.msra.mxu0 %v782
  %792 = vmatpush.bf16.msra.mxu0 %v781
  %793 = vmatpush.bf16.msra.mxu0 %v780
  %794 = vmatpush.bf16.msra.mxu0 %v779
  %795 = vmatpush.bf16.msra.mxu0 %v778
  %796 = vmatpush.bf16.msra.mxu0 %v777
  %797 = vmatpush.bf16.msra.mxu0 %v776
  %798 = vmatpush.bf16.msra.mxu0 %v775
  %799 = vmatmul.bf16.gmra.mxu0 %v735
  %v800 = vpop.f32.mrf.mxu0
  %v801 = vadd.f32 0.0, %v800
  %v802 = vpop.f32.mrf.mxu0
  %v803 = vadd.f32 0.0, %v802
  %804 = vmatmul.bf16.gmra.mxu0 %v736
  %v805 = vpop.f32.mrf.mxu0
  %v806 = vadd.f32 0.0, %v805
  %v807 = vpop.f32.mrf.mxu0
  %v808 = vadd.f32 0.0, %v807
  %809 = vmatmul.bf16.gmra.mxu0 %v737
  %v810 = vpop.f32.mrf.mxu0
  %v811 = vadd.f32 0.0, %v810
  %v812 = vpop.f32.mrf.mxu0
  %v813 = vadd.f32 0.0, %v812
  %814 = vmatmul.bf16.gmra.mxu0 %v738
  %v815 = vpop.f32.mrf.mxu0
  %v816 = vadd.f32 0.0, %v815
  %v817 = vpop.f32.mrf.mxu0
  %v818 = vadd.f32 0.0, %v817
  %819 = vdwg.mxu0
  %v820 = vadd.f32 %v686, %v801
  %v821 = vadd.f32 %v687, %v803
  %v822 = vadd.f32 %v688, %v806
  %v823 = vadd.f32 %v689, %v808
  %v824 = vadd.f32 %v690, %v811
  %v825 = vadd.f32 %v691, %v813
  %v826 = vadd.f32 %v692, %v816
  %v827 = vadd.f32 %v693, %v818
  %v828 = vld [vmem:[%s6] sm:$0xf]
  %v829 = vld [vmem:[%s6 + $0x4] sm:$0xf]
  %v830 = vld [vmem:[%s6 + $0x8] sm:$0xf]
  %v831 = vld [vmem:[%s6 + $0xc] sm:$0xf]
  %v832 = vld [vmem:[%s6 + $0x10] sm:$0xf]
  %v833 = vld [vmem:[%s6 + $0x14] sm:$0xf]
  %v834 = vld [vmem:[%s6 + $0x18] sm:$0xf]
  %v835 = vld [vmem:[%s6 + $0x1c] sm:$0xf]
  %s836 = scalar_lea.vmem %s9, 384
  %v837 = vld [vmem:[%s836] sm:$0xf]
  %v838 = vld [vmem:[%s836 + $0x4] sm:$0xf]
  %v839 = vld [vmem:[%s836 + $0x8] sm:$0xf]
  %v840 = vld [vmem:[%s836 + $0xc] sm:$0xf]
  %v841 = vld [vmem:[%s836 + $0x10] sm:$0xf]
  %v842 = vld [vmem:[%s836 + $0x14] sm:$0xf]
  %v843 = vld [vmem:[%s836 + $0x18] sm:$0xf]
  %v844 = vld [vmem:[%s836 + $0x1c] sm:$0xf]
  %v845 = vld [vmem:[%s836 + $0x20] sm:$0xf]
  %v846 = vld [vmem:[%s836 + $0x24] sm:$0xf]
  %v847 = vld [vmem:[%s836 + $0x28] sm:$0xf]
  %v848 = vld [vmem:[%s836 + $0x2c] sm:$0xf]
  %v849 = vld [vmem:[%s836 + $0x30] sm:$0xf]
  %v850 = vld [vmem:[%s836 + $0x34] sm:$0xf]
  %v851 = vld [vmem:[%s836 + $0x38] sm:$0xf]
  %v852 = vld [vmem:[%s836 + $0x3c] sm:$0xf]
  %v861 = vunpack.c.l.b16 %v828
  %v862 = vunpack.c.l.b16 %v829
  %v863 = vunpack.c.l.b16 %v830
  %v864 = vunpack.c.l.b16 %v831
  %v865 = vunpack.c.l.b16 %v832
  %v866 = vunpack.c.l.b16 %v833
  %v867 = vunpack.c.l.b16 %v834
  %v868 = vunpack.c.l.b16 %v835
  %v869 = vpack.c.b16 %v862, %v861
  %v870 = vpack.c.b16 %v864, %v863
  %v871 = vpack.c.b16 %v866, %v865
  %v872 = vpack.c.b16 %v868, %v867
  %v893 = vunpack.c.l.b16 %v837
  %v894 = vunpack.c.l.b16 %v838
  %v895 = vunpack.c.l.b16 %v839
  %v896 = vunpack.c.l.b16 %v840
  %v897 = vunpack.c.l.b16 %v841
  %v898 = vunpack.c.l.b16 %v842
  %v899 = vunpack.c.l.b16 %v843
  %v900 = vunpack.c.l.b16 %v844
  %v901 = vunpack.c.l.b16 %v845
  %v902 = vunpack.c.l.b16 %v846
  %v903 = vunpack.c.l.b16 %v847
  %v904 = vunpack.c.l.b16 %v848
  %v905 = vunpack.c.l.b16 %v849
  %v906 = vunpack.c.l.b16 %v850
  %v907 = vunpack.c.l.b16 %v851
  %v908 = vunpack.c.l.b16 %v852
  %v909 = vpack.c.b16 %v894, %v893
  %v910 = vpack.c.b16 %v896, %v895
  %v911 = vpack.c.b16 %v898, %v897
  %v912 = vpack.c.b16 %v900, %v899
  %v913 = vpack.c.b16 %v902, %v901
  %v914 = vpack.c.b16 %v904, %v903
  %v915 = vpack.c.b16 %v906, %v905
  %v916 = vpack.c.b16 %v908, %v907
  %925 = vmatpush.bf16.msra.mxu0 %v916
  %926 = vmatpush.bf16.msra.mxu0 %v915
  %927 = vmatpush.bf16.msra.mxu0 %v914
  %928 = vmatpush.bf16.msra.mxu0 %v913
  %929 = vmatpush.bf16.msra.mxu0 %v912
  %930 = vmatpush.bf16.msra.mxu0 %v911
  %931 = vmatpush.bf16.msra.mxu0 %v910
  %932 = vmatpush.bf16.msra.mxu0 %v909
  %933 = vmatmul.bf16.gmra.mxu0 %v869
  %v934 = vpop.f32.mrf.mxu0
  %v935 = vadd.f32 0.0, %v934
  %v936 = vpop.f32.mrf.mxu0
  %v937 = vadd.f32 0.0, %v936
  %938 = vmatmul.bf16.gmra.mxu0 %v870
  %v939 = vpop.f32.mrf.mxu0
  %v940 = vadd.f32 0.0, %v939
  %v941 = vpop.f32.mrf.mxu0
  %v942 = vadd.f32 0.0, %v941
  %943 = vmatmul.bf16.gmra.mxu0 %v871
  %v944 = vpop.f32.mrf.mxu0
  %v945 = vadd.f32 0.0, %v944
  %v946 = vpop.f32.mrf.mxu0
  %v947 = vadd.f32 0.0, %v946
  %948 = vmatmul.bf16.gmra.mxu0 %v872
  %v949 = vpop.f32.mrf.mxu0
  %v950 = vadd.f32 0.0, %v949
  %v951 = vpop.f32.mrf.mxu0
  %v952 = vadd.f32 0.0, %v951
  %953 = vdwg.mxu0
  %v954 = vadd.f32 %v820, %v935
  %v955 = vadd.f32 %v821, %v937
  %v956 = vadd.f32 %v822, %v940
  %v957 = vadd.f32 %v823, %v942
  %v958 = vadd.f32 %v824, %v945
  %v959 = vadd.f32 %v825, %v947
  %v960 = vadd.f32 %v826, %v950
  %v961 = vadd.f32 %v827, %v952
  %v962 = vld [vmem:[%s7] sm:$0xf]
  %v963 = vld [vmem:[%s7 + $0x4] sm:$0xf]
  %v964 = vld [vmem:[%s7 + $0x8] sm:$0xf]
  %v965 = vld [vmem:[%s7 + $0xc] sm:$0xf]
  %v966 = vld [vmem:[%s7 + $0x10] sm:$0xf]
  %v967 = vld [vmem:[%s7 + $0x14] sm:$0xf]
  %v968 = vld [vmem:[%s7 + $0x18] sm:$0xf]
  %v969 = vld [vmem:[%s7 + $0x1c] sm:$0xf]
  %s970 = scalar_lea.vmem %s9, 448
  %v971 = vld [vmem:[%s970] sm:$0xf]
  %v972 = vld [vmem:[%s970 + $0x4] sm:$0xf]
  %v973 = vld [vmem:[%s970 + $0x8] sm:$0xf]
  %v974 = vld [vmem:[%s970 + $0xc] sm:$0xf]
  %v975 = vld [vmem:[%s970 + $0x10] sm:$0xf]
  %v976 = vld [vmem:[%s970 + $0x14] sm:$0xf]
  %v977 = vld [vmem:[%s970 + $0x18] sm:$0xf]
  %v978 = vld [vmem:[%s970 + $0x1c] sm:$0xf]
  %v979 = vld [vmem:[%s970 + $0x20] sm:$0xf]
  %v980 = vld [vmem:[%s970 + $0x24] sm:$0xf]
  %v981 = vld [vmem:[%s970 + $0x28] sm:$0xf]
  %v982 = vld [vmem:[%s970 + $0x2c] sm:$0xf]
  %v983 = vld [vmem:[%s970 + $0x30] sm:$0xf]
  %v984 = vld [vmem:[%s970 + $0x34] sm:$0xf]
  %v985 = vld [vmem:[%s970 + $0x38] sm:$0xf]
  %v986 = vld [vmem:[%s970 + $0x3c] sm:$0xf]
  %v995 = vunpack.c.l.b16 %v962
  %v996 = vunpack.c.l.b16 %v963
  %v997 = vunpack.c.l.b16 %v964
  %v998 = vunpack.c.l.b16 %v965
  %v999 = vunpack.c.l.b16 %v966
  %v1000 = vunpack.c.l.b16 %v967
  %v1001 = vunpack.c.l.b16 %v968
  %v1002 = vunpack.c.l.b16 %v969
  %v1003 = vpack.c.b16 %v996, %v995
  %v1004 = vpack.c.b16 %v998, %v997
  %v1005 = vpack.c.b16 %v1000, %v999
  %v1006 = vpack.c.b16 %v1002, %v1001
  %v1027 = vunpack.c.l.b16 %v971
  %v1028 = vunpack.c.l.b16 %v972
  %v1029 = vunpack.c.l.b16 %v973
  %v1030 = vunpack.c.l.b16 %v974
  %v1031 = vunpack.c.l.b16 %v975
  %v1032 = vunpack.c.l.b16 %v976
  %v1033 = vunpack.c.l.b16 %v977
  %v1034 = vunpack.c.l.b16 %v978
  %v1035 = vunpack.c.l.b16 %v979
  %v1036 = vunpack.c.l.b16 %v980
  %v1037 = vunpack.c.l.b16 %v981
  %v1038 = vunpack.c.l.b16 %v982
  %v1039 = vunpack.c.l.b16 %v983
  %v1040 = vunpack.c.l.b16 %v984
  %v1041 = vunpack.c.l.b16 %v985
  %v1042 = vunpack.c.l.b16 %v986
  %v1043 = vpack.c.b16 %v1028, %v1027
  %v1044 = vpack.c.b16 %v1030, %v1029
  %v1045 = vpack.c.b16 %v1032, %v1031
  %v1046 = vpack.c.b16 %v1034, %v1033
  %v1047 = vpack.c.b16 %v1036, %v1035
  %v1048 = vpack.c.b16 %v1038, %v1037
  %v1049 = vpack.c.b16 %v1040, %v1039
  %v1050 = vpack.c.b16 %v1042, %v1041
  %1059 = vmatpush.bf16.msra.mxu0 %v1050
  %1060 = vmatpush.bf16.msra.mxu0 %v1049
  %1061 = vmatpush.bf16.msra.mxu0 %v1048
  %1062 = vmatpush.bf16.msra.mxu0 %v1047
  %1063 = vmatpush.bf16.msra.mxu0 %v1046
  %1064 = vmatpush.bf16.msra.mxu0 %v1045
  %1065 = vmatpush.bf16.msra.mxu0 %v1044
  %1066 = vmatpush.bf16.msra.mxu0 %v1043
  %1067 = vmatmul.bf16.gmra.mxu0 %v1003
  %v1068 = vpop.f32.mrf.mxu0
  %v1069 = vadd.f32 0.0, %v1068
  %v1070 = vpop.f32.mrf.mxu0
  %v1071 = vadd.f32 0.0, %v1070
  %1072 = vmatmul.bf16.gmra.mxu0 %v1004
  %v1073 = vpop.f32.mrf.mxu0
  %v1074 = vadd.f32 0.0, %v1073
  %v1075 = vpop.f32.mrf.mxu0
  %v1076 = vadd.f32 0.0, %v1075
  %1077 = vmatmul.bf16.gmra.mxu0 %v1005
  %v1078 = vpop.f32.mrf.mxu0
  %v1079 = vadd.f32 0.0, %v1078
  %v1080 = vpop.f32.mrf.mxu0
  %v1081 = vadd.f32 0.0, %v1080
  %1082 = vmatmul.bf16.gmra.mxu0 %v1006
  %v1083 = vpop.f32.mrf.mxu0
  %v1084 = vadd.f32 0.0, %v1083
  %v1085 = vpop.f32.mrf.mxu0
  %v1086 = vadd.f32 0.0, %v1085
  %1087 = vdwg.mxu0
  %v1088 = vadd.f32 %v954, %v1069
  %v1089 = vadd.f32 %v955, %v1071
  %v1090 = vadd.f32 %v956, %v1074
  %v1091 = vadd.f32 %v957, %v1076
  %v1092 = vadd.f32 %v958, %v1079
  %v1093 = vadd.f32 %v959, %v1081
  %v1094 = vadd.f32 %v960, %v1084
  %v1095 = vadd.f32 %v961, %v1086
  %v1096 = vld [vmem:[%s8] sm:$0xf]
  %v1097 = vld [vmem:[%s8 + $0x4] sm:$0xf]
  %v1098 = vld [vmem:[%s8 + $0x8] sm:$0xf]
  %v1099 = vld [vmem:[%s8 + $0xc] sm:$0xf]
  %v1100 = vld [vmem:[%s8 + $0x10] sm:$0xf]
  %v1101 = vld [vmem:[%s8 + $0x14] sm:$0xf]
  %v1102 = vld [vmem:[%s8 + $0x18] sm:$0xf]
  %v1103 = vld [vmem:[%s8 + $0x1c] sm:$0xf]
  %s1104 = scalar_lea.vmem %s9, 512
  %v1105 = vld [vmem:[%s1104] sm:$0xf]
  %v1106 = vld [vmem:[%s1104 + $0x4] sm:$0xf]
  %v1107 = vld [vmem:[%s1104 + $0x8] sm:$0xf]
  %v1108 = vld [vmem:[%s1104 + $0xc] sm:$0xf]
  %v1109 = vld [vmem:[%s1104 + $0x10] sm:$0xf]
  %v1110 = vld [vmem:[%s1104 + $0x14] sm:$0xf]
  %v1111 = vld [vmem:[%s1104 + $0x18] sm:$0xf]
  %v1112 = vld [vmem:[%s1104 + $0x1c] sm:$0xf]
  %v1113 = vld [vmem:[%s1104 + $0x20] sm:$0xf]
  %v1114 = vld [vmem:[%s1104 + $0x24] sm:$0xf]
  %v1115 = vld [vmem:[%s1104 + $0x28] sm:$0xf]
  %v1116 = vld [vmem:[%s1104 + $0x2c] sm:$0xf]
  %v1117 = vld [vmem:[%s1104 + $0x30] sm:$0xf]
  %v1118 = vld [vmem:[%s1104 + $0x34] sm:$0xf]
  %v1119 = vld [vmem:[%s1104 + $0x38] sm:$0xf]
  %v1120 = vld [vmem:[%s1104 + $0x3c] sm:$0xf]
  %v1129 = vunpack.c.l.b16 %v1096
  %v1130 = vunpack.c.l.b16 %v1097
  %v1131 = vunpack.c.l.b16 %v1098
  %v1132 = vunpack.c.l.b16 %v1099
  %v1133 = vunpack.c.l.b16 %v1100
  %v1134 = vunpack.c.l.b16 %v1101
  %v1135 = vunpack.c.l.b16 %v1102
  %v1136 = vunpack.c.l.b16 %v1103
  %v1137 = vpack.c.b16 %v1130, %v1129
  %v1138 = vpack.c.b16 %v1132, %v1131
  %v1139 = vpack.c.b16 %v1134, %v1133
  %v1140 = vpack.c.b16 %v1136, %v1135
  %v1161 = vunpack.c.l.b16 %v1105
  %v1162 = vunpack.c.l.b16 %v1106
  %v1163 = vunpack.c.l.b16 %v1107
  %v1164 = vunpack.c.l.b16 %v1108
  %v1165 = vunpack.c.l.b16 %v1109
  %v1166 = vunpack.c.l.b16 %v1110
  %v1167 = vunpack.c.l.b16 %v1111
  %v1168 = vunpack.c.l.b16 %v1112
  %v1169 = vunpack.c.l.b16 %v1113
  %v1170 = vunpack.c.l.b16 %v1114
  %v1171 = vunpack.c.l.b16 %v1115
  %v1172 = vunpack.c.l.b16 %v1116
  %v1173 = vunpack.c.l.b16 %v1117
  %v1174 = vunpack.c.l.b16 %v1118
  %v1175 = vunpack.c.l.b16 %v1119
  %v1176 = vunpack.c.l.b16 %v1120
  %v1177 = vpack.c.b16 %v1162, %v1161
  %v1178 = vpack.c.b16 %v1164, %v1163
  %v1179 = vpack.c.b16 %v1166, %v1165
  %v1180 = vpack.c.b16 %v1168, %v1167
  %v1181 = vpack.c.b16 %v1170, %v1169
  %v1182 = vpack.c.b16 %v1172, %v1171
  %v1183 = vpack.c.b16 %v1174, %v1173
  %v1184 = vpack.c.b16 %v1176, %v1175
  %1193 = vmatpush.bf16.msra.mxu0 %v1184
  %1194 = vmatpush.bf16.msra.mxu0 %v1183
  %1195 = vmatpush.bf16.msra.mxu0 %v1182
  %1196 = vmatpush.bf16.msra.mxu0 %v1181
  %1197 = vmatpush.bf16.msra.mxu0 %v1180
  %1198 = vmatpush.bf16.msra.mxu0 %v1179
  %1199 = vmatpush.bf16.msra.mxu0 %v1178
  %1200 = vmatpush.bf16.msra.mxu0 %v1177
  %1201 = vmatmul.bf16.gmra.mxu0 %v1137
  %v1202 = vpop.f32.mrf.mxu0
  %v1203 = vadd.f32 0.0, %v1202
  %v1204 = vpop.f32.mrf.mxu0
  %v1205 = vadd.f32 0.0, %v1204
  %1206 = vmatmul.bf16.gmra.mxu0 %v1138
  %v1207 = vpop.f32.mrf.mxu0
  %v1208 = vadd.f32 0.0, %v1207
  %v1209 = vpop.f32.mrf.mxu0
  %v1210 = vadd.f32 0.0, %v1209
  %1211 = vmatmul.bf16.gmra.mxu0 %v1139
  %v1212 = vpop.f32.mrf.mxu0
  %v1213 = vadd.f32 0.0, %v1212
  %v1214 = vpop.f32.mrf.mxu0
  %v1215 = vadd.f32 0.0, %v1214
  %1216 = vmatmul.bf16.gmra.mxu0 %v1140
  %v1217 = vpop.f32.mrf.mxu0
  %v1218 = vadd.f32 0.0, %v1217
  %v1219 = vpop.f32.mrf.mxu0
  %v1220 = vadd.f32 0.0, %v1219
  %1221 = vdwg.mxu0
  %v1222 = vadd.f32 %v1088, %v1203
  %v1223 = vadd.f32 %v1089, %v1205
  %v1224 = vadd.f32 %v1090, %v1208
  %v1225 = vadd.f32 %v1091, %v1210
  %v1226 = vadd.f32 %v1092, %v1213
  %v1227 = vadd.f32 %v1093, %v1215
  %v1228 = vadd.f32 %v1094, %v1218
  %v1229 = vadd.f32 %v1095, %v1220
  %v1230 = vld [vmem:[%s10] sm:$0x1]
  %v1232 = vperm.slane %v1230, 0
  %v1234 = vmul.f32 %v1222, %v1232
  %v1235 = vmul.f32 %v1223, %v1232
  %v1236 = vmul.f32 %v1224, %v1232
  %v1237 = vmul.f32 %v1225, %v1232
  %v1238 = vmul.f32 %v1226, %v1232
  %v1239 = vmul.f32 %v1227, %v1232
  %v1240 = vmul.f32 %v1228, %v1232
  %v1241 = vmul.f32 %v1229, %v1232
  %v1242 = vld [vmem:[%s11] sm:$0x1]
  %v1244 = vperm.slane %v1242, 0
  %v1246 = vadd.f32 %v1234, %v1244
  %v1247 = vadd.f32 %v1235, %v1244
  %v1248 = vadd.f32 %v1236, %v1244
  %v1249 = vadd.f32 %v1237, %v1244
  %v1250 = vadd.f32 %v1238, %v1244
  %v1251 = vadd.f32 %v1239, %v1244
  %v1252 = vadd.f32 %v1240, %v1244
  %v1253 = vadd.f32 %v1241, %v1244
  %1254 = vst [vmem:[%s12] sm:$0xff] %v1246
  %1255 = vst [vmem:[%s12 + $0x8] sm:$0xff] %v1247
  %1256 = vst [vmem:[%s12 + $0x10] sm:$0xff] %v1248
  %1257 = vst [vmem:[%s12 + $0x18] sm:$0xff] %v1249
  %1258 = vst [vmem:[%s12 + $0x20] sm:$0xff] %v1250
  %1259 = vst [vmem:[%s12 + $0x28] sm:$0xff] %v1251
  %1260 = vst [vmem:[%s12 + $0x30] sm:$0xff] %v1252
  %1261 = vst [vmem:[%s12 + $0x38] sm:$0xff] %v1253
  // Predicated region
  $region50: #{_lambda_.21} parent=0 // pred_check
    _
  $region51: #{_lambda_.21} parent=0 // pred_check_branch
    %1263 = sbr.rel (0) target = $region53
  $region52: #{_lambda_.21} parent=0 // pred_region
    _
  $region53: #{_lambda_.21} parent=0 // pred_fallthru
    _
  // Predicated region
  $region54: #{_lambda_.21} parent=0 // pred_check
    _
  $region55: #{_lambda_.21} parent=0 // pred_check_branch
    %1265 = sbr.rel (0) target = $region57
  $region56: #{_lambda_.21} parent=0 // pred_region
    _
  $region57: #{_lambda_.21} parent=0 // pred_fallthru
    _

// kernel: _lambda_.28
$region0: #{_lambda_.28}
  #allocation0 [shape = 'u32[]', space=smem, size = 0x4, offset = 0x4, fixed_abs, tag = 'smem constant byte address 0x4 - core index']
  #allocation1 [shape = 'u32[72,128]{1,0:T(1,128)}', space=vmem, size = 0x9000, scoped, tag = 'internal scratch']
  %s0 = inlined_call_operand.vmem [shape: bf16[8,64], index: 0, kind: input, shape index: {}]
  %s1 = inlined_call_operand.vmem [shape: bf16[1,64,128], index: 1, kind: input, shape index: {}]
  %s2 = inlined_call_operand.vmem [shape: f32[1,128], index: 2, kind: input, shape index: {}]
  %s3 = inlined_call_operand.vmem [shape: f32[1,128], index: 3, kind: input, shape index: {}]
  %s4 = inlined_call_operand.vmem [shape: f32[8,128], index: 4, kind: output, shape index: {}]
  %s5 = sld [smem:[#allocation0]]
  $region26: #{_lambda_.28} parent=0
    _
  %s7 = ssub.s32 1, %s5
  %s8 = scalar_select 0, %s7, %s5
  // Predicated region
  $region2: #{_lambda_.28} parent=0 // pred_check
    _
  $region3: #{_lambda_.28} parent=0 // pred_check_branch
    %10 = sbr.rel (0) target = $region5
  $region4: #{_lambda_.28} parent=0 // pred_region
    _
  $region5: #{_lambda_.28} parent=0 // pred_fallthru
    _
  // Predicated region
  $region6: #{_lambda_.28} parent=0 // pred_check
    _
  $region7: #{_lambda_.28} parent=0 // pred_check_branch
    %12 = sbr.rel (0) target = $region9
  $region8: #{_lambda_.28} parent=0 // pred_region
    _
  $region9: #{_lambda_.28} parent=0 // pred_fallthru
    _
  // Predicated region
  $region10: #{_lambda_.28} parent=0 // pred_check
    _
  $region11: #{_lambda_.28} parent=0 // pred_check_branch
    %14 = sbr.rel (0) target = $region13
  $region12: #{_lambda_.28} parent=0 // pred_region
    _
  $region13: #{_lambda_.28} parent=0 // pred_fallthru
    _
  // Predicated region
  $region14: #{_lambda_.28} parent=0 // pred_check
    _
  $region15: #{_lambda_.28} parent=0 // pred_check_branch
    %16 = sbr.rel (0) target = $region17
  $region16: #{_lambda_.28} parent=0 // pred_region
    _
  $region17: #{_lambda_.28} parent=0 // pred_fallthru
    _
  %v18 = vld [vmem:[%s0] sm:$0xf]
  %v19 = vld [vmem:[%s1] sm:$0xf]
  %v20 = vld [vmem:[%s1 + $0x4] sm:$0xf]
  %v21 = vld [vmem:[%s1 + $0x8] sm:$0xf]
  %v22 = vld [vmem:[%s1 + $0xc] sm:$0xf]
  %v23 = vld [vmem:[%s1 + $0x10] sm:$0xf]
  %v24 = vld [vmem:[%s1 + $0x14] sm:$0xf]
  %v25 = vld [vmem:[%s1 + $0x18] sm:$0xf]
  %v26 = vld [vmem:[%s1 + $0x1c] sm:$0xf]
  %v35 = vunpack.c.l.b16 %v19
  %v36 = vunpack.c.l.b16 %v20
  %v37 = vunpack.c.l.b16 %v21
  %v38 = vunpack.c.l.b16 %v22
  %v39 = vunpack.c.l.b16 %v23
  %v40 = vunpack.c.l.b16 %v24
  %v41 = vunpack.c.l.b16 %v25
  %v42 = vunpack.c.l.b16 %v26
  %v43 = vpack.c.b16 %v36, %v35
  %v44 = vpack.c.b16 %v38, %v37
  %v45 = vpack.c.b16 %v40, %v39
  %v46 = vpack.c.b16 %v42, %v41
  %vm51 = vcmask 523264
  %v53 = vsel %vm51, %v18, 0
  %55 = vmatpush.bf16.msra.mxu0 0
  %56 = vmatpush.bf16.msra.mxu0 0
  %57 = vmatpush.bf16.msra.mxu0 0
  %58 = vmatpush.bf16.msra.mxu0 0
  %59 = vmatpush.bf16.msra.mxu0 %v46
  %60 = vmatpush.bf16.msra.mxu0 %v45
  %61 = vmatpush.bf16.msra.mxu0 %v44
  %62 = vmatpush.bf16.msra.mxu0 %v43
  %63 = vmatmul.bf16.gmra.mxu0 %v53
  %v64 = vpop.f32.mrf.mxu0
  %v65 = vadd.f32 0.0, %v64
  %v66 = vpop.f32.mrf.mxu0
  %67 = vdwg.mxu0
  %v68 = vld [vmem:[%s2] sm:$0x1]
  %v70 = vperm.slane %v68, 0
  %v72 = vmul.f32 %v65, %v70
  %v73 = vld [vmem:[%s3] sm:$0x1]
  %v75 = vperm.slane %v73, 0
  %v77 = vadd.f32 %v72, %v75
  %78 = vst [vmem:[%s4] sm:$0xff] %v77
  // Predicated region
  $region18: #{_lambda_.28} parent=0 // pred_check
    _
  $region19: #{_lambda_.28} parent=0 // pred_check_branch
    %80 = sbr.rel (0) target = $region21
  $region20: #{_lambda_.28} parent=0 // pred_region
    _
  $region21: #{_lambda_.28} parent=0 // pred_fallthru
    _
  // Predicated region
  $region22: #{_lambda_.28} parent=0 // pred_check
    _
  $region23: #{_lambda_.28} parent=0 // pred_check_branch
    %82 = sbr.rel (0) target = $region25
  $region24: #{_lambda_.28} parent=0 // pred_region
    _
  $region25: #{_lambda_.28} parent=0 // pred_fallthru
    _

// kernel: _lambda_.26
$region0: #{_lambda_.26}
  #allocation0 [shape = 'u32[]', space=smem, size = 0x4, offset = 0x4, fixed_abs, tag = 'smem constant byte address 0x4 - core index']
  #allocation1 [shape = 'u32[72,128]{1,0:T(1,128)}', space=vmem, size = 0x9000, scoped, tag = 'internal scratch']
  %s0 = inlined_call_operand.vmem [shape: f32[1,8,128], index: 0, kind: input, shape index: {}]
  %s1 = inlined_call_operand.vmem [shape: f32[1,8,128], index: 1, kind: output, shape index: {}]
  %s2 = sld [smem:[#allocation0]]
  $region14: #{_lambda_.26} parent=0
    _
  %s4 = ssub.s32 1, %s2
  %s5 = scalar_select 0, %s4, %s2
  // Predicated region
  $region2: #{_lambda_.26} parent=0 // pred_check
    _
  $region3: #{_lambda_.26} parent=0 // pred_check_branch
    %7 = sbr.rel (0) target = $region5
  $region4: #{_lambda_.26} parent=0 // pred_region
    _
  $region5: #{_lambda_.26} parent=0 // pred_fallthru
    _
  %v8 = vld [vmem:[%s0] sm:$0xff]
  %v9 = vmul.f32 %v8, 0.6666667
  %v10 = vadd.f32 %v9, 0.0
  %vm11 = vcmp.ge.f32.partialorder %v10, 1.0
  %v12 = vsel %vm11, 1, 0
  %v13 = vcvt.s32.f32 %v12
  %v14 = vsub.f32 1.0, %v13
  %v15 = vmul.f32 %v10, %v14
  %v16 = vadd.f32 %v13, 0.0
  %v17 = vsub.f32 %v8, %v15
  %v18 = vmul.f32 %v17, 0.6666667
  %v19 = vadd.f32 %v15, %v18
  %vm20 = vcmp.ge.f32.partialorder %v19, 1.0
  %v21 = vsel %vm20, 1, 0
  %v22 = vcvt.s32.f32 %v21
  %v23 = vsub.f32 1.0, %v22
  %v24 = vmul.f32 %v19, %v23
  %v25 = vadd.f32 %v16, %v22
  %v26 = vsub.f32 %v8, %v24
  %v27 = vmul.f32 %v26, 0.6666667
  %v28 = vadd.f32 %v24, %v27
  %vm29 = vcmp.ge.f32.partialorder %v28, 1.0
  %v30 = vsel %vm29, 1, 0
  %v31 = vcvt.s32.f32 %v30
  %v32 = vsub.f32 1.0, %v31
  %v33 = vmul.f32 %v28, %v32
  %v34 = vadd.f32 %v25, %v31
  %v35 = vsub.f32 %v8, %v33
  %v36 = vmul.f32 %v35, 0.6666667
  %v37 = vadd.f32 %v33, %v36
  %vm38 = vcmp.ge.f32.partialorder %v37, 1.0
  %v39 = vsel %vm38, 1, 0
  %v40 = vcvt.s32.f32 %v39
  %v41 = vadd.f32 %v34, %v40
  %v42 = vmul.f32 %v41, 0.25
  %43 = vst [vmem:[%s1] sm:$0xff] %v42
  // Predicated region
  $region6: #{_lambda_.26} parent=0 // pred_check
    _
  $region7: #{_lambda_.26} parent=0 // pred_check_branch
    %45 = sbr.rel (0) target = $region9
  $region8: #{_lambda_.26} parent=0 // pred_region
    _
  $region9: #{_lambda_.26} parent=0 // pred_fallthru
    _
  // Predicated region
  $region10: #{_lambda_.26} parent=0 // pred_check
    _
  $region11: #{_lambda_.26} parent=0 // pred_check_branch
    %47 = sbr.rel (0) target = $region13
  $region12: #{_lambda_.26} parent=0 // pred_region
    _
  $region13: #{_lambda_.26} parent=0 // pred_fallthru
    _

// kernel: _lambda_.25
$region0: #{_lambda_.25}
  #allocation0 [shape = 'u32[]', space=smem, size = 0x4, offset = 0x4, fixed_abs, tag = 'smem constant byte address 0x4 - core index']
  #allocation1 [shape = 'u32[72,128]{1,0:T(1,128)}', space=vmem, size = 0x9000, scoped, tag = 'internal scratch']
  %s0 = inlined_call_operand.vmem [shape: bf16[8,64], index: 0, kind: input, shape index: {}]
  %s1 = inlined_call_operand.vmem [shape: bf16[8,64], index: 1, kind: input, shape index: {}]
  %s2 = inlined_call_operand.vmem [shape: bf16[8,64], index: 2, kind: input, shape index: {}]
  %s3 = inlined_call_operand.vmem [shape: bf16[8,64], index: 3, kind: input, shape index: {}]
  %s4 = inlined_call_operand.vmem [shape: bf16[8,64], index: 4, kind: input, shape index: {}]
  %s5 = inlined_call_operand.vmem [shape: bf16[8,64], index: 5, kind: input, shape index: {}]
  %s6 = inlined_call_operand.vmem [shape: bf16[8,64], index: 6, kind: input, shape index: {}]
  %s7 = inlined_call_operand.vmem [shape: bf16[8,64], index: 7, kind: input, shape index: {}]
  %s8 = inlined_call_operand.vmem [shape: bf16[8,64], index: 8, kind: input, shape index: {}]
  %s9 = inlined_call_operand.vmem [shape: bf16[9,64,128], index: 9, kind: input, shape index: {}]
  %s10 = inlined_call_operand.vmem [shape: f32[1,128], index: 10, kind: input, shape index: {}]
  %s11 = inlined_call_operand.vmem [shape: f32[1,128], index: 11, kind: input, shape index: {}]
  %s12 = inlined_call_operand.vmem [shape: f32[8,128], index: 12, kind: output, shape index: {}]
  %s13 = sld [smem:[#allocation0]]
  $region58: #{_lambda_.25} parent=0
    _
  %s15 = ssub.s32 1, %s13
  %s16 = scalar_select 0, %s15, %s13
  // Predicated region
  $region2: #{_lambda_.25} parent=0 // pred_check
    _
  $region3: #{_lambda_.25} parent=0 // pred_check_branch
    %18 = sbr.rel (0) target = $region5
  $region4: #{_lambda_.25} parent=0 // pred_region
    _
  $region5: #{_lambda_.25} parent=0 // pred_fallthru
    _
  // Predicated region
  $region6: #{_lambda_.25} parent=0 // pred_check
    _
  $region7: #{_lambda_.25} parent=0 // pred_check_branch
    %20 = sbr.rel (0) target = $region9
  $region8: #{_lambda_.25} parent=0 // pred_region
    _
  $region9: #{_lambda_.25} parent=0 // pred_fallthru
    _
  // Predicated region
  $region10: #{_lambda_.25} parent=0 // pred_check
    _
  $region11: #{_lambda_.25} parent=0 // pred_check_branch
    %22 = sbr.rel (0) target = $region13
  $region12: #{_lambda_.25} parent=0 // pred_region
    _
  $region13: #{_lambda_.25} parent=0 // pred_fallthru
    _
  // Predicated region
  $region14: #{_lambda_.25} parent=0 // pred_check
    _
  $region15: #{_lambda_.25} parent=0 // pred_check_branch
    %24 = sbr.rel (0) target = $region17
  $region16: #{_lambda_.25} parent=0 // pred_region
    _
  $region17: #{_lambda_.25} parent=0 // pred_fallthru
    _
  // Predicated region
  $region18: #{_lambda_.25} parent=0 // pred_check
    _
  $region19: #{_lambda_.25} parent=0 // pred_check_branch
    %26 = sbr.rel (0) target = $region21
  $region20: #{_lambda_.25} parent=0 // pred_region
    _
  $region21: #{_lambda_.25} parent=0 // pred_fallthru
    _
  // Predicated region
  $region22: #{_lambda_.25} parent=0 // pred_check
    _
  $region23: #{_lambda_.25} parent=0 // pred_check_branch
    %28 = sbr.rel (0) target = $region25
  $region24: #{_lambda_.25} parent=0 // pred_region
    _
  $region25: #{_lambda_.25} parent=0 // pred_fallthru
    _
  // Predicated region
  $region26: #{_lambda_.25} parent=0 // pred_check
    _
  $region27: #{_lambda_.25} parent=0 // pred_check_branch
    %30 = sbr.rel (0) target = $region29
  $region28: #{_lambda_.25} parent=0 // pred_region
    _
  $region29: #{_lambda_.25} parent=0 // pred_fallthru
    _
  // Predicated region
  $region30: #{_lambda_.25} parent=0 // pred_check
    _
  $region31: #{_lambda_.25} parent=0 // pred_check_branch
    %32 = sbr.rel (0) target = $region33
  $region32: #{_lambda_.25} parent=0 // pred_region
    _
  $region33: #{_lambda_.25} parent=0 // pred_fallthru
    _
  // Predicated region
  $region34: #{_lambda_.25} parent=0 // pred_check
    _
  $region35: #{_lambda_.25} parent=0 // pred_check_branch
    %34 = sbr.rel (0) target = $region37
  $region36: #{_lambda_.25} parent=0 // pred_region
    _
  $region37: #{_lambda_.25} parent=0 // pred_fallthru
    _
  // Predicated region
  $region38: #{_lambda_.25} parent=0 // pred_check
    _
  $region39: #{_lambda_.25} parent=0 // pred_check_branch
    %36 = sbr.rel (0) target = $region41
  $region40: #{_lambda_.25} parent=0 // pred_region
    _
  $region41: #{_lambda_.25} parent=0 // pred_fallthru
    _
  // Predicated region
  $region42: #{_lambda_.25} parent=0 // pred_check
    _
  $region43: #{_lambda_.25} parent=0 // pred_check_branch
    %38 = sbr.rel (0) target = $region45
  $region44: #{_lambda_.25} parent=0 // pred_region
    _
  $region45: #{_lambda_.25} parent=0 // pred_fallthru
    _
  // Predicated region
  $region46: #{_lambda_.25} parent=0 // pred_check
    _
  $region47: #{_lambda_.25} parent=0 // pred_check_branch
    %40 = sbr.rel (0) target = $region49
  $region48: #{_lambda_.25} parent=0 // pred_region
    _
  $region49: #{_lambda_.25} parent=0 // pred_fallthru
    _
  %v42 = vld [vmem:[%s0] sm:$0xf]
  %v43 = vld [vmem:[%s9] sm:$0xf]
  %v44 = vld [vmem:[%s9 + $0x4] sm:$0xf]
  %v45 = vld [vmem:[%s9 + $0x8] sm:$0xf]
  %v46 = vld [vmem:[%s9 + $0xc] sm:$0xf]
  %v47 = vld [vmem:[%s9 + $0x10] sm:$0xf]
  %v48 = vld [vmem:[%s9 + $0x14] sm:$0xf]
  %v49 = vld [vmem:[%s9 + $0x18] sm:$0xf]
  %v50 = vld [vmem:[%s9 + $0x1c] sm:$0xf]
  %v51 = vld [vmem:[%s1] sm:$0xf]
  %s52 = scalar_lea.vmem %s9, 32
  %v53 = vld [vmem:[%s52] sm:$0xf]
  %v54 = vld [vmem:[%s52 + $0x4] sm:$0xf]
  %v55 = vld [vmem:[%s52 + $0x8] sm:$0xf]
  %v56 = vld [vmem:[%s52 + $0xc] sm:$0xf]
  %v57 = vld [vmem:[%s52 + $0x10] sm:$0xf]
  %v58 = vld [vmem:[%s52 + $0x14] sm:$0xf]
  %v59 = vld [vmem:[%s52 + $0x18] sm:$0xf]
  %v60 = vld [vmem:[%s52 + $0x1c] sm:$0xf]
  %v69 = vunpack.c.l.b16 %v53
  %v70 = vunpack.c.l.b16 %v54
  %v71 = vunpack.c.l.b16 %v55
  %v72 = vunpack.c.l.b16 %v56
  %v73 = vunpack.c.l.b16 %v57
  %v74 = vunpack.c.l.b16 %v58
  %v75 = vunpack.c.l.b16 %v59
  %v76 = vunpack.c.l.b16 %v60
  %v77 = vpack.c.b16 %v70, %v69
  %v78 = vpack.c.b16 %v72, %v71
  %v79 = vpack.c.b16 %v74, %v73
  %v80 = vpack.c.b16 %v76, %v75
  %vm85 = vcmask 523264
  %v87 = vsel %vm85, %v51, 0
  %89 = vmatpush.bf16.msra.mxu0 0
  %90 = vmatpush.bf16.msra.mxu0 0
  %91 = vmatpush.bf16.msra.mxu0 0
  %92 = vmatpush.bf16.msra.mxu0 0
  %93 = vmatpush.bf16.msra.mxu0 %v80
  %94 = vmatpush.bf16.msra.mxu0 %v79
  %95 = vmatpush.bf16.msra.mxu0 %v78
  %96 = vmatpush.bf16.msra.mxu0 %v77
  %97 = vmatmul.bf16.gmra.mxu0 %v87
  %v98 = vpop.f32.mrf.mxu0
  %v99 = vadd.f32 0.0, %v98
  %v100 = vpop.f32.mrf.mxu0
  %101 = vdwg.mxu0
  %v110 = vunpack.c.l.b16 %v43
  %v111 = vunpack.c.l.b16 %v44
  %v112 = vunpack.c.l.b16 %v45
  %v113 = vunpack.c.l.b16 %v46
  %v114 = vunpack.c.l.b16 %v47
  %v115 = vunpack.c.l.b16 %v48
  %v116 = vunpack.c.l.b16 %v49
  %v117 = vunpack.c.l.b16 %v50
  %v118 = vpack.c.b16 %v111, %v110
  %v119 = vpack.c.b16 %v113, %v112
  %v120 = vpack.c.b16 %v115, %v114
  %v121 = vpack.c.b16 %v117, %v116
  %v127 = vsel %vm85, %v42, 0
  %129 = vmatpush.bf16.msra.mxu0 0
  %130 = vmatpush.bf16.msra.mxu0 0
  %131 = vmatpush.bf16.msra.mxu0 0
  %132 = vmatpush.bf16.msra.mxu0 0
  %133 = vmatpush.bf16.msra.mxu0 %v121
  %134 = vmatpush.bf16.msra.mxu0 %v120
  %135 = vmatpush.bf16.msra.mxu0 %v119
  %136 = vmatpush.bf16.msra.mxu0 %v118
  %137 = vmatmul.bf16.gmra.mxu0 %v127
  %v138 = vpop.f32.mrf.mxu0
  %v139 = vadd.f32 %v99, %v138
  %v140 = vpop.f32.mrf.mxu0
  %141 = vdwg.mxu0
  %v142 = vld [vmem:[%s2] sm:$0xf]
  %s143 = scalar_lea.vmem %s9, 64
  %v144 = vld [vmem:[%s143] sm:$0xf]
  %v145 = vld [vmem:[%s143 + $0x4] sm:$0xf]
  %v146 = vld [vmem:[%s143 + $0x8] sm:$0xf]
  %v147 = vld [vmem:[%s143 + $0xc] sm:$0xf]
  %v148 = vld [vmem:[%s143 + $0x10] sm:$0xf]
  %v149 = vld [vmem:[%s143 + $0x14] sm:$0xf]
  %v150 = vld [vmem:[%s143 + $0x18] sm:$0xf]
  %v151 = vld [vmem:[%s143 + $0x1c] sm:$0xf]
  %v160 = vunpack.c.l.b16 %v144
  %v161 = vunpack.c.l.b16 %v145
  %v162 = vunpack.c.l.b16 %v146
  %v163 = vunpack.c.l.b16 %v147
  %v164 = vunpack.c.l.b16 %v148
  %v165 = vunpack.c.l.b16 %v149
  %v166 = vunpack.c.l.b16 %v150
  %v167 = vunpack.c.l.b16 %v151
  %v168 = vpack.c.b16 %v161, %v160
  %v169 = vpack.c.b16 %v163, %v162
  %v170 = vpack.c.b16 %v165, %v164
  %v171 = vpack.c.b16 %v167, %v166
  %v177 = vsel %vm85, %v142, 0
  %179 = vmatpush.bf16.msra.mxu0 0
  %180 = vmatpush.bf16.msra.mxu0 0
  %181 = vmatpush.bf16.msra.mxu0 0
  %182 = vmatpush.bf16.msra.mxu0 0
  %183 = vmatpush.bf16.msra.mxu0 %v171
  %184 = vmatpush.bf16.msra.mxu0 %v170
  %185 = vmatpush.bf16.msra.mxu0 %v169
  %186 = vmatpush.bf16.msra.mxu0 %v168
  %187 = vmatmul.bf16.gmra.mxu0 %v177
  %v188 = vpop.f32.mrf.mxu0
  %v189 = vadd.f32 0.0, %v188
  %v190 = vpop.f32.mrf.mxu0
  %191 = vdwg.mxu0
  %v192 = vadd.f32 %v139, %v189
  %v193 = vld [vmem:[%s3] sm:$0xf]
  %s194 = scalar_lea.vmem %s9, 96
  %v195 = vld [vmem:[%s194] sm:$0xf]
  %v196 = vld [vmem:[%s194 + $0x4] sm:$0xf]
  %v197 = vld [vmem:[%s194 + $0x8] sm:$0xf]
  %v198 = vld [vmem:[%s194 + $0xc] sm:$0xf]
  %v199 = vld [vmem:[%s194 + $0x10] sm:$0xf]
  %v200 = vld [vmem:[%s194 + $0x14] sm:$0xf]
  %v201 = vld [vmem:[%s194 + $0x18] sm:$0xf]
  %v202 = vld [vmem:[%s194 + $0x1c] sm:$0xf]
  %v211 = vunpack.c.l.b16 %v195
  %v212 = vunpack.c.l.b16 %v196
  %v213 = vunpack.c.l.b16 %v197
  %v214 = vunpack.c.l.b16 %v198
  %v215 = vunpack.c.l.b16 %v199
  %v216 = vunpack.c.l.b16 %v200
  %v217 = vunpack.c.l.b16 %v201
  %v218 = vunpack.c.l.b16 %v202
  %v219 = vpack.c.b16 %v212, %v211
  %v220 = vpack.c.b16 %v214, %v213
  %v221 = vpack.c.b16 %v216, %v215
  %v222 = vpack.c.b16 %v218, %v217
  %v228 = vsel %vm85, %v193, 0
  %230 = vmatpush.bf16.msra.mxu0 0
  %231 = vmatpush.bf16.msra.mxu0 0
  %232 = vmatpush.bf16.msra.mxu0 0
  %233 = vmatpush.bf16.msra.mxu0 0
  %234 = vmatpush.bf16.msra.mxu0 %v222
  %235 = vmatpush.bf16.msra.mxu0 %v221
  %236 = vmatpush.bf16.msra.mxu0 %v220
  %237 = vmatpush.bf16.msra.mxu0 %v219
  %238 = vmatmul.bf16.gmra.mxu0 %v228
  %v239 = vpop.f32.mrf.mxu0
  %v240 = vadd.f32 0.0, %v239
  %v241 = vpop.f32.mrf.mxu0
  %242 = vdwg.mxu0
  %v243 = vadd.f32 %v192, %v240
  %v244 = vld [vmem:[%s4] sm:$0xf]
  %s245 = scalar_lea.vmem %s9, 128
  %v246 = vld [vmem:[%s245] sm:$0xf]
  %v247 = vld [vmem:[%s245 + $0x4] sm:$0xf]
  %v248 = vld [vmem:[%s245 + $0x8] sm:$0xf]
  %v249 = vld [vmem:[%s245 + $0xc] sm:$0xf]
  %v250 = vld [vmem:[%s245 + $0x10] sm:$0xf]
  %v251 = vld [vmem:[%s245 + $0x14] sm:$0xf]
  %v252 = vld [vmem:[%s245 + $0x18] sm:$0xf]
  %v253 = vld [vmem:[%s245 + $0x1c] sm:$0xf]
  %v262 = vunpack.c.l.b16 %v246
  %v263 = vunpack.c.l.b16 %v247
  %v264 = vunpack.c.l.b16 %v248
  %v265 = vunpack.c.l.b16 %v249
  %v266 = vunpack.c.l.b16 %v250
  %v267 = vunpack.c.l.b16 %v251
  %v268 = vunpack.c.l.b16 %v252
  %v269 = vunpack.c.l.b16 %v253
  %v270 = vpack.c.b16 %v263, %v262
  %v271 = vpack.c.b16 %v265, %v264
  %v272 = vpack.c.b16 %v267, %v266
  %v273 = vpack.c.b16 %v269, %v268
  %v279 = vsel %vm85, %v244, 0
  %281 = vmatpush.bf16.msra.mxu0 0
  %282 = vmatpush.bf16.msra.mxu0 0
  %283 = vmatpush.bf16.msra.mxu0 0
  %284 = vmatpush.bf16.msra.mxu0 0
  %285 = vmatpush.bf16.msra.mxu0 %v273
  %286 = vmatpush.bf16.msra.mxu0 %v272
  %287 = vmatpush.bf16.msra.mxu0 %v271
  %288 = vmatpush.bf16.msra.mxu0 %v270
  %289 = vmatmul.bf16.gmra.mxu0 %v279
  %v290 = vpop.f32.mrf.mxu0
  %v291 = vadd.f32 0.0, %v290
  %v292 = vpop.f32.mrf.mxu0
  %293 = vdwg.mxu0
  %v294 = vadd.f32 %v243, %v291
  %v295 = vld [vmem:[%s5] sm:$0xf]
  %s296 = scalar_lea.vmem %s9, 160
  %v297 = vld [vmem:[%s296] sm:$0xf]
  %v298 = vld [vmem:[%s296 + $0x4] sm:$0xf]
  %v299 = vld [vmem:[%s296 + $0x8] sm:$0xf]
  %v300 = vld [vmem:[%s296 + $0xc] sm:$0xf]
  %v301 = vld [vmem:[%s296 + $0x10] sm:$0xf]
  %v302 = vld [vmem:[%s296 + $0x14] sm:$0xf]
  %v303 = vld [vmem:[%s296 + $0x18] sm:$0xf]
  %v304 = vld [vmem:[%s296 + $0x1c] sm:$0xf]
  %v313 = vunpack.c.l.b16 %v297
  %v314 = vunpack.c.l.b16 %v298
  %v315 = vunpack.c.l.b16 %v299
  %v316 = vunpack.c.l.b16 %v300
  %v317 = vunpack.c.l.b16 %v301
  %v318 = vunpack.c.l.b16 %v302
  %v319 = vunpack.c.l.b16 %v303
  %v320 = vunpack.c.l.b16 %v304
  %v321 = vpack.c.b16 %v314, %v313
  %v322 = vpack.c.b16 %v316, %v315
  %v323 = vpack.c.b16 %v318, %v317
  %v324 = vpack.c.b16 %v320, %v319
  %v330 = vsel %vm85, %v295, 0
  %332 = vmatpush.bf16.msra.mxu0 0
  %333 = vmatpush.bf16.msra.mxu0 0
  %334 = vmatpush.bf16.msra.mxu0 0
  %335 = vmatpush.bf16.msra.mxu0 0
  %336 = vmatpush.bf16.msra.mxu0 %v324
  %337 = vmatpush.bf16.msra.mxu0 %v323
  %338 = vmatpush.bf16.msra.mxu0 %v322
  %339 = vmatpush.bf16.msra.mxu0 %v321
  %340 = vmatmul.bf16.gmra.mxu0 %v330
  %v341 = vpop.f32.mrf.mxu0
  %v342 = vadd.f32 0.0, %v341
  %v343 = vpop.f32.mrf.mxu0
  %344 = vdwg.mxu0
  %v345 = vadd.f32 %v294, %v342
  %v346 = vld [vmem:[%s6] sm:$0xf]
  %s347 = scalar_lea.vmem %s9, 192
  %v348 = vld [vmem:[%s347] sm:$0xf]
  %v349 = vld [vmem:[%s347 + $0x4] sm:$0xf]
  %v350 = vld [vmem:[%s347 + $0x8] sm:$0xf]
  %v351 = vld [vmem:[%s347 + $0xc] sm:$0xf]
  %v352 = vld [vmem:[%s347 + $0x10] sm:$0xf]
  %v353 = vld [vmem:[%s347 + $0x14] sm:$0xf]
  %v354 = vld [vmem:[%s347 + $0x18] sm:$0xf]
  %v355 = vld [vmem:[%s347 + $0x1c] sm:$0xf]
  %v364 = vunpack.c.l.b16 %v348
  %v365 = vunpack.c.l.b16 %v349
  %v366 = vunpack.c.l.b16 %v350
  %v367 = vunpack.c.l.b16 %v351
  %v368 = vunpack.c.l.b16 %v352
  %v369 = vunpack.c.l.b16 %v353
  %v370 = vunpack.c.l.b16 %v354
  %v371 = vunpack.c.l.b16 %v355
  %v372 = vpack.c.b16 %v365, %v364
  %v373 = vpack.c.b16 %v367, %v366
  %v374 = vpack.c.b16 %v369, %v368
  %v375 = vpack.c.b16 %v371, %v370
  %v381 = vsel %vm85, %v346, 0
  %383 = vmatpush.bf16.msra.mxu0 0
  %384 = vmatpush.bf16.msra.mxu0 0
  %385 = vmatpush.bf16.msra.mxu0 0
  %386 = vmatpush.bf16.msra.mxu0 0
  %387 = vmatpush.bf16.msra.mxu0 %v375
  %388 = vmatpush.bf16.msra.mxu0 %v374
  %389 = vmatpush.bf16.msra.mxu0 %v373
  %390 = vmatpush.bf16.msra.mxu0 %v372
  %391 = vmatmul.bf16.gmra.mxu0 %v381
  %v392 = vpop.f32.mrf.mxu0
  %v393 = vadd.f32 0.0, %v392
  %v394 = vpop.f32.mrf.mxu0
  %395 = vdwg.mxu0
  %v396 = vadd.f32 %v345, %v393
  %v397 = vld [vmem:[%s7] sm:$0xf]
  %s398 = scalar_lea.vmem %s9, 224
  %v399 = vld [vmem:[%s398] sm:$0xf]
  %v400 = vld [vmem:[%s398 + $0x4] sm:$0xf]
  %v401 = vld [vmem:[%s398 + $0x8] sm:$0xf]
  %v402 = vld [vmem:[%s398 + $0xc] sm:$0xf]
  %v403 = vld [vmem:[%s398 + $0x10] sm:$0xf]
  %v404 = vld [vmem:[%s398 + $0x14] sm:$0xf]
  %v405 = vld [vmem:[%s398 + $0x18] sm:$0xf]
  %v406 = vld [vmem:[%s398 + $0x1c] sm:$0xf]
  %v415 = vunpack.c.l.b16 %v399
  %v416 = vunpack.c.l.b16 %v400
  %v417 = vunpack.c.l.b16 %v401
  %v418 = vunpack.c.l.b16 %v402
  %v419 = vunpack.c.l.b16 %v403
  %v420 = vunpack.c.l.b16 %v404
  %v421 = vunpack.c.l.b16 %v405
  %v422 = vunpack.c.l.b16 %v406
  %v423 = vpack.c.b16 %v416, %v415
  %v424 = vpack.c.b16 %v418, %v417
  %v425 = vpack.c.b16 %v420, %v419
  %v426 = vpack.c.b16 %v422, %v421
  %v432 = vsel %vm85, %v397, 0
  %434 = vmatpush.bf16.msra.mxu0 0
  %435 = vmatpush.bf16.msra.mxu0 0
  %436 = vmatpush.bf16.msra.mxu0 0
  %437 = vmatpush.bf16.msra.mxu0 0
  %438 = vmatpush.bf16.msra.mxu0 %v426
  %439 = vmatpush.bf16.msra.mxu0 %v425
  %440 = vmatpush.bf16.msra.mxu0 %v424
  %441 = vmatpush.bf16.msra.mxu0 %v423
  %442 = vmatmul.bf16.gmra.mxu0 %v432
  %v443 = vpop.f32.mrf.mxu0
  %v444 = vadd.f32 0.0, %v443
  %v445 = vpop.f32.mrf.mxu0
  %446 = vdwg.mxu0
  %v447 = vadd.f32 %v396, %v444
  %v448 = vld [vmem:[%s8] sm:$0xf]
  %s449 = scalar_lea.vmem %s9, 256
  %v450 = vld [vmem:[%s449] sm:$0xf]
  %v451 = vld [vmem:[%s449 + $0x4] sm:$0xf]
  %v452 = vld [vmem:[%s449 + $0x8] sm:$0xf]
  %v453 = vld [vmem:[%s449 + $0xc] sm:$0xf]
  %v454 = vld [vmem:[%s449 + $0x10] sm:$0xf]
  %v455 = vld [vmem:[%s449 + $0x14] sm:$0xf]
  %v456 = vld [vmem:[%s449 + $0x18] sm:$0xf]
  %v457 = vld [vmem:[%s449 + $0x1c] sm:$0xf]
  %v466 = vunpack.c.l.b16 %v450
  %v467 = vunpack.c.l.b16 %v451
  %v468 = vunpack.c.l.b16 %v452
  %v469 = vunpack.c.l.b16 %v453
  %v470 = vunpack.c.l.b16 %v454
  %v471 = vunpack.c.l.b16 %v455
  %v472 = vunpack.c.l.b16 %v456
  %v473 = vunpack.c.l.b16 %v457
  %v474 = vpack.c.b16 %v467, %v466
  %v475 = vpack.c.b16 %v469, %v468
  %v476 = vpack.c.b16 %v471, %v470
  %v477 = vpack.c.b16 %v473, %v472
  %v483 = vsel %vm85, %v448, 0
  %485 = vmatpush.bf16.msra.mxu0 0
  %486 = vmatpush.bf16.msra.mxu0 0
  %487 = vmatpush.bf16.msra.mxu0 0
  %488 = vmatpush.bf16.msra.mxu0 0
  %489 = vmatpush.bf16.msra.mxu0 %v477
  %490 = vmatpush.bf16.msra.mxu0 %v476
  %491 = vmatpush.bf16.msra.mxu0 %v475
  %492 = vmatpush.bf16.msra.mxu0 %v474
  %493 = vmatmul.bf16.gmra.mxu0 %v483
  %v494 = vpop.f32.mrf.mxu0
  %v495 = vadd.f32 0.0, %v494
  %v496 = vpop.f32.mrf.mxu0
  %497 = vdwg.mxu0
  %v498 = vadd.f32 %v447, %v495
  %v499 = vld [vmem:[%s10] sm:$0x1]
  %v501 = vperm.slane %v499, 0
  %v503 = vmul.f32 %v498, %v501
  %v504 = vld [vmem:[%s11] sm:$0x1]
  %v506 = vperm.slane %v504, 0
  %v508 = vadd.f32 %v503, %v506
  %509 = vst [vmem:[%s12] sm:$0xff] %v508
  // Predicated region
  $region50: #{_lambda_.25} parent=0 // pred_check
    _
  $region51: #{_lambda_.25} parent=0 // pred_check_branch
    %511 = sbr.rel (0) target = $region53
  $region52: #{_lambda_.25} parent=0 // pred_region
    _
  $region53: #{_lambda_.25} parent=0 // pred_fallthru
    _
  // Predicated region
  $region54: #{_lambda_.25} parent=0 // pred_check
    _
  $region55: #{_lambda_.25} parent=0 // pred_check_branch
    %513 = sbr.rel (0) target = $region57
  $region56: #{_lambda_.25} parent=0 // pred_region
    _
  $region57: #{_lambda_.25} parent=0 // pred_fallthru
    _

// kernel: _lambda_.33
$region0: #{_lambda_.33}
  #allocation0 [shape = 'u32[]', space=smem, size = 0x4, offset = 0x4, fixed_abs, tag = 'smem constant byte address 0x4 - core index']
  #allocation1 [shape = 'u32[72,128]{1,0:T(1,128)}', space=vmem, size = 0x9000, scoped, tag = 'internal scratch']
  %s0 = inlined_call_operand.vmem [shape: bf16[4,64], index: 0, kind: input, shape index: {}]
  %s1 = inlined_call_operand.vmem [shape: bf16[1,64,128], index: 1, kind: input, shape index: {}]
  %s2 = inlined_call_operand.vmem [shape: f32[1,128], index: 2, kind: input, shape index: {}]
  %s3 = inlined_call_operand.vmem [shape: f32[1,128], index: 3, kind: input, shape index: {}]
  %s4 = inlined_call_operand.vmem [shape: f32[4,128], index: 4, kind: output, shape index: {}]
  %s5 = sld [smem:[#allocation0]]
  $region26: #{_lambda_.33} parent=0
    _
  %s7 = ssub.s32 1, %s5
  %s8 = scalar_select 0, %s7, %s5
  // Predicated region
  $region2: #{_lambda_.33} parent=0 // pred_check
    _
  $region3: #{_lambda_.33} parent=0 // pred_check_branch
    %10 = sbr.rel (0) target = $region5
  $region4: #{_lambda_.33} parent=0 // pred_region
    _
  $region5: #{_lambda_.33} parent=0 // pred_fallthru
    _
  // Predicated region
  $region6: #{_lambda_.33} parent=0 // pred_check
    _
  $region7: #{_lambda_.33} parent=0 // pred_check_branch
    %12 = sbr.rel (0) target = $region9
  $region8: #{_lambda_.33} parent=0 // pred_region
    _
  $region9: #{_lambda_.33} parent=0 // pred_fallthru
    _
  // Predicated region
  $region10: #{_lambda_.33} parent=0 // pred_check
    _
  $region11: #{_lambda_.33} parent=0 // pred_check_branch
    %14 = sbr.rel (0) target = $region13
  $region12: #{_lambda_.33} parent=0 // pred_region
    _
  $region13: #{_lambda_.33} parent=0 // pred_fallthru
    _
  // Predicated region
  $region14: #{_lambda_.33} parent=0 // pred_check
    _
  $region15: #{_lambda_.33} parent=0 // pred_check_branch
    %16 = sbr.rel (0) target = $region17
  $region16: #{_lambda_.33} parent=0 // pred_region
    _
  $region17: #{_lambda_.33} parent=0 // pred_fallthru
    _
  %v18 = vld [vmem:[%s0] sm:$0x3]
  %v19 = vld [vmem:[%s1] sm:$0xf]
  %v20 = vld [vmem:[%s1 + $0x4] sm:$0xf]
  %v21 = vld [vmem:[%s1 + $0x8] sm:$0xf]
  %v22 = vld [vmem:[%s1 + $0xc] sm:$0xf]
  %v23 = vld [vmem:[%s1 + $0x10] sm:$0xf]
  %v24 = vld [vmem:[%s1 + $0x14] sm:$0xf]
  %v25 = vld [vmem:[%s1 + $0x18] sm:$0xf]
  %v26 = vld [vmem:[%s1 + $0x1c] sm:$0xf]
  %v35 = vunpack.c.l.b16 %v19
  %v36 = vunpack.c.l.b16 %v20
  %v37 = vunpack.c.l.b16 %v21
  %v38 = vunpack.c.l.b16 %v22
  %v39 = vunpack.c.l.b16 %v23
  %v40 = vunpack.c.l.b16 %v24
  %v41 = vunpack.c.l.b16 %v25
  %v42 = vunpack.c.l.b16 %v26
  %v43 = vpack.c.b16 %v36, %v35
  %v44 = vpack.c.b16 %v38, %v37
  %v45 = vpack.c.b16 %v40, %v39
  %v46 = vpack.c.b16 %v42, %v41
  %vm51 = vcmask 523264
  %v53 = vsel %vm51, %v18, 0
  %55 = vmatpush.bf16.msra.mxu0 0
  %56 = vmatpush.bf16.msra.mxu0 0
  %57 = vmatpush.bf16.msra.mxu0 0
  %58 = vmatpush.bf16.msra.mxu0 0
  %59 = vmatpush.bf16.msra.mxu0 %v46
  %60 = vmatpush.bf16.msra.mxu0 %v45
  %61 = vmatpush.bf16.msra.mxu0 %v44
  %62 = vmatpush.bf16.msra.mxu0 %v43
  %63 = vmatmul.bf16.gmra.mxu0 %v53
  %v64 = vpop.f32.mrf.mxu0
  %v65 = vadd.f32 0.0, %v64
  %v66 = vpop.f32.mrf.mxu0
  %67 = vdwg.mxu0
  %v68 = vld [vmem:[%s2] sm:$0x1]
  %v70 = vperm.slane %v68, 0
  %v72 = vmul.f32 %v65, %v70
  %v73 = vld [vmem:[%s3] sm:$0x1]
  %v75 = vperm.slane %v73, 0
  %v77 = vadd.f32 %v72, %v75
  %78 = vst [vmem:[%s4] sm:$0xf] %v77
  // Predicated region
  $region18: #{_lambda_.33} parent=0 // pred_check
    _
  $region19: #{_lambda_.33} parent=0 // pred_check_branch
    %80 = sbr.rel (0) target = $region21
  $region20: #{_lambda_.33} parent=0 // pred_region
    _
  $region21: #{_lambda_.33} parent=0 // pred_fallthru
    _
  // Predicated region
  $region22: #{_lambda_.33} parent=0 // pred_check
    _
  $region23: #{_lambda_.33} parent=0 // pred_check_branch
    %82 = sbr.rel (0) target = $region25
  $region24: #{_lambda_.33} parent=0 // pred_region
    _
  $region25: #{_lambda_.33} parent=0 // pred_fallthru
    _

// kernel: _lambda_.29
$region0: #{_lambda_.29}
  #allocation0 [shape = 'u32[]', space=smem, size = 0x4, offset = 0x4, fixed_abs, tag = 'smem constant byte address 0x4 - core index']
  #allocation1 [shape = 'u32[72,128]{1,0:T(1,128)}', space=vmem, size = 0x9000, scoped, tag = 'internal scratch']
  %s0 = inlined_call_operand.vmem [shape: f32[4,8,128], index: 0, kind: input, shape index: {}]
  %s1 = inlined_call_operand.vmem [shape: f32[4,8,128], index: 1, kind: output, shape index: {}]
  %s2 = sld [smem:[#allocation0]]
  $region14: #{_lambda_.29} parent=0
    _
  %s4 = ssub.s32 1, %s2
  %s5 = scalar_select 0, %s4, %s2
  // Predicated region
  $region2: #{_lambda_.29} parent=0 // pred_check
    _
  $region3: #{_lambda_.29} parent=0 // pred_check_branch
    %7 = sbr.rel (0) target = $region5
  $region4: #{_lambda_.29} parent=0 // pred_region
    _
  $region5: #{_lambda_.29} parent=0 // pred_fallthru
    _
  %v8 = vld [vmem:[%s0] sm:$0xff]
  %v9 = vmul.f32 %v8, 0.6666667
  %v10 = vadd.f32 %v9, 0.0
  %vm11 = vcmp.ge.f32.partialorder %v10, 1.0
  %v12 = vsel %vm11, 1, 0
  %v13 = vcvt.s32.f32 %v12
  %v14 = vsub.f32 1.0, %v13
  %v15 = vmul.f32 %v10, %v14
  %16 = vst [vmem:[%s1] sm:$0xff] %v13
  %s17 = scalar_lea.vmem %s0, 8
  %v18 = vld [vmem:[%s17] sm:$0xff]
  %v19 = vsub.f32 %v18, %v15
  %v20 = vmul.f32 %v19, 0.6666667
  %v21 = vadd.f32 %v15, %v20
  %vm22 = vcmp.ge.f32.partialorder %v21, 1.0
  %v23 = vsel %vm22, 1, 0
  %v24 = vcvt.s32.f32 %v23
  %v25 = vsub.f32 1.0, %v24
  %v26 = vmul.f32 %v21, %v25
  %s27 = scalar_lea.vmem %s1, 8
  %28 = vst [vmem:[%s27] sm:$0xff] %v24
  %s29 = scalar_lea.vmem %s0, 16
  %v30 = vld [vmem:[%s29] sm:$0xff]
  %v31 = vsub.f32 %v30, %v26
  %v32 = vmul.f32 %v31, 0.6666667
  %v33 = vadd.f32 %v26, %v32
  %vm34 = vcmp.ge.f32.partialorder %v33, 1.0
  %v35 = vsel %vm34, 1, 0
  %v36 = vcvt.s32.f32 %v35
  %v37 = vsub.f32 1.0, %v36
  %v38 = vmul.f32 %v33, %v37
  %s39 = scalar_lea.vmem %s1, 16
  %40 = vst [vmem:[%s39] sm:$0xff] %v36
  %s41 = scalar_lea.vmem %s0, 24
  %v42 = vld [vmem:[%s41] sm:$0xff]
  %v43 = vsub.f32 %v42, %v38
  %v44 = vmul.f32 %v43, 0.6666667
  %v45 = vadd.f32 %v38, %v44
  %vm46 = vcmp.ge.f32.partialorder %v45, 1.0
  %v47 = vsel %vm46, 1, 0
  %v48 = vcvt.s32.f32 %v47
  %s49 = scalar_lea.vmem %s1, 24
  %50 = vst [vmem:[%s49] sm:$0xff] %v48
  // Predicated region
  $region6: #{_lambda_.29} parent=0 // pred_check
    _
  $region7: #{_lambda_.29} parent=0 // pred_check_branch
    %52 = sbr.rel (0) target = $region9
  $region8: #{_lambda_.29} parent=0 // pred_region
    _
  $region9: #{_lambda_.29} parent=0 // pred_fallthru
    _
  // Predicated region
  $region10: #{_lambda_.29} parent=0 // pred_check
    _
  $region11: #{_lambda_.29} parent=0 // pred_check_branch
    %54 = sbr.rel (0) target = $region13
  $region12: #{_lambda_.29} parent=0 // pred_region
    _
  $region13: #{_lambda_.29} parent=0 // pred_fallthru
    _

// kernel: _lambda_.27
$region0: #{_lambda_.27}
  #allocation0 [shape = 'u32[]', space=smem, size = 0x4, offset = 0x4, fixed_abs, tag = 'smem constant byte address 0x4 - core index']
  #allocation1 [shape = 'u32[72,128]{1,0:T(1,128)}', space=vmem, size = 0x9000, scoped, tag = 'internal scratch']
  %s0 = inlined_call_operand.vmem [shape: bf16[8,128], index: 0, kind: input, shape index: {}]
  %s1 = inlined_call_operand.vmem [shape: bf16[8,128], index: 1, kind: input, shape index: {}]
  %s2 = inlined_call_operand.vmem [shape: bf16[8,128], index: 2, kind: input, shape index: {}]
  %s3 = inlined_call_operand.vmem [shape: bf16[8,128], index: 3, kind: input, shape index: {}]
  %s4 = inlined_call_operand.vmem [shape: bf16[8,128], index: 4, kind: input, shape index: {}]
  %s5 = inlined_call_operand.vmem [shape: bf16[8,128], index: 5, kind: input, shape index: {}]
  %s6 = inlined_call_operand.vmem [shape: bf16[8,128], index: 6, kind: input, shape index: {}]
  %s7 = inlined_call_operand.vmem [shape: bf16[8,128], index: 7, kind: input, shape index: {}]
  %s8 = inlined_call_operand.vmem [shape: bf16[8,128], index: 8, kind: input, shape index: {}]
  %s9 = inlined_call_operand.vmem [shape: bf16[9,128,128], index: 9, kind: input, shape index: {}]
  %s10 = inlined_call_operand.vmem [shape: f32[1,128], index: 10, kind: input, shape index: {}]
  %s11 = inlined_call_operand.vmem [shape: f32[1,128], index: 11, kind: input, shape index: {}]
  %s12 = inlined_call_operand.vmem [shape: f32[8,128], index: 12, kind: output, shape index: {}]
  %s13 = sld [smem:[#allocation0]]
  $region58: #{_lambda_.27} parent=0
    _
  %s15 = ssub.s32 1, %s13
  %s16 = scalar_select 0, %s15, %s13
  // Predicated region
  $region2: #{_lambda_.27} parent=0 // pred_check
    _
  $region3: #{_lambda_.27} parent=0 // pred_check_branch
    %18 = sbr.rel (0) target = $region5
  $region4: #{_lambda_.27} parent=0 // pred_region
    _
  $region5: #{_lambda_.27} parent=0 // pred_fallthru
    _
  // Predicated region
  $region6: #{_lambda_.27} parent=0 // pred_check
    _
  $region7: #{_lambda_.27} parent=0 // pred_check_branch
    %20 = sbr.rel (0) target = $region9
  $region8: #{_lambda_.27} parent=0 // pred_region
    _
  $region9: #{_lambda_.27} parent=0 // pred_fallthru
    _
  // Predicated region
  $region10: #{_lambda_.27} parent=0 // pred_check
    _
  $region11: #{_lambda_.27} parent=0 // pred_check_branch
    %22 = sbr.rel (0) target = $region13
  $region12: #{_lambda_.27} parent=0 // pred_region
    _
  $region13: #{_lambda_.27} parent=0 // pred_fallthru
    _
  // Predicated region
  $region14: #{_lambda_.27} parent=0 // pred_check
    _
  $region15: #{_lambda_.27} parent=0 // pred_check_branch
    %24 = sbr.rel (0) target = $region17
  $region16: #{_lambda_.27} parent=0 // pred_region
    _
  $region17: #{_lambda_.27} parent=0 // pred_fallthru
    _
  // Predicated region
  $region18: #{_lambda_.27} parent=0 // pred_check
    _
  $region19: #{_lambda_.27} parent=0 // pred_check_branch
    %26 = sbr.rel (0) target = $region21
  $region20: #{_lambda_.27} parent=0 // pred_region
    _
  $region21: #{_lambda_.27} parent=0 // pred_fallthru
    _
  // Predicated region
  $region22: #{_lambda_.27} parent=0 // pred_check
    _
  $region23: #{_lambda_.27} parent=0 // pred_check_branch
    %28 = sbr.rel (0) target = $region25
  $region24: #{_lambda_.27} parent=0 // pred_region
    _
  $region25: #{_lambda_.27} parent=0 // pred_fallthru
    _
  // Predicated region
  $region26: #{_lambda_.27} parent=0 // pred_check
    _
  $region27: #{_lambda_.27} parent=0 // pred_check_branch
    %30 = sbr.rel (0) target = $region29
  $region28: #{_lambda_.27} parent=0 // pred_region
    _
  $region29: #{_lambda_.27} parent=0 // pred_fallthru
    _
  // Predicated region
  $region30: #{_lambda_.27} parent=0 // pred_check
    _
  $region31: #{_lambda_.27} parent=0 // pred_check_branch
    %32 = sbr.rel (0) target = $region33
  $region32: #{_lambda_.27} parent=0 // pred_region
    _
  $region33: #{_lambda_.27} parent=0 // pred_fallthru
    _
  // Predicated region
  $region34: #{_lambda_.27} parent=0 // pred_check
    _
  $region35: #{_lambda_.27} parent=0 // pred_check_branch
    %34 = sbr.rel (0) target = $region37
  $region36: #{_lambda_.27} parent=0 // pred_region
    _
  $region37: #{_lambda_.27} parent=0 // pred_fallthru
    _
  // Predicated region
  $region38: #{_lambda_.27} parent=0 // pred_check
    _
  $region39: #{_lambda_.27} parent=0 // pred_check_branch
    %36 = sbr.rel (0) target = $region41
  $region40: #{_lambda_.27} parent=0 // pred_region
    _
  $region41: #{_lambda_.27} parent=0 // pred_fallthru
    _
  // Predicated region
  $region42: #{_lambda_.27} parent=0 // pred_check
    _
  $region43: #{_lambda_.27} parent=0 // pred_check_branch
    %38 = sbr.rel (0) target = $region45
  $region44: #{_lambda_.27} parent=0 // pred_region
    _
  $region45: #{_lambda_.27} parent=0 // pred_fallthru
    _
  // Predicated region
  $region46: #{_lambda_.27} parent=0 // pred_check
    _
  $region47: #{_lambda_.27} parent=0 // pred_check_branch
    %40 = sbr.rel (0) target = $region49
  $region48: #{_lambda_.27} parent=0 // pred_region
    _
  $region49: #{_lambda_.27} parent=0 // pred_fallthru
    _
  %v41 = vld [vmem:[%s0] sm:$0xf]
  %v42 = vld [vmem:[%s9] sm:$0xf]
  %v43 = vld [vmem:[%s9 + $0x4] sm:$0xf]
  %v44 = vld [vmem:[%s9 + $0x8] sm:$0xf]
  %v45 = vld [vmem:[%s9 + $0xc] sm:$0xf]
  %v46 = vld [vmem:[%s9 + $0x10] sm:$0xf]
  %v47 = vld [vmem:[%s9 + $0x14] sm:$0xf]
  %v48 = vld [vmem:[%s9 + $0x18] sm:$0xf]
  %v49 = vld [vmem:[%s9 + $0x1c] sm:$0xf]
  %v50 = vld [vmem:[%s9 + $0x20] sm:$0xf]
  %v51 = vld [vmem:[%s9 + $0x24] sm:$0xf]
  %v52 = vld [vmem:[%s9 + $0x28] sm:$0xf]
  %v53 = vld [vmem:[%s9 + $0x2c] sm:$0xf]
  %v54 = vld [vmem:[%s9 + $0x30] sm:$0xf]
  %v55 = vld [vmem:[%s9 + $0x34] sm:$0xf]
  %v56 = vld [vmem:[%s9 + $0x38] sm:$0xf]
  %v57 = vld [vmem:[%s9 + $0x3c] sm:$0xf]
  %v58 = vld [vmem:[%s1] sm:$0xf]
  %s59 = scalar_lea.vmem %s9, 64
  %v60 = vld [vmem:[%s59] sm:$0xf]
  %v61 = vld [vmem:[%s59 + $0x4] sm:$0xf]
  %v62 = vld [vmem:[%s59 + $0x8] sm:$0xf]
  %v63 = vld [vmem:[%s59 + $0xc] sm:$0xf]
  %v64 = vld [vmem:[%s59 + $0x10] sm:$0xf]
  %v65 = vld [vmem:[%s59 + $0x14] sm:$0xf]
  %v66 = vld [vmem:[%s59 + $0x18] sm:$0xf]
  %v67 = vld [vmem:[%s59 + $0x1c] sm:$0xf]
  %v68 = vld [vmem:[%s59 + $0x20] sm:$0xf]
  %v69 = vld [vmem:[%s59 + $0x24] sm:$0xf]
  %v70 = vld [vmem:[%s59 + $0x28] sm:$0xf]
  %v71 = vld [vmem:[%s59 + $0x2c] sm:$0xf]
  %v72 = vld [vmem:[%s59 + $0x30] sm:$0xf]
  %v73 = vld [vmem:[%s59 + $0x34] sm:$0xf]
  %v74 = vld [vmem:[%s59 + $0x38] sm:$0xf]
  %v75 = vld [vmem:[%s59 + $0x3c] sm:$0xf]
  %v92 = vunpack.c.l.b16 %v60
  %v93 = vunpack.c.l.b16 %v61
  %v94 = vunpack.c.l.b16 %v62
  %v95 = vunpack.c.l.b16 %v63
  %v96 = vunpack.c.l.b16 %v64
  %v97 = vunpack.c.l.b16 %v65
  %v98 = vunpack.c.l.b16 %v66
  %v99 = vunpack.c.l.b16 %v67
  %v100 = vunpack.c.l.b16 %v68
  %v101 = vunpack.c.l.b16 %v69
  %v102 = vunpack.c.l.b16 %v70
  %v103 = vunpack.c.l.b16 %v71
  %v104 = vunpack.c.l.b16 %v72
  %v105 = vunpack.c.l.b16 %v73
  %v106 = vunpack.c.l.b16 %v74
  %v107 = vunpack.c.l.b16 %v75
  %v108 = vpack.c.b16 %v93, %v92
  %v109 = vpack.c.b16 %v95, %v94
  %v110 = vpack.c.b16 %v97, %v96
  %v111 = vpack.c.b16 %v99, %v98
  %v112 = vpack.c.b16 %v101, %v100
  %v113 = vpack.c.b16 %v103, %v102
  %v114 = vpack.c.b16 %v105, %v104
  %v115 = vpack.c.b16 %v107, %v106
  %124 = vmatpush.bf16.msra.mxu0 %v115
  %125 = vmatpush.bf16.msra.mxu0 %v114
  %126 = vmatpush.bf16.msra.mxu0 %v113
  %127 = vmatpush.bf16.msra.mxu0 %v112
  %128 = vmatpush.bf16.msra.mxu0 %v111
  %129 = vmatpush.bf16.msra.mxu0 %v110
  %130 = vmatpush.bf16.msra.mxu0 %v109
  %131 = vmatpush.bf16.msra.mxu0 %v108
  %132 = vmatmul.bf16.gmra.mxu0 %v58
  %v133 = vpop.f32.mrf.mxu0
  %v134 = vadd.f32 0.0, %v133
  %v135 = vpop.f32.mrf.mxu0
  %136 = vdwg.mxu0
  %v153 = vunpack.c.l.b16 %v42
  %v154 = vunpack.c.l.b16 %v43
  %v155 = vunpack.c.l.b16 %v44
  %v156 = vunpack.c.l.b16 %v45
  %v157 = vunpack.c.l.b16 %v46
  %v158 = vunpack.c.l.b16 %v47
  %v159 = vunpack.c.l.b16 %v48
  %v160 = vunpack.c.l.b16 %v49
  %v161 = vunpack.c.l.b16 %v50
  %v162 = vunpack.c.l.b16 %v51
  %v163 = vunpack.c.l.b16 %v52
  %v164 = vunpack.c.l.b16 %v53
  %v165 = vunpack.c.l.b16 %v54
  %v166 = vunpack.c.l.b16 %v55
  %v167 = vunpack.c.l.b16 %v56
  %v168 = vunpack.c.l.b16 %v57
  %v169 = vpack.c.b16 %v154, %v153
  %v170 = vpack.c.b16 %v156, %v155
  %v171 = vpack.c.b16 %v158, %v157
  %v172 = vpack.c.b16 %v160, %v159
  %v173 = vpack.c.b16 %v162, %v161
  %v174 = vpack.c.b16 %v164, %v163
  %v175 = vpack.c.b16 %v166, %v165
  %v176 = vpack.c.b16 %v168, %v167
  %185 = vmatpush.bf16.msra.mxu0 %v176
  %186 = vmatpush.bf16.msra.mxu0 %v175
  %187 = vmatpush.bf16.msra.mxu0 %v174
  %188 = vmatpush.bf16.msra.mxu0 %v173
  %189 = vmatpush.bf16.msra.mxu0 %v172
  %190 = vmatpush.bf16.msra.mxu0 %v171
  %191 = vmatpush.bf16.msra.mxu0 %v170
  %192 = vmatpush.bf16.msra.mxu0 %v169
  %193 = vmatmul.bf16.gmra.mxu0 %v41
  %v194 = vpop.f32.mrf.mxu0
  %v195 = vadd.f32 %v134, %v194
  %v196 = vpop.f32.mrf.mxu0
  %197 = vdwg.mxu0
  %v198 = vld [vmem:[%s2] sm:$0xf]
  %s199 = scalar_lea.vmem %s9, 128
  %v200 = vld [vmem:[%s199] sm:$0xf]
  %v201 = vld [vmem:[%s199 + $0x4] sm:$0xf]
  %v202 = vld [vmem:[%s199 + $0x8] sm:$0xf]
  %v203 = vld [vmem:[%s199 + $0xc] sm:$0xf]
  %v204 = vld [vmem:[%s199 + $0x10] sm:$0xf]
  %v205 = vld [vmem:[%s199 + $0x14] sm:$0xf]
  %v206 = vld [vmem:[%s199 + $0x18] sm:$0xf]
  %v207 = vld [vmem:[%s199 + $0x1c] sm:$0xf]
  %v208 = vld [vmem:[%s199 + $0x20] sm:$0xf]
  %v209 = vld [vmem:[%s199 + $0x24] sm:$0xf]
  %v210 = vld [vmem:[%s199 + $0x28] sm:$0xf]
  %v211 = vld [vmem:[%s199 + $0x2c] sm:$0xf]
  %v212 = vld [vmem:[%s199 + $0x30] sm:$0xf]
  %v213 = vld [vmem:[%s199 + $0x34] sm:$0xf]
  %v214 = vld [vmem:[%s199 + $0x38] sm:$0xf]
  %v215 = vld [vmem:[%s199 + $0x3c] sm:$0xf]
  %v232 = vunpack.c.l.b16 %v200
  %v233 = vunpack.c.l.b16 %v201
  %v234 = vunpack.c.l.b16 %v202
  %v235 = vunpack.c.l.b16 %v203
  %v236 = vunpack.c.l.b16 %v204
  %v237 = vunpack.c.l.b16 %v205
  %v238 = vunpack.c.l.b16 %v206
  %v239 = vunpack.c.l.b16 %v207
  %v240 = vunpack.c.l.b16 %v208
  %v241 = vunpack.c.l.b16 %v209
  %v242 = vunpack.c.l.b16 %v210
  %v243 = vunpack.c.l.b16 %v211
  %v244 = vunpack.c.l.b16 %v212
  %v245 = vunpack.c.l.b16 %v213
  %v246 = vunpack.c.l.b16 %v214
  %v247 = vunpack.c.l.b16 %v215
  %v248 = vpack.c.b16 %v233, %v232
  %v249 = vpack.c.b16 %v235, %v234
  %v250 = vpack.c.b16 %v237, %v236
  %v251 = vpack.c.b16 %v239, %v238
  %v252 = vpack.c.b16 %v241, %v240
  %v253 = vpack.c.b16 %v243, %v242
  %v254 = vpack.c.b16 %v245, %v244
  %v255 = vpack.c.b16 %v247, %v246
  %264 = vmatpush.bf16.msra.mxu0 %v255
  %265 = vmatpush.bf16.msra.mxu0 %v254
  %266 = vmatpush.bf16.msra.mxu0 %v253
  %267 = vmatpush.bf16.msra.mxu0 %v252
  %268 = vmatpush.bf16.msra.mxu0 %v251
  %269 = vmatpush.bf16.msra.mxu0 %v250
  %270 = vmatpush.bf16.msra.mxu0 %v249
  %271 = vmatpush.bf16.msra.mxu0 %v248
  %272 = vmatmul.bf16.gmra.mxu0 %v198
  %v273 = vpop.f32.mrf.mxu0
  %v274 = vadd.f32 0.0, %v273
  %v275 = vpop.f32.mrf.mxu0
  %276 = vdwg.mxu0
  %v277 = vadd.f32 %v195, %v274
  %v278 = vld [vmem:[%s3] sm:$0xf]
  %s279 = scalar_lea.vmem %s9, 192
  %v280 = vld [vmem:[%s279] sm:$0xf]
  %v281 = vld [vmem:[%s279 + $0x4] sm:$0xf]
  %v282 = vld [vmem:[%s279 + $0x8] sm:$0xf]
  %v283 = vld [vmem:[%s279 + $0xc] sm:$0xf]
  %v284 = vld [vmem:[%s279 + $0x10] sm:$0xf]
  %v285 = vld [vmem:[%s279 + $0x14] sm:$0xf]
  %v286 = vld [vmem:[%s279 + $0x18] sm:$0xf]
  %v287 = vld [vmem:[%s279 + $0x1c] sm:$0xf]
  %v288 = vld [vmem:[%s279 + $0x20] sm:$0xf]
  %v289 = vld [vmem:[%s279 + $0x24] sm:$0xf]
  %v290 = vld [vmem:[%s279 + $0x28] sm:$0xf]
  %v291 = vld [vmem:[%s279 + $0x2c] sm:$0xf]
  %v292 = vld [vmem:[%s279 + $0x30] sm:$0xf]
  %v293 = vld [vmem:[%s279 + $0x34] sm:$0xf]
  %v294 = vld [vmem:[%s279 + $0x38] sm:$0xf]
  %v295 = vld [vmem:[%s279 + $0x3c] sm:$0xf]
  %v312 = vunpack.c.l.b16 %v280
  %v313 = vunpack.c.l.b16 %v281
  %v314 = vunpack.c.l.b16 %v282
  %v315 = vunpack.c.l.b16 %v283
  %v316 = vunpack.c.l.b16 %v284
  %v317 = vunpack.c.l.b16 %v285
  %v318 = vunpack.c.l.b16 %v286
  %v319 = vunpack.c.l.b16 %v287
  %v320 = vunpack.c.l.b16 %v288
  %v321 = vunpack.c.l.b16 %v289
  %v322 = vunpack.c.l.b16 %v290
  %v323 = vunpack.c.l.b16 %v291
  %v324 = vunpack.c.l.b16 %v292
  %v325 = vunpack.c.l.b16 %v293
  %v326 = vunpack.c.l.b16 %v294
  %v327 = vunpack.c.l.b16 %v295
  %v328 = vpack.c.b16 %v313, %v312
  %v329 = vpack.c.b16 %v315, %v314
  %v330 = vpack.c.b16 %v317, %v316
  %v331 = vpack.c.b16 %v319, %v318
  %v332 = vpack.c.b16 %v321, %v320
  %v333 = vpack.c.b16 %v323, %v322
  %v334 = vpack.c.b16 %v325, %v324
  %v335 = vpack.c.b16 %v327, %v326
  %344 = vmatpush.bf16.msra.mxu0 %v335
  %345 = vmatpush.bf16.msra.mxu0 %v334
  %346 = vmatpush.bf16.msra.mxu0 %v333
  %347 = vmatpush.bf16.msra.mxu0 %v332
  %348 = vmatpush.bf16.msra.mxu0 %v331
  %349 = vmatpush.bf16.msra.mxu0 %v330
  %350 = vmatpush.bf16.msra.mxu0 %v329
  %351 = vmatpush.bf16.msra.mxu0 %v328
  %352 = vmatmul.bf16.gmra.mxu0 %v278
  %v353 = vpop.f32.mrf.mxu0
  %v354 = vadd.f32 0.0, %v353
  %v355 = vpop.f32.mrf.mxu0
  %356 = vdwg.mxu0
  %v357 = vadd.f32 %v277, %v354
  %v358 = vld [vmem:[%s4] sm:$0xf]
  %s359 = scalar_lea.vmem %s9, 256
  %v360 = vld [vmem:[%s359] sm:$0xf]
  %v361 = vld [vmem:[%s359 + $0x4] sm:$0xf]
  %v362 = vld [vmem:[%s359 + $0x8] sm:$0xf]
  %v363 = vld [vmem:[%s359 + $0xc] sm:$0xf]
  %v364 = vld [vmem:[%s359 + $0x10] sm:$0xf]
  %v365 = vld [vmem:[%s359 + $0x14] sm:$0xf]
  %v366 = vld [vmem:[%s359 + $0x18] sm:$0xf]
  %v367 = vld [vmem:[%s359 + $0x1c] sm:$0xf]
  %v368 = vld [vmem:[%s359 + $0x20] sm:$0xf]
  %v369 = vld [vmem:[%s359 + $0x24] sm:$0xf]
  %v370 = vld [vmem:[%s359 + $0x28] sm:$0xf]
  %v371 = vld [vmem:[%s359 + $0x2c] sm:$0xf]
  %v372 = vld [vmem:[%s359 + $0x30] sm:$0xf]
  %v373 = vld [vmem:[%s359 + $0x34] sm:$0xf]
  %v374 = vld [vmem:[%s359 + $0x38] sm:$0xf]
  %v375 = vld [vmem:[%s359 + $0x3c] sm:$0xf]
  %v392 = vunpack.c.l.b16 %v360
  %v393 = vunpack.c.l.b16 %v361
  %v394 = vunpack.c.l.b16 %v362
  %v395 = vunpack.c.l.b16 %v363
  %v396 = vunpack.c.l.b16 %v364
  %v397 = vunpack.c.l.b16 %v365
  %v398 = vunpack.c.l.b16 %v366
  %v399 = vunpack.c.l.b16 %v367
  %v400 = vunpack.c.l.b16 %v368
  %v401 = vunpack.c.l.b16 %v369
  %v402 = vunpack.c.l.b16 %v370
  %v403 = vunpack.c.l.b16 %v371
  %v404 = vunpack.c.l.b16 %v372
  %v405 = vunpack.c.l.b16 %v373
  %v406 = vunpack.c.l.b16 %v374
  %v407 = vunpack.c.l.b16 %v375
  %v408 = vpack.c.b16 %v393, %v392
  %v409 = vpack.c.b16 %v395, %v394
  %v410 = vpack.c.b16 %v397, %v396
  %v411 = vpack.c.b16 %v399, %v398
  %v412 = vpack.c.b16 %v401, %v400
  %v413 = vpack.c.b16 %v403, %v402
  %v414 = vpack.c.b16 %v405, %v404
  %v415 = vpack.c.b16 %v407, %v406
  %424 = vmatpush.bf16.msra.mxu0 %v415
  %425 = vmatpush.bf16.msra.mxu0 %v414
  %426 = vmatpush.bf16.msra.mxu0 %v413
  %427 = vmatpush.bf16.msra.mxu0 %v412
  %428 = vmatpush.bf16.msra.mxu0 %v411
  %429 = vmatpush.bf16.msra.mxu0 %v410
  %430 = vmatpush.bf16.msra.mxu0 %v409
  %431 = vmatpush.bf16.msra.mxu0 %v408
  %432 = vmatmul.bf16.gmra.mxu0 %v358
  %v433 = vpop.f32.mrf.mxu0
  %v434 = vadd.f32 0.0, %v433
  %v435 = vpop.f32.mrf.mxu0
  %436 = vdwg.mxu0
  %v437 = vadd.f32 %v357, %v434
  %v438 = vld [vmem:[%s5] sm:$0xf]
  %s439 = scalar_lea.vmem %s9, 320
  %v440 = vld [vmem:[%s439] sm:$0xf]
  %v441 = vld [vmem:[%s439 + $0x4] sm:$0xf]
  %v442 = vld [vmem:[%s439 + $0x8] sm:$0xf]
  %v443 = vld [vmem:[%s439 + $0xc] sm:$0xf]
  %v444 = vld [vmem:[%s439 + $0x10] sm:$0xf]
  %v445 = vld [vmem:[%s439 + $0x14] sm:$0xf]
  %v446 = vld [vmem:[%s439 + $0x18] sm:$0xf]
  %v447 = vld [vmem:[%s439 + $0x1c] sm:$0xf]
  %v448 = vld [vmem:[%s439 + $0x20] sm:$0xf]
  %v449 = vld [vmem:[%s439 + $0x24] sm:$0xf]
  %v450 = vld [vmem:[%s439 + $0x28] sm:$0xf]
  %v451 = vld [vmem:[%s439 + $0x2c] sm:$0xf]
  %v452 = vld [vmem:[%s439 + $0x30] sm:$0xf]
  %v453 = vld [vmem:[%s439 + $0x34] sm:$0xf]
  %v454 = vld [vmem:[%s439 + $0x38] sm:$0xf]
  %v455 = vld [vmem:[%s439 + $0x3c] sm:$0xf]
  %v472 = vunpack.c.l.b16 %v440
  %v473 = vunpack.c.l.b16 %v441
  %v474 = vunpack.c.l.b16 %v442
  %v475 = vunpack.c.l.b16 %v443
  %v476 = vunpack.c.l.b16 %v444
  %v477 = vunpack.c.l.b16 %v445
  %v478 = vunpack.c.l.b16 %v446
  %v479 = vunpack.c.l.b16 %v447
  %v480 = vunpack.c.l.b16 %v448
  %v481 = vunpack.c.l.b16 %v449
  %v482 = vunpack.c.l.b16 %v450
  %v483 = vunpack.c.l.b16 %v451
  %v484 = vunpack.c.l.b16 %v452
  %v485 = vunpack.c.l.b16 %v453
  %v486 = vunpack.c.l.b16 %v454
  %v487 = vunpack.c.l.b16 %v455
  %v488 = vpack.c.b16 %v473, %v472
  %v489 = vpack.c.b16 %v475, %v474
  %v490 = vpack.c.b16 %v477, %v476
  %v491 = vpack.c.b16 %v479, %v478
  %v492 = vpack.c.b16 %v481, %v480
  %v493 = vpack.c.b16 %v483, %v482
  %v494 = vpack.c.b16 %v485, %v484
  %v495 = vpack.c.b16 %v487, %v486
  %504 = vmatpush.bf16.msra.mxu0 %v495
  %505 = vmatpush.bf16.msra.mxu0 %v494
  %506 = vmatpush.bf16.msra.mxu0 %v493
  %507 = vmatpush.bf16.msra.mxu0 %v492
  %508 = vmatpush.bf16.msra.mxu0 %v491
  %509 = vmatpush.bf16.msra.mxu0 %v490
  %510 = vmatpush.bf16.msra.mxu0 %v489
  %511 = vmatpush.bf16.msra.mxu0 %v488
  %512 = vmatmul.bf16.gmra.mxu0 %v438
  %v513 = vpop.f32.mrf.mxu0
  %v514 = vadd.f32 0.0, %v513
  %v515 = vpop.f32.mrf.mxu0
  %516 = vdwg.mxu0
  %v517 = vadd.f32 %v437, %v514
  %v518 = vld [vmem:[%s6] sm:$0xf]
  %s519 = scalar_lea.vmem %s9, 384
  %v520 = vld [vmem:[%s519] sm:$0xf]
  %v521 = vld [vmem:[%s519 + $0x4] sm:$0xf]
  %v522 = vld [vmem:[%s519 + $0x8] sm:$0xf]
  %v523 = vld [vmem:[%s519 + $0xc] sm:$0xf]
  %v524 = vld [vmem:[%s519 + $0x10] sm:$0xf]
  %v525 = vld [vmem:[%s519 + $0x14] sm:$0xf]
  %v526 = vld [vmem:[%s519 + $0x18] sm:$0xf]
  %v527 = vld [vmem:[%s519 + $0x1c] sm:$0xf]
  %v528 = vld [vmem:[%s519 + $0x20] sm:$0xf]
  %v529 = vld [vmem:[%s519 + $0x24] sm:$0xf]
  %v530 = vld [vmem:[%s519 + $0x28] sm:$0xf]
  %v531 = vld [vmem:[%s519 + $0x2c] sm:$0xf]
  %v532 = vld [vmem:[%s519 + $0x30] sm:$0xf]
  %v533 = vld [vmem:[%s519 + $0x34] sm:$0xf]
  %v534 = vld [vmem:[%s519 + $0x38] sm:$0xf]
  %v535 = vld [vmem:[%s519 + $0x3c] sm:$0xf]
  %v552 = vunpack.c.l.b16 %v520
  %v553 = vunpack.c.l.b16 %v521
  %v554 = vunpack.c.l.b16 %v522
  %v555 = vunpack.c.l.b16 %v523
  %v556 = vunpack.c.l.b16 %v524
  %v557 = vunpack.c.l.b16 %v525
  %v558 = vunpack.c.l.b16 %v526
  %v559 = vunpack.c.l.b16 %v527
  %v560 = vunpack.c.l.b16 %v528
  %v561 = vunpack.c.l.b16 %v529
  %v562 = vunpack.c.l.b16 %v530
  %v563 = vunpack.c.l.b16 %v531
  %v564 = vunpack.c.l.b16 %v532
  %v565 = vunpack.c.l.b16 %v533
  %v566 = vunpack.c.l.b16 %v534
  %v567 = vunpack.c.l.b16 %v535
  %v568 = vpack.c.b16 %v553, %v552
  %v569 = vpack.c.b16 %v555, %v554
  %v570 = vpack.c.b16 %v557, %v556
  %v571 = vpack.c.b16 %v559, %v558
  %v572 = vpack.c.b16 %v561, %v560
  %v573 = vpack.c.b16 %v563, %v562
  %v574 = vpack.c.b16 %v565, %v564
  %v575 = vpack.c.b16 %v567, %v566
  %584 = vmatpush.bf16.msra.mxu0 %v575
  %585 = vmatpush.bf16.msra.mxu0 %v574
  %586 = vmatpush.bf16.msra.mxu0 %v573
  %587 = vmatpush.bf16.msra.mxu0 %v572
  %588 = vmatpush.bf16.msra.mxu0 %v571
  %589 = vmatpush.bf16.msra.mxu0 %v570
  %590 = vmatpush.bf16.msra.mxu0 %v569
  %591 = vmatpush.bf16.msra.mxu0 %v568
  %592 = vmatmul.bf16.gmra.mxu0 %v518
  %v593 = vpop.f32.mrf.mxu0
  %v594 = vadd.f32 0.0, %v593
  %v595 = vpop.f32.mrf.mxu0
  %596 = vdwg.mxu0
  %v597 = vadd.f32 %v517, %v594
  %v598 = vld [vmem:[%s7] sm:$0xf]
  %s599 = scalar_lea.vmem %s9, 448
  %v600 = vld [vmem:[%s599] sm:$0xf]
  %v601 = vld [vmem:[%s599 + $0x4] sm:$0xf]
  %v602 = vld [vmem:[%s599 + $0x8] sm:$0xf]
  %v603 = vld [vmem:[%s599 + $0xc] sm:$0xf]
  %v604 = vld [vmem:[%s599 + $0x10] sm:$0xf]
  %v605 = vld [vmem:[%s599 + $0x14] sm:$0xf]
  %v606 = vld [vmem:[%s599 + $0x18] sm:$0xf]
  %v607 = vld [vmem:[%s599 + $0x1c] sm:$0xf]
  %v608 = vld [vmem:[%s599 + $0x20] sm:$0xf]
  %v609 = vld [vmem:[%s599 + $0x24] sm:$0xf]
  %v610 = vld [vmem:[%s599 + $0x28] sm:$0xf]
  %v611 = vld [vmem:[%s599 + $0x2c] sm:$0xf]
  %v612 = vld [vmem:[%s599 + $0x30] sm:$0xf]
  %v613 = vld [vmem:[%s599 + $0x34] sm:$0xf]
  %v614 = vld [vmem:[%s599 + $0x38] sm:$0xf]
  %v615 = vld [vmem:[%s599 + $0x3c] sm:$0xf]
  %v632 = vunpack.c.l.b16 %v600
  %v633 = vunpack.c.l.b16 %v601
  %v634 = vunpack.c.l.b16 %v602
  %v635 = vunpack.c.l.b16 %v603
  %v636 = vunpack.c.l.b16 %v604
  %v637 = vunpack.c.l.b16 %v605
  %v638 = vunpack.c.l.b16 %v606
  %v639 = vunpack.c.l.b16 %v607
  %v640 = vunpack.c.l.b16 %v608
  %v641 = vunpack.c.l.b16 %v609
  %v642 = vunpack.c.l.b16 %v610
  %v643 = vunpack.c.l.b16 %v611
  %v644 = vunpack.c.l.b16 %v612
  %v645 = vunpack.c.l.b16 %v613
  %v646 = vunpack.c.l.b16 %v614
  %v647 = vunpack.c.l.b16 %v615
  %v648 = vpack.c.b16 %v633, %v632
  %v649 = vpack.c.b16 %v635, %v634
  %v650 = vpack.c.b16 %v637, %v636
  %v651 = vpack.c.b16 %v639, %v638
  %v652 = vpack.c.b16 %v641, %v640
  %v653 = vpack.c.b16 %v643, %v642
  %v654 = vpack.c.b16 %v645, %v644
  %v655 = vpack.c.b16 %v647, %v646
  %664 = vmatpush.bf16.msra.mxu0 %v655
  %665 = vmatpush.bf16.msra.mxu0 %v654
  %666 = vmatpush.bf16.msra.mxu0 %v653
  %667 = vmatpush.bf16.msra.mxu0 %v652
  %668 = vmatpush.bf16.msra.mxu0 %v651
  %669 = vmatpush.bf16.msra.mxu0 %v650
  %670 = vmatpush.bf16.msra.mxu0 %v649
  %671 = vmatpush.bf16.msra.mxu0 %v648
  %672 = vmatmul.bf16.gmra.mxu0 %v598
  %v673 = vpop.f32.mrf.mxu0
  %v674 = vadd.f32 0.0, %v673
  %v675 = vpop.f32.mrf.mxu0
  %676 = vdwg.mxu0
  %v677 = vadd.f32 %v597, %v674
  %v678 = vld [vmem:[%s8] sm:$0xf]
  %s679 = scalar_lea.vmem %s9, 512
  %v680 = vld [vmem:[%s679] sm:$0xf]
  %v681 = vld [vmem:[%s679 + $0x4] sm:$0xf]
  %v682 = vld [vmem:[%s679 + $0x8] sm:$0xf]
  %v683 = vld [vmem:[%s679 + $0xc] sm:$0xf]
  %v684 = vld [vmem:[%s679 + $0x10] sm:$0xf]
  %v685 = vld [vmem:[%s679 + $0x14] sm:$0xf]
  %v686 = vld [vmem:[%s679 + $0x18] sm:$0xf]
  %v687 = vld [vmem:[%s679 + $0x1c] sm:$0xf]
  %v688 = vld [vmem:[%s679 + $0x20] sm:$0xf]
  %v689 = vld [vmem:[%s679 + $0x24] sm:$0xf]
  %v690 = vld [vmem:[%s679 + $0x28] sm:$0xf]
  %v691 = vld [vmem:[%s679 + $0x2c] sm:$0xf]
  %v692 = vld [vmem:[%s679 + $0x30] sm:$0xf]
  %v693 = vld [vmem:[%s679 + $0x34] sm:$0xf]
  %v694 = vld [vmem:[%s679 + $0x38] sm:$0xf]
  %v695 = vld [vmem:[%s679 + $0x3c] sm:$0xf]
  %v712 = vunpack.c.l.b16 %v680
  %v713 = vunpack.c.l.b16 %v681
  %v714 = vunpack.c.l.b16 %v682
  %v715 = vunpack.c.l.b16 %v683
  %v716 = vunpack.c.l.b16 %v684
  %v717 = vunpack.c.l.b16 %v685
  %v718 = vunpack.c.l.b16 %v686
  %v719 = vunpack.c.l.b16 %v687
  %v720 = vunpack.c.l.b16 %v688
  %v721 = vunpack.c.l.b16 %v689
  %v722 = vunpack.c.l.b16 %v690
  %v723 = vunpack.c.l.b16 %v691
  %v724 = vunpack.c.l.b16 %v692
  %v725 = vunpack.c.l.b16 %v693
  %v726 = vunpack.c.l.b16 %v694
  %v727 = vunpack.c.l.b16 %v695
  %v728 = vpack.c.b16 %v713, %v712
  %v729 = vpack.c.b16 %v715, %v714
  %v730 = vpack.c.b16 %v717, %v716
  %v731 = vpack.c.b16 %v719, %v718
  %v732 = vpack.c.b16 %v721, %v720
  %v733 = vpack.c.b16 %v723, %v722
  %v734 = vpack.c.b16 %v725, %v724
  %v735 = vpack.c.b16 %v727, %v726
  %744 = vmatpush.bf16.msra.mxu0 %v735
  %745 = vmatpush.bf16.msra.mxu0 %v734
  %746 = vmatpush.bf16.msra.mxu0 %v733
  %747 = vmatpush.bf16.msra.mxu0 %v732
  %748 = vmatpush.bf16.msra.mxu0 %v731
  %749 = vmatpush.bf16.msra.mxu0 %v730
  %750 = vmatpush.bf16.msra.mxu0 %v729
  %751 = vmatpush.bf16.msra.mxu0 %v728
  %752 = vmatmul.bf16.gmra.mxu0 %v678
  %v753 = vpop.f32.mrf.mxu0
  %v754 = vadd.f32 0.0, %v753
  %v755 = vpop.f32.mrf.mxu0
  %756 = vdwg.mxu0
  %v757 = vadd.f32 %v677, %v754
  %v758 = vld [vmem:[%s10] sm:$0x1]
  %v760 = vperm.slane %v758, 0
  %v762 = vmul.f32 %v757, %v760
  %v763 = vld [vmem:[%s11] sm:$0x1]
  %v765 = vperm.slane %v763, 0
  %v767 = vadd.f32 %v762, %v765
  %768 = vst [vmem:[%s12] sm:$0xff] %v767
  // Predicated region
  $region50: #{_lambda_.27} parent=0 // pred_check
    _
  $region51: #{_lambda_.27} parent=0 // pred_check_branch
    %770 = sbr.rel (0) target = $region53
  $region52: #{_lambda_.27} parent=0 // pred_region
    _
  $region53: #{_lambda_.27} parent=0 // pred_fallthru
    _
  // Predicated region
  $region54: #{_lambda_.27} parent=0 // pred_check
    _
  $region55: #{_lambda_.27} parent=0 // pred_check_branch
    %772 = sbr.rel (0) target = $region57
  $region56: #{_lambda_.27} parent=0 // pred_region
    _
  $region57: #{_lambda_.27} parent=0 // pred_fallthru
    _

// kernel: _lambda_.31
$region0: #{_lambda_.31}
  #allocation0 [shape = 'u32[]', space=smem, size = 0x4, offset = 0x4, fixed_abs, tag = 'smem constant byte address 0x4 - core index']
  #allocation1 [shape = 'u32[72,128]{1,0:T(1,128)}', space=vmem, size = 0x9000, scoped, tag = 'internal scratch']
  %s0 = inlined_call_operand.vmem [shape: f32[4,4,128], index: 0, kind: input, shape index: {}]
  %s1 = inlined_call_operand.vmem [shape: f32[4,4,128], index: 1, kind: output, shape index: {}]
  %s2 = sld [smem:[#allocation0]]
  $region14: #{_lambda_.31} parent=0
    _
  %s4 = ssub.s32 1, %s2
  %s5 = scalar_select 0, %s4, %s2
  // Predicated region
  $region2: #{_lambda_.31} parent=0 // pred_check
    _
  $region3: #{_lambda_.31} parent=0 // pred_check_branch
    %7 = sbr.rel (0) target = $region5
  $region4: #{_lambda_.31} parent=0 // pred_region
    _
  $region5: #{_lambda_.31} parent=0 // pred_fallthru
    _
  %v8 = vld [vmem:[%s0] sm:$0xf]
  %v9 = vmul.f32 %v8, 0.6666667
  %v10 = vadd.f32 %v9, 0.0
  %vm11 = vcmp.ge.f32.partialorder %v10, 1.0
  %v12 = vsel %vm11, 1, 0
  %v13 = vcvt.s32.f32 %v12
  %v14 = vsub.f32 1.0, %v13
  %v15 = vmul.f32 %v10, %v14
  %16 = vst [vmem:[%s1] sm:$0xf] %v13
  %s17 = scalar_lea.vmem %s0, 4
  %v18 = vld [vmem:[%s17] sm:$0xf]
  %v19 = vsub.f32 %v18, %v15
  %v20 = vmul.f32 %v19, 0.6666667
  %v21 = vadd.f32 %v15, %v20
  %vm22 = vcmp.ge.f32.partialorder %v21, 1.0
  %v23 = vsel %vm22, 1, 0
  %v24 = vcvt.s32.f32 %v23
  %v25 = vsub.f32 1.0, %v24
  %v26 = vmul.f32 %v21, %v25
  %s27 = scalar_lea.vmem %s1, 4
  %28 = vst [vmem:[%s27] sm:$0xf] %v24
  %s29 = scalar_lea.vmem %s0, 8
  %v30 = vld [vmem:[%s29] sm:$0xf]
  %v31 = vsub.f32 %v30, %v26
  %v32 = vmul.f32 %v31, 0.6666667
  %v33 = vadd.f32 %v26, %v32
  %vm34 = vcmp.ge.f32.partialorder %v33, 1.0
  %v35 = vsel %vm34, 1, 0
  %v36 = vcvt.s32.f32 %v35
  %v37 = vsub.f32 1.0, %v36
  %v38 = vmul.f32 %v33, %v37
  %s39 = scalar_lea.vmem %s1, 8
  %40 = vst [vmem:[%s39] sm:$0xf] %v36
  %s41 = scalar_lea.vmem %s0, 12
  %v42 = vld [vmem:[%s41] sm:$0xf]
  %v43 = vsub.f32 %v42, %v38
  %v44 = vmul.f32 %v43, 0.6666667
  %v45 = vadd.f32 %v38, %v44
  %vm46 = vcmp.ge.f32.partialorder %v45, 1.0
  %v47 = vsel %vm46, 1, 0
  %v48 = vcvt.s32.f32 %v47
  %s49 = scalar_lea.vmem %s1, 12
  %50 = vst [vmem:[%s49] sm:$0xf] %v48
  // Predicated region
  $region6: #{_lambda_.31} parent=0 // pred_check
    _
  $region7: #{_lambda_.31} parent=0 // pred_check_branch
    %52 = sbr.rel (0) target = $region9
  $region8: #{_lambda_.31} parent=0 // pred_region
    _
  $region9: #{_lambda_.31} parent=0 // pred_fallthru
    _
  // Predicated region
  $region10: #{_lambda_.31} parent=0 // pred_check
    _
  $region11: #{_lambda_.31} parent=0 // pred_check_branch
    %54 = sbr.rel (0) target = $region13
  $region12: #{_lambda_.31} parent=0 // pred_region
    _
  $region13: #{_lambda_.31} parent=0 // pred_fallthru
    _

// kernel: _lambda_.34
$region0: #{_lambda_.34}
  #allocation0 [shape = 'u32[]', space=smem, size = 0x4, offset = 0x4, fixed_abs, tag = 'smem constant byte address 0x4 - core index']
  #allocation1 [shape = 'u32[72,128]{1,0:T(1,128)}', space=vmem, size = 0x9000, scoped, tag = 'internal scratch']
  %s0 = inlined_call_operand.vmem [shape: f32[4,4,128], index: 0, kind: input, shape index: {}]
  %s1 = inlined_call_operand.vmem [shape: f32[1,4,128], index: 1, kind: output, shape index: {}]
  %s2 = sld [smem:[#allocation0]]
  $region14: #{_lambda_.34} parent=0
    _
  %s4 = ssub.s32 1, %s2
  %s5 = scalar_select 0, %s4, %s2
  // Predicated region
  $region2: #{_lambda_.34} parent=0 // pred_check
    _
  $region3: #{_lambda_.34} parent=0 // pred_check_branch
    %7 = sbr.rel (0) target = $region5
  $region4: #{_lambda_.34} parent=0 // pred_region
    _
  $region5: #{_lambda_.34} parent=0 // pred_fallthru
    _
  %v8 = vld [vmem:[%s0] sm:$0xf]
  %v9 = vmul.f32 %v8, 0.6666667
  %v10 = vadd.f32 %v9, 0.0
  %vm11 = vcmp.ge.f32.partialorder %v10, 1.0
  %v12 = vsel %vm11, 1, 0
  %v13 = vcvt.s32.f32 %v12
  %v14 = vsub.f32 1.0, %v13
  %v15 = vmul.f32 %v10, %v14
  %v16 = vadd.f32 %v13, 0.0
  %s17 = scalar_lea.vmem %s0, 4
  %v18 = vld [vmem:[%s17] sm:$0xf]
  %v19 = vsub.f32 %v18, %v15
  %v20 = vmul.f32 %v19, 0.6666667
  %v21 = vadd.f32 %v15, %v20
  %vm22 = vcmp.ge.f32.partialorder %v21, 1.0
  %v23 = vsel %vm22, 1, 0
  %v24 = vcvt.s32.f32 %v23
  %v25 = vsub.f32 1.0, %v24
  %v26 = vmul.f32 %v21, %v25
  %v27 = vadd.f32 %v16, %v24
  %s28 = scalar_lea.vmem %s0, 8
  %v29 = vld [vmem:[%s28] sm:$0xf]
  %v30 = vsub.f32 %v29, %v26
  %v31 = vmul.f32 %v30, 0.6666667
  %v32 = vadd.f32 %v26, %v31
  %vm33 = vcmp.ge.f32.partialorder %v32, 1.0
  %v34 = vsel %vm33, 1, 0
  %v35 = vcvt.s32.f32 %v34
  %v36 = vsub.f32 1.0, %v35
  %v37 = vmul.f32 %v32, %v36
  %v38 = vadd.f32 %v27, %v35
  %s39 = scalar_lea.vmem %s0, 12
  %v40 = vld [vmem:[%s39] sm:$0xf]
  %v41 = vsub.f32 %v40, %v37
  %v42 = vmul.f32 %v41, 0.6666667
  %v43 = vadd.f32 %v37, %v42
  %vm44 = vcmp.ge.f32.partialorder %v43, 1.0
  %v45 = vsel %vm44, 1, 0
  %v46 = vcvt.s32.f32 %v45
  %v47 = vadd.f32 %v38, %v46
  %v48 = vmul.f32 %v47, 0.25
  %49 = vst [vmem:[%s1] sm:$0xf] %v48
  // Predicated region
  $region6: #{_lambda_.34} parent=0 // pred_check
    _
  $region7: #{_lambda_.34} parent=0 // pred_check_branch
    %51 = sbr.rel (0) target = $region9
  $region8: #{_lambda_.34} parent=0 // pred_region
    _
  $region9: #{_lambda_.34} parent=0 // pred_fallthru
    _
  // Predicated region
  $region10: #{_lambda_.34} parent=0 // pred_check
    _
  $region11: #{_lambda_.34} parent=0 // pred_check_branch
    %53 = sbr.rel (0) target = $region13
  $region12: #{_lambda_.34} parent=0 // pred_region
    _
  $region13: #{_lambda_.34} parent=0 // pred_fallthru
    _

// kernel: _lambda_.30
$region0: #{_lambda_.30}
  #allocation0 [shape = 'u32[]', space=smem, size = 0x4, offset = 0x4, fixed_abs, tag = 'smem constant byte address 0x4 - core index']
  #allocation1 [shape = 'u32[72,128]{1,0:T(1,128)}', space=vmem, size = 0x9000, scoped, tag = 'internal scratch']
  %s0 = inlined_call_operand.vmem [shape: bf16[16,64], index: 0, kind: input, shape index: {}]
  %s1 = inlined_call_operand.vmem [shape: bf16[16,64], index: 1, kind: input, shape index: {}]
  %s2 = inlined_call_operand.vmem [shape: bf16[16,64], index: 2, kind: input, shape index: {}]
  %s3 = inlined_call_operand.vmem [shape: bf16[16,64], index: 3, kind: input, shape index: {}]
  %s4 = inlined_call_operand.vmem [shape: bf16[16,64], index: 4, kind: input, shape index: {}]
  %s5 = inlined_call_operand.vmem [shape: bf16[16,64], index: 5, kind: input, shape index: {}]
  %s6 = inlined_call_operand.vmem [shape: bf16[16,64], index: 6, kind: input, shape index: {}]
  %s7 = inlined_call_operand.vmem [shape: bf16[16,64], index: 7, kind: input, shape index: {}]
  %s8 = inlined_call_operand.vmem [shape: bf16[16,64], index: 8, kind: input, shape index: {}]
  %s9 = inlined_call_operand.vmem [shape: bf16[9,64,128], index: 9, kind: input, shape index: {}]
  %s10 = inlined_call_operand.vmem [shape: f32[1,128], index: 10, kind: input, shape index: {}]
  %s11 = inlined_call_operand.vmem [shape: f32[1,128], index: 11, kind: input, shape index: {}]
  %s12 = inlined_call_operand.vmem [shape: f32[16,128], index: 12, kind: output, shape index: {}]
  %s13 = sld [smem:[#allocation0]]
  $region58: #{_lambda_.30} parent=0
    _
  %s15 = ssub.s32 1, %s13
  %s16 = scalar_select 0, %s15, %s13
  // Predicated region
  $region2: #{_lambda_.30} parent=0 // pred_check
    _
  $region3: #{_lambda_.30} parent=0 // pred_check_branch
    %18 = sbr.rel (0) target = $region5
  $region4: #{_lambda_.30} parent=0 // pred_region
    _
  $region5: #{_lambda_.30} parent=0 // pred_fallthru
    _
  // Predicated region
  $region6: #{_lambda_.30} parent=0 // pred_check
    _
  $region7: #{_lambda_.30} parent=0 // pred_check_branch
    %20 = sbr.rel (0) target = $region9
  $region8: #{_lambda_.30} parent=0 // pred_region
    _
  $region9: #{_lambda_.30} parent=0 // pred_fallthru
    _
  // Predicated region
  $region10: #{_lambda_.30} parent=0 // pred_check
    _
  $region11: #{_lambda_.30} parent=0 // pred_check_branch
    %22 = sbr.rel (0) target = $region13
  $region12: #{_lambda_.30} parent=0 // pred_region
    _
  $region13: #{_lambda_.30} parent=0 // pred_fallthru
    _
  // Predicated region
  $region14: #{_lambda_.30} parent=0 // pred_check
    _
  $region15: #{_lambda_.30} parent=0 // pred_check_branch
    %24 = sbr.rel (0) target = $region17
  $region16: #{_lambda_.30} parent=0 // pred_region
    _
  $region17: #{_lambda_.30} parent=0 // pred_fallthru
    _
  // Predicated region
  $region18: #{_lambda_.30} parent=0 // pred_check
    _
  $region19: #{_lambda_.30} parent=0 // pred_check_branch
    %26 = sbr.rel (0) target = $region21
  $region20: #{_lambda_.30} parent=0 // pred_region
    _
  $region21: #{_lambda_.30} parent=0 // pred_fallthru
    _
  // Predicated region
  $region22: #{_lambda_.30} parent=0 // pred_check
    _
  $region23: #{_lambda_.30} parent=0 // pred_check_branch
    %28 = sbr.rel (0) target = $region25
  $region24: #{_lambda_.30} parent=0 // pred_region
    _
  $region25: #{_lambda_.30} parent=0 // pred_fallthru
    _
  // Predicated region
  $region26: #{_lambda_.30} parent=0 // pred_check
    _
  $region27: #{_lambda_.30} parent=0 // pred_check_branch
    %30 = sbr.rel (0) target = $region29
  $region28: #{_lambda_.30} parent=0 // pred_region
    _
  $region29: #{_lambda_.30} parent=0 // pred_fallthru
    _
  // Predicated region
  $region30: #{_lambda_.30} parent=0 // pred_check
    _
  $region31: #{_lambda_.30} parent=0 // pred_check_branch
    %32 = sbr.rel (0) target = $region33
  $region32: #{_lambda_.30} parent=0 // pred_region
    _
  $region33: #{_lambda_.30} parent=0 // pred_fallthru
    _
  // Predicated region
  $region34: #{_lambda_.30} parent=0 // pred_check
    _
  $region35: #{_lambda_.30} parent=0 // pred_check_branch
    %34 = sbr.rel (0) target = $region37
  $region36: #{_lambda_.30} parent=0 // pred_region
    _
  $region37: #{_lambda_.30} parent=0 // pred_fallthru
    _
  // Predicated region
  $region38: #{_lambda_.30} parent=0 // pred_check
    _
  $region39: #{_lambda_.30} parent=0 // pred_check_branch
    %36 = sbr.rel (0) target = $region41
  $region40: #{_lambda_.30} parent=0 // pred_region
    _
  $region41: #{_lambda_.30} parent=0 // pred_fallthru
    _
  // Predicated region
  $region42: #{_lambda_.30} parent=0 // pred_check
    _
  $region43: #{_lambda_.30} parent=0 // pred_check_branch
    %38 = sbr.rel (0) target = $region45
  $region44: #{_lambda_.30} parent=0 // pred_region
    _
  $region45: #{_lambda_.30} parent=0 // pred_fallthru
    _
  // Predicated region
  $region46: #{_lambda_.30} parent=0 // pred_check
    _
  $region47: #{_lambda_.30} parent=0 // pred_check_branch
    %40 = sbr.rel (0) target = $region49
  $region48: #{_lambda_.30} parent=0 // pred_region
    _
  $region49: #{_lambda_.30} parent=0 // pred_fallthru
    _
  %v42 = vld [vmem:[%s0] sm:$0xf]
  %v43 = vld [vmem:[%s0 + $0x4] sm:$0xf]
  %v44 = vld [vmem:[%s9] sm:$0xf]
  %v45 = vld [vmem:[%s9 + $0x4] sm:$0xf]
  %v46 = vld [vmem:[%s9 + $0x8] sm:$0xf]
  %v47 = vld [vmem:[%s9 + $0xc] sm:$0xf]
  %v48 = vld [vmem:[%s9 + $0x10] sm:$0xf]
  %v49 = vld [vmem:[%s9 + $0x14] sm:$0xf]
  %v50 = vld [vmem:[%s9 + $0x18] sm:$0xf]
  %v51 = vld [vmem:[%s9 + $0x1c] sm:$0xf]
  %v52 = vld [vmem:[%s1] sm:$0xf]
  %v53 = vld [vmem:[%s1 + $0x4] sm:$0xf]
  %s54 = scalar_lea.vmem %s9, 32
  %v55 = vld [vmem:[%s54] sm:$0xf]
  %v56 = vld [vmem:[%s54 + $0x4] sm:$0xf]
  %v57 = vld [vmem:[%s54 + $0x8] sm:$0xf]
  %v58 = vld [vmem:[%s54 + $0xc] sm:$0xf]
  %v59 = vld [vmem:[%s54 + $0x10] sm:$0xf]
  %v60 = vld [vmem:[%s54 + $0x14] sm:$0xf]
  %v61 = vld [vmem:[%s54 + $0x18] sm:$0xf]
  %v62 = vld [vmem:[%s54 + $0x1c] sm:$0xf]
  %v65 = vunpack.c.l.b16 %v52
  %v66 = vunpack.c.l.b16 %v53
  %v67 = vpack.c.b16 %v66, %v65
  %v76 = vunpack.c.l.b16 %v55
  %v77 = vunpack.c.l.b16 %v56
  %v78 = vunpack.c.l.b16 %v57
  %v79 = vunpack.c.l.b16 %v58
  %v80 = vunpack.c.l.b16 %v59
  %v81 = vunpack.c.l.b16 %v60
  %v82 = vunpack.c.l.b16 %v61
  %v83 = vunpack.c.l.b16 %v62
  %v84 = vpack.c.b16 %v77, %v76
  %v85 = vpack.c.b16 %v79, %v78
  %v86 = vpack.c.b16 %v81, %v80
  %v87 = vpack.c.b16 %v83, %v82
  %vm92 = vcmask 523264
  %v94 = vsel %vm92, %v67, 0
  %96 = vmatpush.bf16.msra.mxu0 0
  %97 = vmatpush.bf16.msra.mxu0 0
  %98 = vmatpush.bf16.msra.mxu0 0
  %99 = vmatpush.bf16.msra.mxu0 0
  %100 = vmatpush.bf16.msra.mxu0 %v87
  %101 = vmatpush.bf16.msra.mxu0 %v86
  %102 = vmatpush.bf16.msra.mxu0 %v85
  %103 = vmatpush.bf16.msra.mxu0 %v84
  %104 = vmatmul.bf16.gmra.mxu0 %v94
  %v105 = vpop.f32.mrf.mxu0
  %v106 = vadd.f32 0.0, %v105
  %v107 = vpop.f32.mrf.mxu0
  %v108 = vadd.f32 0.0, %v107
  %109 = vdwg.mxu0
  %v112 = vunpack.c.l.b16 %v42
  %v113 = vunpack.c.l.b16 %v43
  %v114 = vpack.c.b16 %v113, %v112
  %v123 = vunpack.c.l.b16 %v44
  %v124 = vunpack.c.l.b16 %v45
  %v125 = vunpack.c.l.b16 %v46
  %v126 = vunpack.c.l.b16 %v47
  %v127 = vunpack.c.l.b16 %v48
  %v128 = vunpack.c.l.b16 %v49
  %v129 = vunpack.c.l.b16 %v50
  %v130 = vunpack.c.l.b16 %v51
  %v131 = vpack.c.b16 %v124, %v123
  %v132 = vpack.c.b16 %v126, %v125
  %v133 = vpack.c.b16 %v128, %v127
  %v134 = vpack.c.b16 %v130, %v129
  %v140 = vsel %vm92, %v114, 0
  %142 = vmatpush.bf16.msra.mxu0 0
  %143 = vmatpush.bf16.msra.mxu0 0
  %144 = vmatpush.bf16.msra.mxu0 0
  %145 = vmatpush.bf16.msra.mxu0 0
  %146 = vmatpush.bf16.msra.mxu0 %v134
  %147 = vmatpush.bf16.msra.mxu0 %v133
  %148 = vmatpush.bf16.msra.mxu0 %v132
  %149 = vmatpush.bf16.msra.mxu0 %v131
  %150 = vmatmul.bf16.gmra.mxu0 %v140
  %v151 = vpop.f32.mrf.mxu0
  %v152 = vadd.f32 %v106, %v151
  %v153 = vpop.f32.mrf.mxu0
  %v154 = vadd.f32 %v108, %v153
  %155 = vdwg.mxu0
  %v156 = vld [vmem:[%s2] sm:$0xf]
  %v157 = vld [vmem:[%s2 + $0x4] sm:$0xf]
  %s158 = scalar_lea.vmem %s9, 64
  %v159 = vld [vmem:[%s158] sm:$0xf]
  %v160 = vld [vmem:[%s158 + $0x4] sm:$0xf]
  %v161 = vld [vmem:[%s158 + $0x8] sm:$0xf]
  %v162 = vld [vmem:[%s158 + $0xc] sm:$0xf]
  %v163 = vld [vmem:[%s158 + $0x10] sm:$0xf]
  %v164 = vld [vmem:[%s158 + $0x14] sm:$0xf]
  %v165 = vld [vmem:[%s158 + $0x18] sm:$0xf]
  %v166 = vld [vmem:[%s158 + $0x1c] sm:$0xf]
  %v169 = vunpack.c.l.b16 %v156
  %v170 = vunpack.c.l.b16 %v157
  %v171 = vpack.c.b16 %v170, %v169
  %v180 = vunpack.c.l.b16 %v159
  %v181 = vunpack.c.l.b16 %v160
  %v182 = vunpack.c.l.b16 %v161
  %v183 = vunpack.c.l.b16 %v162
  %v184 = vunpack.c.l.b16 %v163
  %v185 = vunpack.c.l.b16 %v164
  %v186 = vunpack.c.l.b16 %v165
  %v187 = vunpack.c.l.b16 %v166
  %v188 = vpack.c.b16 %v181, %v180
  %v189 = vpack.c.b16 %v183, %v182
  %v190 = vpack.c.b16 %v185, %v184
  %v191 = vpack.c.b16 %v187, %v186
  %v197 = vsel %vm92, %v171, 0
  %199 = vmatpush.bf16.msra.mxu0 0
  %200 = vmatpush.bf16.msra.mxu0 0
  %201 = vmatpush.bf16.msra.mxu0 0
  %202 = vmatpush.bf16.msra.mxu0 0
  %203 = vmatpush.bf16.msra.mxu0 %v191
  %204 = vmatpush.bf16.msra.mxu0 %v190
  %205 = vmatpush.bf16.msra.mxu0 %v189
  %206 = vmatpush.bf16.msra.mxu0 %v188
  %207 = vmatmul.bf16.gmra.mxu0 %v197
  %v208 = vpop.f32.mrf.mxu0
  %v209 = vadd.f32 0.0, %v208
  %v210 = vpop.f32.mrf.mxu0
  %v211 = vadd.f32 0.0, %v210
  %212 = vdwg.mxu0
  %v213 = vadd.f32 %v152, %v209
  %v214 = vadd.f32 %v154, %v211
  %v215 = vld [vmem:[%s3] sm:$0xf]
  %v216 = vld [vmem:[%s3 + $0x4] sm:$0xf]
  %s217 = scalar_lea.vmem %s9, 96
  %v218 = vld [vmem:[%s217] sm:$0xf]
  %v219 = vld [vmem:[%s217 + $0x4] sm:$0xf]
  %v220 = vld [vmem:[%s217 + $0x8] sm:$0xf]
  %v221 = vld [vmem:[%s217 + $0xc] sm:$0xf]
  %v222 = vld [vmem:[%s217 + $0x10] sm:$0xf]
  %v223 = vld [vmem:[%s217 + $0x14] sm:$0xf]
  %v224 = vld [vmem:[%s217 + $0x18] sm:$0xf]
  %v225 = vld [vmem:[%s217 + $0x1c] sm:$0xf]
  %v228 = vunpack.c.l.b16 %v215
  %v229 = vunpack.c.l.b16 %v216
  %v230 = vpack.c.b16 %v229, %v228
  %v239 = vunpack.c.l.b16 %v218
  %v240 = vunpack.c.l.b16 %v219
  %v241 = vunpack.c.l.b16 %v220
  %v242 = vunpack.c.l.b16 %v221
  %v243 = vunpack.c.l.b16 %v222
  %v244 = vunpack.c.l.b16 %v223
  %v245 = vunpack.c.l.b16 %v224
  %v246 = vunpack.c.l.b16 %v225
  %v247 = vpack.c.b16 %v240, %v239
  %v248 = vpack.c.b16 %v242, %v241
  %v249 = vpack.c.b16 %v244, %v243
  %v250 = vpack.c.b16 %v246, %v245
  %v256 = vsel %vm92, %v230, 0
  %258 = vmatpush.bf16.msra.mxu0 0
  %259 = vmatpush.bf16.msra.mxu0 0
  %260 = vmatpush.bf16.msra.mxu0 0
  %261 = vmatpush.bf16.msra.mxu0 0
  %262 = vmatpush.bf16.msra.mxu0 %v250
  %263 = vmatpush.bf16.msra.mxu0 %v249
  %264 = vmatpush.bf16.msra.mxu0 %v248
  %265 = vmatpush.bf16.msra.mxu0 %v247
  %266 = vmatmul.bf16.gmra.mxu0 %v256
  %v267 = vpop.f32.mrf.mxu0
  %v268 = vadd.f32 0.0, %v267
  %v269 = vpop.f32.mrf.mxu0
  %v270 = vadd.f32 0.0, %v269
  %271 = vdwg.mxu0
  %v272 = vadd.f32 %v213, %v268
  %v273 = vadd.f32 %v214, %v270
  %v274 = vld [vmem:[%s4] sm:$0xf]
  %v275 = vld [vmem:[%s4 + $0x4] sm:$0xf]
  %s276 = scalar_lea.vmem %s9, 128
  %v277 = vld [vmem:[%s276] sm:$0xf]
  %v278 = vld [vmem:[%s276 + $0x4] sm:$0xf]
  %v279 = vld [vmem:[%s276 + $0x8] sm:$0xf]
  %v280 = vld [vmem:[%s276 + $0xc] sm:$0xf]
  %v281 = vld [vmem:[%s276 + $0x10] sm:$0xf]
  %v282 = vld [vmem:[%s276 + $0x14] sm:$0xf]
  %v283 = vld [vmem:[%s276 + $0x18] sm:$0xf]
  %v284 = vld [vmem:[%s276 + $0x1c] sm:$0xf]
  %v287 = vunpack.c.l.b16 %v274
  %v288 = vunpack.c.l.b16 %v275
  %v289 = vpack.c.b16 %v288, %v287
  %v298 = vunpack.c.l.b16 %v277
  %v299 = vunpack.c.l.b16 %v278
  %v300 = vunpack.c.l.b16 %v279
  %v301 = vunpack.c.l.b16 %v280
  %v302 = vunpack.c.l.b16 %v281
  %v303 = vunpack.c.l.b16 %v282
  %v304 = vunpack.c.l.b16 %v283
  %v305 = vunpack.c.l.b16 %v284
  %v306 = vpack.c.b16 %v299, %v298
  %v307 = vpack.c.b16 %v301, %v300
  %v308 = vpack.c.b16 %v303, %v302
  %v309 = vpack.c.b16 %v305, %v304
  %v315 = vsel %vm92, %v289, 0
  %317 = vmatpush.bf16.msra.mxu0 0
  %318 = vmatpush.bf16.msra.mxu0 0
  %319 = vmatpush.bf16.msra.mxu0 0
  %320 = vmatpush.bf16.msra.mxu0 0
  %321 = vmatpush.bf16.msra.mxu0 %v309
  %322 = vmatpush.bf16.msra.mxu0 %v308
  %323 = vmatpush.bf16.msra.mxu0 %v307
  %324 = vmatpush.bf16.msra.mxu0 %v306
  %325 = vmatmul.bf16.gmra.mxu0 %v315
  %v326 = vpop.f32.mrf.mxu0
  %v327 = vadd.f32 0.0, %v326
  %v328 = vpop.f32.mrf.mxu0
  %v329 = vadd.f32 0.0, %v328
  %330 = vdwg.mxu0
  %v331 = vadd.f32 %v272, %v327
  %v332 = vadd.f32 %v273, %v329
  %v333 = vld [vmem:[%s5] sm:$0xf]
  %v334 = vld [vmem:[%s5 + $0x4] sm:$0xf]
  %s335 = scalar_lea.vmem %s9, 160
  %v336 = vld [vmem:[%s335] sm:$0xf]
  %v337 = vld [vmem:[%s335 + $0x4] sm:$0xf]
  %v338 = vld [vmem:[%s335 + $0x8] sm:$0xf]
  %v339 = vld [vmem:[%s335 + $0xc] sm:$0xf]
  %v340 = vld [vmem:[%s335 + $0x10] sm:$0xf]
  %v341 = vld [vmem:[%s335 + $0x14] sm:$0xf]
  %v342 = vld [vmem:[%s335 + $0x18] sm:$0xf]
  %v343 = vld [vmem:[%s335 + $0x1c] sm:$0xf]
  %v346 = vunpack.c.l.b16 %v333
  %v347 = vunpack.c.l.b16 %v334
  %v348 = vpack.c.b16 %v347, %v346
  %v357 = vunpack.c.l.b16 %v336
  %v358 = vunpack.c.l.b16 %v337
  %v359 = vunpack.c.l.b16 %v338
  %v360 = vunpack.c.l.b16 %v339
  %v361 = vunpack.c.l.b16 %v340
  %v362 = vunpack.c.l.b16 %v341
  %v363 = vunpack.c.l.b16 %v342
  %v364 = vunpack.c.l.b16 %v343
  %v365 = vpack.c.b16 %v358, %v357
  %v366 = vpack.c.b16 %v360, %v359
  %v367 = vpack.c.b16 %v362, %v361
  %v368 = vpack.c.b16 %v364, %v363
  %v374 = vsel %vm92, %v348, 0
  %376 = vmatpush.bf16.msra.mxu0 0
  %377 = vmatpush.bf16.msra.mxu0 0
  %378 = vmatpush.bf16.msra.mxu0 0
  %379 = vmatpush.bf16.msra.mxu0 0
  %380 = vmatpush.bf16.msra.mxu0 %v368
  %381 = vmatpush.bf16.msra.mxu0 %v367
  %382 = vmatpush.bf16.msra.mxu0 %v366
  %383 = vmatpush.bf16.msra.mxu0 %v365
  %384 = vmatmul.bf16.gmra.mxu0 %v374
  %v385 = vpop.f32.mrf.mxu0
  %v386 = vadd.f32 0.0, %v385
  %v387 = vpop.f32.mrf.mxu0
  %v388 = vadd.f32 0.0, %v387
  %389 = vdwg.mxu0
  %v390 = vadd.f32 %v331, %v386
  %v391 = vadd.f32 %v332, %v388
  %v392 = vld [vmem:[%s6] sm:$0xf]
  %v393 = vld [vmem:[%s6 + $0x4] sm:$0xf]
  %s394 = scalar_lea.vmem %s9, 192
  %v395 = vld [vmem:[%s394] sm:$0xf]
  %v396 = vld [vmem:[%s394 + $0x4] sm:$0xf]
  %v397 = vld [vmem:[%s394 + $0x8] sm:$0xf]
  %v398 = vld [vmem:[%s394 + $0xc] sm:$0xf]
  %v399 = vld [vmem:[%s394 + $0x10] sm:$0xf]
  %v400 = vld [vmem:[%s394 + $0x14] sm:$0xf]
  %v401 = vld [vmem:[%s394 + $0x18] sm:$0xf]
  %v402 = vld [vmem:[%s394 + $0x1c] sm:$0xf]
  %v405 = vunpack.c.l.b16 %v392
  %v406 = vunpack.c.l.b16 %v393
  %v407 = vpack.c.b16 %v406, %v405
  %v416 = vunpack.c.l.b16 %v395
  %v417 = vunpack.c.l.b16 %v396
  %v418 = vunpack.c.l.b16 %v397
  %v419 = vunpack.c.l.b16 %v398
  %v420 = vunpack.c.l.b16 %v399
  %v421 = vunpack.c.l.b16 %v400
  %v422 = vunpack.c.l.b16 %v401
  %v423 = vunpack.c.l.b16 %v402
  %v424 = vpack.c.b16 %v417, %v416
  %v425 = vpack.c.b16 %v419, %v418
  %v426 = vpack.c.b16 %v421, %v420
  %v427 = vpack.c.b16 %v423, %v422
  %v433 = vsel %vm92, %v407, 0
  %435 = vmatpush.bf16.msra.mxu0 0
  %436 = vmatpush.bf16.msra.mxu0 0
  %437 = vmatpush.bf16.msra.mxu0 0
  %438 = vmatpush.bf16.msra.mxu0 0
  %439 = vmatpush.bf16.msra.mxu0 %v427
  %440 = vmatpush.bf16.msra.mxu0 %v426
  %441 = vmatpush.bf16.msra.mxu0 %v425
  %442 = vmatpush.bf16.msra.mxu0 %v424
  %443 = vmatmul.bf16.gmra.mxu0 %v433
  %v444 = vpop.f32.mrf.mxu0
  %v445 = vadd.f32 0.0, %v444
  %v446 = vpop.f32.mrf.mxu0
  %v447 = vadd.f32 0.0, %v446
  %448 = vdwg.mxu0
  %v449 = vadd.f32 %v390, %v445
  %v450 = vadd.f32 %v391, %v447
  %v451 = vld [vmem:[%s7] sm:$0xf]
  %v452 = vld [vmem:[%s7 + $0x4] sm:$0xf]
  %s453 = scalar_lea.vmem %s9, 224
  %v454 = vld [vmem:[%s453] sm:$0xf]
  %v455 = vld [vmem:[%s453 + $0x4] sm:$0xf]
  %v456 = vld [vmem:[%s453 + $0x8] sm:$0xf]
  %v457 = vld [vmem:[%s453 + $0xc] sm:$0xf]
  %v458 = vld [vmem:[%s453 + $0x10] sm:$0xf]
  %v459 = vld [vmem:[%s453 + $0x14] sm:$0xf]
  %v460 = vld [vmem:[%s453 + $0x18] sm:$0xf]
  %v461 = vld [vmem:[%s453 + $0x1c] sm:$0xf]
  %v464 = vunpack.c.l.b16 %v451
  %v465 = vunpack.c.l.b16 %v452
  %v466 = vpack.c.b16 %v465, %v464
  %v475 = vunpack.c.l.b16 %v454
  %v476 = vunpack.c.l.b16 %v455
  %v477 = vunpack.c.l.b16 %v456
  %v478 = vunpack.c.l.b16 %v457
  %v479 = vunpack.c.l.b16 %v458
  %v480 = vunpack.c.l.b16 %v459
  %v481 = vunpack.c.l.b16 %v460
  %v482 = vunpack.c.l.b16 %v461
  %v483 = vpack.c.b16 %v476, %v475
  %v484 = vpack.c.b16 %v478, %v477
  %v485 = vpack.c.b16 %v480, %v479
  %v486 = vpack.c.b16 %v482, %v481
  %v492 = vsel %vm92, %v466, 0
  %494 = vmatpush.bf16.msra.mxu0 0
  %495 = vmatpush.bf16.msra.mxu0 0
  %496 = vmatpush.bf16.msra.mxu0 0
  %497 = vmatpush.bf16.msra.mxu0 0
  %498 = vmatpush.bf16.msra.mxu0 %v486
  %499 = vmatpush.bf16.msra.mxu0 %v485
  %500 = vmatpush.bf16.msra.mxu0 %v484
  %501 = vmatpush.bf16.msra.mxu0 %v483
  %502 = vmatmul.bf16.gmra.mxu0 %v492
  %v503 = vpop.f32.mrf.mxu0
  %v504 = vadd.f32 0.0, %v503
  %v505 = vpop.f32.mrf.mxu0
  %v506 = vadd.f32 0.0, %v505
  %507 = vdwg.mxu0
  %v508 = vadd.f32 %v449, %v504
  %v509 = vadd.f32 %v450, %v506
  %v510 = vld [vmem:[%s8] sm:$0xf]
  %v511 = vld [vmem:[%s8 + $0x4] sm:$0xf]
  %s512 = scalar_lea.vmem %s9, 256
  %v513 = vld [vmem:[%s512] sm:$0xf]
  %v514 = vld [vmem:[%s512 + $0x4] sm:$0xf]
  %v515 = vld [vmem:[%s512 + $0x8] sm:$0xf]
  %v516 = vld [vmem:[%s512 + $0xc] sm:$0xf]
  %v517 = vld [vmem:[%s512 + $0x10] sm:$0xf]
  %v518 = vld [vmem:[%s512 + $0x14] sm:$0xf]
  %v519 = vld [vmem:[%s512 + $0x18] sm:$0xf]
  %v520 = vld [vmem:[%s512 + $0x1c] sm:$0xf]
  %v523 = vunpack.c.l.b16 %v510
  %v524 = vunpack.c.l.b16 %v511
  %v525 = vpack.c.b16 %v524, %v523
  %v534 = vunpack.c.l.b16 %v513
  %v535 = vunpack.c.l.b16 %v514
  %v536 = vunpack.c.l.b16 %v515
  %v537 = vunpack.c.l.b16 %v516
  %v538 = vunpack.c.l.b16 %v517
  %v539 = vunpack.c.l.b16 %v518
  %v540 = vunpack.c.l.b16 %v519
  %v541 = vunpack.c.l.b16 %v520
  %v542 = vpack.c.b16 %v535, %v534
  %v543 = vpack.c.b16 %v537, %v536
  %v544 = vpack.c.b16 %v539, %v538
  %v545 = vpack.c.b16 %v541, %v540
  %v551 = vsel %vm92, %v525, 0
  %553 = vmatpush.bf16.msra.mxu0 0
  %554 = vmatpush.bf16.msra.mxu0 0
  %555 = vmatpush.bf16.msra.mxu0 0
  %556 = vmatpush.bf16.msra.mxu0 0
  %557 = vmatpush.bf16.msra.mxu0 %v545
  %558 = vmatpush.bf16.msra.mxu0 %v544
  %559 = vmatpush.bf16.msra.mxu0 %v543
  %560 = vmatpush.bf16.msra.mxu0 %v542
  %561 = vmatmul.bf16.gmra.mxu0 %v551
  %v562 = vpop.f32.mrf.mxu0
  %v563 = vadd.f32 0.0, %v562
  %v564 = vpop.f32.mrf.mxu0
  %v565 = vadd.f32 0.0, %v564
  %566 = vdwg.mxu0
  %v567 = vadd.f32 %v508, %v563
  %v568 = vadd.f32 %v509, %v565
  %v569 = vld [vmem:[%s10] sm:$0x1]
  %v571 = vperm.slane %v569, 0
  %v573 = vmul.f32 %v567, %v571
  %v574 = vmul.f32 %v568, %v571
  %v575 = vld [vmem:[%s11] sm:$0x1]
  %v577 = vperm.slane %v575, 0
  %v579 = vadd.f32 %v573, %v577
  %v580 = vadd.f32 %v574, %v577
  %581 = vst [vmem:[%s12] sm:$0xff] %v579
  %582 = vst [vmem:[%s12 + $0x8] sm:$0xff] %v580
  // Predicated region
  $region50: #{_lambda_.30} parent=0 // pred_check
    _
  $region51: #{_lambda_.30} parent=0 // pred_check_branch
    %584 = sbr.rel (0) target = $region53
  $region52: #{_lambda_.30} parent=0 // pred_region
    _
  $region53: #{_lambda_.30} parent=0 // pred_fallthru
    _
  // Predicated region
  $region54: #{_lambda_.30} parent=0 // pred_check
    _
  $region55: #{_lambda_.30} parent=0 // pred_check_branch
    %586 = sbr.rel (0) target = $region57
  $region56: #{_lambda_.30} parent=0 // pred_region
    _
  $region57: #{_lambda_.30} parent=0 // pred_fallthru
    _

// kernel: _lambda_.32
$region0: #{_lambda_.32}
  #allocation0 [shape = 'u32[]', space=smem, size = 0x4, offset = 0x4, fixed_abs, tag = 'smem constant byte address 0x4 - core index']
  #allocation1 [shape = 'u32[72,128]{1,0:T(1,128)}', space=vmem, size = 0x9000, scoped, tag = 'internal scratch']
  %s0 = inlined_call_operand.vmem [shape: bf16[16,128], index: 0, kind: input, shape index: {}]
  %s1 = inlined_call_operand.vmem [shape: bf16[16,128], index: 1, kind: input, shape index: {}]
  %s2 = inlined_call_operand.vmem [shape: bf16[16,128], index: 2, kind: input, shape index: {}]
  %s3 = inlined_call_operand.vmem [shape: bf16[16,128], index: 3, kind: input, shape index: {}]
  %s4 = inlined_call_operand.vmem [shape: bf16[16,128], index: 4, kind: input, shape index: {}]
  %s5 = inlined_call_operand.vmem [shape: bf16[16,128], index: 5, kind: input, shape index: {}]
  %s6 = inlined_call_operand.vmem [shape: bf16[16,128], index: 6, kind: input, shape index: {}]
  %s7 = inlined_call_operand.vmem [shape: bf16[16,128], index: 7, kind: input, shape index: {}]
  %s8 = inlined_call_operand.vmem [shape: bf16[16,128], index: 8, kind: input, shape index: {}]
  %s9 = inlined_call_operand.vmem [shape: bf16[9,128,128], index: 9, kind: input, shape index: {}]
  %s10 = inlined_call_operand.vmem [shape: f32[1,128], index: 10, kind: input, shape index: {}]
  %s11 = inlined_call_operand.vmem [shape: f32[1,128], index: 11, kind: input, shape index: {}]
  %s12 = inlined_call_operand.vmem [shape: f32[16,128], index: 12, kind: output, shape index: {}]
  %s13 = sld [smem:[#allocation0]]
  $region58: #{_lambda_.32} parent=0
    _
  %s15 = ssub.s32 1, %s13
  %s16 = scalar_select 0, %s15, %s13
  // Predicated region
  $region2: #{_lambda_.32} parent=0 // pred_check
    _
  $region3: #{_lambda_.32} parent=0 // pred_check_branch
    %18 = sbr.rel (0) target = $region5
  $region4: #{_lambda_.32} parent=0 // pred_region
    _
  $region5: #{_lambda_.32} parent=0 // pred_fallthru
    _
  // Predicated region
  $region6: #{_lambda_.32} parent=0 // pred_check
    _
  $region7: #{_lambda_.32} parent=0 // pred_check_branch
    %20 = sbr.rel (0) target = $region9
  $region8: #{_lambda_.32} parent=0 // pred_region
    _
  $region9: #{_lambda_.32} parent=0 // pred_fallthru
    _
  // Predicated region
  $region10: #{_lambda_.32} parent=0 // pred_check
    _
  $region11: #{_lambda_.32} parent=0 // pred_check_branch
    %22 = sbr.rel (0) target = $region13
  $region12: #{_lambda_.32} parent=0 // pred_region
    _
  $region13: #{_lambda_.32} parent=0 // pred_fallthru
    _
  // Predicated region
  $region14: #{_lambda_.32} parent=0 // pred_check
    _
  $region15: #{_lambda_.32} parent=0 // pred_check_branch
    %24 = sbr.rel (0) target = $region17
  $region16: #{_lambda_.32} parent=0 // pred_region
    _
  $region17: #{_lambda_.32} parent=0 // pred_fallthru
    _
  // Predicated region
  $region18: #{_lambda_.32} parent=0 // pred_check
    _
  $region19: #{_lambda_.32} parent=0 // pred_check_branch
    %26 = sbr.rel (0) target = $region21
  $region20: #{_lambda_.32} parent=0 // pred_region
    _
  $region21: #{_lambda_.32} parent=0 // pred_fallthru
    _
  // Predicated region
  $region22: #{_lambda_.32} parent=0 // pred_check
    _
  $region23: #{_lambda_.32} parent=0 // pred_check_branch
    %28 = sbr.rel (0) target = $region25
  $region24: #{_lambda_.32} parent=0 // pred_region
    _
  $region25: #{_lambda_.32} parent=0 // pred_fallthru
    _
  // Predicated region
  $region26: #{_lambda_.32} parent=0 // pred_check
    _
  $region27: #{_lambda_.32} parent=0 // pred_check_branch
    %30 = sbr.rel (0) target = $region29
  $region28: #{_lambda_.32} parent=0 // pred_region
    _
  $region29: #{_lambda_.32} parent=0 // pred_fallthru
    _
  // Predicated region
  $region30: #{_lambda_.32} parent=0 // pred_check
    _
  $region31: #{_lambda_.32} parent=0 // pred_check_branch
    %32 = sbr.rel (0) target = $region33
  $region32: #{_lambda_.32} parent=0 // pred_region
    _
  $region33: #{_lambda_.32} parent=0 // pred_fallthru
    _
  // Predicated region
  $region34: #{_lambda_.32} parent=0 // pred_check
    _
  $region35: #{_lambda_.32} parent=0 // pred_check_branch
    %34 = sbr.rel (0) target = $region37
  $region36: #{_lambda_.32} parent=0 // pred_region
    _
  $region37: #{_lambda_.32} parent=0 // pred_fallthru
    _
  // Predicated region
  $region38: #{_lambda_.32} parent=0 // pred_check
    _
  $region39: #{_lambda_.32} parent=0 // pred_check_branch
    %36 = sbr.rel (0) target = $region41
  $region40: #{_lambda_.32} parent=0 // pred_region
    _
  $region41: #{_lambda_.32} parent=0 // pred_fallthru
    _
  // Predicated region
  $region42: #{_lambda_.32} parent=0 // pred_check
    _
  $region43: #{_lambda_.32} parent=0 // pred_check_branch
    %38 = sbr.rel (0) target = $region45
  $region44: #{_lambda_.32} parent=0 // pred_region
    _
  $region45: #{_lambda_.32} parent=0 // pred_fallthru
    _
  // Predicated region
  $region46: #{_lambda_.32} parent=0 // pred_check
    _
  $region47: #{_lambda_.32} parent=0 // pred_check_branch
    %40 = sbr.rel (0) target = $region49
  $region48: #{_lambda_.32} parent=0 // pred_region
    _
  $region49: #{_lambda_.32} parent=0 // pred_fallthru
    _
  %v41 = vld [vmem:[%s0] sm:$0xf]
  %v42 = vld [vmem:[%s0 + $0x4] sm:$0xf]
  %v43 = vld [vmem:[%s9] sm:$0xf]
  %v44 = vld [vmem:[%s9 + $0x4] sm:$0xf]
  %v45 = vld [vmem:[%s9 + $0x8] sm:$0xf]
  %v46 = vld [vmem:[%s9 + $0xc] sm:$0xf]
  %v47 = vld [vmem:[%s9 + $0x10] sm:$0xf]
  %v48 = vld [vmem:[%s9 + $0x14] sm:$0xf]
  %v49 = vld [vmem:[%s9 + $0x18] sm:$0xf]
  %v50 = vld [vmem:[%s9 + $0x1c] sm:$0xf]
  %v51 = vld [vmem:[%s9 + $0x20] sm:$0xf]
  %v52 = vld [vmem:[%s9 + $0x24] sm:$0xf]
  %v53 = vld [vmem:[%s9 + $0x28] sm:$0xf]
  %v54 = vld [vmem:[%s9 + $0x2c] sm:$0xf]
  %v55 = vld [vmem:[%s9 + $0x30] sm:$0xf]
  %v56 = vld [vmem:[%s9 + $0x34] sm:$0xf]
  %v57 = vld [vmem:[%s9 + $0x38] sm:$0xf]
  %v58 = vld [vmem:[%s9 + $0x3c] sm:$0xf]
  %v59 = vld [vmem:[%s1] sm:$0xf]
  %v60 = vld [vmem:[%s1 + $0x4] sm:$0xf]
  %s61 = scalar_lea.vmem %s9, 64
  %v62 = vld [vmem:[%s61] sm:$0xf]
  %v63 = vld [vmem:[%s61 + $0x4] sm:$0xf]
  %v64 = vld [vmem:[%s61 + $0x8] sm:$0xf]
  %v65 = vld [vmem:[%s61 + $0xc] sm:$0xf]
  %v66 = vld [vmem:[%s61 + $0x10] sm:$0xf]
  %v67 = vld [vmem:[%s61 + $0x14] sm:$0xf]
  %v68 = vld [vmem:[%s61 + $0x18] sm:$0xf]
  %v69 = vld [vmem:[%s61 + $0x1c] sm:$0xf]
  %v70 = vld [vmem:[%s61 + $0x20] sm:$0xf]
  %v71 = vld [vmem:[%s61 + $0x24] sm:$0xf]
  %v72 = vld [vmem:[%s61 + $0x28] sm:$0xf]
  %v73 = vld [vmem:[%s61 + $0x2c] sm:$0xf]
  %v74 = vld [vmem:[%s61 + $0x30] sm:$0xf]
  %v75 = vld [vmem:[%s61 + $0x34] sm:$0xf]
  %v76 = vld [vmem:[%s61 + $0x38] sm:$0xf]
  %v77 = vld [vmem:[%s61 + $0x3c] sm:$0xf]
  %v80 = vunpack.c.l.b16 %v59
  %v81 = vunpack.c.l.b16 %v60
  %v82 = vpack.c.b16 %v81, %v80
  %v100 = vunpack.c.l.b16 %v62
  %v101 = vunpack.c.l.b16 %v63
  %v102 = vunpack.c.l.b16 %v64
  %v103 = vunpack.c.l.b16 %v65
  %v104 = vunpack.c.l.b16 %v66
  %v105 = vunpack.c.l.b16 %v67
  %v106 = vunpack.c.l.b16 %v68
  %v107 = vunpack.c.l.b16 %v69
  %v108 = vunpack.c.l.b16 %v70
  %v109 = vunpack.c.l.b16 %v71
  %v110 = vunpack.c.l.b16 %v72
  %v111 = vunpack.c.l.b16 %v73
  %v112 = vunpack.c.l.b16 %v74
  %v113 = vunpack.c.l.b16 %v75
  %v114 = vunpack.c.l.b16 %v76
  %v115 = vunpack.c.l.b16 %v77
  %v116 = vpack.c.b16 %v101, %v100
  %v117 = vpack.c.b16 %v103, %v102
  %v118 = vpack.c.b16 %v105, %v104
  %v119 = vpack.c.b16 %v107, %v106
  %v120 = vpack.c.b16 %v109, %v108
  %v121 = vpack.c.b16 %v111, %v110
  %v122 = vpack.c.b16 %v113, %v112
  %v123 = vpack.c.b16 %v115, %v114
  %132 = vmatpush.bf16.msra.mxu0 %v123
  %133 = vmatpush.bf16.msra.mxu0 %v122
  %134 = vmatpush.bf16.msra.mxu0 %v121
  %135 = vmatpush.bf16.msra.mxu0 %v120
  %136 = vmatpush.bf16.msra.mxu0 %v119
  %137 = vmatpush.bf16.msra.mxu0 %v118
  %138 = vmatpush.bf16.msra.mxu0 %v117
  %139 = vmatpush.bf16.msra.mxu0 %v116
  %140 = vmatmul.bf16.gmra.mxu0 %v82
  %v141 = vpop.f32.mrf.mxu0
  %v142 = vadd.f32 0.0, %v141
  %v143 = vpop.f32.mrf.mxu0
  %v144 = vadd.f32 0.0, %v143
  %145 = vdwg.mxu0
  %v148 = vunpack.c.l.b16 %v41
  %v149 = vunpack.c.l.b16 %v42
  %v150 = vpack.c.b16 %v149, %v148
  %v168 = vunpack.c.l.b16 %v43
  %v169 = vunpack.c.l.b16 %v44
  %v170 = vunpack.c.l.b16 %v45
  %v171 = vunpack.c.l.b16 %v46
  %v172 = vunpack.c.l.b16 %v47
  %v173 = vunpack.c.l.b16 %v48
  %v174 = vunpack.c.l.b16 %v49
  %v175 = vunpack.c.l.b16 %v50
  %v176 = vunpack.c.l.b16 %v51
  %v177 = vunpack.c.l.b16 %v52
  %v178 = vunpack.c.l.b16 %v53
  %v179 = vunpack.c.l.b16 %v54
  %v180 = vunpack.c.l.b16 %v55
  %v181 = vunpack.c.l.b16 %v56
  %v182 = vunpack.c.l.b16 %v57
  %v183 = vunpack.c.l.b16 %v58
  %v184 = vpack.c.b16 %v169, %v168
  %v185 = vpack.c.b16 %v171, %v170
  %v186 = vpack.c.b16 %v173, %v172
  %v187 = vpack.c.b16 %v175, %v174
  %v188 = vpack.c.b16 %v177, %v176
  %v189 = vpack.c.b16 %v179, %v178
  %v190 = vpack.c.b16 %v181, %v180
  %v191 = vpack.c.b16 %v183, %v182
  %200 = vmatpush.bf16.msra.mxu0 %v191
  %201 = vmatpush.bf16.msra.mxu0 %v190
  %202 = vmatpush.bf16.msra.mxu0 %v189
  %203 = vmatpush.bf16.msra.mxu0 %v188
  %204 = vmatpush.bf16.msra.mxu0 %v187
  %205 = vmatpush.bf16.msra.mxu0 %v186
  %206 = vmatpush.bf16.msra.mxu0 %v185
  %207 = vmatpush.bf16.msra.mxu0 %v184
  %208 = vmatmul.bf16.gmra.mxu0 %v150
  %v209 = vpop.f32.mrf.mxu0
  %v210 = vadd.f32 %v142, %v209
  %v211 = vpop.f32.mrf.mxu0
  %v212 = vadd.f32 %v144, %v211
  %213 = vdwg.mxu0
  %v214 = vld [vmem:[%s2] sm:$0xf]
  %v215 = vld [vmem:[%s2 + $0x4] sm:$0xf]
  %s216 = scalar_lea.vmem %s9, 128
  %v217 = vld [vmem:[%s216] sm:$0xf]
  %v218 = vld [vmem:[%s216 + $0x4] sm:$0xf]
  %v219 = vld [vmem:[%s216 + $0x8] sm:$0xf]
  %v220 = vld [vmem:[%s216 + $0xc] sm:$0xf]
  %v221 = vld [vmem:[%s216 + $0x10] sm:$0xf]
  %v222 = vld [vmem:[%s216 + $0x14] sm:$0xf]
  %v223 = vld [vmem:[%s216 + $0x18] sm:$0xf]
  %v224 = vld [vmem:[%s216 + $0x1c] sm:$0xf]
  %v225 = vld [vmem:[%s216 + $0x20] sm:$0xf]
  %v226 = vld [vmem:[%s216 + $0x24] sm:$0xf]
  %v227 = vld [vmem:[%s216 + $0x28] sm:$0xf]
  %v228 = vld [vmem:[%s216 + $0x2c] sm:$0xf]
  %v229 = vld [vmem:[%s216 + $0x30] sm:$0xf]
  %v230 = vld [vmem:[%s216 + $0x34] sm:$0xf]
  %v231 = vld [vmem:[%s216 + $0x38] sm:$0xf]
  %v232 = vld [vmem:[%s216 + $0x3c] sm:$0xf]
  %v235 = vunpack.c.l.b16 %v214
  %v236 = vunpack.c.l.b16 %v215
  %v237 = vpack.c.b16 %v236, %v235
  %v255 = vunpack.c.l.b16 %v217
  %v256 = vunpack.c.l.b16 %v218
  %v257 = vunpack.c.l.b16 %v219
  %v258 = vunpack.c.l.b16 %v220
  %v259 = vunpack.c.l.b16 %v221
  %v260 = vunpack.c.l.b16 %v222
  %v261 = vunpack.c.l.b16 %v223
  %v262 = vunpack.c.l.b16 %v224
  %v263 = vunpack.c.l.b16 %v225
  %v264 = vunpack.c.l.b16 %v226
  %v265 = vunpack.c.l.b16 %v227
  %v266 = vunpack.c.l.b16 %v228
  %v267 = vunpack.c.l.b16 %v229
  %v268 = vunpack.c.l.b16 %v230
  %v269 = vunpack.c.l.b16 %v231
  %v270 = vunpack.c.l.b16 %v232
  %v271 = vpack.c.b16 %v256, %v255
  %v272 = vpack.c.b16 %v258, %v257
  %v273 = vpack.c.b16 %v260, %v259
  %v274 = vpack.c.b16 %v262, %v261
  %v275 = vpack.c.b16 %v264, %v263
  %v276 = vpack.c.b16 %v266, %v265
  %v277 = vpack.c.b16 %v268, %v267
  %v278 = vpack.c.b16 %v270, %v269
  %287 = vmatpush.bf16.msra.mxu0 %v278
  %288 = vmatpush.bf16.msra.mxu0 %v277
  %289 = vmatpush.bf16.msra.mxu0 %v276
  %290 = vmatpush.bf16.msra.mxu0 %v275
  %291 = vmatpush.bf16.msra.mxu0 %v274
  %292 = vmatpush.bf16.msra.mxu0 %v273
  %293 = vmatpush.bf16.msra.mxu0 %v272
  %294 = vmatpush.bf16.msra.mxu0 %v271
  %295 = vmatmul.bf16.gmra.mxu0 %v237
  %v296 = vpop.f32.mrf.mxu0
  %v297 = vadd.f32 0.0, %v296
  %v298 = vpop.f32.mrf.mxu0
  %v299 = vadd.f32 0.0, %v298
  %300 = vdwg.mxu0
  %v301 = vadd.f32 %v210, %v297
  %v302 = vadd.f32 %v212, %v299
  %v303 = vld [vmem:[%s3] sm:$0xf]
  %v304 = vld [vmem:[%s3 + $0x4] sm:$0xf]
  %s305 = scalar_lea.vmem %s9, 192
  %v306 = vld [vmem:[%s305] sm:$0xf]
  %v307 = vld [vmem:[%s305 + $0x4] sm:$0xf]
  %v308 = vld [vmem:[%s305 + $0x8] sm:$0xf]
  %v309 = vld [vmem:[%s305 + $0xc] sm:$0xf]
  %v310 = vld [vmem:[%s305 + $0x10] sm:$0xf]
  %v311 = vld [vmem:[%s305 + $0x14] sm:$0xf]
  %v312 = vld [vmem:[%s305 + $0x18] sm:$0xf]
  %v313 = vld [vmem:[%s305 + $0x1c] sm:$0xf]
  %v314 = vld [vmem:[%s305 + $0x20] sm:$0xf]
  %v315 = vld [vmem:[%s305 + $0x24] sm:$0xf]
  %v316 = vld [vmem:[%s305 + $0x28] sm:$0xf]
  %v317 = vld [vmem:[%s305 + $0x2c] sm:$0xf]
  %v318 = vld [vmem:[%s305 + $0x30] sm:$0xf]
  %v319 = vld [vmem:[%s305 + $0x34] sm:$0xf]
  %v320 = vld [vmem:[%s305 + $0x38] sm:$0xf]
  %v321 = vld [vmem:[%s305 + $0x3c] sm:$0xf]
  %v324 = vunpack.c.l.b16 %v303
  %v325 = vunpack.c.l.b16 %v304
  %v326 = vpack.c.b16 %v325, %v324
  %v344 = vunpack.c.l.b16 %v306
  %v345 = vunpack.c.l.b16 %v307
  %v346 = vunpack.c.l.b16 %v308
  %v347 = vunpack.c.l.b16 %v309
  %v348 = vunpack.c.l.b16 %v310
  %v349 = vunpack.c.l.b16 %v311
  %v350 = vunpack.c.l.b16 %v312
  %v351 = vunpack.c.l.b16 %v313
  %v352 = vunpack.c.l.b16 %v314
  %v353 = vunpack.c.l.b16 %v315
  %v354 = vunpack.c.l.b16 %v316
  %v355 = vunpack.c.l.b16 %v317
  %v356 = vunpack.c.l.b16 %v318
  %v357 = vunpack.c.l.b16 %v319
  %v358 = vunpack.c.l.b16 %v320
  %v359 = vunpack.c.l.b16 %v321
  %v360 = vpack.c.b16 %v345, %v344
  %v361 = vpack.c.b16 %v347, %v346
  %v362 = vpack.c.b16 %v349, %v348
  %v363 = vpack.c.b16 %v351, %v350
  %v364 = vpack.c.b16 %v353, %v352
  %v365 = vpack.c.b16 %v355, %v354
  %v366 = vpack.c.b16 %v357, %v356
  %v367 = vpack.c.b16 %v359, %v358
  %376 = vmatpush.bf16.msra.mxu0 %v367
  %377 = vmatpush.bf16.msra.mxu0 %v366
  %378 = vmatpush.bf16.msra.mxu0 %v365
  %379 = vmatpush.bf16.msra.mxu0 %v364
  %380 = vmatpush.bf16.msra.mxu0 %v363
  %381 = vmatpush.bf16.msra.mxu0 %v362
  %382 = vmatpush.bf16.msra.mxu0 %v361
  %383 = vmatpush.bf16.msra.mxu0 %v360
  %384 = vmatmul.bf16.gmra.mxu0 %v326
  %v385 = vpop.f32.mrf.mxu0
  %v386 = vadd.f32 0.0, %v385
  %v387 = vpop.f32.mrf.mxu0
  %v388 = vadd.f32 0.0, %v387
  %389 = vdwg.mxu0
  %v390 = vadd.f32 %v301, %v386
  %v391 = vadd.f32 %v302, %v388
  %v392 = vld [vmem:[%s4] sm:$0xf]
  %v393 = vld [vmem:[%s4 + $0x4] sm:$0xf]
  %s394 = scalar_lea.vmem %s9, 256
  %v395 = vld [vmem:[%s394] sm:$0xf]
  %v396 = vld [vmem:[%s394 + $0x4] sm:$0xf]
  %v397 = vld [vmem:[%s394 + $0x8] sm:$0xf]
  %v398 = vld [vmem:[%s394 + $0xc] sm:$0xf]
  %v399 = vld [vmem:[%s394 + $0x10] sm:$0xf]
  %v400 = vld [vmem:[%s394 + $0x14] sm:$0xf]
  %v401 = vld [vmem:[%s394 + $0x18] sm:$0xf]
  %v402 = vld [vmem:[%s394 + $0x1c] sm:$0xf]
  %v403 = vld [vmem:[%s394 + $0x20] sm:$0xf]
  %v404 = vld [vmem:[%s394 + $0x24] sm:$0xf]
  %v405 = vld [vmem:[%s394 + $0x28] sm:$0xf]
  %v406 = vld [vmem:[%s394 + $0x2c] sm:$0xf]
  %v407 = vld [vmem:[%s394 + $0x30] sm:$0xf]
  %v408 = vld [vmem:[%s394 + $0x34] sm:$0xf]
  %v409 = vld [vmem:[%s394 + $0x38] sm:$0xf]
  %v410 = vld [vmem:[%s394 + $0x3c] sm:$0xf]
  %v413 = vunpack.c.l.b16 %v392
  %v414 = vunpack.c.l.b16 %v393
  %v415 = vpack.c.b16 %v414, %v413
  %v433 = vunpack.c.l.b16 %v395
  %v434 = vunpack.c.l.b16 %v396
  %v435 = vunpack.c.l.b16 %v397
  %v436 = vunpack.c.l.b16 %v398
  %v437 = vunpack.c.l.b16 %v399
  %v438 = vunpack.c.l.b16 %v400
  %v439 = vunpack.c.l.b16 %v401
  %v440 = vunpack.c.l.b16 %v402
  %v441 = vunpack.c.l.b16 %v403
  %v442 = vunpack.c.l.b16 %v404
  %v443 = vunpack.c.l.b16 %v405
  %v444 = vunpack.c.l.b16 %v406
  %v445 = vunpack.c.l.b16 %v407
  %v446 = vunpack.c.l.b16 %v408
  %v447 = vunpack.c.l.b16 %v409
  %v448 = vunpack.c.l.b16 %v410
  %v449 = vpack.c.b16 %v434, %v433
  %v450 = vpack.c.b16 %v436, %v435
  %v451 = vpack.c.b16 %v438, %v437
  %v452 = vpack.c.b16 %v440, %v439
  %v453 = vpack.c.b16 %v442, %v441
  %v454 = vpack.c.b16 %v444, %v443
  %v455 = vpack.c.b16 %v446, %v445
  %v456 = vpack.c.b16 %v448, %v447
  %465 = vmatpush.bf16.msra.mxu0 %v456
  %466 = vmatpush.bf16.msra.mxu0 %v455
  %467 = vmatpush.bf16.msra.mxu0 %v454
  %468 = vmatpush.bf16.msra.mxu0 %v453
  %469 = vmatpush.bf16.msra.mxu0 %v452
  %470 = vmatpush.bf16.msra.mxu0 %v451
  %471 = vmatpush.bf16.msra.mxu0 %v450
  %472 = vmatpush.bf16.msra.mxu0 %v449
  %473 = vmatmul.bf16.gmra.mxu0 %v415
  %v474 = vpop.f32.mrf.mxu0
  %v475 = vadd.f32 0.0, %v474
  %v476 = vpop.f32.mrf.mxu0
  %v477 = vadd.f32 0.0, %v476
  %478 = vdwg.mxu0
  %v479 = vadd.f32 %v390, %v475
  %v480 = vadd.f32 %v391, %v477
  %v481 = vld [vmem:[%s5] sm:$0xf]
  %v482 = vld [vmem:[%s5 + $0x4] sm:$0xf]
  %s483 = scalar_lea.vmem %s9, 320
  %v484 = vld [vmem:[%s483] sm:$0xf]
  %v485 = vld [vmem:[%s483 + $0x4] sm:$0xf]
  %v486 = vld [vmem:[%s483 + $0x8] sm:$0xf]
  %v487 = vld [vmem:[%s483 + $0xc] sm:$0xf]
  %v488 = vld [vmem:[%s483 + $0x10] sm:$0xf]
  %v489 = vld [vmem:[%s483 + $0x14] sm:$0xf]
  %v490 = vld [vmem:[%s483 + $0x18] sm:$0xf]
  %v491 = vld [vmem:[%s483 + $0x1c] sm:$0xf]
  %v492 = vld [vmem:[%s483 + $0x20] sm:$0xf]
  %v493 = vld [vmem:[%s483 + $0x24] sm:$0xf]
  %v494 = vld [vmem:[%s483 + $0x28] sm:$0xf]
  %v495 = vld [vmem:[%s483 + $0x2c] sm:$0xf]
  %v496 = vld [vmem:[%s483 + $0x30] sm:$0xf]
  %v497 = vld [vmem:[%s483 + $0x34] sm:$0xf]
  %v498 = vld [vmem:[%s483 + $0x38] sm:$0xf]
  %v499 = vld [vmem:[%s483 + $0x3c] sm:$0xf]
  %v502 = vunpack.c.l.b16 %v481
  %v503 = vunpack.c.l.b16 %v482
  %v504 = vpack.c.b16 %v503, %v502
  %v522 = vunpack.c.l.b16 %v484
  %v523 = vunpack.c.l.b16 %v485
  %v524 = vunpack.c.l.b16 %v486
  %v525 = vunpack.c.l.b16 %v487
  %v526 = vunpack.c.l.b16 %v488
  %v527 = vunpack.c.l.b16 %v489
  %v528 = vunpack.c.l.b16 %v490
  %v529 = vunpack.c.l.b16 %v491
  %v530 = vunpack.c.l.b16 %v492
  %v531 = vunpack.c.l.b16 %v493
  %v532 = vunpack.c.l.b16 %v494
  %v533 = vunpack.c.l.b16 %v495
  %v534 = vunpack.c.l.b16 %v496
  %v535 = vunpack.c.l.b16 %v497
  %v536 = vunpack.c.l.b16 %v498
  %v537 = vunpack.c.l.b16 %v499
  %v538 = vpack.c.b16 %v523, %v522
  %v539 = vpack.c.b16 %v525, %v524
  %v540 = vpack.c.b16 %v527, %v526
  %v541 = vpack.c.b16 %v529, %v528
  %v542 = vpack.c.b16 %v531, %v530
  %v543 = vpack.c.b16 %v533, %v532
  %v544 = vpack.c.b16 %v535, %v534
  %v545 = vpack.c.b16 %v537, %v536
  %554 = vmatpush.bf16.msra.mxu0 %v545
  %555 = vmatpush.bf16.msra.mxu0 %v544
  %556 = vmatpush.bf16.msra.mxu0 %v543
  %557 = vmatpush.bf16.msra.mxu0 %v542
  %558 = vmatpush.bf16.msra.mxu0 %v541
  %559 = vmatpush.bf16.msra.mxu0 %v540
  %560 = vmatpush.bf16.msra.mxu0 %v539
  %561 = vmatpush.bf16.msra.mxu0 %v538
  %562 = vmatmul.bf16.gmra.mxu0 %v504
  %v563 = vpop.f32.mrf.mxu0
  %v564 = vadd.f32 0.0, %v563
  %v565 = vpop.f32.mrf.mxu0
  %v566 = vadd.f32 0.0, %v565
  %567 = vdwg.mxu0
  %v568 = vadd.f32 %v479, %v564
  %v569 = vadd.f32 %v480, %v566
  %v570 = vld [vmem:[%s6] sm:$0xf]
  %v571 = vld [vmem:[%s6 + $0x4] sm:$0xf]
  %s572 = scalar_lea.vmem %s9, 384
  %v573 = vld [vmem:[%s572] sm:$0xf]
  %v574 = vld [vmem:[%s572 + $0x4] sm:$0xf]
  %v575 = vld [vmem:[%s572 + $0x8] sm:$0xf]
  %v576 = vld [vmem:[%s572 + $0xc] sm:$0xf]
  %v577 = vld [vmem:[%s572 + $0x10] sm:$0xf]
  %v578 = vld [vmem:[%s572 + $0x14] sm:$0xf]
  %v579 = vld [vmem:[%s572 + $0x18] sm:$0xf]
  %v580 = vld [vmem:[%s572 + $0x1c] sm:$0xf]
  %v581 = vld [vmem:[%s572 + $0x20] sm:$0xf]
  %v582 = vld [vmem:[%s572 + $0x24] sm:$0xf]
  %v583 = vld [vmem:[%s572 + $0x28] sm:$0xf]
  %v584 = vld [vmem:[%s572 + $0x2c] sm:$0xf]
  %v585 = vld [vmem:[%s572 + $0x30] sm:$0xf]
  %v586 = vld [vmem:[%s572 + $0x34] sm:$0xf]
  %v587 = vld [vmem:[%s572 + $0x38] sm:$0xf]
  %v588 = vld [vmem:[%s572 + $0x3c] sm:$0xf]
  %v591 = vunpack.c.l.b16 %v570
  %v592 = vunpack.c.l.b16 %v571
  %v593 = vpack.c.b16 %v592, %v591
  %v611 = vunpack.c.l.b16 %v573
  %v612 = vunpack.c.l.b16 %v574
  %v613 = vunpack.c.l.b16 %v575
  %v614 = vunpack.c.l.b16 %v576
  %v615 = vunpack.c.l.b16 %v577
  %v616 = vunpack.c.l.b16 %v578
  %v617 = vunpack.c.l.b16 %v579
  %v618 = vunpack.c.l.b16 %v580
  %v619 = vunpack.c.l.b16 %v581
  %v620 = vunpack.c.l.b16 %v582
  %v621 = vunpack.c.l.b16 %v583
  %v622 = vunpack.c.l.b16 %v584
  %v623 = vunpack.c.l.b16 %v585
  %v624 = vunpack.c.l.b16 %v586
  %v625 = vunpack.c.l.b16 %v587
  %v626 = vunpack.c.l.b16 %v588
  %v627 = vpack.c.b16 %v612, %v611
  %v628 = vpack.c.b16 %v614, %v613
  %v629 = vpack.c.b16 %v616, %v615
  %v630 = vpack.c.b16 %v618, %v617
  %v631 = vpack.c.b16 %v620, %v619
  %v632 = vpack.c.b16 %v622, %v621
  %v633 = vpack.c.b16 %v624, %v623
  %v634 = vpack.c.b16 %v626, %v625
  %643 = vmatpush.bf16.msra.mxu0 %v634
  %644 = vmatpush.bf16.msra.mxu0 %v633
  %645 = vmatpush.bf16.msra.mxu0 %v632
  %646 = vmatpush.bf16.msra.mxu0 %v631
  %647 = vmatpush.bf16.msra.mxu0 %v630
  %648 = vmatpush.bf16.msra.mxu0 %v629
  %649 = vmatpush.bf16.msra.mxu0 %v628
  %650 = vmatpush.bf16.msra.mxu0 %v627
  %651 = vmatmul.bf16.gmra.mxu0 %v593
  %v652 = vpop.f32.mrf.mxu0
  %v653 = vadd.f32 0.0, %v652
  %v654 = vpop.f32.mrf.mxu0
  %v655 = vadd.f32 0.0, %v654
  %656 = vdwg.mxu0
  %v657 = vadd.f32 %v568, %v653
  %v658 = vadd.f32 %v569, %v655
  %v659 = vld [vmem:[%s7] sm:$0xf]
  %v660 = vld [vmem:[%s7 + $0x4] sm:$0xf]
  %s661 = scalar_lea.vmem %s9, 448
  %v662 = vld [vmem:[%s661] sm:$0xf]
  %v663 = vld [vmem:[%s661 + $0x4] sm:$0xf]
  %v664 = vld [vmem:[%s661 + $0x8] sm:$0xf]
  %v665 = vld [vmem:[%s661 + $0xc] sm:$0xf]
  %v666 = vld [vmem:[%s661 + $0x10] sm:$0xf]
  %v667 = vld [vmem:[%s661 + $0x14] sm:$0xf]
  %v668 = vld [vmem:[%s661 + $0x18] sm:$0xf]
  %v669 = vld [vmem:[%s661 + $0x1c] sm:$0xf]
  %v670 = vld [vmem:[%s661 + $0x20] sm:$0xf]
  %v671 = vld [vmem:[%s661 + $0x24] sm:$0xf]
  %v672 = vld [vmem:[%s661 + $0x28] sm:$0xf]
  %v673 = vld [vmem:[%s661 + $0x2c] sm:$0xf]
  %v674 = vld [vmem:[%s661 + $0x30] sm:$0xf]
  %v675 = vld [vmem:[%s661 + $0x34] sm:$0xf]
  %v676 = vld [vmem:[%s661 + $0x38] sm:$0xf]
  %v677 = vld [vmem:[%s661 + $0x3c] sm:$0xf]
  %v680 = vunpack.c.l.b16 %v659
  %v681 = vunpack.c.l.b16 %v660
  %v682 = vpack.c.b16 %v681, %v680
  %v700 = vunpack.c.l.b16 %v662
  %v701 = vunpack.c.l.b16 %v663
  %v702 = vunpack.c.l.b16 %v664
  %v703 = vunpack.c.l.b16 %v665
  %v704 = vunpack.c.l.b16 %v666
  %v705 = vunpack.c.l.b16 %v667
  %v706 = vunpack.c.l.b16 %v668
  %v707 = vunpack.c.l.b16 %v669
  %v708 = vunpack.c.l.b16 %v670
  %v709 = vunpack.c.l.b16 %v671
  %v710 = vunpack.c.l.b16 %v672
  %v711 = vunpack.c.l.b16 %v673
  %v712 = vunpack.c.l.b16 %v674
  %v713 = vunpack.c.l.b16 %v675
  %v714 = vunpack.c.l.b16 %v676
  %v715 = vunpack.c.l.b16 %v677
  %v716 = vpack.c.b16 %v701, %v700
  %v717 = vpack.c.b16 %v703, %v702
  %v718 = vpack.c.b16 %v705, %v704
  %v719 = vpack.c.b16 %v707, %v706
  %v720 = vpack.c.b16 %v709, %v708
  %v721 = vpack.c.b16 %v711, %v710
  %v722 = vpack.c.b16 %v713, %v712
  %v723 = vpack.c.b16 %v715, %v714
  %732 = vmatpush.bf16.msra.mxu0 %v723
  %733 = vmatpush.bf16.msra.mxu0 %v722
  %734 = vmatpush.bf16.msra.mxu0 %v721
  %735 = vmatpush.bf16.msra.mxu0 %v720
  %736 = vmatpush.bf16.msra.mxu0 %v719
  %737 = vmatpush.bf16.msra.mxu0 %v718
  %738 = vmatpush.bf16.msra.mxu0 %v717
  %739 = vmatpush.bf16.msra.mxu0 %v716
  %740 = vmatmul.bf16.gmra.mxu0 %v682
  %v741 = vpop.f32.mrf.mxu0
  %v742 = vadd.f32 0.0, %v741
  %v743 = vpop.f32.mrf.mxu0
  %v744 = vadd.f32 0.0, %v743
  %745 = vdwg.mxu0
  %v746 = vadd.f32 %v657, %v742
  %v747 = vadd.f32 %v658, %v744
  %v748 = vld [vmem:[%s8] sm:$0xf]
  %v749 = vld [vmem:[%s8 + $0x4] sm:$0xf]
  %s750 = scalar_lea.vmem %s9, 512
  %v751 = vld [vmem:[%s750] sm:$0xf]
  %v752 = vld [vmem:[%s750 + $0x4] sm:$0xf]
  %v753 = vld [vmem:[%s750 + $0x8] sm:$0xf]
  %v754 = vld [vmem:[%s750 + $0xc] sm:$0xf]
  %v755 = vld [vmem:[%s750 + $0x10] sm:$0xf]
  %v756 = vld [vmem:[%s750 + $0x14] sm:$0xf]
  %v757 = vld [vmem:[%s750 + $0x18] sm:$0xf]
  %v758 = vld [vmem:[%s750 + $0x1c] sm:$0xf]
  %v759 = vld [vmem:[%s750 + $0x20] sm:$0xf]
  %v760 = vld [vmem:[%s750 + $0x24] sm:$0xf]
  %v761 = vld [vmem:[%s750 + $0x28] sm:$0xf]
  %v762 = vld [vmem:[%s750 + $0x2c] sm:$0xf]
  %v763 = vld [vmem:[%s750 + $0x30] sm:$0xf]
  %v764 = vld [vmem:[%s750 + $0x34] sm:$0xf]
  %v765 = vld [vmem:[%s750 + $0x38] sm:$0xf]
  %v766 = vld [vmem:[%s750 + $0x3c] sm:$0xf]
  %v769 = vunpack.c.l.b16 %v748
  %v770 = vunpack.c.l.b16 %v749
  %v771 = vpack.c.b16 %v770, %v769
  %v789 = vunpack.c.l.b16 %v751
  %v790 = vunpack.c.l.b16 %v752
  %v791 = vunpack.c.l.b16 %v753
  %v792 = vunpack.c.l.b16 %v754
  %v793 = vunpack.c.l.b16 %v755
  %v794 = vunpack.c.l.b16 %v756
  %v795 = vunpack.c.l.b16 %v757
  %v796 = vunpack.c.l.b16 %v758
  %v797 = vunpack.c.l.b16 %v759
  %v798 = vunpack.c.l.b16 %v760
  %v799 = vunpack.c.l.b16 %v761
  %v800 = vunpack.c.l.b16 %v762
  %v801 = vunpack.c.l.b16 %v763
  %v802 = vunpack.c.l.b16 %v764
  %v803 = vunpack.c.l.b16 %v765
  %v804 = vunpack.c.l.b16 %v766
  %v805 = vpack.c.b16 %v790, %v789
  %v806 = vpack.c.b16 %v792, %v791
  %v807 = vpack.c.b16 %v794, %v793
  %v808 = vpack.c.b16 %v796, %v795
  %v809 = vpack.c.b16 %v798, %v797
  %v810 = vpack.c.b16 %v800, %v799
  %v811 = vpack.c.b16 %v802, %v801
  %v812 = vpack.c.b16 %v804, %v803
  %821 = vmatpush.bf16.msra.mxu0 %v812
  %822 = vmatpush.bf16.msra.mxu0 %v811
  %823 = vmatpush.bf16.msra.mxu0 %v810
  %824 = vmatpush.bf16.msra.mxu0 %v809
  %825 = vmatpush.bf16.msra.mxu0 %v808
  %826 = vmatpush.bf16.msra.mxu0 %v807
  %827 = vmatpush.bf16.msra.mxu0 %v806
  %828 = vmatpush.bf16.msra.mxu0 %v805
  %829 = vmatmul.bf16.gmra.mxu0 %v771
  %v830 = vpop.f32.mrf.mxu0
  %v831 = vadd.f32 0.0, %v830
  %v832 = vpop.f32.mrf.mxu0
  %v833 = vadd.f32 0.0, %v832
  %834 = vdwg.mxu0
  %v835 = vadd.f32 %v746, %v831
  %v836 = vadd.f32 %v747, %v833
  %v837 = vld [vmem:[%s10] sm:$0x1]
  %v839 = vperm.slane %v837, 0
  %v841 = vmul.f32 %v835, %v839
  %v842 = vmul.f32 %v836, %v839
  %v843 = vld [vmem:[%s11] sm:$0x1]
  %v845 = vperm.slane %v843, 0
  %v847 = vadd.f32 %v841, %v845
  %v848 = vadd.f32 %v842, %v845
  %849 = vst [vmem:[%s12] sm:$0xff] %v847
  %850 = vst [vmem:[%s12 + $0x8] sm:$0xff] %v848
  // Predicated region
  $region50: #{_lambda_.32} parent=0 // pred_check
    _
  $region51: #{_lambda_.32} parent=0 // pred_check_branch
    %852 = sbr.rel (0) target = $region53
  $region52: #{_lambda_.32} parent=0 // pred_region
    _
  $region53: #{_lambda_.32} parent=0 // pred_fallthru
    _
  // Predicated region
  $region54: #{_lambda_.32} parent=0 // pred_check
    _
  $region55: #{_lambda_.32} parent=0 // pred_check_branch
    %854 = sbr.rel (0) target = $region57
  $region56: #{_lambda_.32} parent=0 // pred_region
    _
  $region57: #{_lambda_.32} parent=0 // pred_fallthru
    _

// kernel: _lambda_.35
$region0: #{_lambda_.35}
  #allocation0 [shape = 'u32[]', space=smem, size = 0x4, offset = 0x4, fixed_abs, tag = 'smem constant byte address 0x4 - core index']
  #allocation1 [shape = 'u32[72,128]{1,0:T(1,128)}', space=vmem, size = 0x9000, scoped, tag = 'internal scratch']
  %s0 = inlined_call_operand.vmem [shape: f32[2,64], index: 0, kind: input, shape index: {}]
  %s1 = inlined_call_operand.vmem [shape: f32[64,10], index: 1, kind: input, shape index: {}]
  %s2 = inlined_call_operand.vmem [shape: f32[1,10], index: 2, kind: input, shape index: {}]
  %s3 = inlined_call_operand.hbm [shape: f32[2,10], index: 3, kind: output, shape index: {}]
  %s4 = sld [smem:[#allocation0]]
  $region22: #{_lambda_.35} parent=0
    _
  %s6 = ssub.s32 1, %s4
  %s7 = scalar_select 0, %s6, %s4
  $region1: #{_lambda_.35} parent=0
    #allocation2 [shape = 'u8[1024]{0}', space=vmem, size = 0x400, scoped, tag = 'output window, operand 0, single buffered']
    #allocation3 [shape = 's32[1]{0}', space=sflag, size = 0x4, scoped, tag = 'scoped memory for _lambda_.35']
    %8 = vsyncpa [#allocation3], 0
    // Predicated region
    $region2: #{_lambda_.35} parent=1 // pred_check
      _
    $region3: #{_lambda_.35} parent=1 // pred_check_branch
      %10 = sbr.rel (0) target = $region5
    $region4: #{_lambda_.35} parent=1 // pred_region
      _
    $region5: #{_lambda_.35} parent=1 // pred_fallthru
      _
    // Predicated region
    $region6: #{_lambda_.35} parent=1 // pred_check
      _
    $region7: #{_lambda_.35} parent=1 // pred_check_branch
      %12 = sbr.rel (0) target = $region9
    $region8: #{_lambda_.35} parent=1 // pred_region
      _
    $region9: #{_lambda_.35} parent=1 // pred_fallthru
      _
    // Predicated region
    $region10: #{_lambda_.35} parent=1 // pred_check
      _
    $region11: #{_lambda_.35} parent=1 // pred_check_branch
      %14 = sbr.rel (0) target = $region13
    $region12: #{_lambda_.35} parent=1 // pred_region
      _
    $region13: #{_lambda_.35} parent=1 // pred_fallthru
      _
    %v15 = vld [vmem:[%s0] sm:$0x3]
    %v16 = vld [vmem:[%s1] sm:$0xff]
    %v17 = vld [vmem:[%s1 + $0x8] sm:$0xff]
    %v18 = vld [vmem:[%s1 + $0x10] sm:$0xff]
    %v19 = vld [vmem:[%s1 + $0x18] sm:$0xff]
    %v20 = vld [vmem:[%s1 + $0x20] sm:$0xff]
    %v21 = vld [vmem:[%s1 + $0x28] sm:$0xff]
    %v22 = vld [vmem:[%s1 + $0x30] sm:$0xff]
    %v23 = vld [vmem:[%s1 + $0x38] sm:$0xff]
    %v24 = vld [vmem:[%s2] sm:$0x1]
    %v26 = vperm.slane %v24, 0
    %vm28 = vcmask 523264
    %v30 = vsel %vm28, %v15, 0
    %32 = vmatpush.msra.mxu0 0.0
    %33 = vmatpush.msra.mxu0 0.0
    %34 = vmatpush.msra.mxu0 0.0
    %35 = vmatpush.msra.mxu0 0.0
    %36 = vmatpush.msra.mxu0 0.0
    %37 = vmatpush.msra.mxu0 0.0
    %38 = vmatpush.msra.mxu0 0.0
    %39 = vmatpush.msra.mxu0 0.0
    %40 = vmatpush.msra.mxu0 %v23
    %41 = vmatpush.msra.mxu0 %v22
    %42 = vmatpush.msra.mxu0 %v21
    %43 = vmatpush.msra.mxu0 %v20
    %44 = vmatpush.msra.mxu0 %v19
    %45 = vmatpush.msra.mxu0 %v18
    %46 = vmatpush.msra.mxu0 %v17
    %47 = vmatpush.msra.mxu0 %v16
    %48 = vmatmul.f32.gmra.mxu0 %v30
    %v49 = vpop.f32.mrf.mxu0
    %v50 = vadd.f32 %v26, %v49
    %51 = vdwg.mxu0
    %vm52 = vcmask 74752
    %53 = vst.msk [vmem:[#allocation2] sm:$0x3] %vm52, %v50
    // Predicated region
    $region14: #{_lambda_.35} parent=1 // pred_check
      _
    $region15: #{_lambda_.35} parent=1 // pred_check_branch
      %55 = sbr.rel (0) target = $region17
    $region16: #{_lambda_.35} parent=1 // pred_region
      %57 = vsyncadd [#allocation3], 0
      %s59 = sshll.u32 [#allocation2], 4
      %s60 = int_to_ptr.vmem [resolvable:$true] %s59
      %s61 = sshll.u32 %s3, 4
      %s62 = int_to_ptr.hbm [resolvable:$true] %s61
      %64 = dma.vmem_to_hbm [thread:$0]  %s60, 32, %s62, [#allocation3]
    $region17: #{_lambda_.35} parent=1 // pred_fallthru
      _
    // Predicated region
    $region18: #{_lambda_.35} parent=1 // pred_check
      _
    $region19: #{_lambda_.35} parent=1 // pred_check_branch
      %66 = sbr.rel (0) target = $region21
    $region20: #{_lambda_.35} parent=1 // pred_region
      %68 = dma.done [#allocation3], 32
    $region21: #{_lambda_.35} parent=1 // pred_fallthru
      _
    %69 = vsyncpa [#allocation3], 1

</llo_original>
